<compile_context>
chip_gen: v6e
topology: v6e:2x2x1
jax: 0.10.0
libtpu: 0.0.40
codegen_flags: <defaults>
</compile_context>

<pallas_src>
import functools

import jax
import jax.numpy as jnp
from jax import lax
from jax.experimental import pallas as pl
from jax.experimental.pallas import tpu as pltpu


ACT_DTYPE = jnp.bfloat16       # HBM activations + MXU inputs
_BN_EPS = 1e-3
_DW_UNROLL_LIMIT = 32          # fully unroll the depthwise row loop if Ho <= this


# ----------------------------------------------------------------------------
# utils (mirrors the PyTorch helpers)
# ----------------------------------------------------------------------------
def _make_divisible(ch, divisor=8, min_ch=None):
    if min_ch is None:
        min_ch = divisor
    new_ch = max(min_ch, int(ch + divisor / 2) // divisor * divisor)
    if new_ch < 0.9 * ch:
        new_ch += divisor
    return new_ch


class InvertResidualConfig:
    def __init__(self, in_channels, kernel_size, expand_c, out_channels,
                 use_se, activation, stride, width_multi):
        self.in_channels = self.adjust_channel(in_channels, width_multi)
        self.out_channels = self.adjust_channel(out_channels, width_multi)
        self.kernel_size = kernel_size
        self.expand_c = self.adjust_channel(expand_c, width_multi)
        self.use_se = use_se
        self.use_hs = activation == "HS"
        self.stride = stride

    @staticmethod
    def adjust_channel(channels, width_multi):
        return _make_divisible(channels * width_multi, 8)


# ----------------------------------------------------------------------------
# activations (PyTorch semantics, evaluated in f32 inside kernels)
# ----------------------------------------------------------------------------
def _relu(x):
    return jnp.maximum(x, 0.0)


def _hardswish(x):
    return x * jnp.clip(x + 3.0, 0.0, 6.0) * (1.0 / 6.0)


def _hardsigmoid(x):
    return jnp.clip(x + 3.0, 0.0, 6.0) * (1.0 / 6.0)


def _identity(x):
    return x


_ACTS = {"relu": _relu, "hardswish": _hardswish, "identity": _identity}


def _round_up(x, m):
    return (x + m - 1) // m * m


def _const_spec(a):
    # whole array resident in VMEM; block index constant across the grid
    nd = a.ndim
    return pl.BlockSpec(a.shape, lambda b: (0,) * nd)


# ----------------------------------------------------------------------------
# gridded matmul kernel (stem im2col conv + last 1x1 conv)
# ----------------------------------------------------------------------------
def _matmul_act_kernel(x_ref, w_ref, b_ref, o_ref, *, act):
    y = jnp.dot(x_ref[...], w_ref[...], preferred_element_type=jnp.float32)
    y = _ACTS[act](y + b_ref[...])
    o_ref[...] = y.astype(o_ref.dtype)


def pallas_matmul_act(x, w, b, act, out_dtype, block_m=512):
    M, K = x.shape
    Nc = w.shape[1]
    tm = _round_up(M, 8) if M <= block_m else block_m
    Mp = _round_up(M, tm)
    if Mp != M:
        x = jnp.pad(x, ((0, Mp - M), (0, 0)))
    out = pl.pallas_call(
        functools.partial(_matmul_act_kernel, act=act),
        out_shape=jax.ShapeDtypeStruct((Mp, Nc), out_dtype),
        grid=(Mp // tm,),
        in_specs=[pl.BlockSpec((tm, K), lambda i: (i, 0)),
                  pl.BlockSpec((K, Nc), lambda i: (0, 0)),
                  pl.BlockSpec((1, Nc), lambda i: (0, 0))],
        out_specs=pl.BlockSpec((tm, Nc), lambda i: (i, 0)),
        compiler_params=pltpu.CompilerParams(
            dimension_semantics=("parallel",)),
    )(x, w, b)
    if Mp != M:
        out = out[:M]
    return out


# ----------------------------------------------------------------------------
# fused inverted-residual block kernel
#   expand 1x1 -> depthwise kxk (stride via spatial phases) -> SE -> project
#   1x1 (+ residual); expanded activation stays in VMEM scratch.
# ----------------------------------------------------------------------------
def _make_block_kernel(*, k, stride, Hph, Wph, Ho, Wo, act, has_expand,
                       use_se, use_res, use_row_loop):
    act_fn = _ACTS[act]
    S = Hph * Wph  # flattened padded spatial size of one phase

    def kernel(*refs):
        it = iter(refs)
        x_ref = next(it)
        if has_expand:
            mask_ref = next(it)
            we_ref = next(it)
            be_ref = next(it)
        wdw_ref = next(it)
        bdw_ref = next(it)
        if use_se:
            ws1_ref = next(it)
            bs1_ref = next(it)
            ws2_ref = next(it)
            bs2_ref = next(it)
        wp_ref = next(it)
        bp_ref = next(it)
        if use_res:
            res_ref = next(it)
        o_ref = next(it)
        e_scr = next(it)
        y_scr = next(it)

        cexp = e_scr.shape[-1]

        # -- 1x1 expand conv (+BN+act) over all padded positions, one matmul --
        if has_expand:
            e = jnp.dot(x_ref[0], we_ref[...],
                        preferred_element_type=jnp.float32)
            # mask zeroes the conv padding *after* bias/act so it behaves like
            # true zero-padding of the expanded activation (PyTorch semantics)
            e_scr[...] = act_fn(e + be_ref[...]) * mask_ref[...]
        else:
            # no expansion: padded input itself feeds the depthwise conv
            e_scr[...] = x_ref[0].astype(jnp.float32)

        # hoisted depthwise weights / bias (loaded once)
        wdw = [wdw_ref[t] for t in range(k * k)]     # each (1, cexp) f32
        bdw = bdw_ref[...]                           # (1, cexp) f32

        # -- depthwise kxk conv (+BN+act); stride folded into phase indexing --
        def dw_row(i):
            acc = jnp.zeros((Wo, cexp), jnp.float32)
            for kh in range(k):
                for kw in range(k):
                    p = (kh % stride) * stride + (kw % stride)
                    start = p * S + (i + kh // stride) * Wph + kw // stride
                    acc = acc + e_scr[pl.ds(start, Wo), :] * wdw[kh * k + kw]
            return act_fn(acc + bdw)

        if use_row_loop:
            def body(i, carry):
                y_scr[pl.ds(i * Wo, Wo), :] = dw_row(i)
                return carry
            lax.fori_loop(0, Ho, body, 0)
        else:
            # fully unrolled: every slice start is a static Python int
            for i in range(Ho):
                y_scr[i * Wo:(i + 1) * Wo, :] = dw_row(i)
        y = y_scr[...]                               # (Ho*Wo, cexp) f32

        # -- squeeze & excitation, fully in VMEM --
        if use_se:
            pooled = jnp.mean(y, axis=0, keepdims=True)   # (1, cexp)
            s = jnp.dot(pooled, ws1_ref[...],
                        preferred_element_type=jnp.float32) + bs1_ref[...]
            s = jnp.maximum(s, 0.0)
            s = jnp.dot(s, ws2_ref[...],
                        preferred_element_type=jnp.float32) + bs2_ref[...]
            y = y * _hardsigmoid(s)

        # -- 1x1 project conv (+BN, identity act) with fused residual add --
        out = jnp.dot(y.astype(wp_ref.dtype), wp_ref[...],
                      preferred_element_type=jnp.float32) + bp_ref[...]
        if use_res:
            out = out + res_ref[0].astype(jnp.float32)
        o_ref[0] = out.astype(o_ref.dtype)

    return kernel


def _phase_decompose(x, k, stride):
    """Zero-pad (N,H,W,C) for a kxk/stride depthwise conv and split into
    stride**2 spatial phases, flattened to (N, P*Hph*Wph, C).  Also returns an
    interior mask (P*Hph*Wph, 1) applied after the 1x1 expansion."""
    N, H, W, C = x.shape
    pad = (k - 1) // 2
    Ho = (H + 2 * pad - k) // stride + 1
    Wo = (W + 2 * pad - k) // stride + 1
    Hph = (H + 2 * pad + stride - 1) // stride
    Wph = (W + 2 * pad + stride - 1) // stride
    pad_h = (pad, stride * Hph - H - pad)
    pad_w = (pad, stride * Wph - W - pad)
    xp = jnp.pad(x, ((0, 0), pad_h, pad_w, (0, 0)))
    mask = jnp.pad(jnp.ones((H, W), jnp.float32), (pad_h, pad_w))
    phases, masks = [], []
    for r in range(stride):
        for s in range(stride):
            phases.append(
                xp[:, r::stride, s::stride, :].reshape(N, Hph * Wph, C))
            masks.append(mask[r::stride, s::stride].reshape(Hph * Wph, 1))
    xph = jnp.concatenate(phases, axis=1)      # (N, P*Hph*Wph, C)
    mph = jnp.concatenate(masks, axis=0)       # (P*Hph*Wph, 1)
    return xph, mph, (Ho, Wo, Hph, Wph)


def inverted_residual_block(x, bp, cnf):
    N, H, W, Cin = x.shape
    act = "hardswish" if cnf.use_hs else "relu"
    has_expand = "expand" in bp
    use_res = cnf.stride == 1 and cnf.in_channels == cnf.out_channels
    k, stride = cnf.kernel_size, cnf.stride
    cexp, cout = cnf.expand_c, cnf.out_channels

    xph, mph, (Ho, Wo, Hph, Wph) = _phase_decompose(x, k, stride)
    P = stride * stride
    S = Hph * Wph
    use_row_loop = Ho > _DW_UNROLL_LIMIT

    inputs, in_specs = [], []

    def add(a, spec=None):
        inputs.append(a)
        in_specs.append(spec if spec is not None else _const_spec(a))

    add(xph, pl.BlockSpec((1, P * S, Cin), lambda b: (b, 0, 0)))
    if has_expand:
        add(mph)
        add(bp["expand"]["w"])
        add(bp["expand"]["b"])
    add(bp["dw"]["w"])
    add(bp["dw"]["b"])
    if cnf.use_se:
        se = bp["se"]
        for a in (se["w1"], se["b1"], se["w2"], se["b2"]):
            add(a)
    add(bp["project"]["w"])
    add(bp["project"]["b"])
    if use_res:
        res = x.reshape(N, H * W, Cin)          # Cin == cout when use_res
        add(res, pl.BlockSpec((1, H * W, Cin), lambda b: (b, 0, 0)))

    scratch = [pltpu.VMEM((P * S, cexp), jnp.float32),
               pltpu.VMEM((Ho * Wo, cexp), jnp.float32)]

    kernel = _make_block_kernel(
        k=k, stride=stride, Hph=Hph, Wph=Wph, Ho=Ho, Wo=Wo, act=act,
        has_expand=has_expand, use_se=cnf.use_se, use_res=use_res,
        use_row_loop=use_row_loop)

    out = pl.pallas_call(
        kernel,
        out_shape=jax.ShapeDtypeStruct((N, Ho * Wo, cout), ACT_DTYPE),
        grid=(N,),
        in_specs=in_specs,
        out_specs=pl.BlockSpec((1, Ho * Wo, cout), lambda b: (b, 0, 0)),
        scratch_shapes=scratch,
        compiler_params=pltpu.CompilerParams(
            dimension_semantics=("parallel",)),
    )(*inputs)
    return out.reshape(N, Ho, Wo, cout)


# ----------------------------------------------------------------------------
# fused classifier tail: GAP + fc1 + hardswish + (dropout=id) + fc2
# ----------------------------------------------------------------------------
def _tail_kernel(x_ref, w1_ref, b1_ref, w2_ref, b2_ref, o_ref):
    x = x_ref[0].astype(jnp.float32)                  # (HW, C)
    pooled = jnp.mean(x, axis=0, keepdims=True)       # (1, C)
    h = jnp.dot(pooled.astype(w1_ref.dtype), w1_ref[...],
                preferred_element_type=jnp.float32) + b1_ref[...]
    h = _hardswish(h)
    # TODO(synk): Dropout(p=0.2) is treated as identity (inference/eval mode).
    logits = jnp.dot(h.astype(w2_ref.dtype), w2_ref[...],
                     preferred_element_type=jnp.float32) + b2_ref[...]
    o_ref[0] = logits.astype(o_ref.dtype)


def pallas_classifier_tail(x3, w1, b1, w2, b2, num_classes):
    N, HW, C = x3.shape
    out = pl.pallas_call(
        _tail_kernel,
        out_shape=jax.ShapeDtypeStruct((N, 1, num_classes), jnp.float32),
        grid=(N,),
        in_specs=[pl.BlockSpec((1, HW, C), lambda b: (b, 0, 0)),
                  _const_spec(w1), _const_spec(b1),
                  _const_spec(w2), _const_spec(b2)],
        out_specs=pl.BlockSpec((1, 1, num_classes), lambda b: (b, 0, 0)),
        compiler_params=pltpu.CompilerParams(
            dimension_semantics=("parallel",)),
    )(x3, w1, b1, w2, b2)
    return out.reshape(N, num_classes)


# ----------------------------------------------------------------------------
# plain-JAX glue for the stem / last conv
# ----------------------------------------------------------------------------
def stem_conv(x, p):
    """ConvBNActivation(3, C, k=3, s=2, pad=1, Hardswish) via im2col+matmul."""
    N, H, W, Cin = x.shape
    k, stride, pad = 3, 2, 1
    Ho = (H + 2 * pad - k) // stride + 1
    Wo = (W + 2 * pad - k) // stride + 1
    xp = jnp.pad(x, ((0, 0), (pad, pad), (pad, pad), (0, 0)))
    cols = []
    for kh in range(k):
        for kw in range(k):
            cols.append(xp[:, kh:kh + Ho * stride:stride,
                           kw:kw + Wo * stride:stride, :])
    patches = jnp.concatenate(cols, axis=-1).reshape(N * Ho * Wo, k * k * Cin)
    y = pallas_matmul_act(patches.astype(ACT_DTYPE), p["w"], p["b"],
                          "hardswish", ACT_DTYPE)
    return y.reshape(N, Ho, Wo, -1)


def pointwise_conv(x, p, act):
    N, H, W, Cin = x.shape
    y = pallas_matmul_act(x.reshape(N * H * W, Cin), p["w"], p["b"], act,
                          ACT_DTYPE)
    return y.reshape(N, H, W, -1)


# ----------------------------------------------------------------------------
# parameter init (deterministic; mirrors the PyTorch module, BN folded in f32)
# ----------------------------------------------------------------------------
def _bn_fold_scale_bias(cout):
    gamma = jnp.ones((cout,), jnp.float32)
    beta = jnp.zeros((cout,), jnp.float32)
    mean = jnp.zeros((cout,), jnp.float32)
    var = jnp.ones((cout,), jnp.float32)
    scale = gamma / jnp.sqrt(var + _BN_EPS)
    bias = beta - mean * scale
    return scale, bias


def _conv_bn_params(key, cin, cout, k):
    std = (2.0 / (cout * k * k)) ** 0.5          # kaiming normal, fan_out
    w = jax.random.normal(key, (k, k, cin, cout), jnp.float32) * std
    scale, bias = _bn_fold_scale_bias(cout)
    w = (w * scale).reshape(k * k * cin, cout)   # fold BN in f32, cast after
    return {"w": w.astype(ACT_DTYPE), "b": bias.reshape(1, cout)}


def _dwconv_bn_params(key, c, k):
    std = (2.0 / (k * k)) ** 0.5                 # grouped conv fan_out
    w = jax.random.normal(key, (k, k, c), jnp.float32) * std
    scale, bias = _bn_fold_scale_bias(c)
    return {"w": (w * scale).reshape(k * k, 1, c),   # f32 (VPU path)
            "b": bias.reshape(1, c)}


def _se_params(key, c):
    squeeze_c = _make_divisible(c // 4, 8)
    k1, k2 = jax.random.split(key)
    return {
        "w1": jax.random.normal(k1, (c, squeeze_c), jnp.float32)
        * (2.0 / squeeze_c) ** 0.5,
        "b1": jnp.zeros((1, squeeze_c), jnp.float32),
        "w2": jax.random.normal(k2, (squeeze_c, c), jnp.float32)
        * (2.0 / c) ** 0.5,
        "b2": jnp.zeros((1, c), jnp.float32),
    }


def init_mobilenet_v3(key, setting, last_channel, num_classes):
    keys = iter(jax.random.split(key, 64))
    params = {}
    first_c = setting[0].in_channels
    params["stem"] = _conv_bn_params(next(keys), 3, first_c, 3)
    blocks = []
    for cnf in setting:
        bp = {}
        if cnf.in_channels != cnf.expand_c:
            bp["expand"] = _conv_bn_params(next(keys), cnf.in_channels,
                                           cnf.expand_c, 1)
        bp["dw"] = _dwconv_bn_params(next(keys), cnf.expand_c, cnf.kernel_size)
        if cnf.use_se:
            bp["se"] = _se_params(next(keys), cnf.expand_c)
        bp["project"] = _conv_bn_params(next(keys), cnf.expand_c,
                                        cnf.out_channels, 1)
        blocks.append(bp)
    params["blocks"] = blocks
    last_in = setting[-1].out_channels
    last_out = last_in * 6
    params["last_conv"] = _conv_bn_params(next(keys), last_in, last_out, 1)
    params["fc1_w"] = (jax.random.normal(next(keys), (last_out, last_channel),
                                         jnp.float32) * 0.01).astype(ACT_DTYPE)
    params["fc1_b"] = jnp.zeros((1, last_channel), jnp.float32)
    params["fc2_w"] = (jax.random.normal(next(keys),
                                         (last_channel, num_classes),
                                         jnp.float32) * 0.01).astype(ACT_DTYPE)
    params["fc2_b"] = jnp.zeros((1, num_classes), jnp.float32)
    return params


# ----------------------------------------------------------------------------
# forward pass
# ----------------------------------------------------------------------------
def mobilenet_v3_forward(params, setting, x_nchw):
    x = jnp.transpose(x_nchw, (0, 2, 3, 1)).astype(ACT_DTYPE)  # NCHW -> NHWC

    # features[0]: ConvBNActivation(3, first_c, k=3, s=2, Hardswish)
    x = stem_conv(x, params["stem"])

    # fused inverted-residual blocks (one pallas_call each)
    for cnf, bp in zip(setting, params["blocks"]):
        x = inverted_residual_block(x, bp, cnf)

    # last 1x1 conv (C -> 6C) + Hardswish
    x = pointwise_conv(x, params["last_conv"], "hardswish")

    # AdaptiveAvgPool2d(1) + flatten + classifier, fused in one kernel
    N, H, W, C = x.shape
    logits = pallas_classifier_tail(
        x.reshape(N, H * W, C),
        params["fc1_w"], params["fc1_b"],
        params["fc2_w"], params["fc2_b"],
        params["fc2_w"].shape[1])
    return logits


# ----------------------------------------------------------------------------
# main
# ----------------------------------------------------------------------------
if __name__ == "__main__":
    width_multi = 1.0
    # small synthetic MobileNetV3-style setting (covers no-expand, stride-2,
    # and SE + hardswish + 5x5 code paths)
    setting = [
        InvertResidualConfig(16, 3, 16, 16, False, "RE", 1, width_multi),
        InvertResidualConfig(16, 3, 64, 24, False, "RE", 2, width_multi),
        InvertResidualConfig(24, 5, 72, 24, True, "HS", 1, width_multi),
    ]
    last_channel = 128
    num_classes = 10

    key = jax.random.PRNGKey(0)
    pkey, xkey = jax.random.split(key)
    params = init_mobilenet_v3(pkey, setting, last_channel, num_classes)

    # NCHW input like PyTorch: batch=2, 3 channels, 16x16 spatial
    x = jax.random.normal(xkey, (2, 3, 16, 16), jnp.float32)

    fwd = jax.jit(lambda p, xx: mobilenet_v3_forward(p, setting, xx))
    out = fwd(params, x)
    jax.block_until_ready(out)

    assert out.shape == (2, num_classes)
    assert bool(jnp.all(jnp.isfinite(out)))
    print("KERNEL_OK")
</pallas_src>

<mosaic_0001>
module attributes {stable_mosaic.version = 11 : i64} {
  func.func @_matmul_act_kernel(%arg0: i32, %arg1: memref<128x27xbf16, #tpu.memory_space<vmem>>, %arg2: memref<27x16xbf16, #tpu.memory_space<vmem>>, %arg3: memref<1x16xf32, #tpu.memory_space<vmem>>, %arg4: memref<128x16xbf16, #tpu.memory_space<vmem>>) attributes {dimension_semantics = [#tpu.dimension_semantics<parallel>], iteration_bounds = array<i64: 1>, scalar_prefetch = 0 : i64, scratch_operands = 0 : i64, tpu.core_type = #tpu.core_type<tc>, window_params = [{transform_indices = @transform_0, window_bounds = array<i64: 128, 27>}, {pipeline_mode = #tpu.pipeline_mode<synchronous>, transform_indices = @transform_1, window_bounds = array<i64: 27, 16>}, {pipeline_mode = #tpu.pipeline_mode<synchronous>, transform_indices = @transform_2, window_bounds = array<i64: 1, 16>}, {transform_indices = @transform_3, window_bounds = array<i64: 128, 16>}]} {
    %c0 = arith.constant 0 : index
    %c0_0 = arith.constant 0 : index
    %0 = vector.load %arg1[%c0, %c0_0] : memref<128x27xbf16, #tpu.memory_space<vmem>>, vector<128x27xbf16>
    %c0_1 = arith.constant 0 : index
    %c0_2 = arith.constant 0 : index
    %1 = vector.load %arg2[%c0_1, %c0_2] : memref<27x16xbf16, #tpu.memory_space<vmem>>, vector<27x16xbf16>
    %cst = arith.constant dense<0.000000e+00> : vector<128x16xf32>
    %2 = tpu.matmul %0, %1, %cst {dimension_numbers = #tpu.dot_dimension_numbers<[1], [0], [0], [1], [0, 0, 1, 1], [], []>} : vector<128x27xbf16>, vector<27x16xbf16>, vector<128x16xf32> -> vector<128x16xf32>
    %c0_3 = arith.constant 0 : index
    %c0_4 = arith.constant 0 : index
    %3 = vector.load %arg3[%c0_3, %c0_4] : memref<1x16xf32, #tpu.memory_space<vmem>>, vector<1x16xf32>
    %4 = vector.broadcast %3 : vector<1x16xf32> to vector<128x16xf32>
    %5 = arith.addf %2, %4 : vector<128x16xf32>
    %cst_5 = arith.constant 3.000000e+00 : f32
    %6 = vector.broadcast %cst_5 : f32 to vector<128x16xf32>
    %7 = arith.addf %5, %6 : vector<128x16xf32>
    %cst_6 = arith.constant 0.000000e+00 : f32
    %cst_7 = arith.constant 6.000000e+00 : f32
    %8 = vector.broadcast %cst_6 : f32 to vector<128x16xf32>
    %9 = arith.maximumf %8, %7 : vector<128x16xf32>
    %10 = vector.broadcast %cst_7 : f32 to vector<128x16xf32>
    %11 = arith.minimumf %10, %9 : vector<128x16xf32>
    %12 = arith.mulf %5, %11 : vector<128x16xf32>
    %cst_8 = arith.constant 0.166666672 : f32
    %13 = vector.broadcast %cst_8 : f32 to vector<128x16xf32>
    %14 = arith.mulf %12, %13 : vector<128x16xf32>
    %15 = arith.truncf %14 : vector<128x16xf32> to vector<128x16xbf16>
    %c0_9 = arith.constant 0 : index
    %c0_10 = arith.constant 0 : index
    %16 = vector.load %arg4[%c0_9, %c0_10] : memref<128x16xbf16, #tpu.memory_space<vmem>>, vector<128x16xbf16>
    tpu.vector_store %arg4[%c0_9, %c0_10], %15 {strides = array<i32>} : memref<128x16xbf16, #tpu.memory_space<vmem>>, vector<128x16xbf16>,
    return
  }
  func.func @transform_0(%arg0: i32) -> (i32, i32) {
    %c0_i32 = arith.constant 0 : i32
    %c0_i32_0 = arith.constant 0 : i32
    return %arg0, %c0_i32 : i32, i32
  }
  func.func @transform_1(%arg0: i32) -> (i32, i32) {
    %c0_i32 = arith.constant 0 : i32
    %c0_i32_0 = arith.constant 0 : i32
    %c0_i32_1 = arith.constant 0 : i32
    return %c0_i32, %c0_i32_0 : i32, i32
  }
  func.func @transform_2(%arg0: i32) -> (i32, i32) {
    %c0_i32 = arith.constant 0 : i32
    %c0_i32_0 = arith.constant 0 : i32
    %c0_i32_1 = arith.constant 0 : i32
    return %c0_i32, %c0_i32_0 : i32, i32
  }
  func.func @transform_3(%arg0: i32) -> (i32, i32) {
    %c0_i32 = arith.constant 0 : i32
    %c0_i32_0 = arith.constant 0 : i32
    return %arg0, %c0_i32 : i32, i32
  }
}

module attributes {stable_mosaic.version = 11 : i64} {
  func.func @kernel(%arg0: i32, %arg1: memref<1x100x16xbf16, #tpu.memory_space<vmem>>, %arg2: memref<9x1x16xf32, #tpu.memory_space<vmem>>, %arg3: memref<1x16xf32, #tpu.memory_space<vmem>>, %arg4: memref<16x16xbf16, #tpu.memory_space<vmem>>, %arg5: memref<1x16xf32, #tpu.memory_space<vmem>>, %arg6: memref<1x64x16xbf16, #tpu.memory_space<vmem>>, %arg7: memref<1x64x16xbf16, #tpu.memory_space<vmem>>, %arg8: memref<100x16xf32, #tpu.memory_space<vmem>>, %arg9: memref<64x16xf32, #tpu.memory_space<vmem>>) attributes {dimension_semantics = [#tpu.dimension_semantics<parallel>], iteration_bounds = array<i64: 2>, scalar_prefetch = 0 : i64, scratch_operands = 2 : i64, tpu.core_type = #tpu.core_type<tc>, window_params = [{transform_indices = @transform_0, window_bounds = array<i64: 1, 100, 16>}, {pipeline_mode = #tpu.pipeline_mode<synchronous>, transform_indices = @transform_1, window_bounds = array<i64: 9, 1, 16>}, {pipeline_mode = #tpu.pipeline_mode<synchronous>, transform_indices = @transform_2, window_bounds = array<i64: 1, 16>}, {pipeline_mode = #tpu.pipeline_mode<synchronous>, transform_indices = @transform_3, window_bounds = array<i64: 16, 16>}, {pipeline_mode = #tpu.pipeline_mode<synchronous>, transform_indices = @transform_4, window_bounds = array<i64: 1, 16>}, {transform_indices = @transform_5, window_bounds = array<i64: 1, 64, 16>}, {transform_indices = @transform_6, window_bounds = array<i64: 1, 64, 16>}]} {
    %c0 = arith.constant 0 : index
    %c0_0 = arith.constant 0 : index
    %c0_1 = arith.constant 0 : index
    %0 = vector.load %arg1[%c0, %c0_0, %c0_1] : memref<1x100x16xbf16, #tpu.memory_space<vmem>>, vector<1x100x16xbf16>
    %1 = vector.shape_cast %0 : vector<1x100x16xbf16> to vector<100x16xbf16>
    %2 = arith.extf %1 : vector<100x16xbf16> to vector<100x16xf32>
    %c0_2 = arith.constant 0 : index
    %c0_3 = arith.constant 0 : index
    %3 = vector.load %arg8[%c0_2, %c0_3] : memref<100x16xf32, #tpu.memory_space<vmem>>, vector<100x16xf32>
    tpu.vector_store %arg8[%c0_2, %c0_3], %2 {strides = array<i32>} : memref<100x16xf32, #tpu.memory_space<vmem>>, vector<100x16xf32>,
    %c0_4 = arith.constant 0 : index
    %c0_5 = arith.constant 0 : index
    %c0_6 = arith.constant 0 : index
    %4 = vector.load %arg2[%c0_4, %c0_5, %c0_6] : memref<9x1x16xf32, #tpu.memory_space<vmem>>, vector<1x1x16xf32>
    %5 = vector.shape_cast %4 : vector<1x1x16xf32> to vector<1x16xf32>
    %c1 = arith.constant 1 : index
    %c0_7 = arith.constant 0 : index
    %c0_8 = arith.constant 0 : index
    %6 = vector.load %arg2[%c1, %c0_7, %c0_8] : memref<9x1x16xf32, #tpu.memory_space<vmem>>, vector<1x1x16xf32>
    %7 = vector.shape_cast %6 : vector<1x1x16xf32> to vector<1x16xf32>
    %c2 = arith.constant 2 : index
    %c0_9 = arith.constant 0 : index
    %c0_10 = arith.constant 0 : index
    %8 = vector.load %arg2[%c2, %c0_9, %c0_10] : memref<9x1x16xf32, #tpu.memory_space<vmem>>, vector<1x1x16xf32>
    %9 = vector.shape_cast %8 : vector<1x1x16xf32> to vector<1x16xf32>
    %c3 = arith.constant 3 : index
    %c0_11 = arith.constant 0 : index
    %c0_12 = arith.constant 0 : index
    %10 = vector.load %arg2[%c3, %c0_11, %c0_12] : memref<9x1x16xf32, #tpu.memory_space<vmem>>, vector<1x1x16xf32>
    %11 = vector.shape_cast %10 : vector<1x1x16xf32> to vector<1x16xf32>
    %c4 = arith.constant 4 : index
    %c0_13 = arith.constant 0 : index
    %c0_14 = arith.constant 0 : index
    %12 = vector.load %arg2[%c4, %c0_13, %c0_14] : memref<9x1x16xf32, #tpu.memory_space<vmem>>, vector<1x1x16xf32>
    %13 = vector.shape_cast %12 : vector<1x1x16xf32> to vector<1x16xf32>
    %c5 = arith.constant 5 : index
    %c0_15 = arith.constant 0 : index
    %c0_16 = arith.constant 0 : index
    %14 = vector.load %arg2[%c5, %c0_15, %c0_16] : memref<9x1x16xf32, #tpu.memory_space<vmem>>, vector<1x1x16xf32>
    %15 = vector.shape_cast %14 : vector<1x1x16xf32> to vector<1x16xf32>
    %c6 = arith.constant 6 : index
    %c0_17 = arith.constant 0 : index
    %c0_18 = arith.constant 0 : index
    %16 = vector.load %arg2[%c6, %c0_17, %c0_18] : memref<9x1x16xf32, #tpu.memory_space<vmem>>, vector<1x1x16xf32>
    %17 = vector.shape_cast %16 : vector<1x1x16xf32> to vector<1x16xf32>
    %c7 = arith.constant 7 : index
    %c0_19 = arith.constant 0 : index
    %c0_20 = arith.constant 0 : index
    %18 = vector.load %arg2[%c7, %c0_19, %c0_20] : memref<9x1x16xf32, #tpu.memory_space<vmem>>, vector<1x1x16xf32>
    %19 = vector.shape_cast %18 : vector<1x1x16xf32> to vector<1x16xf32>
    %c8 = arith.constant 8 : index
    %c0_21 = arith.constant 0 : index
    %c0_22 = arith.constant 0 : index
    %20 = vector.load %arg2[%c8, %c0_21, %c0_22] : memref<9x1x16xf32, #tpu.memory_space<vmem>>, vector<1x1x16xf32>
    %21 = vector.shape_cast %20 : vector<1x1x16xf32> to vector<1x16xf32>
    %c0_23 = arith.constant 0 : index
    %c0_24 = arith.constant 0 : index
    %22 = vector.load %arg3[%c0_23, %c0_24] : memref<1x16xf32, #tpu.memory_space<vmem>>, vector<1x16xf32>
    %cst = arith.constant 0.000000e+00 : f32
    %23 = vector.broadcast %cst : f32 to vector<8x16xf32>
    %c0_25 = arith.constant 0 : index
    %c0_26 = arith.constant 0 : index
    %24 = vector.load %arg8[%c0_25, %c0_26] : memref<100x16xf32, #tpu.memory_space<vmem>>, vector<8x16xf32>
    %25 = vector.broadcast %5 : vector<1x16xf32> to vector<8x16xf32>
    %26 = arith.mulf %24, %25 : vector<8x16xf32>
    %27 = arith.addf %23, %26 : vector<8x16xf32>
    %c1_27 = arith.constant 1 : index
    %c0_28 = arith.constant 0 : index
    %28 = vector.load %arg8[%c1_27, %c0_28] : memref<100x16xf32, #tpu.memory_space<vmem>>, vector<8x16xf32>
    %29 = vector.broadcast %7 : vector<1x16xf32> to vector<8x16xf32>
    %30 = arith.mulf %28, %29 : vector<8x16xf32>
    %31 = arith.addf %27, %30 : vector<8x16xf32>
    %c2_29 = arith.constant 2 : index
    %c0_30 = arith.constant 0 : index
    %32 = vector.load %arg8[%c2_29, %c0_30] : memref<100x16xf32, #tpu.memory_space<vmem>>, vector<8x16xf32>
    %33 = vector.broadcast %9 : vector<1x16xf32> to vector<8x16xf32>
    %34 = arith.mulf %32, %33 : vector<8x16xf32>
    %35 = arith.addf %31, %34 : vector<8x16xf32>
    %c10 = arith.constant 10 : index
    %c0_31 = arith.constant 0 : index
    %36 = vector.load %arg8[%c10, %c0_31] : memref<100x16xf32, #tpu.memory_space<vmem>>, vector<8x16xf32>
    %37 = vector.broadcast %11 : vector<1x16xf32> to vector<8x16xf32>
    %38 = arith.mulf %36, %37 : vector<8x16xf32>
    %39 = arith.addf %35, %38 : vector<8x16xf32>
    %c11 = arith.constant 11 : index
    %c0_32 = arith.constant 0 : index
    %40 = vector.load %arg8[%c11, %c0_32] : memref<100x16xf32, #tpu.memory_space<vmem>>, vector<8x16xf32>
    %41 = vector.broadcast %13 : vector<1x16xf32> to vector<8x16xf32>
    %42 = arith.mulf %40, %41 : vector<8x16xf32>
    %43 = arith.addf %39, %42 : vector<8x16xf32>
    %c12 = arith.constant 12 : index
    %c0_33 = arith.constant 0 : index
    %44 = vector.load %arg8[%c12, %c0_33] : memref<100x16xf32, #tpu.memory_space<vmem>>, vector<8x16xf32>
    %45 = vector.broadcast %15 : vector<1x16xf32> to vector<8x16xf32>
    %46 = arith.mulf %44, %45 : vector<8x16xf32>
    %47 = arith.addf %43, %46 : vector<8x16xf32>
    %c20 = arith.constant 20 : index
    %c0_34 = arith.constant 0 : index
    %48 = vector.load %arg8[%c20, %c0_34] : memref<100x16xf32, #tpu.memory_space<vmem>>, vector<8x16xf32>
    %49 = vector.broadcast %17 : vector<1x16xf32> to vector<8x16xf32>
    %50 = arith.mulf %48, %49 : vector<8x16xf32>
    %51 = arith.addf %47, %50 : vector<8x16xf32>
    %c21 = arith.constant 21 : index
    %c0_35 = arith.constant 0 : index
    %52 = vector.load %arg8[%c21, %c0_35] : memref<100x16xf32, #tpu.memory_space<vmem>>, vector<8x16xf32>
    %53 = vector.broadcast %19 : vector<1x16xf32> to vector<8x16xf32>
    %54 = arith.mulf %52, %53 : vector<8x16xf32>
    %55 = arith.addf %51, %54 : vector<8x16xf32>
    %c22 = arith.constant 22 : index
    %c0_36 = arith.constant 0 : index
    %56 = vector.load %arg8[%c22, %c0_36] : memref<100x16xf32, #tpu.memory_space<vmem>>, vector<8x16xf32>
    %57 = vector.broadcast %21 : vector<1x16xf32> to vector<8x16xf32>
    %58 = arith.mulf %56, %57 : vector<8x16xf32>
    %59 = arith.addf %55, %58 : vector<8x16xf32>
    %60 = vector.broadcast %22 : vector<1x16xf32> to vector<8x16xf32>
    %61 = arith.addf %59, %60 : vector<8x16xf32>
    %cst_37 = arith.constant 0.000000e+00 : f32
    %62 = vector.broadcast %cst_37 : f32 to vector<8x16xf32>
    %63 = arith.maximumf %61, %62 : vector<8x16xf32>
    %c0_38 = arith.constant 0 : index
    %c0_39 = arith.constant 0 : index
    %64 = vector.load %arg9[%c0_38, %c0_39] : memref<64x16xf32, #tpu.memory_space<vmem>>, vector<8x16xf32>
    tpu.vector_store %arg9[%c0_38, %c0_39], %63 {strides = array<i32>} : memref<64x16xf32, #tpu.memory_space<vmem>>, vector<8x16xf32>,
    %cst_40 = arith.constant 0.000000e+00 : f32
    %65 = vector.broadcast %cst_40 : f32 to vector<8x16xf32>
    %c10_41 = arith.constant 10 : index
    %c0_42 = arith.constant 0 : index
    %66 = vector.load %arg8[%c10_41, %c0_42] : memref<100x16xf32, #tpu.memory_space<vmem>>, vector<8x16xf32>
    %67 = vector.broadcast %5 : vector<1x16xf32> to vector<8x16xf32>
    %68 = arith.mulf %66, %67 : vector<8x16xf32>
    %69 = arith.addf %65, %68 : vector<8x16xf32>
    %c11_43 = arith.constant 11 : index
    %c0_44 = arith.constant 0 : index
    %70 = vector.load %arg8[%c11_43, %c0_44] : memref<100x16xf32, #tpu.memory_space<vmem>>, vector<8x16xf32>
    %71 = vector.broadcast %7 : vector<1x16xf32> to vector<8x16xf32>
    %72 = arith.mulf %70, %71 : vector<8x16xf32>
    %73 = arith.addf %69, %72 : vector<8x16xf32>
    %c12_45 = arith.constant 12 : index
    %c0_46 = arith.constant 0 : index
    %74 = vector.load %arg8[%c12_45, %c0_46] : memref<100x16xf32, #tpu.memory_space<vmem>>, vector<8x16xf32>
    %75 = vector.broadcast %9 : vector<1x16xf32> to vector<8x16xf32>
    %76 = arith.mulf %74, %75 : vector<8x16xf32>
    %77 = arith.addf %73, %76 : vector<8x16xf32>
    %c20_47 = arith.constant 20 : index
    %c0_48 = arith.constant 0 : index
    %78 = vector.load %arg8[%c20_47, %c0_48] : memref<100x16xf32, #tpu.memory_space<vmem>>, vector<8x16xf32>
    %79 = vector.broadcast %11 : vector<1x16xf32> to vector<8x16xf32>
    %80 = arith.mulf %78, %79 : vector<8x16xf32>
    %81 = arith.addf %77, %80 : vector<8x16xf32>
    %c21_49 = arith.constant 21 : index
    %c0_50 = arith.constant 0 : index
    %82 = vector.load %arg8[%c21_49, %c0_50] : memref<100x16xf32, #tpu.memory_space<vmem>>, vector<8x16xf32>
    %83 = vector.broadcast %13 : vector<1x16xf32> to vector<8x16xf32>
    %84 = arith.mulf %82, %83 : vector<8x16xf32>
    %85 = arith.addf %81, %84 : vector<8x16xf32>
    %c22_51 = arith.constant 22 : index
    %c0_52 = arith.constant 0 : index
    %86 = vector.load %arg8[%c22_51, %c0_52] : memref<100x16xf32, #tpu.memory_space<vmem>>, vector<8x16xf32>
    %87 = vector.broadcast %15 : vector<1x16xf32> to vector<8x16xf32>
    %88 = arith.mulf %86, %87 : vector<8x16xf32>
    %89 = arith.addf %85, %88 : vector<8x16xf32>
    %c30 = arith.constant 30 : index
    %c0_53 = arith.constant 0 : index
    %90 = vector.load %arg8[%c30, %c0_53] : memref<100x16xf32, #tpu.memory_space<vmem>>, vector<8x16xf32>
    %91 = vector.broadcast %17 : vector<1x16xf32> to vector<8x16xf32>
    %92 = arith.mulf %90, %91 : vector<8x16xf32>
    %93 = arith.addf %89, %92 : vector<8x16xf32>
    %c31 = arith.constant 31 : index
    %c0_54 = arith.constant 0 : index
    %94 = vector.load %arg8[%c31, %c0_54] : memref<100x16xf32, #tpu.memory_space<vmem>>, vector<8x16xf32>
    %95 = vector.broadcast %19 : vector<1x16xf32> to vector<8x16xf32>
    %96 = arith.mulf %94, %95 : vector<8x16xf32>
    %97 = arith.addf %93, %96 : vector<8x16xf32>
    %c32 = arith.constant 32 : index
    %c0_55 = arith.constant 0 : index
    %98 = vector.load %arg8[%c32, %c0_55] : memref<100x16xf32, #tpu.memory_space<vmem>>, vector<8x16xf32>
    %99 = vector.broadcast %21 : vector<1x16xf32> to vector<8x16xf32>
    %100 = arith.mulf %98, %99 : vector<8x16xf32>
    %101 = arith.addf %97, %100 : vector<8x16xf32>
    %102 = vector.broadcast %22 : vector<1x16xf32> to vector<8x16xf32>
    %103 = arith.addf %101, %102 : vector<8x16xf32>
    %cst_56 = arith.constant 0.000000e+00 : f32
    %104 = vector.broadcast %cst_56 : f32 to vector<8x16xf32>
    %105 = arith.maximumf %103, %104 : vector<8x16xf32>
    %c8_57 = arith.constant 8 : index
    %c0_58 = arith.constant 0 : index
    %106 = vector.load %arg9[%c8_57, %c0_58] : memref<64x16xf32, #tpu.memory_space<vmem>>, vector<8x16xf32>
    tpu.vector_store %arg9[%c8_57, %c0_58], %105 {strides = array<i32>} : memref<64x16xf32, #tpu.memory_space<vmem>>, vector<8x16xf32>,
    %cst_59 = arith.constant 0.000000e+00 : f32
    %107 = vector.broadcast %cst_59 : f32 to vector<8x16xf32>
    %c20_60 = arith.constant 20 : index
    %c0_61 = arith.constant 0 : index
    %108 = vector.load %arg8[%c20_60, %c0_61] : memref<100x16xf32, #tpu.memory_space<vmem>>, vector<8x16xf32>
    %109 = vector.broadcast %5 : vector<1x16xf32> to vector<8x16xf32>
    %110 = arith.mulf %108, %109 : vector<8x16xf32>
    %111 = arith.addf %107, %110 : vector<8x16xf32>
    %c21_62 = arith.constant 21 : index
    %c0_63 = arith.constant 0 : index
    %112 = vector.load %arg8[%c21_62, %c0_63] : memref<100x16xf32, #tpu.memory_space<vmem>>, vector<8x16xf32>
    %113 = vector.broadcast %7 : vector<1x16xf32> to vector<8x16xf32>
    %114 = arith.mulf %112, %113 : vector<8x16xf32>
    %115 = arith.addf %111, %114 : vector<8x16xf32>
    %c22_64 = arith.constant 22 : index
    %c0_65 = arith.constant 0 : index
    %116 = vector.load %arg8[%c22_64, %c0_65] : memref<100x16xf32, #tpu.memory_space<vmem>>, vector<8x16xf32>
    %117 = vector.broadcast %9 : vector<1x16xf32> to vector<8x16xf32>
    %118 = arith.mulf %116, %117 : vector<8x16xf32>
    %119 = arith.addf %115, %118 : vector<8x16xf32>
    %c30_66 = arith.constant 30 : index
    %c0_67 = arith.constant 0 : index
    %120 = vector.load %arg8[%c30_66, %c0_67] : memref<100x16xf32, #tpu.memory_space<vmem>>, vector<8x16xf32>
    %121 = vector.broadcast %11 : vector<1x16xf32> to vector<8x16xf32>
    %122 = arith.mulf %120, %121 : vector<8x16xf32>
    %123 = arith.addf %119, %122 : vector<8x16xf32>
    %c31_68 = arith.constant 31 : index
    %c0_69 = arith.constant 0 : index
    %124 = vector.load %arg8[%c31_68, %c0_69] : memref<100x16xf32, #tpu.memory_space<vmem>>, vector<8x16xf32>
    %125 = vector.broadcast %13 : vector<1x16xf32> to vector<8x16xf32>
    %126 = arith.mulf %124, %125 : vector<8x16xf32>
    %127 = arith.addf %123, %126 : vector<8x16xf32>
    %c32_70 = arith.constant 32 : index
    %c0_71 = arith.constant 0 : index
    %128 = vector.load %arg8[%c32_70, %c0_71] : memref<100x16xf32, #tpu.memory_space<vmem>>, vector<8x16xf32>
    %129 = vector.broadcast %15 : vector<1x16xf32> to vector<8x16xf32>
    %130 = arith.mulf %128, %129 : vector<8x16xf32>
    %131 = arith.addf %127, %130 : vector<8x16xf32>
    %c40 = arith.constant 40 : index
    %c0_72 = arith.constant 0 : index
    %132 = vector.load %arg8[%c40, %c0_72] : memref<100x16xf32, #tpu.memory_space<vmem>>, vector<8x16xf32>
    %133 = vector.broadcast %17 : vector<1x16xf32> to vector<8x16xf32>
    %134 = arith.mulf %132, %133 : vector<8x16xf32>
    %135 = arith.addf %131, %134 : vector<8x16xf32>
    %c41 = arith.constant 41 : index
    %c0_73 = arith.constant 0 : index
    %136 = vector.load %arg8[%c41, %c0_73] : memref<100x16xf32, #tpu.memory_space<vmem>>, vector<8x16xf32>
    %137 = vector.broadcast %19 : vector<1x16xf32> to vector<8x16xf32>
    %138 = arith.mulf %136, %137 : vector<8x16xf32>
    %139 = arith.addf %135, %138 : vector<8x16xf32>
    %c42 = arith.constant 42 : index
    %c0_74 = arith.constant 0 : index
    %140 = vector.load %arg8[%c42, %c0_74] : memref<100x16xf32, #tpu.memory_space<vmem>>, vector<8x16xf32>
    %141 = vector.broadcast %21 : vector<1x16xf32> to vector<8x16xf32>
    %142 = arith.mulf %140, %141 : vector<8x16xf32>
    %143 = arith.addf %139, %142 : vector<8x16xf32>
    %144 = vector.broadcast %22 : vector<1x16xf32> to vector<8x16xf32>
    %145 = arith.addf %143, %144 : vector<8x16xf32>
    %cst_75 = arith.constant 0.000000e+00 : f32
    %146 = vector.broadcast %cst_75 : f32 to vector<8x16xf32>
    %147 = arith.maximumf %145, %146 : vector<8x16xf32>
    %c16 = arith.constant 16 : index
    %c0_76 = arith.constant 0 : index
    %148 = vector.load %arg9[%c16, %c0_76] : memref<64x16xf32, #tpu.memory_space<vmem>>, vector<8x16xf32>
    tpu.vector_store %arg9[%c16, %c0_76], %147 {strides = array<i32>} : memref<64x16xf32, #tpu.memory_space<vmem>>, vector<8x16xf32>,
    %cst_77 = arith.constant 0.000000e+00 : f32
    %149 = vector.broadcast %cst_77 : f32 to vector<8x16xf32>
    %c30_78 = arith.constant 30 : index
    %c0_79 = arith.constant 0 : index
    %150 = vector.load %arg8[%c30_78, %c0_79] : memref<100x16xf32, #tpu.memory_space<vmem>>, vector<8x16xf32>
    %151 = vector.broadcast %5 : vector<1x16xf32> to vector<8x16xf32>
    %152 = arith.mulf %150, %151 : vector<8x16xf32>
    %153 = arith.addf %149, %152 : vector<8x16xf32>
    %c31_80 = arith.constant 31 : index
    %c0_81 = arith.constant 0 : index
    %154 = vector.load %arg8[%c31_80, %c0_81] : memref<100x16xf32, #tpu.memory_space<vmem>>, vector<8x16xf32>
    %155 = vector.broadcast %7 : vector<1x16xf32> to vector<8x16xf32>
    %156 = arith.mulf %154, %155 : vector<8x16xf32>
    %157 = arith.addf %153, %156 : vector<8x16xf32>
    %c32_82 = arith.constant 32 : index
    %c0_83 = arith.constant 0 : index
    %158 = vector.load %arg8[%c32_82, %c0_83] : memref<100x16xf32, #tpu.memory_space<vmem>>, vector<8x16xf32>
    %159 = vector.broadcast %9 : vector<1x16xf32> to vector<8x16xf32>
    %160 = arith.mulf %158, %159 : vector<8x16xf32>
    %161 = arith.addf %157, %160 : vector<8x16xf32>
    %c40_84 = arith.constant 40 : index
    %c0_85 = arith.constant 0 : index
    %162 = vector.load %arg8[%c40_84, %c0_85] : memref<100x16xf32, #tpu.memory_space<vmem>>, vector<8x16xf32>
    %163 = vector.broadcast %11 : vector<1x16xf32> to vector<8x16xf32>
    %164 = arith.mulf %162, %163 : vector<8x16xf32>
    %165 = arith.addf %161, %164 : vector<8x16xf32>
    %c41_86 = arith.constant 41 : index
    %c0_87 = arith.constant 0 : index
    %166 = vector.load %arg8[%c41_86, %c0_87] : memref<100x16xf32, #tpu.memory_space<vmem>>, vector<8x16xf32>
    %167 = vector.broadcast %13 : vector<1x16xf32> to vector<8x16xf32>
    %168 = arith.mulf %166, %167 : vector<8x16xf32>
    %169 = arith.addf %165, %168 : vector<8x16xf32>
    %c42_88 = arith.constant 42 : index
    %c0_89 = arith.constant 0 : index
    %170 = vector.load %arg8[%c42_88, %c0_89] : memref<100x16xf32, #tpu.memory_space<vmem>>, vector<8x16xf32>
    %171 = vector.broadcast %15 : vector<1x16xf32> to vector<8x16xf32>
    %172 = arith.mulf %170, %171 : vector<8x16xf32>
    %173 = arith.addf %169, %172 : vector<8x16xf32>
    %c50 = arith.constant 50 : index
    %c0_90 = arith.constant 0 : index
    %174 = vector.load %arg8[%c50, %c0_90] : memref<100x16xf32, #tpu.memory_space<vmem>>, vector<8x16xf32>
    %175 = vector.broadcast %17 : vector<1x16xf32> to vector<8x16xf32>
    %176 = arith.mulf %174, %175 : vector<8x16xf32>
    %177 = arith.addf %173, %176 : vector<8x16xf32>
    %c51 = arith.constant 51 : index
    %c0_91 = arith.constant 0 : index
    %178 = vector.load %arg8[%c51, %c0_91] : memref<100x16xf32, #tpu.memory_space<vmem>>, vector<8x16xf32>
    %179 = vector.broadcast %19 : vector<1x16xf32> to vector<8x16xf32>
    %180 = arith.mulf %178, %179 : vector<8x16xf32>
    %181 = arith.addf %177, %180 : vector<8x16xf32>
    %c52 = arith.constant 52 : index
    %c0_92 = arith.constant 0 : index
    %182 = vector.load %arg8[%c52, %c0_92] : memref<100x16xf32, #tpu.memory_space<vmem>>, vector<8x16xf32>
    %183 = vector.broadcast %21 : vector<1x16xf32> to vector<8x16xf32>
    %184 = arith.mulf %182, %183 : vector<8x16xf32>
    %185 = arith.addf %181, %184 : vector<8x16xf32>
    %186 = vector.broadcast %22 : vector<1x16xf32> to vector<8x16xf32>
    %187 = arith.addf %185, %186 : vector<8x16xf32>
    %cst_93 = arith.constant 0.000000e+00 : f32
    %188 = vector.broadcast %cst_93 : f32 to vector<8x16xf32>
    %189 = arith.maximumf %187, %188 : vector<8x16xf32>
    %c24 = arith.constant 24 : index
    %c0_94 = arith.constant 0 : index
    %190 = vector.load %arg9[%c24, %c0_94] : memref<64x16xf32, #tpu.memory_space<vmem>>, vector<8x16xf32>
    tpu.vector_store %arg9[%c24, %c0_94], %189 {strides = array<i32>} : memref<64x16xf32, #tpu.memory_space<vmem>>, vector<8x16xf32>,
    %cst_95 = arith.constant 0.000000e+00 : f32
    %191 = vector.broadcast %cst_95 : f32 to vector<8x16xf32>
    %c40_96 = arith.constant 40 : index
    %c0_97 = arith.constant 0 : index
    %192 = vector.load %arg8[%c40_96, %c0_97] : memref<100x16xf32, #tpu.memory_space<vmem>>, vector<8x16xf32>
    %193 = vector.broadcast %5 : vector<1x16xf32> to vector<8x16xf32>
    %194 = arith.mulf %192, %193 : vector<8x16xf32>
    %195 = arith.addf %191, %194 : vector<8x16xf32>
    %c41_98 = arith.constant 41 : index
    %c0_99 = arith.constant 0 : index
    %196 = vector.load %arg8[%c41_98, %c0_99] : memref<100x16xf32, #tpu.memory_space<vmem>>, vector<8x16xf32>
    %197 = vector.broadcast %7 : vector<1x16xf32> to vector<8x16xf32>
    %198 = arith.mulf %196, %197 : vector<8x16xf32>
    %199 = arith.addf %195, %198 : vector<8x16xf32>
    %c42_100 = arith.constant 42 : index
    %c0_101 = arith.constant 0 : index
    %200 = vector.load %arg8[%c42_100, %c0_101] : memref<100x16xf32, #tpu.memory_space<vmem>>, vector<8x16xf32>
    %201 = vector.broadcast %9 : vector<1x16xf32> to vector<8x16xf32>
    %202 = arith.mulf %200, %201 : vector<8x16xf32>
    %203 = arith.addf %199, %202 : vector<8x16xf32>
    %c50_102 = arith.constant 50 : index
    %c0_103 = arith.constant 0 : index
    %204 = vector.load %arg8[%c50_102, %c0_103] : memref<100x16xf32, #tpu.memory_space<vmem>>, vector<8x16xf32>
    %205 = vector.broadcast %11 : vector<1x16xf32> to vector<8x16xf32>
    %206 = arith.mulf %204, %205 : vector<8x16xf32>
    %207 = arith.addf %203, %206 : vector<8x16xf32>
    %c51_104 = arith.constant 51 : index
    %c0_105 = arith.constant 0 : index
    %208 = vector.load %arg8[%c51_104, %c0_105] : memref<100x16xf32, #tpu.memory_space<vmem>>, vector<8x16xf32>
    %209 = vector.broadcast %13 : vector<1x16xf32> to vector<8x16xf32>
    %210 = arith.mulf %208, %209 : vector<8x16xf32>
    %211 = arith.addf %207, %210 : vector<8x16xf32>
    %c52_106 = arith.constant 52 : index
    %c0_107 = arith.constant 0 : index
    %212 = vector.load %arg8[%c52_106, %c0_107] : memref<100x16xf32, #tpu.memory_space<vmem>>, vector<8x16xf32>
    %213 = vector.broadcast %15 : vector<1x16xf32> to vector<8x16xf32>
    %214 = arith.mulf %212, %213 : vector<8x16xf32>
    %215 = arith.addf %211, %214 : vector<8x16xf32>
    %c60 = arith.constant 60 : index
    %c0_108 = arith.constant 0 : index
    %216 = vector.load %arg8[%c60, %c0_108] : memref<100x16xf32, #tpu.memory_space<vmem>>, vector<8x16xf32>
    %217 = vector.broadcast %17 : vector<1x16xf32> to vector<8x16xf32>
    %218 = arith.mulf %216, %217 : vector<8x16xf32>
    %219 = arith.addf %215, %218 : vector<8x16xf32>
    %c61 = arith.constant 61 : index
    %c0_109 = arith.constant 0 : index
    %220 = vector.load %arg8[%c61, %c0_109] : memref<100x16xf32, #tpu.memory_space<vmem>>, vector<8x16xf32>
    %221 = vector.broadcast %19 : vector<1x16xf32> to vector<8x16xf32>
    %222 = arith.mulf %220, %221 : vector<8x16xf32>
    %223 = arith.addf %219, %222 : vector<8x16xf32>
    %c62 = arith.constant 62 : index
    %c0_110 = arith.constant 0 : index
    %224 = vector.load %arg8[%c62, %c0_110] : memref<100x16xf32, #tpu.memory_space<vmem>>, vector<8x16xf32>
    %225 = vector.broadcast %21 : vector<1x16xf32> to vector<8x16xf32>
    %226 = arith.mulf %224, %225 : vector<8x16xf32>
    %227 = arith.addf %223, %226 : vector<8x16xf32>
    %228 = vector.broadcast %22 : vector<1x16xf32> to vector<8x16xf32>
    %229 = arith.addf %227, %228 : vector<8x16xf32>
    %cst_111 = arith.constant 0.000000e+00 : f32
    %230 = vector.broadcast %cst_111 : f32 to vector<8x16xf32>
    %231 = arith.maximumf %229, %230 : vector<8x16xf32>
    %c32_112 = arith.constant 32 : index
    %c0_113 = arith.constant 0 : index
    %232 = vector.load %arg9[%c32_112, %c0_113] : memref<64x16xf32, #tpu.memory_space<vmem>>, vector<8x16xf32>
    tpu.vector_store %arg9[%c32_112, %c0_113], %231 {strides = array<i32>} : memref<64x16xf32, #tpu.memory_space<vmem>>, vector<8x16xf32>,
    %cst_114 = arith.constant 0.000000e+00 : f32
    %233 = vector.broadcast %cst_114 : f32 to vector<8x16xf32>
    %c50_115 = arith.constant 50 : index
    %c0_116 = arith.constant 0 : index
    %234 = vector.load %arg8[%c50_115, %c0_116] : memref<100x16xf32, #tpu.memory_space<vmem>>, vector<8x16xf32>
    %235 = vector.broadcast %5 : vector<1x16xf32> to vector<8x16xf32>
    %236 = arith.mulf %234, %235 : vector<8x16xf32>
    %237 = arith.addf %233, %236 : vector<8x16xf32>
    %c51_117 = arith.constant 51 : index
    %c0_118 = arith.constant 0 : index
    %238 = vector.load %arg8[%c51_117, %c0_118] : memref<100x16xf32, #tpu.memory_space<vmem>>, vector<8x16xf32>
    %239 = vector.broadcast %7 : vector<1x16xf32> to vector<8x16xf32>
    %240 = arith.mulf %238, %239 : vector<8x16xf32>
    %241 = arith.addf %237, %240 : vector<8x16xf32>
    %c52_119 = arith.constant 52 : index
    %c0_120 = arith.constant 0 : index
    %242 = vector.load %arg8[%c52_119, %c0_120] : memref<100x16xf32, #tpu.memory_space<vmem>>, vector<8x16xf32>
    %243 = vector.broadcast %9 : vector<1x16xf32> to vector<8x16xf32>
    %244 = arith.mulf %242, %243 : vector<8x16xf32>
    %245 = arith.addf %241, %244 : vector<8x16xf32>
    %c60_121 = arith.constant 60 : index
    %c0_122 = arith.constant 0 : index
    %246 = vector.load %arg8[%c60_121, %c0_122] : memref<100x16xf32, #tpu.memory_space<vmem>>, vector<8x16xf32>
    %247 = vector.broadcast %11 : vector<1x16xf32> to vector<8x16xf32>
    %248 = arith.mulf %246, %247 : vector<8x16xf32>
    %249 = arith.addf %245, %248 : vector<8x16xf32>
    %c61_123 = arith.constant 61 : index
    %c0_124 = arith.constant 0 : index
    %250 = vector.load %arg8[%c61_123, %c0_124] : memref<100x16xf32, #tpu.memory_space<vmem>>, vector<8x16xf32>
    %251 = vector.broadcast %13 : vector<1x16xf32> to vector<8x16xf32>
    %252 = arith.mulf %250, %251 : vector<8x16xf32>
    %253 = arith.addf %249, %252 : vector<8x16xf32>
    %c62_125 = arith.constant 62 : index
    %c0_126 = arith.constant 0 : index
    %254 = vector.load %arg8[%c62_125, %c0_126] : memref<100x16xf32, #tpu.memory_space<vmem>>, vector<8x16xf32>
    %255 = vector.broadcast %15 : vector<1x16xf32> to vector<8x16xf32>
    %256 = arith.mulf %254, %255 : vector<8x16xf32>
    %257 = arith.addf %253, %256 : vector<8x16xf32>
    %c70 = arith.constant 70 : index
    %c0_127 = arith.constant 0 : index
    %258 = vector.load %arg8[%c70, %c0_127] : memref<100x16xf32, #tpu.memory_space<vmem>>, vector<8x16xf32>
    %259 = vector.broadcast %17 : vector<1x16xf32> to vector<8x16xf32>
    %260 = arith.mulf %258, %259 : vector<8x16xf32>
    %261 = arith.addf %257, %260 : vector<8x16xf32>
    %c71 = arith.constant 71 : index
    %c0_128 = arith.constant 0 : index
    %262 = vector.load %arg8[%c71, %c0_128] : memref<100x16xf32, #tpu.memory_space<vmem>>, vector<8x16xf32>
    %263 = vector.broadcast %19 : vector<1x16xf32> to vector<8x16xf32>
    %264 = arith.mulf %262, %263 : vector<8x16xf32>
    %265 = arith.addf %261, %264 : vector<8x16xf32>
    %c72 = arith.constant 72 : index
    %c0_129 = arith.constant 0 : index
    %266 = vector.load %arg8[%c72, %c0_129] : memref<100x16xf32, #tpu.memory_space<vmem>>, vector<8x16xf32>
    %267 = vector.broadcast %21 : vector<1x16xf32> to vector<8x16xf32>
    %268 = arith.mulf %266, %267 : vector<8x16xf32>
    %269 = arith.addf %265, %268 : vector<8x16xf32>
    %270 = vector.broadcast %22 : vector<1x16xf32> to vector<8x16xf32>
    %271 = arith.addf %269, %270 : vector<8x16xf32>
    %cst_130 = arith.constant 0.000000e+00 : f32
    %272 = vector.broadcast %cst_130 : f32 to vector<8x16xf32>
    %273 = arith.maximumf %271, %272 : vector<8x16xf32>
    %c40_131 = arith.constant 40 : index
    %c0_132 = arith.constant 0 : index
    %274 = vector.load %arg9[%c40_131, %c0_132] : memref<64x16xf32, #tpu.memory_space<vmem>>, vector<8x16xf32>
    tpu.vector_store %arg9[%c40_131, %c0_132], %273 {strides = array<i32>} : memref<64x16xf32, #tpu.memory_space<vmem>>, vector<8x16xf32>,
    %cst_133 = arith.constant 0.000000e+00 : f32
    %275 = vector.broadcast %cst_133 : f32 to vector<8x16xf32>
    %c60_134 = arith.constant 60 : index
    %c0_135 = arith.constant 0 : index
    %276 = vector.load %arg8[%c60_134, %c0_135] : memref<100x16xf32, #tpu.memory_space<vmem>>, vector<8x16xf32>
    %277 = vector.broadcast %5 : vector<1x16xf32> to vector<8x16xf32>
    %278 = arith.mulf %276, %277 : vector<8x16xf32>
    %279 = arith.addf %275, %278 : vector<8x16xf32>
    %c61_136 = arith.constant 61 : index
    %c0_137 = arith.constant 0 : index
    %280 = vector.load %arg8[%c61_136, %c0_137] : memref<100x16xf32, #tpu.memory_space<vmem>>, vector<8x16xf32>
    %281 = vector.broadcast %7 : vector<1x16xf32> to vector<8x16xf32>
    %282 = arith.mulf %280, %281 : vector<8x16xf32>
    %283 = arith.addf %279, %282 : vector<8x16xf32>
    %c62_138 = arith.constant 62 : index
    %c0_139 = arith.constant 0 : index
    %284 = vector.load %arg8[%c62_138, %c0_139] : memref<100x16xf32, #tpu.memory_space<vmem>>, vector<8x16xf32>
    %285 = vector.broadcast %9 : vector<1x16xf32> to vector<8x16xf32>
    %286 = arith.mulf %284, %285 : vector<8x16xf32>
    %287 = arith.addf %283, %286 : vector<8x16xf32>
    %c70_140 = arith.constant 70 : index
    %c0_141 = arith.constant 0 : index
    %288 = vector.load %arg8[%c70_140, %c0_141] : memref<100x16xf32, #tpu.memory_space<vmem>>, vector<8x16xf32>
    %289 = vector.broadcast %11 : vector<1x16xf32> to vector<8x16xf32>
    %290 = arith.mulf %288, %289 : vector<8x16xf32>
    %291 = arith.addf %287, %290 : vector<8x16xf32>
    %c71_142 = arith.constant 71 : index
    %c0_143 = arith.constant 0 : index
    %292 = vector.load %arg8[%c71_142, %c0_143] : memref<100x16xf32, #tpu.memory_space<vmem>>, vector<8x16xf32>
    %293 = vector.broadcast %13 : vector<1x16xf32> to vector<8x16xf32>
    %294 = arith.mulf %292, %293 : vector<8x16xf32>
    %295 = arith.addf %291, %294 : vector<8x16xf32>
    %c72_144 = arith.constant 72 : index
    %c0_145 = arith.constant 0 : index
    %296 = vector.load %arg8[%c72_144, %c0_145] : memref<100x16xf32, #tpu.memory_space<vmem>>, vector<8x16xf32>
    %297 = vector.broadcast %15 : vector<1x16xf32> to vector<8x16xf32>
    %298 = arith.mulf %296, %297 : vector<8x16xf32>
    %299 = arith.addf %295, %298 : vector<8x16xf32>
    %c80 = arith.constant 80 : index
    %c0_146 = arith.constant 0 : index
    %300 = vector.load %arg8[%c80, %c0_146] : memref<100x16xf32, #tpu.memory_space<vmem>>, vector<8x16xf32>
    %301 = vector.broadcast %17 : vector<1x16xf32> to vector<8x16xf32>
    %302 = arith.mulf %300, %301 : vector<8x16xf32>
    %303 = arith.addf %299, %302 : vector<8x16xf32>
    %c81 = arith.constant 81 : index
    %c0_147 = arith.constant 0 : index
    %304 = vector.load %arg8[%c81, %c0_147] : memref<100x16xf32, #tpu.memory_space<vmem>>, vector<8x16xf32>
    %305 = vector.broadcast %19 : vector<1x16xf32> to vector<8x16xf32>
    %306 = arith.mulf %304, %305 : vector<8x16xf32>
    %307 = arith.addf %303, %306 : vector<8x16xf32>
    %c82 = arith.constant 82 : index
    %c0_148 = arith.constant 0 : index
    %308 = vector.load %arg8[%c82, %c0_148] : memref<100x16xf32, #tpu.memory_space<vmem>>, vector<8x16xf32>
    %309 = vector.broadcast %21 : vector<1x16xf32> to vector<8x16xf32>
    %310 = arith.mulf %308, %309 : vector<8x16xf32>
    %311 = arith.addf %307, %310 : vector<8x16xf32>
    %312 = vector.broadcast %22 : vector<1x16xf32> to vector<8x16xf32>
    %313 = arith.addf %311, %312 : vector<8x16xf32>
    %cst_149 = arith.constant 0.000000e+00 : f32
    %314 = vector.broadcast %cst_149 : f32 to vector<8x16xf32>
    %315 = arith.maximumf %313, %314 : vector<8x16xf32>
    %c48 = arith.constant 48 : index
    %c0_150 = arith.constant 0 : index
    %316 = vector.load %arg9[%c48, %c0_150] : memref<64x16xf32, #tpu.memory_space<vmem>>, vector<8x16xf32>
    tpu.vector_store %arg9[%c48, %c0_150], %315 {strides = array<i32>} : memref<64x16xf32, #tpu.memory_space<vmem>>, vector<8x16xf32>,
    %cst_151 = arith.constant 0.000000e+00 : f32
    %317 = vector.broadcast %cst_151 : f32 to vector<8x16xf32>
    %c70_152 = arith.constant 70 : index
    %c0_153 = arith.constant 0 : index
    %318 = vector.load %arg8[%c70_152, %c0_153] : memref<100x16xf32, #tpu.memory_space<vmem>>, vector<8x16xf32>
    %319 = vector.broadcast %5 : vector<1x16xf32> to vector<8x16xf32>
    %320 = arith.mulf %318, %319 : vector<8x16xf32>
    %321 = arith.addf %317, %320 : vector<8x16xf32>
    %c71_154 = arith.constant 71 : index
    %c0_155 = arith.constant 0 : index
    %322 = vector.load %arg8[%c71_154, %c0_155] : memref<100x16xf32, #tpu.memory_space<vmem>>, vector<8x16xf32>
    %323 = vector.broadcast %7 : vector<1x16xf32> to vector<8x16xf32>
    %324 = arith.mulf %322, %323 : vector<8x16xf32>
    %325 = arith.addf %321, %324 : vector<8x16xf32>
    %c72_156 = arith.constant 72 : index
    %c0_157 = arith.constant 0 : index
    %326 = vector.load %arg8[%c72_156, %c0_157] : memref<100x16xf32, #tpu.memory_space<vmem>>, vector<8x16xf32>
    %327 = vector.broadcast %9 : vector<1x16xf32> to vector<8x16xf32>
    %328 = arith.mulf %326, %327 : vector<8x16xf32>
    %329 = arith.addf %325, %328 : vector<8x16xf32>
    %c80_158 = arith.constant 80 : index
    %c0_159 = arith.constant 0 : index
    %330 = vector.load %arg8[%c80_158, %c0_159] : memref<100x16xf32, #tpu.memory_space<vmem>>, vector<8x16xf32>
    %331 = vector.broadcast %11 : vector<1x16xf32> to vector<8x16xf32>
    %332 = arith.mulf %330, %331 : vector<8x16xf32>
    %333 = arith.addf %329, %332 : vector<8x16xf32>
    %c81_160 = arith.constant 81 : index
    %c0_161 = arith.constant 0 : index
    %334 = vector.load %arg8[%c81_160, %c0_161] : memref<100x16xf32, #tpu.memory_space<vmem>>, vector<8x16xf32>
    %335 = vector.broadcast %13 : vector<1x16xf32> to vector<8x16xf32>
    %336 = arith.mulf %334, %335 : vector<8x16xf32>
    %337 = arith.addf %333, %336 : vector<8x16xf32>
    %c82_162 = arith.constant 82 : index
    %c0_163 = arith.constant 0 : index
    %338 = vector.load %arg8[%c82_162, %c0_163] : memref<100x16xf32, #tpu.memory_space<vmem>>, vector<8x16xf32>
    %339 = vector.broadcast %15 : vector<1x16xf32> to vector<8x16xf32>
    %340 = arith.mulf %338, %339 : vector<8x16xf32>
    %341 = arith.addf %337, %340 : vector<8x16xf32>
    %c90 = arith.constant 90 : index
    %c0_164 = arith.constant 0 : index
    %342 = vector.load %arg8[%c90, %c0_164] : memref<100x16xf32, #tpu.memory_space<vmem>>, vector<8x16xf32>
    %343 = vector.broadcast %17 : vector<1x16xf32> to vector<8x16xf32>
    %344 = arith.mulf %342, %343 : vector<8x16xf32>
    %345 = arith.addf %341, %344 : vector<8x16xf32>
    %c91 = arith.constant 91 : index
    %c0_165 = arith.constant 0 : index
    %346 = vector.load %arg8[%c91, %c0_165] : memref<100x16xf32, #tpu.memory_space<vmem>>, vector<8x16xf32>
    %347 = vector.broadcast %19 : vector<1x16xf32> to vector<8x16xf32>
    %348 = arith.mulf %346, %347 : vector<8x16xf32>
    %349 = arith.addf %345, %348 : vector<8x16xf32>
    %c92 = arith.constant 92 : index
    %c0_166 = arith.constant 0 : index
    %350 = vector.load %arg8[%c92, %c0_166] : memref<100x16xf32, #tpu.memory_space<vmem>>, vector<8x16xf32>
    %351 = vector.broadcast %21 : vector<1x16xf32> to vector<8x16xf32>
    %352 = arith.mulf %350, %351 : vector<8x16xf32>
    %353 = arith.addf %349, %352 : vector<8x16xf32>
    %354 = vector.broadcast %22 : vector<1x16xf32> to vector<8x16xf32>
    %355 = arith.addf %353, %354 : vector<8x16xf32>
    %cst_167 = arith.constant 0.000000e+00 : f32
    %356 = vector.broadcast %cst_167 : f32 to vector<8x16xf32>
    %357 = arith.maximumf %355, %356 : vector<8x16xf32>
    %c56 = arith.constant 56 : index
    %c0_168 = arith.constant 0 : index
    %358 = vector.load %arg9[%c56, %c0_168] : memref<64x16xf32, #tpu.memory_space<vmem>>, vector<8x16xf32>
    tpu.vector_store %arg9[%c56, %c0_168], %357 {strides = array<i32>} : memref<64x16xf32, #tpu.memory_space<vmem>>, vector<8x16xf32>,
    %c0_169 = arith.constant 0 : index
    %c0_170 = arith.constant 0 : index
    %359 = vector.load %arg9[%c0_169, %c0_170] : memref<64x16xf32, #tpu.memory_space<vmem>>, vector<64x16xf32>
    %360 = arith.truncf %359 : vector<64x16xf32> to vector<64x16xbf16>
    %c0_171 = arith.constant 0 : index
    %c0_172 = arith.constant 0 : index
    %361 = vector.load %arg4[%c0_171, %c0_172] : memref<16x16xbf16, #tpu.memory_space<vmem>>, vector<16x16xbf16>
    %cst_173 = arith.constant dense<0.000000e+00> : vector<64x16xf32>
    %362 = tpu.matmul %360, %361, %cst_173 {dimension_numbers = #tpu.dot_dimension_numbers<[1], [0], [0], [1], [0, 0, 1, 1], [], []>} : vector<64x16xbf16>, vector<16x16xbf16>, vector<64x16xf32> -> vector<64x16xf32>
    %c0_174 = arith.constant 0 : index
    %c0_175 = arith.constant 0 : index
    %363 = vector.load %arg5[%c0_174, %c0_175] : memref<1x16xf32, #tpu.memory_space<vmem>>, vector<1x16xf32>
    %364 = vector.broadcast %363 : vector<1x16xf32> to vector<64x16xf32>
    %365 = arith.addf %362, %364 : vector<64x16xf32>
    %c0_176 = arith.constant 0 : index
    %c0_177 = arith.constant 0 : index
    %c0_178 = arith.constant 0 : index
    %366 = vector.load %arg6[%c0_176, %c0_177, %c0_178] : memref<1x64x16xbf16, #tpu.memory_space<vmem>>, vector<1x64x16xbf16>
    %367 = vector.shape_cast %366 : vector<1x64x16xbf16> to vector<64x16xbf16>
    %368 = arith.extf %367 : vector<64x16xbf16> to vector<64x16xf32>
    %369 = arith.addf %365, %368 : vector<64x16xf32>
    %370 = arith.truncf %369 : vector<64x16xf32> to vector<64x16xbf16>
    %c0_179 = arith.constant 0 : index
    %c0_180 = arith.constant 0 : index
    %c0_181 = arith.constant 0 : index
    %371 = vector.load %arg7[%c0_179, %c0_180, %c0_181] : memref<1x64x16xbf16, #tpu.memory_space<vmem>>, vector<1x64x16xbf16>
    %372 = vector.shape_cast %371 : vector<1x64x16xbf16> to vector<64x16xbf16>
    %373 = vector.shape_cast %370 : vector<64x16xbf16> to vector<1x64x16xbf16>
    tpu.vector_store %arg7[%c0_179, %c0_180, %c0_181], %373 {strides = array<i32>} : memref<1x64x16xbf16, #tpu.memory_space<vmem>>, vector<1x64x16xbf16>,
    return
  }
  func.func @transform_0(%arg0: i32) -> (i32, i32, i32) {
    %c0_i32 = arith.constant 0 : i32
    %c0_i32_0 = arith.constant 0 : i32
    %c0_i32_1 = arith.constant 0 : i32
    return %arg0, %c0_i32, %c0_i32_0 : i32, i32, i32
  }
  func.func @transform_1(%arg0: i32) -> (i32, i32, i32) {
    %c0_i32 = arith.constant 0 : i32
    %c0_i32_0 = arith.constant 0 : i32
    %c0_i32_1 = arith.constant 0 : i32
    %c0_i32_2 = arith.constant 0 : i32
    return %c0_i32, %c0_i32_0, %c0_i32_1 : i32, i32, i32
  }
  func.func @transform_2(%arg0: i32) -> (i32, i32) {
    %c0_i32 = arith.constant 0 : i32
    %c0_i32_0 = arith.constant 0 : i32
    %c0_i32_1 = arith.constant 0 : i32
    return %c0_i32, %c0_i32_0 : i32, i32
  }
  func.func @transform_3(%arg0: i32) -> (i32, i32) {
    %c0_i32 = arith.constant 0 : i32
    %c0_i32_0 = arith.constant 0 : i32
    %c0_i32_1 = arith.constant 0 : i32
    return %c0_i32, %c0_i32_0 : i32, i32
  }
  func.func @transform_4(%arg0: i32) -> (i32, i32) {
    %c0_i32 = arith.constant 0 : i32
    %c0_i32_0 = arith.constant 0 : i32
    %c0_i32_1 = arith.constant 0 : i32
    return %c0_i32, %c0_i32_0 : i32, i32
  }
  func.func @transform_5(%arg0: i32) -> (i32, i32, i32) {
    %c0_i32 = arith.constant 0 : i32
    %c0_i32_0 = arith.constant 0 : i32
    %c0_i32_1 = arith.constant 0 : i32
    return %arg0, %c0_i32, %c0_i32_0 : i32, i32, i32
  }
  func.func @transform_6(%arg0: i32) -> (i32, i32, i32) {
    %c0_i32 = arith.constant 0 : i32
    %c0_i32_0 = arith.constant 0 : i32
    %c0_i32_1 = arith.constant 0 : i32
    return %arg0, %c0_i32, %c0_i32_0 : i32, i32, i32
  }
}

module attributes {stable_mosaic.version = 11 : i64} {
  func.func @kernel(%arg0: i32, %arg1: memref<1x100x16xbf16, #tpu.memory_space<vmem>>, %arg2: memref<100x1xf32, #tpu.memory_space<vmem>>, %arg3: memref<16x64xbf16, #tpu.memory_space<vmem>>, %arg4: memref<1x64xf32, #tpu.memory_space<vmem>>, %arg5: memref<9x1x64xf32, #tpu.memory_space<vmem>>, %arg6: memref<1x64xf32, #tpu.memory_space<vmem>>, %arg7: memref<64x24xbf16, #tpu.memory_space<vmem>>, %arg8: memref<1x24xf32, #tpu.memory_space<vmem>>, %arg9: memref<1x16x24xbf16, #tpu.memory_space<vmem>>, %arg10: memref<100x64xf32, #tpu.memory_space<vmem>>, %arg11: memref<16x64xf32, #tpu.memory_space<vmem>>) attributes {dimension_semantics = [#tpu.dimension_semantics<parallel>], iteration_bounds = array<i64: 2>, scalar_prefetch = 0 : i64, scratch_operands = 2 : i64, tpu.core_type = #tpu.core_type<tc>, window_params = [{transform_indices = @transform_0, window_bounds = array<i64: 1, 100, 16>}, {pipeline_mode = #tpu.pipeline_mode<synchronous>, transform_indices = @transform_1, window_bounds = array<i64: 100, 1>}, {pipeline_mode = #tpu.pipeline_mode<synchronous>, transform_indices = @transform_2, window_bounds = array<i64: 16, 64>}, {pipeline_mode = #tpu.pipeline_mode<synchronous>, transform_indices = @transform_3, window_bounds = array<i64: 1, 64>}, {pipeline_mode = #tpu.pipeline_mode<synchronous>, transform_indices = @transform_4, window_bounds = array<i64: 9, 1, 64>}, {pipeline_mode = #tpu.pipeline_mode<synchronous>, transform_indices = @transform_5, window_bounds = array<i64: 1, 64>}, {pipeline_mode = #tpu.pipeline_mode<synchronous>, transform_indices = @transform_6, window_bounds = array<i64: 64, 24>}, {pipeline_mode = #tpu.pipeline_mode<synchronous>, transform_indices = @transform_7, window_bounds = array<i64: 1, 24>}, {transform_indices = @transform_8, window_bounds = array<i64: 1, 16, 24>}]} {
    %c0 = arith.constant 0 : index
    %c0_0 = arith.constant 0 : index
    %c0_1 = arith.constant 0 : index
    %0 = vector.load %arg1[%c0, %c0_0, %c0_1] : memref<1x100x16xbf16, #tpu.memory_space<vmem>>, vector<1x100x16xbf16>
    %1 = vector.shape_cast %0 : vector<1x100x16xbf16> to vector<100x16xbf16>
    %c0_2 = arith.constant 0 : index
    %c0_3 = arith.constant 0 : index
    %2 = vector.load %arg3[%c0_2, %c0_3] : memref<16x64xbf16, #tpu.memory_space<vmem>>, vector<16x64xbf16>
    %cst = arith.constant dense<0.000000e+00> : vector<100x64xf32>
    %3 = tpu.matmul %1, %2, %cst {dimension_numbers = #tpu.dot_dimension_numbers<[1], [0], [0], [1], [0, 0, 1, 1], [], []>} : vector<100x16xbf16>, vector<16x64xbf16>, vector<100x64xf32> -> vector<100x64xf32>
    %c0_4 = arith.constant 0 : index
    %c0_5 = arith.constant 0 : index
    %4 = vector.load %arg4[%c0_4, %c0_5] : memref<1x64xf32, #tpu.memory_space<vmem>>, vector<1x64xf32>
    %5 = vector.broadcast %4 : vector<1x64xf32> to vector<100x64xf32>
    %6 = arith.addf %3, %5 : vector<100x64xf32>
    %cst_6 = arith.constant 0.000000e+00 : f32
    %7 = vector.broadcast %cst_6 : f32 to vector<100x64xf32>
    %8 = arith.maximumf %6, %7 : vector<100x64xf32>
    %c0_7 = arith.constant 0 : index
    %c0_8 = arith.constant 0 : index
    %9 = vector.load %arg2[%c0_7, %c0_8] : memref<100x1xf32, #tpu.memory_space<vmem>>, vector<100x1xf32>
    %10 = vector.broadcast %9 : vector<100x1xf32> to vector<100x64xf32>
    %11 = arith.mulf %8, %10 : vector<100x64xf32>
    %c0_9 = arith.constant 0 : index
    %c0_10 = arith.constant 0 : index
    %12 = vector.load %arg10[%c0_9, %c0_10] : memref<100x64xf32, #tpu.memory_space<vmem>>, vector<100x64xf32>
    tpu.vector_store %arg10[%c0_9, %c0_10], %11 {strides = array<i32>} : memref<100x64xf32, #tpu.memory_space<vmem>>, vector<100x64xf32>,
    %c0_11 = arith.constant 0 : index
    %c0_12 = arith.constant 0 : index
    %c0_13 = arith.constant 0 : index
    %13 = vector.load %arg5[%c0_11, %c0_12, %c0_13] : memref<9x1x64xf32, #tpu.memory_space<vmem>>, vector<1x1x64xf32>
    %14 = vector.shape_cast %13 : vector<1x1x64xf32> to vector<1x64xf32>
    %c1 = arith.constant 1 : index
    %c0_14 = arith.constant 0 : index
    %c0_15 = arith.constant 0 : index
    %15 = vector.load %arg5[%c1, %c0_14, %c0_15] : memref<9x1x64xf32, #tpu.memory_space<vmem>>, vector<1x1x64xf32>
    %16 = vector.shape_cast %15 : vector<1x1x64xf32> to vector<1x64xf32>
    %c2 = arith.constant 2 : index
    %c0_16 = arith.constant 0 : index
    %c0_17 = arith.constant 0 : index
    %17 = vector.load %arg5[%c2, %c0_16, %c0_17] : memref<9x1x64xf32, #tpu.memory_space<vmem>>, vector<1x1x64xf32>
    %18 = vector.shape_cast %17 : vector<1x1x64xf32> to vector<1x64xf32>
    %c3 = arith.constant 3 : index
    %c0_18 = arith.constant 0 : index
    %c0_19 = arith.constant 0 : index
    %19 = vector.load %arg5[%c3, %c0_18, %c0_19] : memref<9x1x64xf32, #tpu.memory_space<vmem>>, vector<1x1x64xf32>
    %20 = vector.shape_cast %19 : vector<1x1x64xf32> to vector<1x64xf32>
    %c4 = arith.constant 4 : index
    %c0_20 = arith.constant 0 : index
    %c0_21 = arith.constant 0 : index
    %21 = vector.load %arg5[%c4, %c0_20, %c0_21] : memref<9x1x64xf32, #tpu.memory_space<vmem>>, vector<1x1x64xf32>
    %22 = vector.shape_cast %21 : vector<1x1x64xf32> to vector<1x64xf32>
    %c5 = arith.constant 5 : index
    %c0_22 = arith.constant 0 : index
    %c0_23 = arith.constant 0 : index
    %23 = vector.load %arg5[%c5, %c0_22, %c0_23] : memref<9x1x64xf32, #tpu.memory_space<vmem>>, vector<1x1x64xf32>
    %24 = vector.shape_cast %23 : vector<1x1x64xf32> to vector<1x64xf32>
    %c6 = arith.constant 6 : index
    %c0_24 = arith.constant 0 : index
    %c0_25 = arith.constant 0 : index
    %25 = vector.load %arg5[%c6, %c0_24, %c0_25] : memref<9x1x64xf32, #tpu.memory_space<vmem>>, vector<1x1x64xf32>
    %26 = vector.shape_cast %25 : vector<1x1x64xf32> to vector<1x64xf32>
    %c7 = arith.constant 7 : index
    %c0_26 = arith.constant 0 : index
    %c0_27 = arith.constant 0 : index
    %27 = vector.load %arg5[%c7, %c0_26, %c0_27] : memref<9x1x64xf32, #tpu.memory_space<vmem>>, vector<1x1x64xf32>
    %28 = vector.shape_cast %27 : vector<1x1x64xf32> to vector<1x64xf32>
    %c8 = arith.constant 8 : index
    %c0_28 = arith.constant 0 : index
    %c0_29 = arith.constant 0 : index
    %29 = vector.load %arg5[%c8, %c0_28, %c0_29] : memref<9x1x64xf32, #tpu.memory_space<vmem>>, vector<1x1x64xf32>
    %30 = vector.shape_cast %29 : vector<1x1x64xf32> to vector<1x64xf32>
    %c0_30 = arith.constant 0 : index
    %c0_31 = arith.constant 0 : index
    %31 = vector.load %arg6[%c0_30, %c0_31] : memref<1x64xf32, #tpu.memory_space<vmem>>, vector<1x64xf32>
    %cst_32 = arith.constant 0.000000e+00 : f32
    %32 = vector.broadcast %cst_32 : f32 to vector<4x64xf32>
    %c0_33 = arith.constant 0 : index
    %c0_34 = arith.constant 0 : index
    %33 = vector.load %arg10[%c0_33, %c0_34] : memref<100x64xf32, #tpu.memory_space<vmem>>, vector<4x64xf32>
    %34 = vector.broadcast %14 : vector<1x64xf32> to vector<4x64xf32>
    %35 = arith.mulf %33, %34 : vector<4x64xf32>
    %36 = arith.addf %32, %35 : vector<4x64xf32>
    %c25 = arith.constant 25 : index
    %c0_35 = arith.constant 0 : index
    %37 = vector.load %arg10[%c25, %c0_35] : memref<100x64xf32, #tpu.memory_space<vmem>>, vector<4x64xf32>
    %38 = vector.broadcast %16 : vector<1x64xf32> to vector<4x64xf32>
    %39 = arith.mulf %37, %38 : vector<4x64xf32>
    %40 = arith.addf %36, %39 : vector<4x64xf32>
    %c1_36 = arith.constant 1 : index
    %c0_37 = arith.constant 0 : index
    %41 = vector.load %arg10[%c1_36, %c0_37] : memref<100x64xf32, #tpu.memory_space<vmem>>, vector<4x64xf32>
    %42 = vector.broadcast %18 : vector<1x64xf32> to vector<4x64xf32>
    %43 = arith.mulf %41, %42 : vector<4x64xf32>
    %44 = arith.addf %40, %43 : vector<4x64xf32>
    %c50 = arith.constant 50 : index
    %c0_38 = arith.constant 0 : index
    %45 = vector.load %arg10[%c50, %c0_38] : memref<100x64xf32, #tpu.memory_space<vmem>>, vector<4x64xf32>
    %46 = vector.broadcast %20 : vector<1x64xf32> to vector<4x64xf32>
    %47 = arith.mulf %45, %46 : vector<4x64xf32>
    %48 = arith.addf %44, %47 : vector<4x64xf32>
    %c75 = arith.constant 75 : index
    %c0_39 = arith.constant 0 : index
    %49 = vector.load %arg10[%c75, %c0_39] : memref<100x64xf32, #tpu.memory_space<vmem>>, vector<4x64xf32>
    %50 = vector.broadcast %22 : vector<1x64xf32> to vector<4x64xf32>
    %51 = arith.mulf %49, %50 : vector<4x64xf32>
    %52 = arith.addf %48, %51 : vector<4x64xf32>
    %c51 = arith.constant 51 : index
    %c0_40 = arith.constant 0 : index
    %53 = vector.load %arg10[%c51, %c0_40] : memref<100x64xf32, #tpu.memory_space<vmem>>, vector<4x64xf32>
    %54 = vector.broadcast %24 : vector<1x64xf32> to vector<4x64xf32>
    %55 = arith.mulf %53, %54 : vector<4x64xf32>
    %56 = arith.addf %52, %55 : vector<4x64xf32>
    %c5_41 = arith.constant 5 : index
    %c0_42 = arith.constant 0 : index
    %57 = vector.load %arg10[%c5_41, %c0_42] : memref<100x64xf32, #tpu.memory_space<vmem>>, vector<4x64xf32>
    %58 = vector.broadcast %26 : vector<1x64xf32> to vector<4x64xf32>
    %59 = arith.mulf %57, %58 : vector<4x64xf32>
    %60 = arith.addf %56, %59 : vector<4x64xf32>
    %c30 = arith.constant 30 : index
    %c0_43 = arith.constant 0 : index
    %61 = vector.load %arg10[%c30, %c0_43] : memref<100x64xf32, #tpu.memory_space<vmem>>, vector<4x64xf32>
    %62 = vector.broadcast %28 : vector<1x64xf32> to vector<4x64xf32>
    %63 = arith.mulf %61, %62 : vector<4x64xf32>
    %64 = arith.addf %60, %63 : vector<4x64xf32>
    %c6_44 = arith.constant 6 : index
    %c0_45 = arith.constant 0 : index
    %65 = vector.load %arg10[%c6_44, %c0_45] : memref<100x64xf32, #tpu.memory_space<vmem>>, vector<4x64xf32>
    %66 = vector.broadcast %30 : vector<1x64xf32> to vector<4x64xf32>
    %67 = arith.mulf %65, %66 : vector<4x64xf32>
    %68 = arith.addf %64, %67 : vector<4x64xf32>
    %69 = vector.broadcast %31 : vector<1x64xf32> to vector<4x64xf32>
    %70 = arith.addf %68, %69 : vector<4x64xf32>
    %cst_46 = arith.constant 0.000000e+00 : f32
    %71 = vector.broadcast %cst_46 : f32 to vector<4x64xf32>
    %72 = arith.maximumf %70, %71 : vector<4x64xf32>
    %c0_47 = arith.constant 0 : index
    %c0_48 = arith.constant 0 : index
    %73 = vector.load %arg11[%c0_47, %c0_48] : memref<16x64xf32, #tpu.memory_space<vmem>>, vector<4x64xf32>
    tpu.vector_store %arg11[%c0_47, %c0_48], %72 {strides = array<i32>} : memref<16x64xf32, #tpu.memory_space<vmem>>, vector<4x64xf32>,
    %cst_49 = arith.constant 0.000000e+00 : f32
    %74 = vector.broadcast %cst_49 : f32 to vector<4x64xf32>
    %c5_50 = arith.constant 5 : index
    %c0_51 = arith.constant 0 : index
    %75 = vector.load %arg10[%c5_50, %c0_51] : memref<100x64xf32, #tpu.memory_space<vmem>>, vector<4x64xf32>
    %76 = vector.broadcast %14 : vector<1x64xf32> to vector<4x64xf32>
    %77 = arith.mulf %75, %76 : vector<4x64xf32>
    %78 = arith.addf %74, %77 : vector<4x64xf32>
    %c30_52 = arith.constant 30 : index
    %c0_53 = arith.constant 0 : index
    %79 = vector.load %arg10[%c30_52, %c0_53] : memref<100x64xf32, #tpu.memory_space<vmem>>, vector<4x64xf32>
    %80 = vector.broadcast %16 : vector<1x64xf32> to vector<4x64xf32>
    %81 = arith.mulf %79, %80 : vector<4x64xf32>
    %82 = arith.addf %78, %81 : vector<4x64xf32>
    %c6_54 = arith.constant 6 : index
    %c0_55 = arith.constant 0 : index
    %83 = vector.load %arg10[%c6_54, %c0_55] : memref<100x64xf32, #tpu.memory_space<vmem>>, vector<4x64xf32>
    %84 = vector.broadcast %18 : vector<1x64xf32> to vector<4x64xf32>
    %85 = arith.mulf %83, %84 : vector<4x64xf32>
    %86 = arith.addf %82, %85 : vector<4x64xf32>
    %c55 = arith.constant 55 : index
    %c0_56 = arith.constant 0 : index
    %87 = vector.load %arg10[%c55, %c0_56] : memref<100x64xf32, #tpu.memory_space<vmem>>, vector<4x64xf32>
    %88 = vector.broadcast %20 : vector<1x64xf32> to vector<4x64xf32>
    %89 = arith.mulf %87, %88 : vector<4x64xf32>
    %90 = arith.addf %86, %89 : vector<4x64xf32>
    %c80 = arith.constant 80 : index
    %c0_57 = arith.constant 0 : index
    %91 = vector.load %arg10[%c80, %c0_57] : memref<100x64xf32, #tpu.memory_space<vmem>>, vector<4x64xf32>
    %92 = vector.broadcast %22 : vector<1x64xf32> to vector<4x64xf32>
    %93 = arith.mulf %91, %92 : vector<4x64xf32>
    %94 = arith.addf %90, %93 : vector<4x64xf32>
    %c56 = arith.constant 56 : index
    %c0_58 = arith.constant 0 : index
    %95 = vector.load %arg10[%c56, %c0_58] : memref<100x64xf32, #tpu.memory_space<vmem>>, vector<4x64xf32>
    %96 = vector.broadcast %24 : vector<1x64xf32> to vector<4x64xf32>
    %97 = arith.mulf %95, %96 : vector<4x64xf32>
    %98 = arith.addf %94, %97 : vector<4x64xf32>
    %c10 = arith.constant 10 : index
    %c0_59 = arith.constant 0 : index
    %99 = vector.load %arg10[%c10, %c0_59] : memref<100x64xf32, #tpu.memory_space<vmem>>, vector<4x64xf32>
    %100 = vector.broadcast %26 : vector<1x64xf32> to vector<4x64xf32>
    %101 = arith.mulf %99, %100 : vector<4x64xf32>
    %102 = arith.addf %98, %101 : vector<4x64xf32>
    %c35 = arith.constant 35 : index
    %c0_60 = arith.constant 0 : index
    %103 = vector.load %arg10[%c35, %c0_60] : memref<100x64xf32, #tpu.memory_space<vmem>>, vector<4x64xf32>
    %104 = vector.broadcast %28 : vector<1x64xf32> to vector<4x64xf32>
    %105 = arith.mulf %103, %104 : vector<4x64xf32>
    %106 = arith.addf %102, %105 : vector<4x64xf32>
    %c11 = arith.constant 11 : index
    %c0_61 = arith.constant 0 : index
    %107 = vector.load %arg10[%c11, %c0_61] : memref<100x64xf32, #tpu.memory_space<vmem>>, vector<4x64xf32>
    %108 = vector.broadcast %30 : vector<1x64xf32> to vector<4x64xf32>
    %109 = arith.mulf %107, %108 : vector<4x64xf32>
    %110 = arith.addf %106, %109 : vector<4x64xf32>
    %111 = vector.broadcast %31 : vector<1x64xf32> to vector<4x64xf32>
    %112 = arith.addf %110, %111 : vector<4x64xf32>
    %cst_62 = arith.constant 0.000000e+00 : f32
    %113 = vector.broadcast %cst_62 : f32 to vector<4x64xf32>
    %114 = arith.maximumf %112, %113 : vector<4x64xf32>
    %c4_63 = arith.constant 4 : index
    %c0_64 = arith.constant 0 : index
    %115 = vector.load %arg11[%c4_63, %c0_64] : memref<16x64xf32, #tpu.memory_space<vmem>>, vector<4x64xf32>
    tpu.vector_store %arg11[%c4_63, %c0_64], %114 {strides = array<i32>} : memref<16x64xf32, #tpu.memory_space<vmem>>, vector<4x64xf32>,
    %cst_65 = arith.constant 0.000000e+00 : f32
    %116 = vector.broadcast %cst_65 : f32 to vector<4x64xf32>
    %c10_66 = arith.constant 10 : index
    %c0_67 = arith.constant 0 : index
    %117 = vector.load %arg10[%c10_66, %c0_67] : memref<100x64xf32, #tpu.memory_space<vmem>>, vector<4x64xf32>
    %118 = vector.broadcast %14 : vector<1x64xf32> to vector<4x64xf32>
    %119 = arith.mulf %117, %118 : vector<4x64xf32>
    %120 = arith.addf %116, %119 : vector<4x64xf32>
    %c35_68 = arith.constant 35 : index
    %c0_69 = arith.constant 0 : index
    %121 = vector.load %arg10[%c35_68, %c0_69] : memref<100x64xf32, #tpu.memory_space<vmem>>, vector<4x64xf32>
    %122 = vector.broadcast %16 : vector<1x64xf32> to vector<4x64xf32>
    %123 = arith.mulf %121, %122 : vector<4x64xf32>
    %124 = arith.addf %120, %123 : vector<4x64xf32>
    %c11_70 = arith.constant 11 : index
    %c0_71 = arith.constant 0 : index
    %125 = vector.load %arg10[%c11_70, %c0_71] : memref<100x64xf32, #tpu.memory_space<vmem>>, vector<4x64xf32>
    %126 = vector.broadcast %18 : vector<1x64xf32> to vector<4x64xf32>
    %127 = arith.mulf %125, %126 : vector<4x64xf32>
    %128 = arith.addf %124, %127 : vector<4x64xf32>
    %c60 = arith.constant 60 : index
    %c0_72 = arith.constant 0 : index
    %129 = vector.load %arg10[%c60, %c0_72] : memref<100x64xf32, #tpu.memory_space<vmem>>, vector<4x64xf32>
    %130 = vector.broadcast %20 : vector<1x64xf32> to vector<4x64xf32>
    %131 = arith.mulf %129, %130 : vector<4x64xf32>
    %132 = arith.addf %128, %131 : vector<4x64xf32>
    %c85 = arith.constant 85 : index
    %c0_73 = arith.constant 0 : index
    %133 = vector.load %arg10[%c85, %c0_73] : memref<100x64xf32, #tpu.memory_space<vmem>>, vector<4x64xf32>
    %134 = vector.broadcast %22 : vector<1x64xf32> to vector<4x64xf32>
    %135 = arith.mulf %133, %134 : vector<4x64xf32>
    %136 = arith.addf %132, %135 : vector<4x64xf32>
    %c61 = arith.constant 61 : index
    %c0_74 = arith.constant 0 : index
    %137 = vector.load %arg10[%c61, %c0_74] : memref<100x64xf32, #tpu.memory_space<vmem>>, vector<4x64xf32>
    %138 = vector.broadcast %24 : vector<1x64xf32> to vector<4x64xf32>
    %139 = arith.mulf %137, %138 : vector<4x64xf32>
    %140 = arith.addf %136, %139 : vector<4x64xf32>
    %c15 = arith.constant 15 : index
    %c0_75 = arith.constant 0 : index
    %141 = vector.load %arg10[%c15, %c0_75] : memref<100x64xf32, #tpu.memory_space<vmem>>, vector<4x64xf32>
    %142 = vector.broadcast %26 : vector<1x64xf32> to vector<4x64xf32>
    %143 = arith.mulf %141, %142 : vector<4x64xf32>
    %144 = arith.addf %140, %143 : vector<4x64xf32>
    %c40 = arith.constant 40 : index
    %c0_76 = arith.constant 0 : index
    %145 = vector.load %arg10[%c40, %c0_76] : memref<100x64xf32, #tpu.memory_space<vmem>>, vector<4x64xf32>
    %146 = vector.broadcast %28 : vector<1x64xf32> to vector<4x64xf32>
    %147 = arith.mulf %145, %146 : vector<4x64xf32>
    %148 = arith.addf %144, %147 : vector<4x64xf32>
    %c16 = arith.constant 16 : index
    %c0_77 = arith.constant 0 : index
    %149 = vector.load %arg10[%c16, %c0_77] : memref<100x64xf32, #tpu.memory_space<vmem>>, vector<4x64xf32>
    %150 = vector.broadcast %30 : vector<1x64xf32> to vector<4x64xf32>
    %151 = arith.mulf %149, %150 : vector<4x64xf32>
    %152 = arith.addf %148, %151 : vector<4x64xf32>
    %153 = vector.broadcast %31 : vector<1x64xf32> to vector<4x64xf32>
    %154 = arith.addf %152, %153 : vector<4x64xf32>
    %cst_78 = arith.constant 0.000000e+00 : f32
    %155 = vector.broadcast %cst_78 : f32 to vector<4x64xf32>
    %156 = arith.maximumf %154, %155 : vector<4x64xf32>
    %c8_79 = arith.constant 8 : index
    %c0_80 = arith.constant 0 : index
    %157 = vector.load %arg11[%c8_79, %c0_80] : memref<16x64xf32, #tpu.memory_space<vmem>>, vector<4x64xf32>
    tpu.vector_store %arg11[%c8_79, %c0_80], %156 {strides = array<i32>} : memref<16x64xf32, #tpu.memory_space<vmem>>, vector<4x64xf32>,
    %cst_81 = arith.constant 0.000000e+00 : f32
    %158 = vector.broadcast %cst_81 : f32 to vector<4x64xf32>
    %c15_82 = arith.constant 15 : index
    %c0_83 = arith.constant 0 : index
    %159 = vector.load %arg10[%c15_82, %c0_83] : memref<100x64xf32, #tpu.memory_space<vmem>>, vector<4x64xf32>
    %160 = vector.broadcast %14 : vector<1x64xf32> to vector<4x64xf32>
    %161 = arith.mulf %159, %160 : vector<4x64xf32>
    %162 = arith.addf %158, %161 : vector<4x64xf32>
    %c40_84 = arith.constant 40 : index
    %c0_85 = arith.constant 0 : index
    %163 = vector.load %arg10[%c40_84, %c0_85] : memref<100x64xf32, #tpu.memory_space<vmem>>, vector<4x64xf32>
    %164 = vector.broadcast %16 : vector<1x64xf32> to vector<4x64xf32>
    %165 = arith.mulf %163, %164 : vector<4x64xf32>
    %166 = arith.addf %162, %165 : vector<4x64xf32>
    %c16_86 = arith.constant 16 : index
    %c0_87 = arith.constant 0 : index
    %167 = vector.load %arg10[%c16_86, %c0_87] : memref<100x64xf32, #tpu.memory_space<vmem>>, vector<4x64xf32>
    %168 = vector.broadcast %18 : vector<1x64xf32> to vector<4x64xf32>
    %169 = arith.mulf %167, %168 : vector<4x64xf32>
    %170 = arith.addf %166, %169 : vector<4x64xf32>
    %c65 = arith.constant 65 : index
    %c0_88 = arith.constant 0 : index
    %171 = vector.load %arg10[%c65, %c0_88] : memref<100x64xf32, #tpu.memory_space<vmem>>, vector<4x64xf32>
    %172 = vector.broadcast %20 : vector<1x64xf32> to vector<4x64xf32>
    %173 = arith.mulf %171, %172 : vector<4x64xf32>
    %174 = arith.addf %170, %173 : vector<4x64xf32>
    %c90 = arith.constant 90 : index
    %c0_89 = arith.constant 0 : index
    %175 = vector.load %arg10[%c90, %c0_89] : memref<100x64xf32, #tpu.memory_space<vmem>>, vector<4x64xf32>
    %176 = vector.broadcast %22 : vector<1x64xf32> to vector<4x64xf32>
    %177 = arith.mulf %175, %176 : vector<4x64xf32>
    %178 = arith.addf %174, %177 : vector<4x64xf32>
    %c66 = arith.constant 66 : index
    %c0_90 = arith.constant 0 : index
    %179 = vector.load %arg10[%c66, %c0_90] : memref<100x64xf32, #tpu.memory_space<vmem>>, vector<4x64xf32>
    %180 = vector.broadcast %24 : vector<1x64xf32> to vector<4x64xf32>
    %181 = arith.mulf %179, %180 : vector<4x64xf32>
    %182 = arith.addf %178, %181 : vector<4x64xf32>
    %c20 = arith.constant 20 : index
    %c0_91 = arith.constant 0 : index
    %183 = vector.load %arg10[%c20, %c0_91] : memref<100x64xf32, #tpu.memory_space<vmem>>, vector<4x64xf32>
    %184 = vector.broadcast %26 : vector<1x64xf32> to vector<4x64xf32>
    %185 = arith.mulf %183, %184 : vector<4x64xf32>
    %186 = arith.addf %182, %185 : vector<4x64xf32>
    %c45 = arith.constant 45 : index
    %c0_92 = arith.constant 0 : index
    %187 = vector.load %arg10[%c45, %c0_92] : memref<100x64xf32, #tpu.memory_space<vmem>>, vector<4x64xf32>
    %188 = vector.broadcast %28 : vector<1x64xf32> to vector<4x64xf32>
    %189 = arith.mulf %187, %188 : vector<4x64xf32>
    %190 = arith.addf %186, %189 : vector<4x64xf32>
    %c21 = arith.constant 21 : index
    %c0_93 = arith.constant 0 : index
    %191 = vector.load %arg10[%c21, %c0_93] : memref<100x64xf32, #tpu.memory_space<vmem>>, vector<4x64xf32>
    %192 = vector.broadcast %30 : vector<1x64xf32> to vector<4x64xf32>
    %193 = arith.mulf %191, %192 : vector<4x64xf32>
    %194 = arith.addf %190, %193 : vector<4x64xf32>
    %195 = vector.broadcast %31 : vector<1x64xf32> to vector<4x64xf32>
    %196 = arith.addf %194, %195 : vector<4x64xf32>
    %cst_94 = arith.constant 0.000000e+00 : f32
    %197 = vector.broadcast %cst_94 : f32 to vector<4x64xf32>
    %198 = arith.maximumf %196, %197 : vector<4x64xf32>
    %c12 = arith.constant 12 : index
    %c0_95 = arith.constant 0 : index
    %199 = vector.load %arg11[%c12, %c0_95] : memref<16x64xf32, #tpu.memory_space<vmem>>, vector<4x64xf32>
    tpu.vector_store %arg11[%c12, %c0_95], %198 {strides = array<i32>} : memref<16x64xf32, #tpu.memory_space<vmem>>, vector<4x64xf32>,
    %c0_96 = arith.constant 0 : index
    %c0_97 = arith.constant 0 : index
    %200 = vector.load %arg11[%c0_96, %c0_97] : memref<16x64xf32, #tpu.memory_space<vmem>>, vector<16x64xf32>
    %201 = arith.truncf %200 : vector<16x64xf32> to vector<16x64xbf16>
    %c0_98 = arith.constant 0 : index
    %c0_99 = arith.constant 0 : index
    %202 = vector.load %arg7[%c0_98, %c0_99] : memref<64x24xbf16, #tpu.memory_space<vmem>>, vector<64x24xbf16>
    %cst_100 = arith.constant dense<0.000000e+00> : vector<16x24xf32>
    %203 = tpu.matmul %201, %202, %cst_100 {dimension_numbers = #tpu.dot_dimension_numbers<[1], [0], [0], [1], [0, 0, 1, 1], [], []>} : vector<16x64xbf16>, vector<64x24xbf16>, vector<16x24xf32> -> vector<16x24xf32>
    %c0_101 = arith.constant 0 : index
    %c0_102 = arith.constant 0 : index
    %204 = vector.load %arg8[%c0_101, %c0_102] : memref<1x24xf32, #tpu.memory_space<vmem>>, vector<1x24xf32>
    %205 = vector.broadcast %204 : vector<1x24xf32> to vector<16x24xf32>
    %206 = arith.addf %203, %205 : vector<16x24xf32>
    %207 = arith.truncf %206 : vector<16x24xf32> to vector<16x24xbf16>
    %c0_103 = arith.constant 0 : index
    %c0_104 = arith.constant 0 : index
    %c0_105 = arith.constant 0 : index
    %208 = vector.load %arg9[%c0_103, %c0_104, %c0_105] : memref<1x16x24xbf16, #tpu.memory_space<vmem>>, vector<1x16x24xbf16>
    %209 = vector.shape_cast %208 : vector<1x16x24xbf16> to vector<16x24xbf16>
    %210 = vector.shape_cast %207 : vector<16x24xbf16> to vector<1x16x24xbf16>
    tpu.vector_store %arg9[%c0_103, %c0_104, %c0_105], %210 {strides = array<i32>} : memref<1x16x24xbf16, #tpu.memory_space<vmem>>, vector<1x16x24xbf16>,
    return
  }
  func.func @transform_0(%arg0: i32) -> (i32, i32, i32) {
    %c0_i32 = arith.constant 0 : i32
    %c0_i32_0 = arith.constant 0 : i32
    %c0_i32_1 = arith.constant 0 : i32
    return %arg0, %c0_i32, %c0_i32_0 : i32, i32, i32
  }
  func.func @transform_1(%arg0: i32) -> (i32, i32) {
    %c0_i32 = arith.constant 0 : i32
    %c0_i32_0 = arith.constant 0 : i32
    %c0_i32_1 = arith.constant 0 : i32
    return %c0_i32, %c0_i32_0 : i32, i32
  }
  func.func @transform_2(%arg0: i32) -> (i32, i32) {
    %c0_i32 = arith.constant 0 : i32
    %c0_i32_0 = arith.constant 0 : i32
    %c0_i32_1 = arith.constant 0 : i32
    return %c0_i32, %c0_i32_0 : i32, i32
  }
  func.func @transform_3(%arg0: i32) -> (i32, i32) {
    %c0_i32 = arith.constant 0 : i32
    %c0_i32_0 = arith.constant 0 : i32
    %c0_i32_1 = arith.constant 0 : i32
    return %c0_i32, %c0_i32_0 : i32, i32
  }
  func.func @transform_4(%arg0: i32) -> (i32, i32, i32) {
    %c0_i32 = arith.constant 0 : i32
    %c0_i32_0 = arith.constant 0 : i32
    %c0_i32_1 = arith.constant 0 : i32
    %c0_i32_2 = arith.constant 0 : i32
    return %c0_i32, %c0_i32_0, %c0_i32_1 : i32, i32, i32
  }
  func.func @transform_5(%arg0: i32) -> (i32, i32) {
    %c0_i32 = arith.constant 0 : i32
    %c0_i32_0 = arith.constant 0 : i32
    %c0_i32_1 = arith.constant 0 : i32
    return %c0_i32, %c0_i32_0 : i32, i32
  }
  func.func @transform_6(%arg0: i32) -> (i32, i32) {
    %c0_i32 = arith.constant 0 : i32
    %c0_i32_0 = arith.constant 0 : i32
    %c0_i32_1 = arith.constant 0 : i32
    return %c0_i32, %c0_i32_0 : i32, i32
  }
  func.func @transform_7(%arg0: i32) -> (i32, i32) {
    %c0_i32 = arith.constant 0 : i32
    %c0_i32_0 = arith.constant 0 : i32
    %c0_i32_1 = arith.constant 0 : i32
    return %c0_i32, %c0_i32_0 : i32, i32
  }
  func.func @transform_8(%arg0: i32) -> (i32, i32, i32) {
    %c0_i32 = arith.constant 0 : i32
    %c0_i32_0 = arith.constant 0 : i32
    %c0_i32_1 = arith.constant 0 : i32
    return %arg0, %c0_i32, %c0_i32_0 : i32, i32, i32
  }
}

module attributes {stable_mosaic.version = 11 : i64} {
  func.func @_matmul_act_kernel(%arg0: i32, %arg1: memref<32x24xbf16, #tpu.memory_space<vmem>>, %arg2: memref<24x144xbf16, #tpu.memory_space<vmem>>, %arg3: memref<1x144xf32, #tpu.memory_space<vmem>>, %arg4: memref<32x144xbf16, #tpu.memory_space<vmem>>) attributes {dimension_semantics = [#tpu.dimension_semantics<parallel>], iteration_bounds = array<i64: 1>, scalar_prefetch = 0 : i64, scratch_operands = 0 : i64, tpu.core_type = #tpu.core_type<tc>, window_params = [{transform_indices = @transform_0, window_bounds = array<i64: 32, 24>}, {pipeline_mode = #tpu.pipeline_mode<synchronous>, transform_indices = @transform_1, window_bounds = array<i64: 24, 144>}, {pipeline_mode = #tpu.pipeline_mode<synchronous>, transform_indices = @transform_2, window_bounds = array<i64: 1, 144>}, {transform_indices = @transform_3, window_bounds = array<i64: 32, 144>}]} {
    %c0 = arith.constant 0 : index
    %c0_0 = arith.constant 0 : index
    %0 = vector.load %arg1[%c0, %c0_0] : memref<32x24xbf16, #tpu.memory_space<vmem>>, vector<32x24xbf16>
    %c0_1 = arith.constant 0 : index
    %c0_2 = arith.constant 0 : index
    %1 = vector.load %arg2[%c0_1, %c0_2] : memref<24x144xbf16, #tpu.memory_space<vmem>>, vector<24x144xbf16>
    %cst = arith.constant dense<0.000000e+00> : vector<32x144xf32>
    %2 = tpu.matmul %0, %1, %cst {dimension_numbers = #tpu.dot_dimension_numbers<[1], [0], [0], [1], [0, 0, 1, 1], [], []>} : vector<32x24xbf16>, vector<24x144xbf16>, vector<32x144xf32> -> vector<32x144xf32>
    %c0_3 = arith.constant 0 : index
    %c0_4 = arith.constant 0 : index
    %3 = vector.load %arg3[%c0_3, %c0_4] : memref<1x144xf32, #tpu.memory_space<vmem>>, vector<1x144xf32>
    %4 = vector.broadcast %3 : vector<1x144xf32> to vector<32x144xf32>
    %5 = arith.addf %2, %4 : vector<32x144xf32>
    %cst_5 = arith.constant 3.000000e+00 : f32
    %6 = vector.broadcast %cst_5 : f32 to vector<32x144xf32>
    %7 = arith.addf %5, %6 : vector<32x144xf32>
    %cst_6 = arith.constant 0.000000e+00 : f32
    %cst_7 = arith.constant 6.000000e+00 : f32
    %8 = vector.broadcast %cst_6 : f32 to vector<32x144xf32>
    %9 = arith.maximumf %8, %7 : vector<32x144xf32>
    %10 = vector.broadcast %cst_7 : f32 to vector<32x144xf32>
    %11 = arith.minimumf %10, %9 : vector<32x144xf32>
    %12 = arith.mulf %5, %11 : vector<32x144xf32>
    %cst_8 = arith.constant 0.166666672 : f32
    %13 = vector.broadcast %cst_8 : f32 to vector<32x144xf32>
    %14 = arith.mulf %12, %13 : vector<32x144xf32>
    %15 = arith.truncf %14 : vector<32x144xf32> to vector<32x144xbf16>
    %c0_9 = arith.constant 0 : index
    %c0_10 = arith.constant 0 : index
    %16 = vector.load %arg4[%c0_9, %c0_10] : memref<32x144xbf16, #tpu.memory_space<vmem>>, vector<32x144xbf16>
    tpu.vector_store %arg4[%c0_9, %c0_10], %15 {strides = array<i32>} : memref<32x144xbf16, #tpu.memory_space<vmem>>, vector<32x144xbf16>,
    return
  }
  func.func @transform_0(%arg0: i32) -> (i32, i32) {
    %c0_i32 = arith.constant 0 : i32
    %c0_i32_0 = arith.constant 0 : i32
    return %arg0, %c0_i32 : i32, i32
  }
  func.func @transform_1(%arg0: i32) -> (i32, i32) {
    %c0_i32 = arith.constant 0 : i32
    %c0_i32_0 = arith.constant 0 : i32
    %c0_i32_1 = arith.constant 0 : i32
    return %c0_i32, %c0_i32_0 : i32, i32
  }
  func.func @transform_2(%arg0: i32) -> (i32, i32) {
    %c0_i32 = arith.constant 0 : i32
    %c0_i32_0 = arith.constant 0 : i32
    %c0_i32_1 = arith.constant 0 : i32
    return %c0_i32, %c0_i32_0 : i32, i32
  }
  func.func @transform_3(%arg0: i32) -> (i32, i32) {
    %c0_i32 = arith.constant 0 : i32
    %c0_i32_0 = arith.constant 0 : i32
    return %arg0, %c0_i32 : i32, i32
  }
}

module attributes {stable_mosaic.version = 11 : i64} {
  func.func @kernel(%arg0: i32, %arg1: memref<1x64x24xbf16, #tpu.memory_space<vmem>>, %arg2: memref<64x1xf32, #tpu.memory_space<vmem>>, %arg3: memref<24x72xbf16, #tpu.memory_space<vmem>>, %arg4: memref<1x72xf32, #tpu.memory_space<vmem>>, %arg5: memref<25x1x72xf32, #tpu.memory_space<vmem>>, %arg6: memref<1x72xf32, #tpu.memory_space<vmem>>, %arg7: memref<72x24xf32, #tpu.memory_space<vmem>>, %arg8: memref<1x24xf32, #tpu.memory_space<vmem>>, %arg9: memref<24x72xf32, #tpu.memory_space<vmem>>, %arg10: memref<1x72xf32, #tpu.memory_space<vmem>>, %arg11: memref<72x24xbf16, #tpu.memory_space<vmem>>, %arg12: memref<1x24xf32, #tpu.memory_space<vmem>>, %arg13: memref<1x16x24xbf16, #tpu.memory_space<vmem>>, %arg14: memref<1x16x24xbf16, #tpu.memory_space<vmem>>, %arg15: memref<64x72xf32, #tpu.memory_space<vmem>>, %arg16: memref<16x72xf32, #tpu.memory_space<vmem>>) attributes {dimension_semantics = [#tpu.dimension_semantics<parallel>], iteration_bounds = array<i64: 2>, scalar_prefetch = 0 : i64, scratch_operands = 2 : i64, tpu.core_type = #tpu.core_type<tc>, window_params = [{transform_indices = @transform_0, window_bounds = array<i64: 1, 64, 24>}, {pipeline_mode = #tpu.pipeline_mode<synchronous>, transform_indices = @transform_1, window_bounds = array<i64: 64, 1>}, {pipeline_mode = #tpu.pipeline_mode<synchronous>, transform_indices = @transform_2, window_bounds = array<i64: 24, 72>}, {pipeline_mode = #tpu.pipeline_mode<synchronous>, transform_indices = @transform_3, window_bounds = array<i64: 1, 72>}, {pipeline_mode = #tpu.pipeline_mode<synchronous>, transform_indices = @transform_4, window_bounds = array<i64: 25, 1, 72>}, {pipeline_mode = #tpu.pipeline_mode<synchronous>, transform_indices = @transform_5, window_bounds = array<i64: 1, 72>}, {pipeline_mode = #tpu.pipeline_mode<synchronous>, transform_indices = @transform_6, window_bounds = array<i64: 72, 24>}, {pipeline_mode = #tpu.pipeline_mode<synchronous>, transform_indices = @transform_7, window_bounds = array<i64: 1, 24>}, {pipeline_mode = #tpu.pipeline_mode<synchronous>, transform_indices = @transform_8, window_bounds = array<i64: 24, 72>}, {pipeline_mode = #tpu.pipeline_mode<synchronous>, transform_indices = @transform_9, window_bounds = array<i64: 1, 72>}, {pipeline_mode = #tpu.pipeline_mode<synchronous>, transform_indices = @transform_10, window_bounds = array<i64: 72, 24>}, {pipeline_mode = #tpu.pipeline_mode<synchronous>, transform_indices = @transform_11, window_bounds = array<i64: 1, 24>}, {transform_indices = @transform_12, window_bounds = array<i64: 1, 16, 24>}, {transform_indices = @transform_13, window_bounds = array<i64: 1, 16, 24>}]} {
    %c0 = arith.constant 0 : index
    %c0_0 = arith.constant 0 : index
    %c0_1 = arith.constant 0 : index
    %0 = vector.load %arg1[%c0, %c0_0, %c0_1] : memref<1x64x24xbf16, #tpu.memory_space<vmem>>, vector<1x64x24xbf16>
    %1 = vector.shape_cast %0 : vector<1x64x24xbf16> to vector<64x24xbf16>
    %c0_2 = arith.constant 0 : index
    %c0_3 = arith.constant 0 : index
    %2 = vector.load %arg3[%c0_2, %c0_3] : memref<24x72xbf16, #tpu.memory_space<vmem>>, vector<24x72xbf16>
    %cst = arith.constant dense<0.000000e+00> : vector<64x72xf32>
    %3 = tpu.matmul %1, %2, %cst {dimension_numbers = #tpu.dot_dimension_numbers<[1], [0], [0], [1], [0, 0, 1, 1], [], []>} : vector<64x24xbf16>, vector<24x72xbf16>, vector<64x72xf32> -> vector<64x72xf32>
    %c0_4 = arith.constant 0 : index
    %c0_5 = arith.constant 0 : index
    %4 = vector.load %arg4[%c0_4, %c0_5] : memref<1x72xf32, #tpu.memory_space<vmem>>, vector<1x72xf32>
    %5 = vector.broadcast %4 : vector<1x72xf32> to vector<64x72xf32>
    %6 = arith.addf %3, %5 : vector<64x72xf32>
    %cst_6 = arith.constant 3.000000e+00 : f32
    %7 = vector.broadcast %cst_6 : f32 to vector<64x72xf32>
    %8 = arith.addf %6, %7 : vector<64x72xf32>
    %cst_7 = arith.constant 0.000000e+00 : f32
    %cst_8 = arith.constant 6.000000e+00 : f32
    %9 = vector.broadcast %cst_7 : f32 to vector<64x72xf32>
    %10 = arith.maximumf %9, %8 : vector<64x72xf32>
    %11 = vector.broadcast %cst_8 : f32 to vector<64x72xf32>
    %12 = arith.minimumf %11, %10 : vector<64x72xf32>
    %13 = arith.mulf %6, %12 : vector<64x72xf32>
    %cst_9 = arith.constant 0.166666672 : f32
    %14 = vector.broadcast %cst_9 : f32 to vector<64x72xf32>
    %15 = arith.mulf %13, %14 : vector<64x72xf32>
    %c0_10 = arith.constant 0 : index
    %c0_11 = arith.constant 0 : index
    %16 = vector.load %arg2[%c0_10, %c0_11] : memref<64x1xf32, #tpu.memory_space<vmem>>, vector<64x1xf32>
    %17 = vector.broadcast %16 : vector<64x1xf32> to vector<64x72xf32>
    %18 = arith.mulf %15, %17 : vector<64x72xf32>
    %c0_12 = arith.constant 0 : index
    %c0_13 = arith.constant 0 : index
    %19 = vector.load %arg15[%c0_12, %c0_13] : memref<64x72xf32, #tpu.memory_space<vmem>>, vector<64x72xf32>
    tpu.vector_store %arg15[%c0_12, %c0_13], %18 {strides = array<i32>} : memref<64x72xf32, #tpu.memory_space<vmem>>, vector<64x72xf32>,
    %c0_14 = arith.constant 0 : index
    %c0_15 = arith.constant 0 : index
    %c0_16 = arith.constant 0 : index
    %20 = vector.load %arg5[%c0_14, %c0_15, %c0_16] : memref<25x1x72xf32, #tpu.memory_space<vmem>>, vector<1x1x72xf32>
    %21 = vector.shape_cast %20 : vector<1x1x72xf32> to vector<1x72xf32>
    %c1 = arith.constant 1 : index
    %c0_17 = arith.constant 0 : index
    %c0_18 = arith.constant 0 : index
    %22 = vector.load %arg5[%c1, %c0_17, %c0_18] : memref<25x1x72xf32, #tpu.memory_space<vmem>>, vector<1x1x72xf32>
    %23 = vector.shape_cast %22 : vector<1x1x72xf32> to vector<1x72xf32>
    %c2 = arith.constant 2 : index
    %c0_19 = arith.constant 0 : index
    %c0_20 = arith.constant 0 : index
    %24 = vector.load %arg5[%c2, %c0_19, %c0_20] : memref<25x1x72xf32, #tpu.memory_space<vmem>>, vector<1x1x72xf32>
    %25 = vector.shape_cast %24 : vector<1x1x72xf32> to vector<1x72xf32>
    %c3 = arith.constant 3 : index
    %c0_21 = arith.constant 0 : index
    %c0_22 = arith.constant 0 : index
    %26 = vector.load %arg5[%c3, %c0_21, %c0_22] : memref<25x1x72xf32, #tpu.memory_space<vmem>>, vector<1x1x72xf32>
    %27 = vector.shape_cast %26 : vector<1x1x72xf32> to vector<1x72xf32>
    %c4 = arith.constant 4 : index
    %c0_23 = arith.constant 0 : index
    %c0_24 = arith.constant 0 : index
    %28 = vector.load %arg5[%c4, %c0_23, %c0_24] : memref<25x1x72xf32, #tpu.memory_space<vmem>>, vector<1x1x72xf32>
    %29 = vector.shape_cast %28 : vector<1x1x72xf32> to vector<1x72xf32>
    %c5 = arith.constant 5 : index
    %c0_25 = arith.constant 0 : index
    %c0_26 = arith.constant 0 : index
    %30 = vector.load %arg5[%c5, %c0_25, %c0_26] : memref<25x1x72xf32, #tpu.memory_space<vmem>>, vector<1x1x72xf32>
    %31 = vector.shape_cast %30 : vector<1x1x72xf32> to vector<1x72xf32>
    %c6 = arith.constant 6 : index
    %c0_27 = arith.constant 0 : index
    %c0_28 = arith.constant 0 : index
    %32 = vector.load %arg5[%c6, %c0_27, %c0_28] : memref<25x1x72xf32, #tpu.memory_space<vmem>>, vector<1x1x72xf32>
    %33 = vector.shape_cast %32 : vector<1x1x72xf32> to vector<1x72xf32>
    %c7 = arith.constant 7 : index
    %c0_29 = arith.constant 0 : index
    %c0_30 = arith.constant 0 : index
    %34 = vector.load %arg5[%c7, %c0_29, %c0_30] : memref<25x1x72xf32, #tpu.memory_space<vmem>>, vector<1x1x72xf32>
    %35 = vector.shape_cast %34 : vector<1x1x72xf32> to vector<1x72xf32>
    %c8 = arith.constant 8 : index
    %c0_31 = arith.constant 0 : index
    %c0_32 = arith.constant 0 : index
    %36 = vector.load %arg5[%c8, %c0_31, %c0_32] : memref<25x1x72xf32, #tpu.memory_space<vmem>>, vector<1x1x72xf32>
    %37 = vector.shape_cast %36 : vector<1x1x72xf32> to vector<1x72xf32>
    %c9 = arith.constant 9 : index
    %c0_33 = arith.constant 0 : index
    %c0_34 = arith.constant 0 : index
    %38 = vector.load %arg5[%c9, %c0_33, %c0_34] : memref<25x1x72xf32, #tpu.memory_space<vmem>>, vector<1x1x72xf32>
    %39 = vector.shape_cast %38 : vector<1x1x72xf32> to vector<1x72xf32>
    %c10 = arith.constant 10 : index
    %c0_35 = arith.constant 0 : index
    %c0_36 = arith.constant 0 : index
    %40 = vector.load %arg5[%c10, %c0_35, %c0_36] : memref<25x1x72xf32, #tpu.memory_space<vmem>>, vector<1x1x72xf32>
    %41 = vector.shape_cast %40 : vector<1x1x72xf32> to vector<1x72xf32>
    %c11 = arith.constant 11 : index
    %c0_37 = arith.constant 0 : index
    %c0_38 = arith.constant 0 : index
    %42 = vector.load %arg5[%c11, %c0_37, %c0_38] : memref<25x1x72xf32, #tpu.memory_space<vmem>>, vector<1x1x72xf32>
    %43 = vector.shape_cast %42 : vector<1x1x72xf32> to vector<1x72xf32>
    %c12 = arith.constant 12 : index
    %c0_39 = arith.constant 0 : index
    %c0_40 = arith.constant 0 : index
    %44 = vector.load %arg5[%c12, %c0_39, %c0_40] : memref<25x1x72xf32, #tpu.memory_space<vmem>>, vector<1x1x72xf32>
    %45 = vector.shape_cast %44 : vector<1x1x72xf32> to vector<1x72xf32>
    %c13 = arith.constant 13 : index
    %c0_41 = arith.constant 0 : index
    %c0_42 = arith.constant 0 : index
    %46 = vector.load %arg5[%c13, %c0_41, %c0_42] : memref<25x1x72xf32, #tpu.memory_space<vmem>>, vector<1x1x72xf32>
    %47 = vector.shape_cast %46 : vector<1x1x72xf32> to vector<1x72xf32>
    %c14 = arith.constant 14 : index
    %c0_43 = arith.constant 0 : index
    %c0_44 = arith.constant 0 : index
    %48 = vector.load %arg5[%c14, %c0_43, %c0_44] : memref<25x1x72xf32, #tpu.memory_space<vmem>>, vector<1x1x72xf32>
    %49 = vector.shape_cast %48 : vector<1x1x72xf32> to vector<1x72xf32>
    %c15 = arith.constant 15 : index
    %c0_45 = arith.constant 0 : index
    %c0_46 = arith.constant 0 : index
    %50 = vector.load %arg5[%c15, %c0_45, %c0_46] : memref<25x1x72xf32, #tpu.memory_space<vmem>>, vector<1x1x72xf32>
    %51 = vector.shape_cast %50 : vector<1x1x72xf32> to vector<1x72xf32>
    %c16 = arith.constant 16 : index
    %c0_47 = arith.constant 0 : index
    %c0_48 = arith.constant 0 : index
    %52 = vector.load %arg5[%c16, %c0_47, %c0_48] : memref<25x1x72xf32, #tpu.memory_space<vmem>>, vector<1x1x72xf32>
    %53 = vector.shape_cast %52 : vector<1x1x72xf32> to vector<1x72xf32>
    %c17 = arith.constant 17 : index
    %c0_49 = arith.constant 0 : index
    %c0_50 = arith.constant 0 : index
    %54 = vector.load %arg5[%c17, %c0_49, %c0_50] : memref<25x1x72xf32, #tpu.memory_space<vmem>>, vector<1x1x72xf32>
    %55 = vector.shape_cast %54 : vector<1x1x72xf32> to vector<1x72xf32>
    %c18 = arith.constant 18 : index
    %c0_51 = arith.constant 0 : index
    %c0_52 = arith.constant 0 : index
    %56 = vector.load %arg5[%c18, %c0_51, %c0_52] : memref<25x1x72xf32, #tpu.memory_space<vmem>>, vector<1x1x72xf32>
    %57 = vector.shape_cast %56 : vector<1x1x72xf32> to vector<1x72xf32>
    %c19 = arith.constant 19 : index
    %c0_53 = arith.constant 0 : index
    %c0_54 = arith.constant 0 : index
    %58 = vector.load %arg5[%c19, %c0_53, %c0_54] : memref<25x1x72xf32, #tpu.memory_space<vmem>>, vector<1x1x72xf32>
    %59 = vector.shape_cast %58 : vector<1x1x72xf32> to vector<1x72xf32>
    %c20 = arith.constant 20 : index
    %c0_55 = arith.constant 0 : index
    %c0_56 = arith.constant 0 : index
    %60 = vector.load %arg5[%c20, %c0_55, %c0_56] : memref<25x1x72xf32, #tpu.memory_space<vmem>>, vector<1x1x72xf32>
    %61 = vector.shape_cast %60 : vector<1x1x72xf32> to vector<1x72xf32>
    %c21 = arith.constant 21 : index
    %c0_57 = arith.constant 0 : index
    %c0_58 = arith.constant 0 : index
    %62 = vector.load %arg5[%c21, %c0_57, %c0_58] : memref<25x1x72xf32, #tpu.memory_space<vmem>>, vector<1x1x72xf32>
    %63 = vector.shape_cast %62 : vector<1x1x72xf32> to vector<1x72xf32>
    %c22 = arith.constant 22 : index
    %c0_59 = arith.constant 0 : index
    %c0_60 = arith.constant 0 : index
    %64 = vector.load %arg5[%c22, %c0_59, %c0_60] : memref<25x1x72xf32, #tpu.memory_space<vmem>>, vector<1x1x72xf32>
    %65 = vector.shape_cast %64 : vector<1x1x72xf32> to vector<1x72xf32>
    %c23 = arith.constant 23 : index
    %c0_61 = arith.constant 0 : index
    %c0_62 = arith.constant 0 : index
    %66 = vector.load %arg5[%c23, %c0_61, %c0_62] : memref<25x1x72xf32, #tpu.memory_space<vmem>>, vector<1x1x72xf32>
    %67 = vector.shape_cast %66 : vector<1x1x72xf32> to vector<1x72xf32>
    %c24 = arith.constant 24 : index
    %c0_63 = arith.constant 0 : index
    %c0_64 = arith.constant 0 : index
    %68 = vector.load %arg5[%c24, %c0_63, %c0_64] : memref<25x1x72xf32, #tpu.memory_space<vmem>>, vector<1x1x72xf32>
    %69 = vector.shape_cast %68 : vector<1x1x72xf32> to vector<1x72xf32>
    %c0_65 = arith.constant 0 : index
    %c0_66 = arith.constant 0 : index
    %70 = vector.load %arg6[%c0_65, %c0_66] : memref<1x72xf32, #tpu.memory_space<vmem>>, vector<1x72xf32>
    %cst_67 = arith.constant 0.000000e+00 : f32
    %71 = vector.broadcast %cst_67 : f32 to vector<4x72xf32>
    %c0_68 = arith.constant 0 : index
    %c0_69 = arith.constant 0 : index
    %72 = vector.load %arg15[%c0_68, %c0_69] : memref<64x72xf32, #tpu.memory_space<vmem>>, vector<4x72xf32>
    %73 = vector.broadcast %21 : vector<1x72xf32> to vector<4x72xf32>
    %74 = arith.mulf %72, %73 : vector<4x72xf32>
    %75 = arith.addf %71, %74 : vector<4x72xf32>
    %c1_70 = arith.constant 1 : index
    %c0_71 = arith.constant 0 : index
    %76 = vector.load %arg15[%c1_70, %c0_71] : memref<64x72xf32, #tpu.memory_space<vmem>>, vector<4x72xf32>
    %77 = vector.broadcast %23 : vector<1x72xf32> to vector<4x72xf32>
    %78 = arith.mulf %76, %77 : vector<4x72xf32>
    %79 = arith.addf %75, %78 : vector<4x72xf32>
    %c2_72 = arith.constant 2 : index
    %c0_73 = arith.constant 0 : index
    %80 = vector.load %arg15[%c2_72, %c0_73] : memref<64x72xf32, #tpu.memory_space<vmem>>, vector<4x72xf32>
    %81 = vector.broadcast %25 : vector<1x72xf32> to vector<4x72xf32>
    %82 = arith.mulf %80, %81 : vector<4x72xf32>
    %83 = arith.addf %79, %82 : vector<4x72xf32>
    %c3_74 = arith.constant 3 : index
    %c0_75 = arith.constant 0 : index
    %84 = vector.load %arg15[%c3_74, %c0_75] : memref<64x72xf32, #tpu.memory_space<vmem>>, vector<4x72xf32>
    %85 = vector.broadcast %27 : vector<1x72xf32> to vector<4x72xf32>
    %86 = arith.mulf %84, %85 : vector<4x72xf32>
    %87 = arith.addf %83, %86 : vector<4x72xf32>
    %c4_76 = arith.constant 4 : index
    %c0_77 = arith.constant 0 : index
    %88 = vector.load %arg15[%c4_76, %c0_77] : memref<64x72xf32, #tpu.memory_space<vmem>>, vector<4x72xf32>
    %89 = vector.broadcast %29 : vector<1x72xf32> to vector<4x72xf32>
    %90 = arith.mulf %88, %89 : vector<4x72xf32>
    %91 = arith.addf %87, %90 : vector<4x72xf32>
    %c8_78 = arith.constant 8 : index
    %c0_79 = arith.constant 0 : index
    %92 = vector.load %arg15[%c8_78, %c0_79] : memref<64x72xf32, #tpu.memory_space<vmem>>, vector<4x72xf32>
    %93 = vector.broadcast %31 : vector<1x72xf32> to vector<4x72xf32>
    %94 = arith.mulf %92, %93 : vector<4x72xf32>
    %95 = arith.addf %91, %94 : vector<4x72xf32>
    %c9_80 = arith.constant 9 : index
    %c0_81 = arith.constant 0 : index
    %96 = vector.load %arg15[%c9_80, %c0_81] : memref<64x72xf32, #tpu.memory_space<vmem>>, vector<4x72xf32>
    %97 = vector.broadcast %33 : vector<1x72xf32> to vector<4x72xf32>
    %98 = arith.mulf %96, %97 : vector<4x72xf32>
    %99 = arith.addf %95, %98 : vector<4x72xf32>
    %c10_82 = arith.constant 10 : index
    %c0_83 = arith.constant 0 : index
    %100 = vector.load %arg15[%c10_82, %c0_83] : memref<64x72xf32, #tpu.memory_space<vmem>>, vector<4x72xf32>
    %101 = vector.broadcast %35 : vector<1x72xf32> to vector<4x72xf32>
    %102 = arith.mulf %100, %101 : vector<4x72xf32>
    %103 = arith.addf %99, %102 : vector<4x72xf32>
    %c11_84 = arith.constant 11 : index
    %c0_85 = arith.constant 0 : index
    %104 = vector.load %arg15[%c11_84, %c0_85] : memref<64x72xf32, #tpu.memory_space<vmem>>, vector<4x72xf32>
    %105 = vector.broadcast %37 : vector<1x72xf32> to vector<4x72xf32>
    %106 = arith.mulf %104, %105 : vector<4x72xf32>
    %107 = arith.addf %103, %106 : vector<4x72xf32>
    %c12_86 = arith.constant 12 : index
    %c0_87 = arith.constant 0 : index
    %108 = vector.load %arg15[%c12_86, %c0_87] : memref<64x72xf32, #tpu.memory_space<vmem>>, vector<4x72xf32>
    %109 = vector.broadcast %39 : vector<1x72xf32> to vector<4x72xf32>
    %110 = arith.mulf %108, %109 : vector<4x72xf32>
    %111 = arith.addf %107, %110 : vector<4x72xf32>
    %c16_88 = arith.constant 16 : index
    %c0_89 = arith.constant 0 : index
    %112 = vector.load %arg15[%c16_88, %c0_89] : memref<64x72xf32, #tpu.memory_space<vmem>>, vector<4x72xf32>
    %113 = vector.broadcast %41 : vector<1x72xf32> to vector<4x72xf32>
    %114 = arith.mulf %112, %113 : vector<4x72xf32>
    %115 = arith.addf %111, %114 : vector<4x72xf32>
    %c17_90 = arith.constant 17 : index
    %c0_91 = arith.constant 0 : index
    %116 = vector.load %arg15[%c17_90, %c0_91] : memref<64x72xf32, #tpu.memory_space<vmem>>, vector<4x72xf32>
    %117 = vector.broadcast %43 : vector<1x72xf32> to vector<4x72xf32>
    %118 = arith.mulf %116, %117 : vector<4x72xf32>
    %119 = arith.addf %115, %118 : vector<4x72xf32>
    %c18_92 = arith.constant 18 : index
    %c0_93 = arith.constant 0 : index
    %120 = vector.load %arg15[%c18_92, %c0_93] : memref<64x72xf32, #tpu.memory_space<vmem>>, vector<4x72xf32>
    %121 = vector.broadcast %45 : vector<1x72xf32> to vector<4x72xf32>
    %122 = arith.mulf %120, %121 : vector<4x72xf32>
    %123 = arith.addf %119, %122 : vector<4x72xf32>
    %c19_94 = arith.constant 19 : index
    %c0_95 = arith.constant 0 : index
    %124 = vector.load %arg15[%c19_94, %c0_95] : memref<64x72xf32, #tpu.memory_space<vmem>>, vector<4x72xf32>
    %125 = vector.broadcast %47 : vector<1x72xf32> to vector<4x72xf32>
    %126 = arith.mulf %124, %125 : vector<4x72xf32>
    %127 = arith.addf %123, %126 : vector<4x72xf32>
    %c20_96 = arith.constant 20 : index
    %c0_97 = arith.constant 0 : index
    %128 = vector.load %arg15[%c20_96, %c0_97] : memref<64x72xf32, #tpu.memory_space<vmem>>, vector<4x72xf32>
    %129 = vector.broadcast %49 : vector<1x72xf32> to vector<4x72xf32>
    %130 = arith.mulf %128, %129 : vector<4x72xf32>
    %131 = arith.addf %127, %130 : vector<4x72xf32>
    %c24_98 = arith.constant 24 : index
    %c0_99 = arith.constant 0 : index
    %132 = vector.load %arg15[%c24_98, %c0_99] : memref<64x72xf32, #tpu.memory_space<vmem>>, vector<4x72xf32>
    %133 = vector.broadcast %51 : vector<1x72xf32> to vector<4x72xf32>
    %134 = arith.mulf %132, %133 : vector<4x72xf32>
    %135 = arith.addf %131, %134 : vector<4x72xf32>
    %c25 = arith.constant 25 : index
    %c0_100 = arith.constant 0 : index
    %136 = vector.load %arg15[%c25, %c0_100] : memref<64x72xf32, #tpu.memory_space<vmem>>, vector<4x72xf32>
    %137 = vector.broadcast %53 : vector<1x72xf32> to vector<4x72xf32>
    %138 = arith.mulf %136, %137 : vector<4x72xf32>
    %139 = arith.addf %135, %138 : vector<4x72xf32>
    %c26 = arith.constant 26 : index
    %c0_101 = arith.constant 0 : index
    %140 = vector.load %arg15[%c26, %c0_101] : memref<64x72xf32, #tpu.memory_space<vmem>>, vector<4x72xf32>
    %141 = vector.broadcast %55 : vector<1x72xf32> to vector<4x72xf32>
    %142 = arith.mulf %140, %141 : vector<4x72xf32>
    %143 = arith.addf %139, %142 : vector<4x72xf32>
    %c27 = arith.constant 27 : index
    %c0_102 = arith.constant 0 : index
    %144 = vector.load %arg15[%c27, %c0_102] : memref<64x72xf32, #tpu.memory_space<vmem>>, vector<4x72xf32>
    %145 = vector.broadcast %57 : vector<1x72xf32> to vector<4x72xf32>
    %146 = arith.mulf %144, %145 : vector<4x72xf32>
    %147 = arith.addf %143, %146 : vector<4x72xf32>
    %c28 = arith.constant 28 : index
    %c0_103 = arith.constant 0 : index
    %148 = vector.load %arg15[%c28, %c0_103] : memref<64x72xf32, #tpu.memory_space<vmem>>, vector<4x72xf32>
    %149 = vector.broadcast %59 : vector<1x72xf32> to vector<4x72xf32>
    %150 = arith.mulf %148, %149 : vector<4x72xf32>
    %151 = arith.addf %147, %150 : vector<4x72xf32>
    %c32 = arith.constant 32 : index
    %c0_104 = arith.constant 0 : index
    %152 = vector.load %arg15[%c32, %c0_104] : memref<64x72xf32, #tpu.memory_space<vmem>>, vector<4x72xf32>
    %153 = vector.broadcast %61 : vector<1x72xf32> to vector<4x72xf32>
    %154 = arith.mulf %152, %153 : vector<4x72xf32>
    %155 = arith.addf %151, %154 : vector<4x72xf32>
    %c33 = arith.constant 33 : index
    %c0_105 = arith.constant 0 : index
    %156 = vector.load %arg15[%c33, %c0_105] : memref<64x72xf32, #tpu.memory_space<vmem>>, vector<4x72xf32>
    %157 = vector.broadcast %63 : vector<1x72xf32> to vector<4x72xf32>
    %158 = arith.mulf %156, %157 : vector<4x72xf32>
    %159 = arith.addf %155, %158 : vector<4x72xf32>
    %c34 = arith.constant 34 : index
    %c0_106 = arith.constant 0 : index
    %160 = vector.load %arg15[%c34, %c0_106] : memref<64x72xf32, #tpu.memory_space<vmem>>, vector<4x72xf32>
    %161 = vector.broadcast %65 : vector<1x72xf32> to vector<4x72xf32>
    %162 = arith.mulf %160, %161 : vector<4x72xf32>
    %163 = arith.addf %159, %162 : vector<4x72xf32>
    %c35 = arith.constant 35 : index
    %c0_107 = arith.constant 0 : index
    %164 = vector.load %arg15[%c35, %c0_107] : memref<64x72xf32, #tpu.memory_space<vmem>>, vector<4x72xf32>
    %165 = vector.broadcast %67 : vector<1x72xf32> to vector<4x72xf32>
    %166 = arith.mulf %164, %165 : vector<4x72xf32>
    %167 = arith.addf %163, %166 : vector<4x72xf32>
    %c36 = arith.constant 36 : index
    %c0_108 = arith.constant 0 : index
    %168 = vector.load %arg15[%c36, %c0_108] : memref<64x72xf32, #tpu.memory_space<vmem>>, vector<4x72xf32>
    %169 = vector.broadcast %69 : vector<1x72xf32> to vector<4x72xf32>
    %170 = arith.mulf %168, %169 : vector<4x72xf32>
    %171 = arith.addf %167, %170 : vector<4x72xf32>
    %172 = vector.broadcast %70 : vector<1x72xf32> to vector<4x72xf32>
    %173 = arith.addf %171, %172 : vector<4x72xf32>
    %cst_109 = arith.constant 3.000000e+00 : f32
    %174 = vector.broadcast %cst_109 : f32 to vector<4x72xf32>
    %175 = arith.addf %173, %174 : vector<4x72xf32>
    %cst_110 = arith.constant 0.000000e+00 : f32
    %cst_111 = arith.constant 6.000000e+00 : f32
    %176 = vector.broadcast %cst_110 : f32 to vector<4x72xf32>
    %177 = arith.maximumf %176, %175 : vector<4x72xf32>
    %178 = vector.broadcast %cst_111 : f32 to vector<4x72xf32>
    %179 = arith.minimumf %178, %177 : vector<4x72xf32>
    %180 = arith.mulf %173, %179 : vector<4x72xf32>
    %cst_112 = arith.constant 0.166666672 : f32
    %181 = vector.broadcast %cst_112 : f32 to vector<4x72xf32>
    %182 = arith.mulf %180, %181 : vector<4x72xf32>
    %c0_113 = arith.constant 0 : index
    %c0_114 = arith.constant 0 : index
    %183 = vector.load %arg16[%c0_113, %c0_114] : memref<16x72xf32, #tpu.memory_space<vmem>>, vector<4x72xf32>
    tpu.vector_store %arg16[%c0_113, %c0_114], %182 {strides = array<i32>} : memref<16x72xf32, #tpu.memory_space<vmem>>, vector<4x72xf32>,
    %cst_115 = arith.constant 0.000000e+00 : f32
    %184 = vector.broadcast %cst_115 : f32 to vector<4x72xf32>
    %c8_116 = arith.constant 8 : index
    %c0_117 = arith.constant 0 : index
    %185 = vector.load %arg15[%c8_116, %c0_117] : memref<64x72xf32, #tpu.memory_space<vmem>>, vector<4x72xf32>
    %186 = vector.broadcast %21 : vector<1x72xf32> to vector<4x72xf32>
    %187 = arith.mulf %185, %186 : vector<4x72xf32>
    %188 = arith.addf %184, %187 : vector<4x72xf32>
    %c9_118 = arith.constant 9 : index
    %c0_119 = arith.constant 0 : index
    %189 = vector.load %arg15[%c9_118, %c0_119] : memref<64x72xf32, #tpu.memory_space<vmem>>, vector<4x72xf32>
    %190 = vector.broadcast %23 : vector<1x72xf32> to vector<4x72xf32>
    %191 = arith.mulf %189, %190 : vector<4x72xf32>
    %192 = arith.addf %188, %191 : vector<4x72xf32>
    %c10_120 = arith.constant 10 : index
    %c0_121 = arith.constant 0 : index
    %193 = vector.load %arg15[%c10_120, %c0_121] : memref<64x72xf32, #tpu.memory_space<vmem>>, vector<4x72xf32>
    %194 = vector.broadcast %25 : vector<1x72xf32> to vector<4x72xf32>
    %195 = arith.mulf %193, %194 : vector<4x72xf32>
    %196 = arith.addf %192, %195 : vector<4x72xf32>
    %c11_122 = arith.constant 11 : index
    %c0_123 = arith.constant 0 : index
    %197 = vector.load %arg15[%c11_122, %c0_123] : memref<64x72xf32, #tpu.memory_space<vmem>>, vector<4x72xf32>
    %198 = vector.broadcast %27 : vector<1x72xf32> to vector<4x72xf32>
    %199 = arith.mulf %197, %198 : vector<4x72xf32>
    %200 = arith.addf %196, %199 : vector<4x72xf32>
    %c12_124 = arith.constant 12 : index
    %c0_125 = arith.constant 0 : index
    %201 = vector.load %arg15[%c12_124, %c0_125] : memref<64x72xf32, #tpu.memory_space<vmem>>, vector<4x72xf32>
    %202 = vector.broadcast %29 : vector<1x72xf32> to vector<4x72xf32>
    %203 = arith.mulf %201, %202 : vector<4x72xf32>
    %204 = arith.addf %200, %203 : vector<4x72xf32>
    %c16_126 = arith.constant 16 : index
    %c0_127 = arith.constant 0 : index
    %205 = vector.load %arg15[%c16_126, %c0_127] : memref<64x72xf32, #tpu.memory_space<vmem>>, vector<4x72xf32>
    %206 = vector.broadcast %31 : vector<1x72xf32> to vector<4x72xf32>
    %207 = arith.mulf %205, %206 : vector<4x72xf32>
    %208 = arith.addf %204, %207 : vector<4x72xf32>
    %c17_128 = arith.constant 17 : index
    %c0_129 = arith.constant 0 : index
    %209 = vector.load %arg15[%c17_128, %c0_129] : memref<64x72xf32, #tpu.memory_space<vmem>>, vector<4x72xf32>
    %210 = vector.broadcast %33 : vector<1x72xf32> to vector<4x72xf32>
    %211 = arith.mulf %209, %210 : vector<4x72xf32>
    %212 = arith.addf %208, %211 : vector<4x72xf32>
    %c18_130 = arith.constant 18 : index
    %c0_131 = arith.constant 0 : index
    %213 = vector.load %arg15[%c18_130, %c0_131] : memref<64x72xf32, #tpu.memory_space<vmem>>, vector<4x72xf32>
    %214 = vector.broadcast %35 : vector<1x72xf32> to vector<4x72xf32>
    %215 = arith.mulf %213, %214 : vector<4x72xf32>
    %216 = arith.addf %212, %215 : vector<4x72xf32>
    %c19_132 = arith.constant 19 : index
    %c0_133 = arith.constant 0 : index
    %217 = vector.load %arg15[%c19_132, %c0_133] : memref<64x72xf32, #tpu.memory_space<vmem>>, vector<4x72xf32>
    %218 = vector.broadcast %37 : vector<1x72xf32> to vector<4x72xf32>
    %219 = arith.mulf %217, %218 : vector<4x72xf32>
    %220 = arith.addf %216, %219 : vector<4x72xf32>
    %c20_134 = arith.constant 20 : index
    %c0_135 = arith.constant 0 : index
    %221 = vector.load %arg15[%c20_134, %c0_135] : memref<64x72xf32, #tpu.memory_space<vmem>>, vector<4x72xf32>
    %222 = vector.broadcast %39 : vector<1x72xf32> to vector<4x72xf32>
    %223 = arith.mulf %221, %222 : vector<4x72xf32>
    %224 = arith.addf %220, %223 : vector<4x72xf32>
    %c24_136 = arith.constant 24 : index
    %c0_137 = arith.constant 0 : index
    %225 = vector.load %arg15[%c24_136, %c0_137] : memref<64x72xf32, #tpu.memory_space<vmem>>, vector<4x72xf32>
    %226 = vector.broadcast %41 : vector<1x72xf32> to vector<4x72xf32>
    %227 = arith.mulf %225, %226 : vector<4x72xf32>
    %228 = arith.addf %224, %227 : vector<4x72xf32>
    %c25_138 = arith.constant 25 : index
    %c0_139 = arith.constant 0 : index
    %229 = vector.load %arg15[%c25_138, %c0_139] : memref<64x72xf32, #tpu.memory_space<vmem>>, vector<4x72xf32>
    %230 = vector.broadcast %43 : vector<1x72xf32> to vector<4x72xf32>
    %231 = arith.mulf %229, %230 : vector<4x72xf32>
    %232 = arith.addf %228, %231 : vector<4x72xf32>
    %c26_140 = arith.constant 26 : index
    %c0_141 = arith.constant 0 : index
    %233 = vector.load %arg15[%c26_140, %c0_141] : memref<64x72xf32, #tpu.memory_space<vmem>>, vector<4x72xf32>
    %234 = vector.broadcast %45 : vector<1x72xf32> to vector<4x72xf32>
    %235 = arith.mulf %233, %234 : vector<4x72xf32>
    %236 = arith.addf %232, %235 : vector<4x72xf32>
    %c27_142 = arith.constant 27 : index
    %c0_143 = arith.constant 0 : index
    %237 = vector.load %arg15[%c27_142, %c0_143] : memref<64x72xf32, #tpu.memory_space<vmem>>, vector<4x72xf32>
    %238 = vector.broadcast %47 : vector<1x72xf32> to vector<4x72xf32>
    %239 = arith.mulf %237, %238 : vector<4x72xf32>
    %240 = arith.addf %236, %239 : vector<4x72xf32>
    %c28_144 = arith.constant 28 : index
    %c0_145 = arith.constant 0 : index
    %241 = vector.load %arg15[%c28_144, %c0_145] : memref<64x72xf32, #tpu.memory_space<vmem>>, vector<4x72xf32>
    %242 = vector.broadcast %49 : vector<1x72xf32> to vector<4x72xf32>
    %243 = arith.mulf %241, %242 : vector<4x72xf32>
    %244 = arith.addf %240, %243 : vector<4x72xf32>
    %c32_146 = arith.constant 32 : index
    %c0_147 = arith.constant 0 : index
    %245 = vector.load %arg15[%c32_146, %c0_147] : memref<64x72xf32, #tpu.memory_space<vmem>>, vector<4x72xf32>
    %246 = vector.broadcast %51 : vector<1x72xf32> to vector<4x72xf32>
    %247 = arith.mulf %245, %246 : vector<4x72xf32>
    %248 = arith.addf %244, %247 : vector<4x72xf32>
    %c33_148 = arith.constant 33 : index
    %c0_149 = arith.constant 0 : index
    %249 = vector.load %arg15[%c33_148, %c0_149] : memref<64x72xf32, #tpu.memory_space<vmem>>, vector<4x72xf32>
    %250 = vector.broadcast %53 : vector<1x72xf32> to vector<4x72xf32>
    %251 = arith.mulf %249, %250 : vector<4x72xf32>
    %252 = arith.addf %248, %251 : vector<4x72xf32>
    %c34_150 = arith.constant 34 : index
    %c0_151 = arith.constant 0 : index
    %253 = vector.load %arg15[%c34_150, %c0_151] : memref<64x72xf32, #tpu.memory_space<vmem>>, vector<4x72xf32>
    %254 = vector.broadcast %55 : vector<1x72xf32> to vector<4x72xf32>
    %255 = arith.mulf %253, %254 : vector<4x72xf32>
    %256 = arith.addf %252, %255 : vector<4x72xf32>
    %c35_152 = arith.constant 35 : index
    %c0_153 = arith.constant 0 : index
    %257 = vector.load %arg15[%c35_152, %c0_153] : memref<64x72xf32, #tpu.memory_space<vmem>>, vector<4x72xf32>
    %258 = vector.broadcast %57 : vector<1x72xf32> to vector<4x72xf32>
    %259 = arith.mulf %257, %258 : vector<4x72xf32>
    %260 = arith.addf %256, %259 : vector<4x72xf32>
    %c36_154 = arith.constant 36 : index
    %c0_155 = arith.constant 0 : index
    %261 = vector.load %arg15[%c36_154, %c0_155] : memref<64x72xf32, #tpu.memory_space<vmem>>, vector<4x72xf32>
    %262 = vector.broadcast %59 : vector<1x72xf32> to vector<4x72xf32>
    %263 = arith.mulf %261, %262 : vector<4x72xf32>
    %264 = arith.addf %260, %263 : vector<4x72xf32>
    %c40 = arith.constant 40 : index
    %c0_156 = arith.constant 0 : index
    %265 = vector.load %arg15[%c40, %c0_156] : memref<64x72xf32, #tpu.memory_space<vmem>>, vector<4x72xf32>
    %266 = vector.broadcast %61 : vector<1x72xf32> to vector<4x72xf32>
    %267 = arith.mulf %265, %266 : vector<4x72xf32>
    %268 = arith.addf %264, %267 : vector<4x72xf32>
    %c41 = arith.constant 41 : index
    %c0_157 = arith.constant 0 : index
    %269 = vector.load %arg15[%c41, %c0_157] : memref<64x72xf32, #tpu.memory_space<vmem>>, vector<4x72xf32>
    %270 = vector.broadcast %63 : vector<1x72xf32> to vector<4x72xf32>
    %271 = arith.mulf %269, %270 : vector<4x72xf32>
    %272 = arith.addf %268, %271 : vector<4x72xf32>
    %c42 = arith.constant 42 : index
    %c0_158 = arith.constant 0 : index
    %273 = vector.load %arg15[%c42, %c0_158] : memref<64x72xf32, #tpu.memory_space<vmem>>, vector<4x72xf32>
    %274 = vector.broadcast %65 : vector<1x72xf32> to vector<4x72xf32>
    %275 = arith.mulf %273, %274 : vector<4x72xf32>
    %276 = arith.addf %272, %275 : vector<4x72xf32>
    %c43 = arith.constant 43 : index
    %c0_159 = arith.constant 0 : index
    %277 = vector.load %arg15[%c43, %c0_159] : memref<64x72xf32, #tpu.memory_space<vmem>>, vector<4x72xf32>
    %278 = vector.broadcast %67 : vector<1x72xf32> to vector<4x72xf32>
    %279 = arith.mulf %277, %278 : vector<4x72xf32>
    %280 = arith.addf %276, %279 : vector<4x72xf32>
    %c44 = arith.constant 44 : index
    %c0_160 = arith.constant 0 : index
    %281 = vector.load %arg15[%c44, %c0_160] : memref<64x72xf32, #tpu.memory_space<vmem>>, vector<4x72xf32>
    %282 = vector.broadcast %69 : vector<1x72xf32> to vector<4x72xf32>
    %283 = arith.mulf %281, %282 : vector<4x72xf32>
    %284 = arith.addf %280, %283 : vector<4x72xf32>
    %285 = vector.broadcast %70 : vector<1x72xf32> to vector<4x72xf32>
    %286 = arith.addf %284, %285 : vector<4x72xf32>
    %cst_161 = arith.constant 3.000000e+00 : f32
    %287 = vector.broadcast %cst_161 : f32 to vector<4x72xf32>
    %288 = arith.addf %286, %287 : vector<4x72xf32>
    %cst_162 = arith.constant 0.000000e+00 : f32
    %cst_163 = arith.constant 6.000000e+00 : f32
    %289 = vector.broadcast %cst_162 : f32 to vector<4x72xf32>
    %290 = arith.maximumf %289, %288 : vector<4x72xf32>
    %291 = vector.broadcast %cst_163 : f32 to vector<4x72xf32>
    %292 = arith.minimumf %291, %290 : vector<4x72xf32>
    %293 = arith.mulf %286, %292 : vector<4x72xf32>
    %cst_164 = arith.constant 0.166666672 : f32
    %294 = vector.broadcast %cst_164 : f32 to vector<4x72xf32>
    %295 = arith.mulf %293, %294 : vector<4x72xf32>
    %c4_165 = arith.constant 4 : index
    %c0_166 = arith.constant 0 : index
    %296 = vector.load %arg16[%c4_165, %c0_166] : memref<16x72xf32, #tpu.memory_space<vmem>>, vector<4x72xf32>
    tpu.vector_store %arg16[%c4_165, %c0_166], %295 {strides = array<i32>} : memref<16x72xf32, #tpu.memory_space<vmem>>, vector<4x72xf32>,
    %cst_167 = arith.constant 0.000000e+00 : f32
    %297 = vector.broadcast %cst_167 : f32 to vector<4x72xf32>
    %c16_168 = arith.constant 16 : index
    %c0_169 = arith.constant 0 : index
    %298 = vector.load %arg15[%c16_168, %c0_169] : memref<64x72xf32, #tpu.memory_space<vmem>>, vector<4x72xf32>
    %299 = vector.broadcast %21 : vector<1x72xf32> to vector<4x72xf32>
    %300 = arith.mulf %298, %299 : vector<4x72xf32>
    %301 = arith.addf %297, %300 : vector<4x72xf32>
    %c17_170 = arith.constant 17 : index
    %c0_171 = arith.constant 0 : index
    %302 = vector.load %arg15[%c17_170, %c0_171] : memref<64x72xf32, #tpu.memory_space<vmem>>, vector<4x72xf32>
    %303 = vector.broadcast %23 : vector<1x72xf32> to vector<4x72xf32>
    %304 = arith.mulf %302, %303 : vector<4x72xf32>
    %305 = arith.addf %301, %304 : vector<4x72xf32>
    %c18_172 = arith.constant 18 : index
    %c0_173 = arith.constant 0 : index
    %306 = vector.load %arg15[%c18_172, %c0_173] : memref<64x72xf32, #tpu.memory_space<vmem>>, vector<4x72xf32>
    %307 = vector.broadcast %25 : vector<1x72xf32> to vector<4x72xf32>
    %308 = arith.mulf %306, %307 : vector<4x72xf32>
    %309 = arith.addf %305, %308 : vector<4x72xf32>
    %c19_174 = arith.constant 19 : index
    %c0_175 = arith.constant 0 : index
    %310 = vector.load %arg15[%c19_174, %c0_175] : memref<64x72xf32, #tpu.memory_space<vmem>>, vector<4x72xf32>
    %311 = vector.broadcast %27 : vector<1x72xf32> to vector<4x72xf32>
    %312 = arith.mulf %310, %311 : vector<4x72xf32>
    %313 = arith.addf %309, %312 : vector<4x72xf32>
    %c20_176 = arith.constant 20 : index
    %c0_177 = arith.constant 0 : index
    %314 = vector.load %arg15[%c20_176, %c0_177] : memref<64x72xf32, #tpu.memory_space<vmem>>, vector<4x72xf32>
    %315 = vector.broadcast %29 : vector<1x72xf32> to vector<4x72xf32>
    %316 = arith.mulf %314, %315 : vector<4x72xf32>
    %317 = arith.addf %313, %316 : vector<4x72xf32>
    %c24_178 = arith.constant 24 : index
    %c0_179 = arith.constant 0 : index
    %318 = vector.load %arg15[%c24_178, %c0_179] : memref<64x72xf32, #tpu.memory_space<vmem>>, vector<4x72xf32>
    %319 = vector.broadcast %31 : vector<1x72xf32> to vector<4x72xf32>
    %320 = arith.mulf %318, %319 : vector<4x72xf32>
    %321 = arith.addf %317, %320 : vector<4x72xf32>
    %c25_180 = arith.constant 25 : index
    %c0_181 = arith.constant 0 : index
    %322 = vector.load %arg15[%c25_180, %c0_181] : memref<64x72xf32, #tpu.memory_space<vmem>>, vector<4x72xf32>
    %323 = vector.broadcast %33 : vector<1x72xf32> to vector<4x72xf32>
    %324 = arith.mulf %322, %323 : vector<4x72xf32>
    %325 = arith.addf %321, %324 : vector<4x72xf32>
    %c26_182 = arith.constant 26 : index
    %c0_183 = arith.constant 0 : index
    %326 = vector.load %arg15[%c26_182, %c0_183] : memref<64x72xf32, #tpu.memory_space<vmem>>, vector<4x72xf32>
    %327 = vector.broadcast %35 : vector<1x72xf32> to vector<4x72xf32>
    %328 = arith.mulf %326, %327 : vector<4x72xf32>
    %329 = arith.addf %325, %328 : vector<4x72xf32>
    %c27_184 = arith.constant 27 : index
    %c0_185 = arith.constant 0 : index
    %330 = vector.load %arg15[%c27_184, %c0_185] : memref<64x72xf32, #tpu.memory_space<vmem>>, vector<4x72xf32>
    %331 = vector.broadcast %37 : vector<1x72xf32> to vector<4x72xf32>
    %332 = arith.mulf %330, %331 : vector<4x72xf32>
    %333 = arith.addf %329, %332 : vector<4x72xf32>
    %c28_186 = arith.constant 28 : index
    %c0_187 = arith.constant 0 : index
    %334 = vector.load %arg15[%c28_186, %c0_187] : memref<64x72xf32, #tpu.memory_space<vmem>>, vector<4x72xf32>
    %335 = vector.broadcast %39 : vector<1x72xf32> to vector<4x72xf32>
    %336 = arith.mulf %334, %335 : vector<4x72xf32>
    %337 = arith.addf %333, %336 : vector<4x72xf32>
    %c32_188 = arith.constant 32 : index
    %c0_189 = arith.constant 0 : index
    %338 = vector.load %arg15[%c32_188, %c0_189] : memref<64x72xf32, #tpu.memory_space<vmem>>, vector<4x72xf32>
    %339 = vector.broadcast %41 : vector<1x72xf32> to vector<4x72xf32>
    %340 = arith.mulf %338, %339 : vector<4x72xf32>
    %341 = arith.addf %337, %340 : vector<4x72xf32>
    %c33_190 = arith.constant 33 : index
    %c0_191 = arith.constant 0 : index
    %342 = vector.load %arg15[%c33_190, %c0_191] : memref<64x72xf32, #tpu.memory_space<vmem>>, vector<4x72xf32>
    %343 = vector.broadcast %43 : vector<1x72xf32> to vector<4x72xf32>
    %344 = arith.mulf %342, %343 : vector<4x72xf32>
    %345 = arith.addf %341, %344 : vector<4x72xf32>
    %c34_192 = arith.constant 34 : index
    %c0_193 = arith.constant 0 : index
    %346 = vector.load %arg15[%c34_192, %c0_193] : memref<64x72xf32, #tpu.memory_space<vmem>>, vector<4x72xf32>
    %347 = vector.broadcast %45 : vector<1x72xf32> to vector<4x72xf32>
    %348 = arith.mulf %346, %347 : vector<4x72xf32>
    %349 = arith.addf %345, %348 : vector<4x72xf32>
    %c35_194 = arith.constant 35 : index
    %c0_195 = arith.constant 0 : index
    %350 = vector.load %arg15[%c35_194, %c0_195] : memref<64x72xf32, #tpu.memory_space<vmem>>, vector<4x72xf32>
    %351 = vector.broadcast %47 : vector<1x72xf32> to vector<4x72xf32>
    %352 = arith.mulf %350, %351 : vector<4x72xf32>
    %353 = arith.addf %349, %352 : vector<4x72xf32>
    %c36_196 = arith.constant 36 : index
    %c0_197 = arith.constant 0 : index
    %354 = vector.load %arg15[%c36_196, %c0_197] : memref<64x72xf32, #tpu.memory_space<vmem>>, vector<4x72xf32>
    %355 = vector.broadcast %49 : vector<1x72xf32> to vector<4x72xf32>
    %356 = arith.mulf %354, %355 : vector<4x72xf32>
    %357 = arith.addf %353, %356 : vector<4x72xf32>
    %c40_198 = arith.constant 40 : index
    %c0_199 = arith.constant 0 : index
    %358 = vector.load %arg15[%c40_198, %c0_199] : memref<64x72xf32, #tpu.memory_space<vmem>>, vector<4x72xf32>
    %359 = vector.broadcast %51 : vector<1x72xf32> to vector<4x72xf32>
    %360 = arith.mulf %358, %359 : vector<4x72xf32>
    %361 = arith.addf %357, %360 : vector<4x72xf32>
    %c41_200 = arith.constant 41 : index
    %c0_201 = arith.constant 0 : index
    %362 = vector.load %arg15[%c41_200, %c0_201] : memref<64x72xf32, #tpu.memory_space<vmem>>, vector<4x72xf32>
    %363 = vector.broadcast %53 : vector<1x72xf32> to vector<4x72xf32>
    %364 = arith.mulf %362, %363 : vector<4x72xf32>
    %365 = arith.addf %361, %364 : vector<4x72xf32>
    %c42_202 = arith.constant 42 : index
    %c0_203 = arith.constant 0 : index
    %366 = vector.load %arg15[%c42_202, %c0_203] : memref<64x72xf32, #tpu.memory_space<vmem>>, vector<4x72xf32>
    %367 = vector.broadcast %55 : vector<1x72xf32> to vector<4x72xf32>
    %368 = arith.mulf %366, %367 : vector<4x72xf32>
    %369 = arith.addf %365, %368 : vector<4x72xf32>
    %c43_204 = arith.constant 43 : index
    %c0_205 = arith.constant 0 : index
    %370 = vector.load %arg15[%c43_204, %c0_205] : memref<64x72xf32, #tpu.memory_space<vmem>>, vector<4x72xf32>
    %371 = vector.broadcast %57 : vector<1x72xf32> to vector<4x72xf32>
    %372 = arith.mulf %370, %371 : vector<4x72xf32>
    %373 = arith.addf %369, %372 : vector<4x72xf32>
    %c44_206 = arith.constant 44 : index
    %c0_207 = arith.constant 0 : index
    %374 = vector.load %arg15[%c44_206, %c0_207] : memref<64x72xf32, #tpu.memory_space<vmem>>, vector<4x72xf32>
    %375 = vector.broadcast %59 : vector<1x72xf32> to vector<4x72xf32>
    %376 = arith.mulf %374, %375 : vector<4x72xf32>
    %377 = arith.addf %373, %376 : vector<4x72xf32>
    %c48 = arith.constant 48 : index
    %c0_208 = arith.constant 0 : index
    %378 = vector.load %arg15[%c48, %c0_208] : memref<64x72xf32, #tpu.memory_space<vmem>>, vector<4x72xf32>
    %379 = vector.broadcast %61 : vector<1x72xf32> to vector<4x72xf32>
    %380 = arith.mulf %378, %379 : vector<4x72xf32>
    %381 = arith.addf %377, %380 : vector<4x72xf32>
    %c49 = arith.constant 49 : index
    %c0_209 = arith.constant 0 : index
    %382 = vector.load %arg15[%c49, %c0_209] : memref<64x72xf32, #tpu.memory_space<vmem>>, vector<4x72xf32>
    %383 = vector.broadcast %63 : vector<1x72xf32> to vector<4x72xf32>
    %384 = arith.mulf %382, %383 : vector<4x72xf32>
    %385 = arith.addf %381, %384 : vector<4x72xf32>
    %c50 = arith.constant 50 : index
    %c0_210 = arith.constant 0 : index
    %386 = vector.load %arg15[%c50, %c0_210] : memref<64x72xf32, #tpu.memory_space<vmem>>, vector<4x72xf32>
    %387 = vector.broadcast %65 : vector<1x72xf32> to vector<4x72xf32>
    %388 = arith.mulf %386, %387 : vector<4x72xf32>
    %389 = arith.addf %385, %388 : vector<4x72xf32>
    %c51 = arith.constant 51 : index
    %c0_211 = arith.constant 0 : index
    %390 = vector.load %arg15[%c51, %c0_211] : memref<64x72xf32, #tpu.memory_space<vmem>>, vector<4x72xf32>
    %391 = vector.broadcast %67 : vector<1x72xf32> to vector<4x72xf32>
    %392 = arith.mulf %390, %391 : vector<4x72xf32>
    %393 = arith.addf %389, %392 : vector<4x72xf32>
    %c52 = arith.constant 52 : index
    %c0_212 = arith.constant 0 : index
    %394 = vector.load %arg15[%c52, %c0_212] : memref<64x72xf32, #tpu.memory_space<vmem>>, vector<4x72xf32>
    %395 = vector.broadcast %69 : vector<1x72xf32> to vector<4x72xf32>
    %396 = arith.mulf %394, %395 : vector<4x72xf32>
    %397 = arith.addf %393, %396 : vector<4x72xf32>
    %398 = vector.broadcast %70 : vector<1x72xf32> to vector<4x72xf32>
    %399 = arith.addf %397, %398 : vector<4x72xf32>
    %cst_213 = arith.constant 3.000000e+00 : f32
    %400 = vector.broadcast %cst_213 : f32 to vector<4x72xf32>
    %401 = arith.addf %399, %400 : vector<4x72xf32>
    %cst_214 = arith.constant 0.000000e+00 : f32
    %cst_215 = arith.constant 6.000000e+00 : f32
    %402 = vector.broadcast %cst_214 : f32 to vector<4x72xf32>
    %403 = arith.maximumf %402, %401 : vector<4x72xf32>
    %404 = vector.broadcast %cst_215 : f32 to vector<4x72xf32>
    %405 = arith.minimumf %404, %403 : vector<4x72xf32>
    %406 = arith.mulf %399, %405 : vector<4x72xf32>
    %cst_216 = arith.constant 0.166666672 : f32
    %407 = vector.broadcast %cst_216 : f32 to vector<4x72xf32>
    %408 = arith.mulf %406, %407 : vector<4x72xf32>
    %c8_217 = arith.constant 8 : index
    %c0_218 = arith.constant 0 : index
    %409 = vector.load %arg16[%c8_217, %c0_218] : memref<16x72xf32, #tpu.memory_space<vmem>>, vector<4x72xf32>
    tpu.vector_store %arg16[%c8_217, %c0_218], %408 {strides = array<i32>} : memref<16x72xf32, #tpu.memory_space<vmem>>, vector<4x72xf32>,
    %cst_219 = arith.constant 0.000000e+00 : f32
    %410 = vector.broadcast %cst_219 : f32 to vector<4x72xf32>
    %c24_220 = arith.constant 24 : index
    %c0_221 = arith.constant 0 : index
    %411 = vector.load %arg15[%c24_220, %c0_221] : memref<64x72xf32, #tpu.memory_space<vmem>>, vector<4x72xf32>
    %412 = vector.broadcast %21 : vector<1x72xf32> to vector<4x72xf32>
    %413 = arith.mulf %411, %412 : vector<4x72xf32>
    %414 = arith.addf %410, %413 : vector<4x72xf32>
    %c25_222 = arith.constant 25 : index
    %c0_223 = arith.constant 0 : index
    %415 = vector.load %arg15[%c25_222, %c0_223] : memref<64x72xf32, #tpu.memory_space<vmem>>, vector<4x72xf32>
    %416 = vector.broadcast %23 : vector<1x72xf32> to vector<4x72xf32>
    %417 = arith.mulf %415, %416 : vector<4x72xf32>
    %418 = arith.addf %414, %417 : vector<4x72xf32>
    %c26_224 = arith.constant 26 : index
    %c0_225 = arith.constant 0 : index
    %419 = vector.load %arg15[%c26_224, %c0_225] : memref<64x72xf32, #tpu.memory_space<vmem>>, vector<4x72xf32>
    %420 = vector.broadcast %25 : vector<1x72xf32> to vector<4x72xf32>
    %421 = arith.mulf %419, %420 : vector<4x72xf32>
    %422 = arith.addf %418, %421 : vector<4x72xf32>
    %c27_226 = arith.constant 27 : index
    %c0_227 = arith.constant 0 : index
    %423 = vector.load %arg15[%c27_226, %c0_227] : memref<64x72xf32, #tpu.memory_space<vmem>>, vector<4x72xf32>
    %424 = vector.broadcast %27 : vector<1x72xf32> to vector<4x72xf32>
    %425 = arith.mulf %423, %424 : vector<4x72xf32>
    %426 = arith.addf %422, %425 : vector<4x72xf32>
    %c28_228 = arith.constant 28 : index
    %c0_229 = arith.constant 0 : index
    %427 = vector.load %arg15[%c28_228, %c0_229] : memref<64x72xf32, #tpu.memory_space<vmem>>, vector<4x72xf32>
    %428 = vector.broadcast %29 : vector<1x72xf32> to vector<4x72xf32>
    %429 = arith.mulf %427, %428 : vector<4x72xf32>
    %430 = arith.addf %426, %429 : vector<4x72xf32>
    %c32_230 = arith.constant 32 : index
    %c0_231 = arith.constant 0 : index
    %431 = vector.load %arg15[%c32_230, %c0_231] : memref<64x72xf32, #tpu.memory_space<vmem>>, vector<4x72xf32>
    %432 = vector.broadcast %31 : vector<1x72xf32> to vector<4x72xf32>
    %433 = arith.mulf %431, %432 : vector<4x72xf32>
    %434 = arith.addf %430, %433 : vector<4x72xf32>
    %c33_232 = arith.constant 33 : index
    %c0_233 = arith.constant 0 : index
    %435 = vector.load %arg15[%c33_232, %c0_233] : memref<64x72xf32, #tpu.memory_space<vmem>>, vector<4x72xf32>
    %436 = vector.broadcast %33 : vector<1x72xf32> to vector<4x72xf32>
    %437 = arith.mulf %435, %436 : vector<4x72xf32>
    %438 = arith.addf %434, %437 : vector<4x72xf32>
    %c34_234 = arith.constant 34 : index
    %c0_235 = arith.constant 0 : index
    %439 = vector.load %arg15[%c34_234, %c0_235] : memref<64x72xf32, #tpu.memory_space<vmem>>, vector<4x72xf32>
    %440 = vector.broadcast %35 : vector<1x72xf32> to vector<4x72xf32>
    %441 = arith.mulf %439, %440 : vector<4x72xf32>
    %442 = arith.addf %438, %441 : vector<4x72xf32>
    %c35_236 = arith.constant 35 : index
    %c0_237 = arith.constant 0 : index
    %443 = vector.load %arg15[%c35_236, %c0_237] : memref<64x72xf32, #tpu.memory_space<vmem>>, vector<4x72xf32>
    %444 = vector.broadcast %37 : vector<1x72xf32> to vector<4x72xf32>
    %445 = arith.mulf %443, %444 : vector<4x72xf32>
    %446 = arith.addf %442, %445 : vector<4x72xf32>
    %c36_238 = arith.constant 36 : index
    %c0_239 = arith.constant 0 : index
    %447 = vector.load %arg15[%c36_238, %c0_239] : memref<64x72xf32, #tpu.memory_space<vmem>>, vector<4x72xf32>
    %448 = vector.broadcast %39 : vector<1x72xf32> to vector<4x72xf32>
    %449 = arith.mulf %447, %448 : vector<4x72xf32>
    %450 = arith.addf %446, %449 : vector<4x72xf32>
    %c40_240 = arith.constant 40 : index
    %c0_241 = arith.constant 0 : index
    %451 = vector.load %arg15[%c40_240, %c0_241] : memref<64x72xf32, #tpu.memory_space<vmem>>, vector<4x72xf32>
    %452 = vector.broadcast %41 : vector<1x72xf32> to vector<4x72xf32>
    %453 = arith.mulf %451, %452 : vector<4x72xf32>
    %454 = arith.addf %450, %453 : vector<4x72xf32>
    %c41_242 = arith.constant 41 : index
    %c0_243 = arith.constant 0 : index
    %455 = vector.load %arg15[%c41_242, %c0_243] : memref<64x72xf32, #tpu.memory_space<vmem>>, vector<4x72xf32>
    %456 = vector.broadcast %43 : vector<1x72xf32> to vector<4x72xf32>
    %457 = arith.mulf %455, %456 : vector<4x72xf32>
    %458 = arith.addf %454, %457 : vector<4x72xf32>
    %c42_244 = arith.constant 42 : index
    %c0_245 = arith.constant 0 : index
    %459 = vector.load %arg15[%c42_244, %c0_245] : memref<64x72xf32, #tpu.memory_space<vmem>>, vector<4x72xf32>
    %460 = vector.broadcast %45 : vector<1x72xf32> to vector<4x72xf32>
    %461 = arith.mulf %459, %460 : vector<4x72xf32>
    %462 = arith.addf %458, %461 : vector<4x72xf32>
    %c43_246 = arith.constant 43 : index
    %c0_247 = arith.constant 0 : index
    %463 = vector.load %arg15[%c43_246, %c0_247] : memref<64x72xf32, #tpu.memory_space<vmem>>, vector<4x72xf32>
    %464 = vector.broadcast %47 : vector<1x72xf32> to vector<4x72xf32>
    %465 = arith.mulf %463, %464 : vector<4x72xf32>
    %466 = arith.addf %462, %465 : vector<4x72xf32>
    %c44_248 = arith.constant 44 : index
    %c0_249 = arith.constant 0 : index
    %467 = vector.load %arg15[%c44_248, %c0_249] : memref<64x72xf32, #tpu.memory_space<vmem>>, vector<4x72xf32>
    %468 = vector.broadcast %49 : vector<1x72xf32> to vector<4x72xf32>
    %469 = arith.mulf %467, %468 : vector<4x72xf32>
    %470 = arith.addf %466, %469 : vector<4x72xf32>
    %c48_250 = arith.constant 48 : index
    %c0_251 = arith.constant 0 : index
    %471 = vector.load %arg15[%c48_250, %c0_251] : memref<64x72xf32, #tpu.memory_space<vmem>>, vector<4x72xf32>
    %472 = vector.broadcast %51 : vector<1x72xf32> to vector<4x72xf32>
    %473 = arith.mulf %471, %472 : vector<4x72xf32>
    %474 = arith.addf %470, %473 : vector<4x72xf32>
    %c49_252 = arith.constant 49 : index
    %c0_253 = arith.constant 0 : index
    %475 = vector.load %arg15[%c49_252, %c0_253] : memref<64x72xf32, #tpu.memory_space<vmem>>, vector<4x72xf32>
    %476 = vector.broadcast %53 : vector<1x72xf32> to vector<4x72xf32>
    %477 = arith.mulf %475, %476 : vector<4x72xf32>
    %478 = arith.addf %474, %477 : vector<4x72xf32>
    %c50_254 = arith.constant 50 : index
    %c0_255 = arith.constant 0 : index
    %479 = vector.load %arg15[%c50_254, %c0_255] : memref<64x72xf32, #tpu.memory_space<vmem>>, vector<4x72xf32>
    %480 = vector.broadcast %55 : vector<1x72xf32> to vector<4x72xf32>
    %481 = arith.mulf %479, %480 : vector<4x72xf32>
    %482 = arith.addf %478, %481 : vector<4x72xf32>
    %c51_256 = arith.constant 51 : index
    %c0_257 = arith.constant 0 : index
    %483 = vector.load %arg15[%c51_256, %c0_257] : memref<64x72xf32, #tpu.memory_space<vmem>>, vector<4x72xf32>
    %484 = vector.broadcast %57 : vector<1x72xf32> to vector<4x72xf32>
    %485 = arith.mulf %483, %484 : vector<4x72xf32>
    %486 = arith.addf %482, %485 : vector<4x72xf32>
    %c52_258 = arith.constant 52 : index
    %c0_259 = arith.constant 0 : index
    %487 = vector.load %arg15[%c52_258, %c0_259] : memref<64x72xf32, #tpu.memory_space<vmem>>, vector<4x72xf32>
    %488 = vector.broadcast %59 : vector<1x72xf32> to vector<4x72xf32>
    %489 = arith.mulf %487, %488 : vector<4x72xf32>
    %490 = arith.addf %486, %489 : vector<4x72xf32>
    %c56 = arith.constant 56 : index
    %c0_260 = arith.constant 0 : index
    %491 = vector.load %arg15[%c56, %c0_260] : memref<64x72xf32, #tpu.memory_space<vmem>>, vector<4x72xf32>
    %492 = vector.broadcast %61 : vector<1x72xf32> to vector<4x72xf32>
    %493 = arith.mulf %491, %492 : vector<4x72xf32>
    %494 = arith.addf %490, %493 : vector<4x72xf32>
    %c57 = arith.constant 57 : index
    %c0_261 = arith.constant 0 : index
    %495 = vector.load %arg15[%c57, %c0_261] : memref<64x72xf32, #tpu.memory_space<vmem>>, vector<4x72xf32>
    %496 = vector.broadcast %63 : vector<1x72xf32> to vector<4x72xf32>
    %497 = arith.mulf %495, %496 : vector<4x72xf32>
    %498 = arith.addf %494, %497 : vector<4x72xf32>
    %c58 = arith.constant 58 : index
    %c0_262 = arith.constant 0 : index
    %499 = vector.load %arg15[%c58, %c0_262] : memref<64x72xf32, #tpu.memory_space<vmem>>, vector<4x72xf32>
    %500 = vector.broadcast %65 : vector<1x72xf32> to vector<4x72xf32>
    %501 = arith.mulf %499, %500 : vector<4x72xf32>
    %502 = arith.addf %498, %501 : vector<4x72xf32>
    %c59 = arith.constant 59 : index
    %c0_263 = arith.constant 0 : index
    %503 = vector.load %arg15[%c59, %c0_263] : memref<64x72xf32, #tpu.memory_space<vmem>>, vector<4x72xf32>
    %504 = vector.broadcast %67 : vector<1x72xf32> to vector<4x72xf32>
    %505 = arith.mulf %503, %504 : vector<4x72xf32>
    %506 = arith.addf %502, %505 : vector<4x72xf32>
    %c60 = arith.constant 60 : index
    %c0_264 = arith.constant 0 : index
    %507 = vector.load %arg15[%c60, %c0_264] : memref<64x72xf32, #tpu.memory_space<vmem>>, vector<4x72xf32>
    %508 = vector.broadcast %69 : vector<1x72xf32> to vector<4x72xf32>
    %509 = arith.mulf %507, %508 : vector<4x72xf32>
    %510 = arith.addf %506, %509 : vector<4x72xf32>
    %511 = vector.broadcast %70 : vector<1x72xf32> to vector<4x72xf32>
    %512 = arith.addf %510, %511 : vector<4x72xf32>
    %cst_265 = arith.constant 3.000000e+00 : f32
    %513 = vector.broadcast %cst_265 : f32 to vector<4x72xf32>
    %514 = arith.addf %512, %513 : vector<4x72xf32>
    %cst_266 = arith.constant 0.000000e+00 : f32
    %cst_267 = arith.constant 6.000000e+00 : f32
    %515 = vector.broadcast %cst_266 : f32 to vector<4x72xf32>
    %516 = arith.maximumf %515, %514 : vector<4x72xf32>
    %517 = vector.broadcast %cst_267 : f32 to vector<4x72xf32>
    %518 = arith.minimumf %517, %516 : vector<4x72xf32>
    %519 = arith.mulf %512, %518 : vector<4x72xf32>
    %cst_268 = arith.constant 0.166666672 : f32
    %520 = vector.broadcast %cst_268 : f32 to vector<4x72xf32>
    %521 = arith.mulf %519, %520 : vector<4x72xf32>
    %c12_269 = arith.constant 12 : index
    %c0_270 = arith.constant 0 : index
    %522 = vector.load %arg16[%c12_269, %c0_270] : memref<16x72xf32, #tpu.memory_space<vmem>>, vector<4x72xf32>
    tpu.vector_store %arg16[%c12_269, %c0_270], %521 {strides = array<i32>} : memref<16x72xf32, #tpu.memory_space<vmem>>, vector<4x72xf32>,
    %c0_271 = arith.constant 0 : index
    %c0_272 = arith.constant 0 : index
    %523 = vector.load %arg16[%c0_271, %c0_272] : memref<16x72xf32, #tpu.memory_space<vmem>>, vector<16x72xf32>
    %cst_273 = arith.constant dense<0.000000e+00> : vector<72xf32>
    %524 = vector.multi_reduction <add>, %523, %cst_273 [0] : vector<16x72xf32> to vector<72xf32>
    %525 = vector.shape_cast %524 : vector<72xf32> to vector<1x72xf32>
    %cst_274 = arith.constant 1.600000e+01 : f32
    %526 = vector.broadcast %cst_274 : f32 to vector<1x72xf32>
    %527 = arith.divf %525, %526 : vector<1x72xf32>
    %c0_275 = arith.constant 0 : index
    %c0_276 = arith.constant 0 : index
    %528 = vector.load %arg7[%c0_275, %c0_276] : memref<72x24xf32, #tpu.memory_space<vmem>>, vector<72x24xf32>
    %cst_277 = arith.constant dense<0.000000e+00> : vector<1x24xf32>
    %529 = tpu.matmul %527, %528, %cst_277 {dimension_numbers = #tpu.dot_dimension_numbers<[1], [0], [0], [1], [0, 0, 1, 1], [], []>} : vector<1x72xf32>, vector<72x24xf32>, vector<1x24xf32> -> vector<1x24xf32>
    %c0_278 = arith.constant 0 : index
    %c0_279 = arith.constant 0 : index
    %530 = vector.load %arg8[%c0_278, %c0_279] : memref<1x24xf32, #tpu.memory_space<vmem>>, vector<1x24xf32>
    %531 = arith.addf %529, %530 : vector<1x24xf32>
    %cst_280 = arith.constant 0.000000e+00 : f32
    %532 = vector.broadcast %cst_280 : f32 to vector<1x24xf32>
    %533 = arith.maximumf %531, %532 : vector<1x24xf32>
    %c0_281 = arith.constant 0 : index
    %c0_282 = arith.constant 0 : index
    %534 = vector.load %arg9[%c0_281, %c0_282] : memref<24x72xf32, #tpu.memory_space<vmem>>, vector<24x72xf32>
    %cst_283 = arith.constant dense<0.000000e+00> : vector<1x72xf32>
    %535 = tpu.matmul %533, %534, %cst_283 {dimension_numbers = #tpu.dot_dimension_numbers<[1], [0], [0], [1], [0, 0, 1, 1], [], []>} : vector<1x24xf32>, vector<24x72xf32>, vector<1x72xf32> -> vector<1x72xf32>
    %c0_284 = arith.constant 0 : index
    %c0_285 = arith.constant 0 : index
    %536 = vector.load %arg10[%c0_284, %c0_285] : memref<1x72xf32, #tpu.memory_space<vmem>>, vector<1x72xf32>
    %537 = arith.addf %535, %536 : vector<1x72xf32>
    %cst_286 = arith.constant 3.000000e+00 : f32
    %538 = vector.broadcast %cst_286 : f32 to vector<1x72xf32>
    %539 = arith.addf %537, %538 : vector<1x72xf32>
    %cst_287 = arith.constant 0.000000e+00 : f32
    %cst_288 = arith.constant 6.000000e+00 : f32
    %540 = vector.broadcast %cst_287 : f32 to vector<1x72xf32>
    %541 = arith.maximumf %540, %539 : vector<1x72xf32>
    %542 = vector.broadcast %cst_288 : f32 to vector<1x72xf32>
    %543 = arith.minimumf %542, %541 : vector<1x72xf32>
    %cst_289 = arith.constant 0.166666672 : f32
    %544 = vector.broadcast %cst_289 : f32 to vector<1x72xf32>
    %545 = arith.mulf %543, %544 : vector<1x72xf32>
    %546 = vector.broadcast %545 : vector<1x72xf32> to vector<16x72xf32>
    %547 = arith.mulf %523, %546 : vector<16x72xf32>
    %548 = arith.truncf %547 : vector<16x72xf32> to vector<16x72xbf16>
    %c0_290 = arith.constant 0 : index
    %c0_291 = arith.constant 0 : index
    %549 = vector.load %arg11[%c0_290, %c0_291] : memref<72x24xbf16, #tpu.memory_space<vmem>>, vector<72x24xbf16>
    %cst_292 = arith.constant dense<0.000000e+00> : vector<16x24xf32>
    %550 = tpu.matmul %548, %549, %cst_292 {dimension_numbers = #tpu.dot_dimension_numbers<[1], [0], [0], [1], [0, 0, 1, 1], [], []>} : vector<16x72xbf16>, vector<72x24xbf16>, vector<16x24xf32> -> vector<16x24xf32>
    %c0_293 = arith.constant 0 : index
    %c0_294 = arith.constant 0 : index
    %551 = vector.load %arg12[%c0_293, %c0_294] : memref<1x24xf32, #tpu.memory_space<vmem>>, vector<1x24xf32>
    %552 = vector.broadcast %551 : vector<1x24xf32> to vector<16x24xf32>
    %553 = arith.addf %550, %552 : vector<16x24xf32>
    %c0_295 = arith.constant 0 : index
    %c0_296 = arith.constant 0 : index
    %c0_297 = arith.constant 0 : index
    %554 = vector.load %arg13[%c0_295, %c0_296, %c0_297] : memref<1x16x24xbf16, #tpu.memory_space<vmem>>, vector<1x16x24xbf16>
    %555 = vector.shape_cast %554 : vector<1x16x24xbf16> to vector<16x24xbf16>
    %556 = arith.extf %555 : vector<16x24xbf16> to vector<16x24xf32>
    %557 = arith.addf %553, %556 : vector<16x24xf32>
    %558 = arith.truncf %557 : vector<16x24xf32> to vector<16x24xbf16>
    %c0_298 = arith.constant 0 : index
    %c0_299 = arith.constant 0 : index
    %c0_300 = arith.constant 0 : index
    %559 = vector.load %arg14[%c0_298, %c0_299, %c0_300] : memref<1x16x24xbf16, #tpu.memory_space<vmem>>, vector<1x16x24xbf16>
    %560 = vector.shape_cast %559 : vector<1x16x24xbf16> to vector<16x24xbf16>
    %561 = vector.shape_cast %558 : vector<16x24xbf16> to vector<1x16x24xbf16>
    tpu.vector_store %arg14[%c0_298, %c0_299, %c0_300], %561 {strides = array<i32>} : memref<1x16x24xbf16, #tpu.memory_space<vmem>>, vector<1x16x24xbf16>,
    return
  }
  func.func @transform_0(%arg0: i32) -> (i32, i32, i32) {
    %c0_i32 = arith.constant 0 : i32
    %c0_i32_0 = arith.constant 0 : i32
    %c0_i32_1 = arith.constant 0 : i32
    return %arg0, %c0_i32, %c0_i32_0 : i32, i32, i32
  }
  func.func @transform_1(%arg0: i32) -> (i32, i32) {
    %c0_i32 = arith.constant 0 : i32
    %c0_i32_0 = arith.constant 0 : i32
    %c0_i32_1 = arith.constant 0 : i32
    return %c0_i32, %c0_i32_0 : i32, i32
  }
  func.func @transform_2(%arg0: i32) -> (i32, i32) {
    %c0_i32 = arith.constant 0 : i32
    %c0_i32_0 = arith.constant 0 : i32
    %c0_i32_1 = arith.constant 0 : i32
    return %c0_i32, %c0_i32_0 : i32, i32
  }
  func.func @transform_3(%arg0: i32) -> (i32, i32) {
    %c0_i32 = arith.constant 0 : i32
    %c0_i32_0 = arith.constant 0 : i32
    %c0_i32_1 = arith.constant 0 : i32
    return %c0_i32, %c0_i32_0 : i32, i32
  }
  func.func @transform_4(%arg0: i32) -> (i32, i32, i32) {
    %c0_i32 = arith.constant 0 : i32
    %c0_i32_0 = arith.constant 0 : i32
    %c0_i32_1 = arith.constant 0 : i32
    %c0_i32_2 = arith.constant 0 : i32
    return %c0_i32, %c0_i32_0, %c0_i32_1 : i32, i32, i32
  }
  func.func @transform_5(%arg0: i32) -> (i32, i32) {
    %c0_i32 = arith.constant 0 : i32
    %c0_i32_0 = arith.constant 0 : i32
    %c0_i32_1 = arith.constant 0 : i32
    return %c0_i32, %c0_i32_0 : i32, i32
  }
  func.func @transform_6(%arg0: i32) -> (i32, i32) {
    %c0_i32 = arith.constant 0 : i32
    %c0_i32_0 = arith.constant 0 : i32
    %c0_i32_1 = arith.constant 0 : i32
    return %c0_i32, %c0_i32_0 : i32, i32
  }
  func.func @transform_7(%arg0: i32) -> (i32, i32) {
    %c0_i32 = arith.constant 0 : i32
    %c0_i32_0 = arith.constant 0 : i32
    %c0_i32_1 = arith.constant 0 : i32
    return %c0_i32, %c0_i32_0 : i32, i32
  }
  func.func @transform_8(%arg0: i32) -> (i32, i32) {
    %c0_i32 = arith.constant 0 : i32
    %c0_i32_0 = arith.constant 0 : i32
    %c0_i32_1 = arith.constant 0 : i32
    return %c0_i32, %c0_i32_0 : i32, i32
  }
  func.func @transform_9(%arg0: i32) -> (i32, i32) {
    %c0_i32 = arith.constant 0 : i32
    %c0_i32_0 = arith.constant 0 : i32
    %c0_i32_1 = arith.constant 0 : i32
    return %c0_i32, %c0_i32_0 : i32, i32
  }
  func.func @transform_10(%arg0: i32) -> (i32, i32) {
    %c0_i32 = arith.constant 0 : i32
    %c0_i32_0 = arith.constant 0 : i32
    %c0_i32_1 = arith.constant 0 : i32
    return %c0_i32, %c0_i32_0 : i32, i32
  }
  func.func @transform_11(%arg0: i32) -> (i32, i32) {
    %c0_i32 = arith.constant 0 : i32
    %c0_i32_0 = arith.constant 0 : i32
    %c0_i32_1 = arith.constant 0 : i32
    return %c0_i32, %c0_i32_0 : i32, i32
  }
  func.func @transform_12(%arg0: i32) -> (i32, i32, i32) {
    %c0_i32 = arith.constant 0 : i32
    %c0_i32_0 = arith.constant 0 : i32
    %c0_i32_1 = arith.constant 0 : i32
    return %arg0, %c0_i32, %c0_i32_0 : i32, i32, i32
  }
  func.func @transform_13(%arg0: i32) -> (i32, i32, i32) {
    %c0_i32 = arith.constant 0 : i32
    %c0_i32_0 = arith.constant 0 : i32
    %c0_i32_1 = arith.constant 0 : i32
    return %arg0, %c0_i32, %c0_i32_0 : i32, i32, i32
  }
}

module attributes {stable_mosaic.version = 11 : i64} {
  func.func @_tail_kernel(%arg0: i32, %arg1: memref<1x16x144xbf16, #tpu.memory_space<vmem>>, %arg2: memref<144x128xbf16, #tpu.memory_space<vmem>>, %arg3: memref<1x128xf32, #tpu.memory_space<vmem>>, %arg4: memref<128x10xbf16, #tpu.memory_space<vmem>>, %arg5: memref<1x10xf32, #tpu.memory_space<vmem>>, %arg6: memref<1x1x10xf32, #tpu.memory_space<vmem>>) attributes {dimension_semantics = [#tpu.dimension_semantics<parallel>], iteration_bounds = array<i64: 2>, scalar_prefetch = 0 : i64, scratch_operands = 0 : i64, tpu.core_type = #tpu.core_type<tc>, window_params = [{transform_indices = @transform_0, window_bounds = array<i64: 1, 16, 144>}, {pipeline_mode = #tpu.pipeline_mode<synchronous>, transform_indices = @transform_1, window_bounds = array<i64: 144, 128>}, {pipeline_mode = #tpu.pipeline_mode<synchronous>, transform_indices = @transform_2, window_bounds = array<i64: 1, 128>}, {pipeline_mode = #tpu.pipeline_mode<synchronous>, transform_indices = @transform_3, window_bounds = array<i64: 128, 10>}, {pipeline_mode = #tpu.pipeline_mode<synchronous>, transform_indices = @transform_4, window_bounds = array<i64: 1, 10>}, {transform_indices = @transform_5, window_bounds = array<i64: 1, 1, 10>}]} {
    %c0 = arith.constant 0 : index
    %c0_0 = arith.constant 0 : index
    %c0_1 = arith.constant 0 : index
    %0 = vector.load %arg1[%c0, %c0_0, %c0_1] : memref<1x16x144xbf16, #tpu.memory_space<vmem>>, vector<1x16x144xbf16>
    %1 = vector.shape_cast %0 : vector<1x16x144xbf16> to vector<16x144xbf16>
    %2 = arith.extf %1 : vector<16x144xbf16> to vector<16x144xf32>
    %cst = arith.constant dense<0.000000e+00> : vector<144xf32>
    %3 = vector.multi_reduction <add>, %2, %cst [0] : vector<16x144xf32> to vector<144xf32>
    %4 = vector.shape_cast %3 : vector<144xf32> to vector<1x144xf32>
    %cst_2 = arith.constant 1.600000e+01 : f32
    %5 = vector.broadcast %cst_2 : f32 to vector<1x144xf32>
    %6 = arith.divf %4, %5 : vector<1x144xf32>
    %7 = arith.truncf %6 : vector<1x144xf32> to vector<1x144xbf16>
    %c0_3 = arith.constant 0 : index
    %c0_4 = arith.constant 0 : index
    %8 = vector.load %arg2[%c0_3, %c0_4] : memref<144x128xbf16, #tpu.memory_space<vmem>>, vector<144x128xbf16>
    %cst_5 = arith.constant dense<0.000000e+00> : vector<1x128xf32>
    %9 = tpu.matmul %7, %8, %cst_5 {dimension_numbers = #tpu.dot_dimension_numbers<[1], [0], [0], [1], [0, 0, 1, 1], [], []>} : vector<1x144xbf16>, vector<144x128xbf16>, vector<1x128xf32> -> vector<1x128xf32>
    %c0_6 = arith.constant 0 : index
    %c0_7 = arith.constant 0 : index
    %10 = vector.load %arg3[%c0_6, %c0_7] : memref<1x128xf32, #tpu.memory_space<vmem>>, vector<1x128xf32>
    %11 = arith.addf %9, %10 : vector<1x128xf32>
    %cst_8 = arith.constant 3.000000e+00 : f32
    %12 = vector.broadcast %cst_8 : f32 to vector<1x128xf32>
    %13 = arith.addf %11, %12 : vector<1x128xf32>
    %cst_9 = arith.constant 0.000000e+00 : f32
    %cst_10 = arith.constant 6.000000e+00 : f32
    %14 = vector.broadcast %cst_9 : f32 to vector<1x128xf32>
    %15 = arith.maximumf %14, %13 : vector<1x128xf32>
    %16 = vector.broadcast %cst_10 : f32 to vector<1x128xf32>
    %17 = arith.minimumf %16, %15 : vector<1x128xf32>
    %18 = arith.mulf %11, %17 : vector<1x128xf32>
    %cst_11 = arith.constant 0.166666672 : f32
    %19 = vector.broadcast %cst_11 : f32 to vector<1x128xf32>
    %20 = arith.mulf %18, %19 : vector<1x128xf32>
    %21 = arith.truncf %20 : vector<1x128xf32> to vector<1x128xbf16>
    %c0_12 = arith.constant 0 : index
    %c0_13 = arith.constant 0 : index
    %22 = vector.load %arg4[%c0_12, %c0_13] : memref<128x10xbf16, #tpu.memory_space<vmem>>, vector<128x10xbf16>
    %cst_14 = arith.constant dense<0.000000e+00> : vector<1x10xf32>
    %23 = tpu.matmul %21, %22, %cst_14 {dimension_numbers = #tpu.dot_dimension_numbers<[1], [0], [0], [1], [0, 0, 1, 1], [], []>} : vector<1x128xbf16>, vector<128x10xbf16>, vector<1x10xf32> -> vector<1x10xf32>
    %c0_15 = arith.constant 0 : index
    %c0_16 = arith.constant 0 : index
    %24 = vector.load %arg5[%c0_15, %c0_16] : memref<1x10xf32, #tpu.memory_space<vmem>>, vector<1x10xf32>
    %25 = arith.addf %23, %24 : vector<1x10xf32>
    %c0_17 = arith.constant 0 : index
    %c0_18 = arith.constant 0 : index
    %c0_19 = arith.constant 0 : index
    %26 = vector.load %arg6[%c0_17, %c0_18, %c0_19] : memref<1x1x10xf32, #tpu.memory_space<vmem>>, vector<1x1x10xf32>
    %27 = vector.shape_cast %26 : vector<1x1x10xf32> to vector<1x10xf32>
    %28 = vector.shape_cast %25 : vector<1x10xf32> to vector<1x1x10xf32>
    tpu.vector_store %arg6[%c0_17, %c0_18, %c0_19], %28 {strides = array<i32>} : memref<1x1x10xf32, #tpu.memory_space<vmem>>, vector<1x1x10xf32>,
    return
  }
  func.func @transform_0(%arg0: i32) -> (i32, i32, i32) {
    %c0_i32 = arith.constant 0 : i32
    %c0_i32_0 = arith.constant 0 : i32
    %c0_i32_1 = arith.constant 0 : i32
    return %arg0, %c0_i32, %c0_i32_0 : i32, i32, i32
  }
  func.func @transform_1(%arg0: i32) -> (i32, i32) {
    %c0_i32 = arith.constant 0 : i32
    %c0_i32_0 = arith.constant 0 : i32
    %c0_i32_1 = arith.constant 0 : i32
    return %c0_i32, %c0_i32_0 : i32, i32
  }
  func.func @transform_2(%arg0: i32) -> (i32, i32) {
    %c0_i32 = arith.constant 0 : i32
    %c0_i32_0 = arith.constant 0 : i32
    %c0_i32_1 = arith.constant 0 : i32
    return %c0_i32, %c0_i32_0 : i32, i32
  }
  func.func @transform_3(%arg0: i32) -> (i32, i32) {
    %c0_i32 = arith.constant 0 : i32
    %c0_i32_0 = arith.constant 0 : i32
    %c0_i32_1 = arith.constant 0 : i32
    return %c0_i32, %c0_i32_0 : i32, i32
  }
  func.func @transform_4(%arg0: i32) -> (i32, i32) {
    %c0_i32 = arith.constant 0 : i32
    %c0_i32_0 = arith.constant 0 : i32
    %c0_i32_1 = arith.constant 0 : i32
    return %c0_i32, %c0_i32_0 : i32, i32
  }
  func.func @transform_5(%arg0: i32) -> (i32, i32, i32) {
    %c0_i32 = arith.constant 0 : i32
    %c0_i32_0 = arith.constant 0 : i32
    %c0_i32_1 = arith.constant 0 : i32
    return %arg0, %c0_i32, %c0_i32_0 : i32, i32, i32
  }
}

</mosaic_0001>

<llo_original>
// kernel: _lambda_.6
$region0: #{_lambda_.6}
  #allocation0 [shape = 'u32[]', space=smem, size = 0x4, offset = 0x4, fixed_abs, tag = 'smem constant byte address 0x4 - core index']
  #allocation1 [shape = 'u32[144,128]{1,0:T(1,128)}', space=vmem, size = 0x12000, scoped, tag = 'internal scratch']
  %s0 = inlined_call_operand.vmem [shape: bf16[128,27], index: 0, kind: input, shape index: {}]
  %s1 = inlined_call_operand.vmem [shape: bf16[27,16], index: 1, kind: input, shape index: {}]
  %s2 = inlined_call_operand.vmem [shape: f32[1,16], index: 2, kind: input, shape index: {}]
  %s3 = inlined_call_operand.vmem [shape: bf16[128,16], index: 3, kind: output, shape index: {}]
  %s4 = sld [smem:[#allocation0]]
  $region22: #{_lambda_.6} parent=0
    _
  %s6 = ssub.s32 1, %s4
  %s7 = scalar_select 0, %s6, %s4
  // Predicated region
  $region2: #{_lambda_.6} parent=0 // pred_check
    _
  $region3: #{_lambda_.6} parent=0 // pred_check_branch
    %9 = sbr.rel (0) target = $region5
  $region4: #{_lambda_.6} parent=0 // pred_region
    _
  $region5: #{_lambda_.6} parent=0 // pred_fallthru
    _
  // Predicated region
  $region6: #{_lambda_.6} parent=0 // pred_check
    _
  $region7: #{_lambda_.6} parent=0 // pred_check_branch
    %11 = sbr.rel (0) target = $region9
  $region8: #{_lambda_.6} parent=0 // pred_region
    _
  $region9: #{_lambda_.6} parent=0 // pred_fallthru
    _
  // Predicated region
  $region10: #{_lambda_.6} parent=0 // pred_check
    _
  $region11: #{_lambda_.6} parent=0 // pred_check_branch
    %13 = sbr.rel (0) target = $region13
  $region12: #{_lambda_.6} parent=0 // pred_region
    _
  $region13: #{_lambda_.6} parent=0 // pred_fallthru
    _
  %v15 = vld [vmem:[%s0] sm:$0xf]
  %v16 = vld [vmem:[%s0 + $0x4] sm:$0xf]
  %v17 = vld [vmem:[%s0 + $0x8] sm:$0xf]
  %v18 = vld [vmem:[%s0 + $0xc] sm:$0xf]
  %v19 = vld [vmem:[%s0 + $0x10] sm:$0xf]
  %v20 = vld [vmem:[%s0 + $0x14] sm:$0xf]
  %v21 = vld [vmem:[%s0 + $0x18] sm:$0xf]
  %v22 = vld [vmem:[%s0 + $0x1c] sm:$0xf]
  %v23 = vld [vmem:[%s0 + $0x20] sm:$0xf]
  %v24 = vld [vmem:[%s0 + $0x24] sm:$0xf]
  %v25 = vld [vmem:[%s0 + $0x28] sm:$0xf]
  %v26 = vld [vmem:[%s0 + $0x2c] sm:$0xf]
  %v27 = vld [vmem:[%s0 + $0x30] sm:$0xf]
  %v28 = vld [vmem:[%s0 + $0x34] sm:$0xf]
  %v29 = vld [vmem:[%s0 + $0x38] sm:$0xf]
  %v30 = vld [vmem:[%s0 + $0x3c] sm:$0xf]
  %v31 = vld [vmem:[%s1] sm:$0xf]
  %v32 = vld [vmem:[%s1 + $0x4] sm:$0xf]
  %v33 = vld [vmem:[%s1 + $0x8] sm:$0xf]
  %v34 = vld [vmem:[%s1 + $0xc] sm:$0x3]
  %v35 = vld [vmem:[%s2] sm:$0x1]
  %v37 = vlaneseq
  %v38 = vshrl.u32 %v37, 7
  %v39 = vsub.s32 0, %v38
  %v40 = vrot.slane %v35, %v39
  %v58 = vunpack.c.l.b16 %v15
  %v59 = vunpack.c.l.b16 %v16
  %v60 = vunpack.c.l.b16 %v17
  %v61 = vunpack.c.l.b16 %v18
  %v62 = vunpack.c.l.b16 %v19
  %v63 = vunpack.c.l.b16 %v20
  %v64 = vunpack.c.l.b16 %v21
  %v65 = vunpack.c.l.b16 %v22
  %v66 = vunpack.c.l.b16 %v23
  %v67 = vunpack.c.l.b16 %v24
  %v68 = vunpack.c.l.b16 %v25
  %v69 = vunpack.c.l.b16 %v26
  %v70 = vunpack.c.l.b16 %v27
  %v71 = vunpack.c.l.b16 %v28
  %v72 = vunpack.c.l.b16 %v29
  %v73 = vunpack.c.l.b16 %v30
  %v74 = vpack.c.b16 %v59, %v58
  %v75 = vpack.c.b16 %v61, %v60
  %v76 = vpack.c.b16 %v63, %v62
  %v77 = vpack.c.b16 %v65, %v64
  %v78 = vpack.c.b16 %v67, %v66
  %v79 = vpack.c.b16 %v69, %v68
  %v80 = vpack.c.b16 %v71, %v70
  %v81 = vpack.c.b16 %v73, %v72
  %v86 = vunpack.c.l.b16 %v31
  %v87 = vunpack.c.l.b16 %v32
  %v88 = vunpack.c.l.b16 %v33
  %v89 = vunpack.c.l.b16 %v34
  %v90 = vpack.c.b16 %v87, %v86
  %v91 = vpack.c.b16 %v89, %v88
  %vm93 = vcmask 220160
  %v95 = vsel %vm93, %v74, 0
  %v98 = vsel %vm93, %v75, 0
  %v101 = vsel %vm93, %v76, 0
  %v104 = vsel %vm93, %v77, 0
  %v107 = vsel %vm93, %v78, 0
  %v110 = vsel %vm93, %v79, 0
  %v113 = vsel %vm93, %v80, 0
  %v116 = vsel %vm93, %v81, 0
  %vm118 = vcmask 1044480
  %vm119 = vcmask 1045504
  %v120 = vsel %vm118, 4294967295, 65535
  %v121 = vsel %vm119, %v120, 0
  %v123 = vand.u32 %v91, %v121
  %125 = vmatprep.subr.bf16.mxu0 0
  %126 = vmatpush1.bf16.msra.mxu0 0
  %127 = vmatprep.subr.bf16.mxu0 0
  %128 = vmatpush1.bf16.msra.mxu0 0
  %129 = vmatprep.subr.bf16.mxu0 0
  %130 = vmatpush1.bf16.msra.mxu0 0
  %131 = vmatprep.subr.bf16.mxu0 0
  %132 = vmatpush1.bf16.msra.mxu0 0
  %133 = vmatprep.subr.bf16.mxu0 0
  %134 = vmatpush1.bf16.msra.mxu0 0
  %135 = vmatprep.subr.bf16.mxu0 0
  %136 = vmatpush1.bf16.msra.mxu0 0
  %137 = vmatprep.subr.bf16.mxu0 0
  %138 = vmatpush1.bf16.msra.mxu0 %v123
  %139 = vmatprep.subr.bf16.mxu0 0
  %140 = vmatpush1.bf16.msra.mxu0 %v90
  %141 = vmatprep.subr.bf16.mxu0 0
  %142 = vmatpush2.bf16.msra.mxu0 0
  %143 = vmatprep.subr.bf16.mxu0 0
  %144 = vmatpush2.bf16.msra.mxu0 0
  %145 = vmatprep.subr.bf16.mxu0 0
  %146 = vmatpush2.bf16.msra.mxu0 0
  %147 = vmatprep.subr.bf16.mxu0 0
  %148 = vmatpush2.bf16.msra.mxu0 0
  %149 = vmatprep.subr.bf16.mxu0 0
  %150 = vmatpush2.bf16.msra.mxu0 0
  %151 = vmatprep.subr.bf16.mxu0 0
  %152 = vmatpush2.bf16.msra.mxu0 0
  %153 = vmatprep.subr.bf16.mxu0 0
  %154 = vmatpush2.bf16.msra.mxu0 0
  %155 = vmatprep.subr.bf16.mxu0 0
  %156 = vmatpush2.bf16.msra.mxu0 0
  %157 = vmatprep.mubr.bf16.mxu0 0
  %158 = vmatmul.mubr.bf16.gmra.mxu0 %v95
  %v159 = vpop.f32.mrf.mxu0
  %v160 = vadd.f32 %v40, %v159
  %v161 = vpop.f32.mrf.mxu0
  %v162 = vpop.f32.mrf.mxu0
  %v163 = vadd.f32 %v40, %v162
  %v164 = vpop.f32.mrf.mxu0
  %165 = vmatprep.mubr.bf16.mxu0 0
  %166 = vmatmul.mubr.bf16.gmra.mxu0 %v98
  %v167 = vpop.f32.mrf.mxu0
  %v168 = vadd.f32 %v40, %v167
  %v169 = vpop.f32.mrf.mxu0
  %v170 = vpop.f32.mrf.mxu0
  %v171 = vadd.f32 %v40, %v170
  %v172 = vpop.f32.mrf.mxu0
  %173 = vmatprep.mubr.bf16.mxu0 0
  %174 = vmatmul.mubr.bf16.gmra.mxu0 %v101
  %v175 = vpop.f32.mrf.mxu0
  %v176 = vadd.f32 %v40, %v175
  %v177 = vpop.f32.mrf.mxu0
  %v178 = vpop.f32.mrf.mxu0
  %v179 = vadd.f32 %v40, %v178
  %v180 = vpop.f32.mrf.mxu0
  %181 = vmatprep.mubr.bf16.mxu0 0
  %182 = vmatmul.mubr.bf16.gmra.mxu0 %v104
  %v183 = vpop.f32.mrf.mxu0
  %v184 = vadd.f32 %v40, %v183
  %v185 = vpop.f32.mrf.mxu0
  %v186 = vpop.f32.mrf.mxu0
  %v187 = vadd.f32 %v40, %v186
  %v188 = vpop.f32.mrf.mxu0
  %189 = vmatprep.mubr.bf16.mxu0 0
  %190 = vmatmul.mubr.bf16.gmra.mxu0 %v107
  %v191 = vpop.f32.mrf.mxu0
  %v192 = vadd.f32 %v40, %v191
  %v193 = vpop.f32.mrf.mxu0
  %v194 = vpop.f32.mrf.mxu0
  %v195 = vadd.f32 %v40, %v194
  %v196 = vpop.f32.mrf.mxu0
  %197 = vmatprep.mubr.bf16.mxu0 0
  %198 = vmatmul.mubr.bf16.gmra.mxu0 %v110
  %v199 = vpop.f32.mrf.mxu0
  %v200 = vadd.f32 %v40, %v199
  %v201 = vpop.f32.mrf.mxu0
  %v202 = vpop.f32.mrf.mxu0
  %v203 = vadd.f32 %v40, %v202
  %v204 = vpop.f32.mrf.mxu0
  %205 = vmatprep.mubr.bf16.mxu0 0
  %206 = vmatmul.mubr.bf16.gmra.mxu0 %v113
  %v207 = vpop.f32.mrf.mxu0
  %v208 = vadd.f32 %v40, %v207
  %v209 = vpop.f32.mrf.mxu0
  %v210 = vpop.f32.mrf.mxu0
  %v211 = vadd.f32 %v40, %v210
  %v212 = vpop.f32.mrf.mxu0
  %213 = vmatprep.mubr.bf16.mxu0 0
  %214 = vmatmul.mubr.bf16.gmra.mxu0 %v116
  %v215 = vpop.f32.mrf.mxu0
  %v216 = vadd.f32 %v40, %v215
  %v217 = vpop.f32.mrf.mxu0
  %v218 = vpop.f32.mrf.mxu0
  %v219 = vadd.f32 %v40, %v218
  %v220 = vpop.f32.mrf.mxu0
  %221 = vdwg.mxu0
  %v222 = vadd.f32 %v160, 3.0
  %v223 = vadd.f32 %v163, 3.0
  %v224 = vadd.f32 %v168, 3.0
  %v225 = vadd.f32 %v171, 3.0
  %v226 = vadd.f32 %v176, 3.0
  %v227 = vadd.f32 %v179, 3.0
  %v228 = vadd.f32 %v184, 3.0
  %v229 = vadd.f32 %v187, 3.0
  %v230 = vadd.f32 %v192, 3.0
  %v231 = vadd.f32 %v195, 3.0
  %v232 = vadd.f32 %v200, 3.0
  %v233 = vadd.f32 %v203, 3.0
  %v234 = vadd.f32 %v208, 3.0
  %v235 = vadd.f32 %v211, 3.0
  %v236 = vadd.f32 %v216, 3.0
  %v237 = vadd.f32 %v219, 3.0
  %v238 = vmax.f32 %v222, 0.0
  %v239 = vmax.f32 %v223, 0.0
  %v240 = vmax.f32 %v224, 0.0
  %v241 = vmax.f32 %v225, 0.0
  %v242 = vmax.f32 %v226, 0.0
  %v243 = vmax.f32 %v227, 0.0
  %v244 = vmax.f32 %v228, 0.0
  %v245 = vmax.f32 %v229, 0.0
  %v246 = vmax.f32 %v230, 0.0
  %v247 = vmax.f32 %v231, 0.0
  %v248 = vmax.f32 %v232, 0.0
  %v249 = vmax.f32 %v233, 0.0
  %v250 = vmax.f32 %v234, 0.0
  %v251 = vmax.f32 %v235, 0.0
  %v252 = vmax.f32 %v236, 0.0
  %v253 = vmax.f32 %v237, 0.0
  %v254 = vmin.f32 %v238, 6.0
  %v255 = vmin.f32 %v239, 6.0
  %v256 = vmin.f32 %v240, 6.0
  %v257 = vmin.f32 %v241, 6.0
  %v258 = vmin.f32 %v242, 6.0
  %v259 = vmin.f32 %v243, 6.0
  %v260 = vmin.f32 %v244, 6.0
  %v261 = vmin.f32 %v245, 6.0
  %v262 = vmin.f32 %v246, 6.0
  %v263 = vmin.f32 %v247, 6.0
  %v264 = vmin.f32 %v248, 6.0
  %v265 = vmin.f32 %v249, 6.0
  %v266 = vmin.f32 %v250, 6.0
  %v267 = vmin.f32 %v251, 6.0
  %v268 = vmin.f32 %v252, 6.0
  %v269 = vmin.f32 %v253, 6.0
  %v270 = vmul.f32 %v160, %v254
  %v271 = vmul.f32 %v163, %v255
  %v272 = vmul.f32 %v168, %v256
  %v273 = vmul.f32 %v171, %v257
  %v274 = vmul.f32 %v176, %v258
  %v275 = vmul.f32 %v179, %v259
  %v276 = vmul.f32 %v184, %v260
  %v277 = vmul.f32 %v187, %v261
  %v278 = vmul.f32 %v192, %v262
  %v279 = vmul.f32 %v195, %v263
  %v280 = vmul.f32 %v200, %v264
  %v281 = vmul.f32 %v203, %v265
  %v282 = vmul.f32 %v208, %v266
  %v283 = vmul.f32 %v211, %v267
  %v284 = vmul.f32 %v216, %v268
  %v285 = vmul.f32 %v219, %v269
  %v286 = vmul.f32 %v270, 0.16666667
  %v287 = vmul.f32 %v271, 0.16666667
  %v288 = vmul.f32 %v272, 0.16666667
  %v289 = vmul.f32 %v273, 0.16666667
  %v290 = vmul.f32 %v274, 0.16666667
  %v291 = vmul.f32 %v275, 0.16666667
  %v292 = vmul.f32 %v276, 0.16666667
  %v293 = vmul.f32 %v277, 0.16666667
  %v294 = vmul.f32 %v278, 0.16666667
  %v295 = vmul.f32 %v279, 0.16666667
  %v296 = vmul.f32 %v280, 0.16666667
  %v297 = vmul.f32 %v281, 0.16666667
  %v298 = vmul.f32 %v282, 0.16666667
  %v299 = vmul.f32 %v283, 0.16666667
  %v300 = vmul.f32 %v284, 0.16666667
  %v301 = vmul.f32 %v285, 0.16666667
  %v302 = vpack.c.bf16 %v287, %v286
  %v303 = vpack.c.bf16 %v289, %v288
  %v304 = vpack.c.bf16 %v291, %v290
  %v305 = vpack.c.bf16 %v293, %v292
  %v306 = vpack.c.bf16 %v295, %v294
  %v307 = vpack.c.bf16 %v297, %v296
  %v308 = vpack.c.bf16 %v299, %v298
  %v309 = vpack.c.bf16 %v301, %v300
  %v318 = vunpack.c.l.b16 %v302
  %v319 = vunpack.c.h.b16 %v302
  %v320 = vunpack.c.l.b16 %v303
  %v321 = vunpack.c.h.b16 %v303
  %v322 = vunpack.c.l.b16 %v304
  %v323 = vunpack.c.h.b16 %v304
  %v324 = vunpack.c.l.b16 %v305
  %v325 = vunpack.c.h.b16 %v305
  %v326 = vunpack.c.l.b16 %v306
  %v327 = vunpack.c.h.b16 %v306
  %v328 = vunpack.c.l.b16 %v307
  %v329 = vunpack.c.h.b16 %v307
  %v330 = vunpack.c.l.b16 %v308
  %v331 = vunpack.c.h.b16 %v308
  %v332 = vunpack.c.l.b16 %v309
  %v333 = vunpack.c.h.b16 %v309
  %v334 = vpack.c.b16 %v318, %v318
  %v335 = vpack.c.b16 %v319, %v319
  %v336 = vpack.c.b16 %v320, %v320
  %v337 = vpack.c.b16 %v321, %v321
  %v338 = vpack.c.b16 %v322, %v322
  %v339 = vpack.c.b16 %v323, %v323
  %v340 = vpack.c.b16 %v324, %v324
  %v341 = vpack.c.b16 %v325, %v325
  %v342 = vpack.c.b16 %v326, %v326
  %v343 = vpack.c.b16 %v327, %v327
  %v344 = vpack.c.b16 %v328, %v328
  %v345 = vpack.c.b16 %v329, %v329
  %v346 = vpack.c.b16 %v330, %v330
  %v347 = vpack.c.b16 %v331, %v331
  %v348 = vpack.c.b16 %v332, %v332
  %v349 = vpack.c.b16 %v333, %v333
  %vm366 = vcmask 125952
  %367 = vst.msk [vmem:[%s3] sm:$0xf] %vm366, %v334
  %368 = vst.msk [vmem:[%s3 + $0x4] sm:$0xf] %vm366, %v335
  %369 = vst.msk [vmem:[%s3 + $0x8] sm:$0xf] %vm366, %v336
  %370 = vst.msk [vmem:[%s3 + $0xc] sm:$0xf] %vm366, %v337
  %371 = vst.msk [vmem:[%s3 + $0x10] sm:$0xf] %vm366, %v338
  %372 = vst.msk [vmem:[%s3 + $0x14] sm:$0xf] %vm366, %v339
  %373 = vst.msk [vmem:[%s3 + $0x18] sm:$0xf] %vm366, %v340
  %374 = vst.msk [vmem:[%s3 + $0x1c] sm:$0xf] %vm366, %v341
  %375 = vst.msk [vmem:[%s3 + $0x20] sm:$0xf] %vm366, %v342
  %376 = vst.msk [vmem:[%s3 + $0x24] sm:$0xf] %vm366, %v343
  %377 = vst.msk [vmem:[%s3 + $0x28] sm:$0xf] %vm366, %v344
  %378 = vst.msk [vmem:[%s3 + $0x2c] sm:$0xf] %vm366, %v345
  %379 = vst.msk [vmem:[%s3 + $0x30] sm:$0xf] %vm366, %v346
  %380 = vst.msk [vmem:[%s3 + $0x34] sm:$0xf] %vm366, %v347
  %381 = vst.msk [vmem:[%s3 + $0x38] sm:$0xf] %vm366, %v348
  %382 = vst.msk [vmem:[%s3 + $0x3c] sm:$0xf] %vm366, %v349
  // Predicated region
  $region14: #{_lambda_.6} parent=0 // pred_check
    _
  $region15: #{_lambda_.6} parent=0 // pred_check_branch
    %384 = sbr.rel (0) target = $region17
  $region16: #{_lambda_.6} parent=0 // pred_region
    _
  $region17: #{_lambda_.6} parent=0 // pred_fallthru
    _
  // Predicated region
  $region18: #{_lambda_.6} parent=0 // pred_check
    _
  $region19: #{_lambda_.6} parent=0 // pred_check_branch
    %386 = sbr.rel (0) target = $region21
  $region20: #{_lambda_.6} parent=0 // pred_region
    _
  $region21: #{_lambda_.6} parent=0 // pred_fallthru
    _

// kernel: _lambda_.7
$region0: #{_lambda_.7}
  #allocation0 [shape = 'u32[]', space=smem, size = 0x4, offset = 0x4, fixed_abs, tag = 'smem constant byte address 0x4 - core index']
  #allocation1 [shape = 'u32[144,128]{1,0:T(1,128)}', space=vmem, size = 0x12000, scoped, tag = 'internal scratch']
  #allocation2 [shape = 'f32[100,16]{1,0:T(8,128)}', space=vmem, size = 0xd000, scoped, tag = 'scratch operand']
  #allocation3 [shape = 'f32[64,16]{1,0:T(8,128)}', space=vmem, size = 0x8000, scoped, tag = 'scratch operand']
  %s0 = inlined_call_operand.vmem [shape: bf16[2,100,16], index: 0, kind: input, shape index: {}]
  %s1 = inlined_call_operand.vmem [shape: f32[9,1,16], index: 1, kind: input, shape index: {}]
  %s2 = inlined_call_operand.vmem [shape: f32[1,16], index: 2, kind: input, shape index: {}]
  %s3 = inlined_call_operand.vmem [shape: bf16[16,16], index: 3, kind: input, shape index: {}]
  %s4 = inlined_call_operand.vmem [shape: f32[1,16], index: 4, kind: input, shape index: {}]
  %s5 = inlined_call_operand.vmem [shape: bf16[2,64,16], index: 5, kind: input, shape index: {}]
  %s6 = inlined_call_operand.vmem [shape: bf16[2,64,16], index: 6, kind: output, shape index: {}]
  %s7 = sld [smem:[#allocation0]]
  $region57: #{_lambda_.7} parent=0
    _
  %s9 = ssub.s32 1, %s7
  %s10 = scalar_select 0, %s9, %s7
  loop: start=0, step=1, limit=4
  $region2: #{_lambda_.7} parent=0 // loop_pre_header
    _
  $region3: #{_lambda_.7} parent=0 // loop_header
    %s12 = sphi 0, %s16
    %p13 = scmp.ge.s32.totalorder %s12, 4
    %s22 = sphi 0, %s24
    %s25 = sphi 0, %s22
    %s26 = sphi 0, %s25
    %s42 = sphi 0, %s26
    %s46 = sphi 0, %s46
    %s48 = sphi 0, %s46
    %s49 = sphi 0, %s48
    %s63 = sphi 0, %s49
    %s67 = sphi 0, %s67
    %s69 = sphi 0, %s67
    %s70 = sphi 0, %s69
    %s84 = sphi 0, %s70
    %s88 = sphi 0, %s88
    %s90 = sphi 0, %s88
    %s91 = sphi 0, %s90
    %s105 = sphi 0, %s91
    %s109 = sphi 0, %s109
    %s111 = sphi 0, %s109
    %s112 = sphi 0, %s111
    %s126 = sphi 0, %s112
    %s132 = sphi 0, %s134
    %s135 = sphi 0, %s132
    %s136 = sphi 0, %s135
    %s152 = sphi 0, %s136
    %s158 = sphi 0, %s160
    %s161 = sphi 0, %s158
    %s162 = sphi 0, %s161
    %s178 = sphi 0, %s162
  $region4: #{_lambda_.7} parent=0 // loop_header_branch
    %15 = sbr.rel (%p13) target = $region8
  $region5: #{_lambda_.7} parent=0 // loop_body
    %s17 = ssub.s32 %s12, 1
    %s18 = ssub.s32 %s12, 2
    %s19 = sadd.s32 %s12, 1
    %s20 = ssub.s32 %s12, %s19
    %p21 = scmp.eq.s32.totalorder %s20, 0
    %s23 = sadd.s32 %s22, 1
    %s24 = scalar_select %p21, %s22, %s23
    %p27 = pneg %p21
    %p28 = scmp.eq.s32.totalorder %s12, 1
    %p29 = por %p27, %p28
    %p30 = scmp.ne.s32.totalorder %s22, %s25
    %p31 = scmp.eq.s32.totalorder %s12, 0
    %p32 = por %p30, %p31
    %p33 = scmp.ne.s32.totalorder %s22, %s25
    %p34 = scmp.eq.s32.totalorder %s17, 1
    %p35 = por %p33, %p34
    %p36 = scmp.ne.s32.totalorder %s25, %s26
    %p37 = scmp.eq.s32.totalorder %s17, 0
    %p38 = por %p36, %p37
    %p39 = scmp.ne.s32.totalorder %s25, %s26
    %p40 = scmp.eq.s32.totalorder %s18, 1
    %p41 = por %p39, %p40
    %p43 = scmp.ne.s32.totalorder %s26, %s42
    %p44 = scmp.eq.s32.totalorder %s18, 0
    %p45 = por %p43, %p44
    %s47 = sadd.s32 %s46, 1
    %p50 = scmp.eq.s32.totalorder %s12, 1
    %p51 = scmp.ne.s32.totalorder %s46, %s48
    %p52 = scmp.eq.s32.totalorder %s12, 0
    %p53 = por %p51, %p52
    %p54 = scmp.ne.s32.totalorder %s46, %s48
    %p55 = scmp.eq.s32.totalorder %s17, 1
    %p56 = por %p54, %p55
    %p57 = scmp.ne.s32.totalorder %s48, %s49
    %p58 = scmp.eq.s32.totalorder %s17, 0
    %p59 = por %p57, %p58
    %p60 = scmp.ne.s32.totalorder %s48, %s49
    %p61 = scmp.eq.s32.totalorder %s18, 1
    %p62 = por %p60, %p61
    %p64 = scmp.ne.s32.totalorder %s49, %s63
    %p65 = scmp.eq.s32.totalorder %s18, 0
    %p66 = por %p64, %p65
    %s68 = sadd.s32 %s67, 1
    %p71 = scmp.eq.s32.totalorder %s12, 1
    %p72 = scmp.ne.s32.totalorder %s67, %s69
    %p73 = scmp.eq.s32.totalorder %s12, 0
    %p74 = por %p72, %p73
    %p75 = scmp.ne.s32.totalorder %s67, %s69
    %p76 = scmp.eq.s32.totalorder %s17, 1
    %p77 = por %p75, %p76
    %p78 = scmp.ne.s32.totalorder %s69, %s70
    %p79 = scmp.eq.s32.totalorder %s17, 0
    %p80 = por %p78, %p79
    %p81 = scmp.ne.s32.totalorder %s69, %s70
    %p82 = scmp.eq.s32.totalorder %s18, 1
    %p83 = por %p81, %p82
    %p85 = scmp.ne.s32.totalorder %s70, %s84
    %p86 = scmp.eq.s32.totalorder %s18, 0
    %p87 = por %p85, %p86
    %s89 = sadd.s32 %s88, 1
    %p92 = scmp.eq.s32.totalorder %s12, 1
    %p93 = scmp.ne.s32.totalorder %s88, %s90
    %p94 = scmp.eq.s32.totalorder %s12, 0
    %p95 = por %p93, %p94
    %p96 = scmp.ne.s32.totalorder %s88, %s90
    %p97 = scmp.eq.s32.totalorder %s17, 1
    %p98 = por %p96, %p97
    %p99 = scmp.ne.s32.totalorder %s90, %s91
    %p100 = scmp.eq.s32.totalorder %s17, 0
    %p101 = por %p99, %p100
    %p102 = scmp.ne.s32.totalorder %s90, %s91
    %p103 = scmp.eq.s32.totalorder %s18, 1
    %p104 = por %p102, %p103
    %p106 = scmp.ne.s32.totalorder %s91, %s105
    %p107 = scmp.eq.s32.totalorder %s18, 0
    %p108 = por %p106, %p107
    %s110 = sadd.s32 %s109, 1
    %p113 = scmp.eq.s32.totalorder %s12, 1
    %p114 = scmp.ne.s32.totalorder %s109, %s111
    %p115 = scmp.eq.s32.totalorder %s12, 0
    %p116 = por %p114, %p115
    %p117 = scmp.ne.s32.totalorder %s109, %s111
    %p118 = scmp.eq.s32.totalorder %s17, 1
    %p119 = por %p117, %p118
    %p120 = scmp.ne.s32.totalorder %s111, %s112
    %p121 = scmp.eq.s32.totalorder %s17, 0
    %p122 = por %p120, %p121
    %p123 = scmp.ne.s32.totalorder %s111, %s112
    %p124 = scmp.eq.s32.totalorder %s18, 1
    %p125 = por %p123, %p124
    %p127 = scmp.ne.s32.totalorder %s112, %s126
    %p128 = scmp.eq.s32.totalorder %s18, 0
    %p129 = por %p127, %p128
    %s130 = ssub.s32 %s12, %s19
    %p131 = scmp.eq.s32.totalorder %s130, 0
    %s133 = sadd.s32 %s132, 1
    %s134 = scalar_select %p131, %s132, %s133
    %p137 = pneg %p131
    %p138 = scmp.eq.s32.totalorder %s12, 1
    %p139 = por %p137, %p138
    %p140 = scmp.ne.s32.totalorder %s132, %s135
    %p141 = scmp.eq.s32.totalorder %s12, 0
    %p142 = por %p140, %p141
    %p143 = scmp.ne.s32.totalorder %s132, %s135
    %p144 = scmp.eq.s32.totalorder %s17, 1
    %p145 = por %p143, %p144
    %p146 = scmp.ne.s32.totalorder %s135, %s136
    %p147 = scmp.eq.s32.totalorder %s17, 0
    %p148 = por %p146, %p147
    %p149 = scmp.ne.s32.totalorder %s135, %s136
    %p150 = scmp.eq.s32.totalorder %s18, 1
    %p151 = por %p149, %p150
    %p153 = scmp.ne.s32.totalorder %s136, %s152
    %p154 = scmp.eq.s32.totalorder %s18, 0
    %p155 = por %p153, %p154
    %s156 = ssub.s32 %s12, %s19
    %p157 = scmp.eq.s32.totalorder %s156, 0
    %s159 = sadd.s32 %s158, 1
    %s160 = scalar_select %p157, %s158, %s159
    %p163 = pneg %p157
    %p164 = scmp.eq.s32.totalorder %s12, 1
    %p165 = por %p163, %p164
    %p166 = scmp.ne.s32.totalorder %s158, %s161
    %p167 = scmp.eq.s32.totalorder %s12, 0
    %p168 = por %p166, %p167
    %p169 = scmp.ne.s32.totalorder %s158, %s161
    %p170 = scmp.eq.s32.totalorder %s17, 1
    %p171 = por %p169, %p170
    %p172 = scmp.ne.s32.totalorder %s161, %s162
    %p173 = scmp.eq.s32.totalorder %s17, 0
    %p174 = por %p172, %p173
    %p175 = scmp.ne.s32.totalorder %s161, %s162
    %p176 = scmp.eq.s32.totalorder %s18, 1
    %p177 = por %p175, %p176
    %p179 = scmp.ne.s32.totalorder %s162, %s178
    %p180 = scmp.eq.s32.totalorder %s18, 0
    %p181 = por %p179, %p180
    %p182 = scmp.le.s32.totalorder 1, %s12
    %p183 = scmp.lt.s32.totalorder %s12, 3
    %p184 = pnand %p182, %p183
    %p185 = pneg %p184
    // Predicated region
    $region9: #{_lambda_.7} parent=5 // pred_check
      _
    $region10: #{_lambda_.7} parent=5 // pred_check_branch
      %187 = sbr.rel (%p184) target = $region12
    $region11: #{_lambda_.7} parent=5 // pred_region
      %s188 = ssub.s32 %s12, 1
      // Predicated region
      $region13: #{_lambda_.7} parent=11 // pred_check
        %p189 = pneg %p59
      $region14: #{_lambda_.7} parent=11 // pred_check_branch
        %191 = sbr.rel (%p189) target = $region16
      $region15: #{_lambda_.7} parent=11 // pred_region
        _
      $region16: #{_lambda_.7} parent=11 // pred_fallthru
        _
      // Predicated region
      $region17: #{_lambda_.7} parent=11 // pred_check
        %p192 = pneg %p80
      $region18: #{_lambda_.7} parent=11 // pred_check_branch
        %194 = sbr.rel (%p192) target = $region20
      $region19: #{_lambda_.7} parent=11 // pred_region
        _
      $region20: #{_lambda_.7} parent=11 // pred_fallthru
        _
      // Predicated region
      $region21: #{_lambda_.7} parent=11 // pred_check
        %p195 = pneg %p101
      $region22: #{_lambda_.7} parent=11 // pred_check_branch
        %197 = sbr.rel (%p195) target = $region24
      $region23: #{_lambda_.7} parent=11 // pred_region
        _
      $region24: #{_lambda_.7} parent=11 // pred_fallthru
        _
      // Predicated region
      $region25: #{_lambda_.7} parent=11 // pred_check
        %p198 = pneg %p122
      $region26: #{_lambda_.7} parent=11 // pred_check_branch
        %200 = sbr.rel (%p198) target = $region28
      $region27: #{_lambda_.7} parent=11 // pred_region
        _
      $region28: #{_lambda_.7} parent=11 // pred_fallthru
        _
    $region12: #{_lambda_.7} parent=5 // pred_fallthru
      _
    %p201 = scmp.lt.s32.totalorder %s12, 2
    // Predicated region
    $region29: #{_lambda_.7} parent=5 // pred_check
      %p202 = pneg %p201
    $region30: #{_lambda_.7} parent=5 // pred_check_branch
      %204 = sbr.rel (%p202) target = $region32
    $region31: #{_lambda_.7} parent=5 // pred_region
      // Predicated region
      $region33: #{_lambda_.7} parent=31 // pred_check
        %p205 = pneg %p32
      $region34: #{_lambda_.7} parent=31 // pred_check_branch
        %207 = sbr.rel (%p205) target = $region36
      $region35: #{_lambda_.7} parent=31 // pred_region
        %p208 = scmp.lt.s32.totalorder %s12, 1
        %s209 = scalar_select %p208, %s12, 1
        %s210 = smul.addr %s209, 13
        %s211 = smul.addr %s210, 4
        %s212 = scalar_lea.vmem %s0, %s211
      $region36: #{_lambda_.7} parent=31 // pred_fallthru
        _
      // Predicated region
      $region37: #{_lambda_.7} parent=31 // pred_check
        %p213 = pneg %p142
      $region38: #{_lambda_.7} parent=31 // pred_check_branch
        %215 = sbr.rel (%p213) target = $region40
      $region39: #{_lambda_.7} parent=31 // pred_region
        %p216 = scmp.lt.s32.totalorder %s12, 1
        %s217 = scalar_select %p216, %s12, 1
        %s218 = smul.addr %s217, 8
        %s219 = smul.addr %s218, 4
        %s220 = scalar_lea.vmem %s5, %s219
      $region40: #{_lambda_.7} parent=31 // pred_fallthru
        _
    $region32: #{_lambda_.7} parent=5 // pred_fallthru
      _
    %p221 = scmp.le.s32.totalorder 1, %s12
    %p222 = scmp.lt.s32.totalorder %s12, 3
    %p223 = pnand %p221, %p222
    %p224 = pneg %p223
    // Predicated region
    $region41: #{_lambda_.7} parent=5 // pred_check
      _
    $region42: #{_lambda_.7} parent=5 // pred_check_branch
      %226 = sbr.rel (%p223) target = $region44
    $region43: #{_lambda_.7} parent=5 // pred_region
      %s227 = ssub.s32 %s12, 1
      %p228 = scmp.lt.s32.totalorder %s17, 1
      %s229 = scalar_select %p228, %s17, 1
      %s230 = smul.addr %s229, 13
      %s231 = smul.addr %s230, 4
      %s232 = scalar_lea.vmem %s0, %s231
      %p233 = pneg %p38
      %p234 = pneg %p35
      %p235 = pneg %p59
      %p236 = pneg %p56
      %p237 = pneg %p80
      %p238 = pneg %p77
      %p239 = pneg %p101
      %p240 = pneg %p98
      %p241 = pneg %p122
      %p242 = pneg %p119
      %p243 = scmp.lt.s32.totalorder %s17, 1
      %s244 = scalar_select %p243, %s17, 1
      %s245 = smul.addr %s244, 8
      %s246 = smul.addr %s245, 4
      %s247 = scalar_lea.vmem %s5, %s246
      %p248 = pneg %p148
      %p249 = pneg %p145
      %p250 = pneg %p174
      %p251 = pneg %p171
      %p252 = scmp.lt.s32.totalorder %s17, 1
      %s253 = scalar_select %p252, %s17, 1
      %s254 = smul.addr %s253, 8
      %s255 = smul.addr %s254, 4
      %s256 = scalar_lea.vmem %s6, %s255
      %p257 = scmp.lt.s32.totalorder %s17, 1
      %s258 = scalar_select %p257, %s17, 1
      %s259 = smul.addr %s258, 13
      %s260 = smul.addr %s259, 4
      %s261 = scalar_lea.vmem %s0, %s260
      %p262 = scmp.lt.s32.totalorder %s17, 1
      %s263 = scalar_select %p262, %s17, 1
      %s264 = smul.addr %s263, 8
      %s265 = smul.addr %s264, 4
      %s266 = scalar_lea.vmem %s5, %s265
      %p267 = scmp.lt.s32.totalorder %s17, 1
      %s268 = scalar_select %p267, %s17, 1
      %s269 = smul.addr %s268, 8
      %s270 = smul.addr %s269, 4
      %s271 = scalar_lea.vmem %s6, %s270
      %v273 = vld [vmem:[%s261] sm:$0xf]
      %v274 = vld [vmem:[%s261 + $0x4] sm:$0xf]
      %v275 = vld [vmem:[%s261 + $0x8] sm:$0xf]
      %v276 = vld [vmem:[%s261 + $0xc] sm:$0xf]
      %v277 = vld [vmem:[%s261 + $0x10] sm:$0xf]
      %v278 = vld [vmem:[%s261 + $0x14] sm:$0xf]
      %v279 = vld [vmem:[%s261 + $0x18] sm:$0xf]
      %v280 = vld [vmem:[%s261 + $0x1c] sm:$0xf]
      %v281 = vld [vmem:[%s261 + $0x20] sm:$0xf]
      %v282 = vld [vmem:[%s261 + $0x24] sm:$0xf]
      %v283 = vld [vmem:[%s261 + $0x28] sm:$0xf]
      %v284 = vld [vmem:[%s261 + $0x2c] sm:$0xf]
      %v285 = vld [vmem:[%s261 + $0x30] sm:$0x3]
      %v286 = vunpack.c.l.bf16 %v273
      %v287 = vunpack.c.l.bf16 %v274
      %v288 = vunpack.c.l.bf16 %v275
      %v289 = vunpack.c.l.bf16 %v276
      %v290 = vunpack.c.l.bf16 %v277
      %v291 = vunpack.c.l.bf16 %v278
      %v292 = vunpack.c.l.bf16 %v279
      %v293 = vunpack.c.l.bf16 %v280
      %v294 = vunpack.c.l.bf16 %v281
      %v295 = vunpack.c.l.bf16 %v282
      %v296 = vunpack.c.l.bf16 %v283
      %v297 = vunpack.c.l.bf16 %v284
      %v298 = vunpack.c.l.bf16 %v285
      %vm299 = vcmask 130048
      %300 = vst.msk [vmem:[#allocation2] sm:$0xff] %vm299, %v286
      %301 = vst.msk [vmem:[#allocation2 + $0x8] sm:$0xff] %vm299, %v287
      %302 = vst.msk [vmem:[#allocation2 + $0x10] sm:$0xff] %vm299, %v288
      %303 = vst.msk [vmem:[#allocation2 + $0x18] sm:$0xff] %vm299, %v289
      %304 = vst.msk [vmem:[#allocation2 + $0x20] sm:$0xff] %vm299, %v290
      %305 = vst.msk [vmem:[#allocation2 + $0x28] sm:$0xff] %vm299, %v291
      %306 = vst.msk [vmem:[#allocation2 + $0x30] sm:$0xff] %vm299, %v292
      %307 = vst.msk [vmem:[#allocation2 + $0x38] sm:$0xff] %vm299, %v293
      %308 = vst.msk [vmem:[#allocation2 + $0x40] sm:$0xff] %vm299, %v294
      %309 = vst.msk [vmem:[#allocation2 + $0x48] sm:$0xff] %vm299, %v295
      %310 = vst.msk [vmem:[#allocation2 + $0x50] sm:$0xff] %vm299, %v296
      %311 = vst.msk [vmem:[#allocation2 + $0x58] sm:$0xff] %vm299, %v297
      %vm312 = vcmask 125952
      %313 = vst.msk [vmem:[#allocation2 + $0x60] sm:$0xf] %vm312, %v298
      %v314 = vld [vmem:[%s1] sm:$0x1]
      %s315 = scalar_lea.vmem %s1, 1
      %v316 = vld [vmem:[%s315] sm:$0x1]
      %s317 = scalar_lea.vmem %s1, 2
      %v318 = vld [vmem:[%s317] sm:$0x1]
      %s319 = scalar_lea.vmem %s1, 3
      %v320 = vld [vmem:[%s319] sm:$0x1]
      %s321 = scalar_lea.vmem %s1, 4
      %v322 = vld [vmem:[%s321] sm:$0x1]
      %s323 = scalar_lea.vmem %s1, 5
      %v324 = vld [vmem:[%s323] sm:$0x1]
      %s325 = scalar_lea.vmem %s1, 6
      %v326 = vld [vmem:[%s325] sm:$0x1]
      %s327 = scalar_lea.vmem %s1, 7
      %v328 = vld [vmem:[%s327] sm:$0x1]
      %s329 = scalar_lea.vmem %s1, 8
      %v330 = vld [vmem:[%s329] sm:$0x1]
      %v331 = vld [vmem:[%s2] sm:$0x1]
      %v332 = vld [vmem:[#allocation2] sm:$0xff]
      %v334 = vlaneseq
      %v335 = vshrl.u32 %v334, 7
      %v336 = vsub.s32 0, %v335
      %v337 = vrot.slane %v314, %v336
      %v339 = vmul.f32 %v332, %v337
      %v340 = vadd.f32 %v339, 0.0
      %v341 = vld [vmem:[#allocation2 + $0x1] sm:$0xff]
      %v343 = vlaneseq
      %v344 = vshrl.u32 %v343, 7
      %v345 = vsub.s32 0, %v344
      %v346 = vrot.slane %v316, %v345
      %v348 = vmul.f32 %v341, %v346
      %v349 = vadd.f32 %v340, %v348
      %v350 = vld [vmem:[#allocation2 + $0x2] sm:$0xff]
      %v352 = vlaneseq
      %v353 = vshrl.u32 %v352, 7
      %v354 = vsub.s32 0, %v353
      %v355 = vrot.slane %v318, %v354
      %v357 = vmul.f32 %v350, %v355
      %v358 = vadd.f32 %v349, %v357
      %v359 = vld [vmem:[#allocation2 + $0xa] sm:$0xff]
      %v361 = vlaneseq
      %v362 = vshrl.u32 %v361, 7
      %v363 = vsub.s32 0, %v362
      %v364 = vrot.slane %v320, %v363
      %v366 = vmul.f32 %v359, %v364
      %v367 = vadd.f32 %v358, %v366
      %v368 = vld [vmem:[#allocation2 + $0xb] sm:$0xff]
      %v370 = vlaneseq
      %v371 = vshrl.u32 %v370, 7
      %v372 = vsub.s32 0, %v371
      %v373 = vrot.slane %v322, %v372
      %v375 = vmul.f32 %v368, %v373
      %v376 = vadd.f32 %v367, %v375
      %v377 = vld [vmem:[#allocation2 + $0xc] sm:$0xff]
      %v379 = vlaneseq
      %v380 = vshrl.u32 %v379, 7
      %v381 = vsub.s32 0, %v380
      %v382 = vrot.slane %v324, %v381
      %v384 = vmul.f32 %v377, %v382
      %v385 = vadd.f32 %v376, %v384
      %v386 = vld [vmem:[#allocation2 + $0x14] sm:$0xff]
      %v388 = vlaneseq
      %v389 = vshrl.u32 %v388, 7
      %v390 = vsub.s32 0, %v389
      %v391 = vrot.slane %v326, %v390
      %v393 = vmul.f32 %v386, %v391
      %v394 = vadd.f32 %v385, %v393
      %v395 = vld [vmem:[#allocation2 + $0x15] sm:$0xff]
      %v397 = vlaneseq
      %v398 = vshrl.u32 %v397, 7
      %v399 = vsub.s32 0, %v398
      %v400 = vrot.slane %v328, %v399
      %v402 = vmul.f32 %v395, %v400
      %v403 = vadd.f32 %v394, %v402
      %v404 = vld [vmem:[#allocation2 + $0x16] sm:$0xff]
      %v406 = vlaneseq
      %v407 = vshrl.u32 %v406, 7
      %v408 = vsub.s32 0, %v407
      %v409 = vrot.slane %v330, %v408
      %v411 = vmul.f32 %v404, %v409
      %v412 = vadd.f32 %v403, %v411
      %v414 = vlaneseq
      %v415 = vshrl.u32 %v414, 7
      %v416 = vsub.s32 0, %v415
      %v417 = vrot.slane %v331, %v416
      %v419 = vadd.f32 %v412, %v417
      %v420 = vmax.f32 %v419, 0.0
      %421 = vst.msk [vmem:[#allocation3] sm:$0xff] %vm299, %v420
      %v422 = vld [vmem:[#allocation2 + $0xa] sm:$0xff]
      %v423 = vmul.f32 %v422, %v337
      %v424 = vadd.f32 %v423, 0.0
      %v425 = vld [vmem:[#allocation2 + $0xb] sm:$0xff]
      %v426 = vmul.f32 %v425, %v346
      %v427 = vadd.f32 %v424, %v426
      %v428 = vld [vmem:[#allocation2 + $0xc] sm:$0xff]
      %v429 = vmul.f32 %v428, %v355
      %v430 = vadd.f32 %v427, %v429
      %v431 = vld [vmem:[#allocation2 + $0x14] sm:$0xff]
      %v432 = vmul.f32 %v431, %v364
      %v433 = vadd.f32 %v430, %v432
      %v434 = vld [vmem:[#allocation2 + $0x15] sm:$0xff]
      %v435 = vmul.f32 %v434, %v373
      %v436 = vadd.f32 %v433, %v435
      %v437 = vld [vmem:[#allocation2 + $0x16] sm:$0xff]
      %v438 = vmul.f32 %v437, %v382
      %v439 = vadd.f32 %v436, %v438
      %v440 = vld [vmem:[#allocation2 + $0x1e] sm:$0xff]
      %v441 = vmul.f32 %v440, %v391
      %v442 = vadd.f32 %v439, %v441
      %v443 = vld [vmem:[#allocation2 + $0x1f] sm:$0xff]
      %v444 = vmul.f32 %v443, %v400
      %v445 = vadd.f32 %v442, %v444
      %v446 = vld [vmem:[#allocation2 + $0x20] sm:$0xff]
      %v447 = vmul.f32 %v446, %v409
      %v448 = vadd.f32 %v445, %v447
      %v449 = vadd.f32 %v448, %v417
      %v450 = vmax.f32 %v449, 0.0
      %451 = vst.msk [vmem:[#allocation3 + $0x8] sm:$0xff] %vm299, %v450
      %v452 = vld [vmem:[#allocation2 + $0x14] sm:$0xff]
      %v453 = vmul.f32 %v452, %v337
      %v454 = vadd.f32 %v453, 0.0
      %v455 = vld [vmem:[#allocation2 + $0x15] sm:$0xff]
      %v456 = vmul.f32 %v455, %v346
      %v457 = vadd.f32 %v454, %v456
      %v458 = vld [vmem:[#allocation2 + $0x16] sm:$0xff]
      %v459 = vmul.f32 %v458, %v355
      %v460 = vadd.f32 %v457, %v459
      %v461 = vld [vmem:[#allocation2 + $0x1e] sm:$0xff]
      %v462 = vmul.f32 %v461, %v364
      %v463 = vadd.f32 %v460, %v462
      %v464 = vld [vmem:[#allocation2 + $0x1f] sm:$0xff]
      %v465 = vmul.f32 %v464, %v373
      %v466 = vadd.f32 %v463, %v465
      %v467 = vld [vmem:[#allocation2 + $0x20] sm:$0xff]
      %v468 = vmul.f32 %v467, %v382
      %v469 = vadd.f32 %v466, %v468
      %v470 = vld [vmem:[#allocation2 + $0x28] sm:$0xff]
      %v471 = vmul.f32 %v470, %v391
      %v472 = vadd.f32 %v469, %v471
      %v473 = vld [vmem:[#allocation2 + $0x29] sm:$0xff]
      %v474 = vmul.f32 %v473, %v400
      %v475 = vadd.f32 %v472, %v474
      %v476 = vld [vmem:[#allocation2 + $0x2a] sm:$0xff]
      %v477 = vmul.f32 %v476, %v409
      %v478 = vadd.f32 %v475, %v477
      %v479 = vadd.f32 %v478, %v417
      %v480 = vmax.f32 %v479, 0.0
      %481 = vst.msk [vmem:[#allocation3 + $0x10] sm:$0xff] %vm299, %v480
      %v482 = vld [vmem:[#allocation2 + $0x1e] sm:$0xff]
      %v483 = vmul.f32 %v482, %v337
      %v484 = vadd.f32 %v483, 0.0
      %v485 = vld [vmem:[#allocation2 + $0x1f] sm:$0xff]
      %v486 = vmul.f32 %v485, %v346
      %v487 = vadd.f32 %v484, %v486
      %v488 = vld [vmem:[#allocation2 + $0x20] sm:$0xff]
      %v489 = vmul.f32 %v488, %v355
      %v490 = vadd.f32 %v487, %v489
      %v491 = vld [vmem:[#allocation2 + $0x28] sm:$0xff]
      %v492 = vmul.f32 %v491, %v364
      %v493 = vadd.f32 %v490, %v492
      %v494 = vld [vmem:[#allocation2 + $0x29] sm:$0xff]
      %v495 = vmul.f32 %v494, %v373
      %v496 = vadd.f32 %v493, %v495
      %v497 = vld [vmem:[#allocation2 + $0x2a] sm:$0xff]
      %v498 = vmul.f32 %v497, %v382
      %v499 = vadd.f32 %v496, %v498
      %v500 = vld [vmem:[#allocation2 + $0x32] sm:$0xff]
      %v501 = vmul.f32 %v500, %v391
      %v502 = vadd.f32 %v499, %v501
      %v503 = vld [vmem:[#allocation2 + $0x33] sm:$0xff]
      %v504 = vmul.f32 %v503, %v400
      %v505 = vadd.f32 %v502, %v504
      %v506 = vld [vmem:[#allocation2 + $0x34] sm:$0xff]
      %v507 = vmul.f32 %v506, %v409
      %v508 = vadd.f32 %v505, %v507
      %v509 = vadd.f32 %v508, %v417
      %v510 = vmax.f32 %v509, 0.0
      %511 = vst.msk [vmem:[#allocation3 + $0x18] sm:$0xff] %vm299, %v510
      %v512 = vld [vmem:[#allocation2 + $0x28] sm:$0xff]
      %v513 = vmul.f32 %v512, %v337
      %v514 = vadd.f32 %v513, 0.0
      %v515 = vld [vmem:[#allocation2 + $0x29] sm:$0xff]
      %v516 = vmul.f32 %v515, %v346
      %v517 = vadd.f32 %v514, %v516
      %v518 = vld [vmem:[#allocation2 + $0x2a] sm:$0xff]
      %v519 = vmul.f32 %v518, %v355
      %v520 = vadd.f32 %v517, %v519
      %v521 = vld [vmem:[#allocation2 + $0x32] sm:$0xff]
      %v522 = vmul.f32 %v521, %v364
      %v523 = vadd.f32 %v520, %v522
      %v524 = vld [vmem:[#allocation2 + $0x33] sm:$0xff]
      %v525 = vmul.f32 %v524, %v373
      %v526 = vadd.f32 %v523, %v525
      %v527 = vld [vmem:[#allocation2 + $0x34] sm:$0xff]
      %v528 = vmul.f32 %v527, %v382
      %v529 = vadd.f32 %v526, %v528
      %v530 = vld [vmem:[#allocation2 + $0x3c] sm:$0xff]
      %v531 = vmul.f32 %v530, %v391
      %v532 = vadd.f32 %v529, %v531
      %v533 = vld [vmem:[#allocation2 + $0x3d] sm:$0xff]
      %v534 = vmul.f32 %v533, %v400
      %v535 = vadd.f32 %v532, %v534
      %v536 = vld [vmem:[#allocation2 + $0x3e] sm:$0xff]
      %v537 = vmul.f32 %v536, %v409
      %v538 = vadd.f32 %v535, %v537
      %v539 = vadd.f32 %v538, %v417
      %v540 = vmax.f32 %v539, 0.0
      %541 = vst.msk [vmem:[#allocation3 + $0x20] sm:$0xff] %vm299, %v540
      %v542 = vld [vmem:[#allocation2 + $0x32] sm:$0xff]
      %v543 = vmul.f32 %v542, %v337
      %v544 = vadd.f32 %v543, 0.0
      %v545 = vld [vmem:[#allocation2 + $0x33] sm:$0xff]
      %v546 = vmul.f32 %v545, %v346
      %v547 = vadd.f32 %v544, %v546
      %v548 = vld [vmem:[#allocation2 + $0x34] sm:$0xff]
      %v549 = vmul.f32 %v548, %v355
      %v550 = vadd.f32 %v547, %v549
      %v551 = vld [vmem:[#allocation2 + $0x3c] sm:$0xff]
      %v552 = vmul.f32 %v551, %v364
      %v553 = vadd.f32 %v550, %v552
      %v554 = vld [vmem:[#allocation2 + $0x3d] sm:$0xff]
      %v555 = vmul.f32 %v554, %v373
      %v556 = vadd.f32 %v553, %v555
      %v557 = vld [vmem:[#allocation2 + $0x3e] sm:$0xff]
      %v558 = vmul.f32 %v557, %v382
      %v559 = vadd.f32 %v556, %v558
      %v560 = vld [vmem:[#allocation2 + $0x46] sm:$0xff]
      %v561 = vmul.f32 %v560, %v391
      %v562 = vadd.f32 %v559, %v561
      %v563 = vld [vmem:[#allocation2 + $0x47] sm:$0xff]
      %v564 = vmul.f32 %v563, %v400
      %v565 = vadd.f32 %v562, %v564
      %v566 = vld [vmem:[#allocation2 + $0x48] sm:$0xff]
      %v567 = vmul.f32 %v566, %v409
      %v568 = vadd.f32 %v565, %v567
      %v569 = vadd.f32 %v568, %v417
      %v570 = vmax.f32 %v569, 0.0
      %571 = vst.msk [vmem:[#allocation3 + $0x28] sm:$0xff] %vm299, %v570
      %v572 = vld [vmem:[#allocation2 + $0x3c] sm:$0xff]
      %v573 = vmul.f32 %v572, %v337
      %v574 = vadd.f32 %v573, 0.0
      %v575 = vld [vmem:[#allocation2 + $0x3d] sm:$0xff]
      %v576 = vmul.f32 %v575, %v346
      %v577 = vadd.f32 %v574, %v576
      %v578 = vld [vmem:[#allocation2 + $0x3e] sm:$0xff]
      %v579 = vmul.f32 %v578, %v355
      %v580 = vadd.f32 %v577, %v579
      %v581 = vld [vmem:[#allocation2 + $0x46] sm:$0xff]
      %v582 = vmul.f32 %v581, %v364
      %v583 = vadd.f32 %v580, %v582
      %v584 = vld [vmem:[#allocation2 + $0x47] sm:$0xff]
      %v585 = vmul.f32 %v584, %v373
      %v586 = vadd.f32 %v583, %v585
      %v587 = vld [vmem:[#allocation2 + $0x48] sm:$0xff]
      %v588 = vmul.f32 %v587, %v382
      %v589 = vadd.f32 %v586, %v588
      %v590 = vld [vmem:[#allocation2 + $0x50] sm:$0xff]
      %v591 = vmul.f32 %v590, %v391
      %v592 = vadd.f32 %v589, %v591
      %v593 = vld [vmem:[#allocation2 + $0x51] sm:$0xff]
      %v594 = vmul.f32 %v593, %v400
      %v595 = vadd.f32 %v592, %v594
      %v596 = vld [vmem:[#allocation2 + $0x52] sm:$0xff]
      %v597 = vmul.f32 %v596, %v409
      %v598 = vadd.f32 %v595, %v597
      %v599 = vadd.f32 %v598, %v417
      %v600 = vmax.f32 %v599, 0.0
      %601 = vst.msk [vmem:[#allocation3 + $0x30] sm:$0xff] %vm299, %v600
      %v602 = vld [vmem:[#allocation2 + $0x46] sm:$0xff]
      %v603 = vmul.f32 %v602, %v337
      %v604 = vadd.f32 %v603, 0.0
      %v605 = vld [vmem:[#allocation2 + $0x47] sm:$0xff]
      %v606 = vmul.f32 %v605, %v346
      %v607 = vadd.f32 %v604, %v606
      %v608 = vld [vmem:[#allocation2 + $0x48] sm:$0xff]
      %v609 = vmul.f32 %v608, %v355
      %v610 = vadd.f32 %v607, %v609
      %v611 = vld [vmem:[#allocation2 + $0x50] sm:$0xff]
      %v612 = vmul.f32 %v611, %v364
      %v613 = vadd.f32 %v610, %v612
      %v614 = vld [vmem:[#allocation2 + $0x51] sm:$0xff]
      %v615 = vmul.f32 %v614, %v373
      %v616 = vadd.f32 %v613, %v615
      %v617 = vld [vmem:[#allocation2 + $0x52] sm:$0xff]
      %v618 = vmul.f32 %v617, %v382
      %v619 = vadd.f32 %v616, %v618
      %v620 = vld [vmem:[#allocation2 + $0x5a] sm:$0xff]
      %v621 = vmul.f32 %v620, %v391
      %v622 = vadd.f32 %v619, %v621
      %v623 = vld [vmem:[#allocation2 + $0x5b] sm:$0xff]
      %v624 = vmul.f32 %v623, %v400
      %v625 = vadd.f32 %v622, %v624
      %v626 = vld [vmem:[#allocation2 + $0x5c] sm:$0xff]
      %v627 = vmul.f32 %v626, %v409
      %v628 = vadd.f32 %v625, %v627
      %v629 = vadd.f32 %v628, %v417
      %v630 = vmax.f32 %v629, 0.0
      %631 = vst.msk [vmem:[#allocation3 + $0x38] sm:$0xff] %vm299, %v630
      %v632 = vld [vmem:[#allocation3] sm:$0xff]
      %v633 = vld [vmem:[#allocation3 + $0x8] sm:$0xff]
      %v634 = vld [vmem:[#allocation3 + $0x10] sm:$0xff]
      %v635 = vld [vmem:[#allocation3 + $0x18] sm:$0xff]
      %v636 = vld [vmem:[#allocation3 + $0x20] sm:$0xff]
      %v637 = vld [vmem:[#allocation3 + $0x28] sm:$0xff]
      %v638 = vld [vmem:[#allocation3 + $0x30] sm:$0xff]
      %v639 = vld [vmem:[#allocation3 + $0x38] sm:$0xff]
      %v640 = vpack.c.bf16 %v633, %v632
      %v641 = vpack.c.bf16 %v635, %v634
      %v642 = vpack.c.bf16 %v637, %v636
      %v643 = vpack.c.bf16 %v639, %v638
      %v644 = vld [vmem:[%s3] sm:$0xf]
      %v645 = vld [vmem:[%s3 + $0x4] sm:$0xf]
      %v646 = vld [vmem:[%s4] sm:$0x1]
      %v648 = vlaneseq
      %v649 = vshrl.u32 %v648, 7
      %v650 = vsub.s32 0, %v649
      %v651 = vrot.slane %v646, %v650
      %v655 = vunpack.c.l.b16 %v644
      %v656 = vunpack.c.l.b16 %v645
      %v657 = vpack.c.b16 %v656, %v655
      %v660 = vsel %vm299, %v640, 0
      %v663 = vsel %vm299, %v641, 0
      %v666 = vsel %vm299, %v642, 0
      %v669 = vsel %vm299, %v643, 0
      %671 = vmatprep.subr.bf16.mxu0 0
      %672 = vmatpush1.bf16.msra.mxu0 0
      %673 = vmatprep.subr.bf16.mxu0 0
      %674 = vmatpush1.bf16.msra.mxu0 0
      %675 = vmatprep.subr.bf16.mxu0 0
      %676 = vmatpush1.bf16.msra.mxu0 0
      %677 = vmatprep.subr.bf16.mxu0 0
      %678 = vmatpush1.bf16.msra.mxu0 0
      %679 = vmatprep.subr.bf16.mxu0 0
      %680 = vmatpush1.bf16.msra.mxu0 0
      %681 = vmatprep.subr.bf16.mxu0 0
      %682 = vmatpush1.bf16.msra.mxu0 0
      %683 = vmatprep.subr.bf16.mxu0 0
      %684 = vmatpush1.bf16.msra.mxu0 0
      %685 = vmatprep.subr.bf16.mxu0 0
      %686 = vmatpush1.bf16.msra.mxu0 %v657
      %687 = vmatprep.subr.bf16.mxu0 0
      %688 = vmatpush2.bf16.msra.mxu0 0
      %689 = vmatprep.subr.bf16.mxu0 0
      %690 = vmatpush2.bf16.msra.mxu0 0
      %691 = vmatprep.subr.bf16.mxu0 0
      %692 = vmatpush2.bf16.msra.mxu0 0
      %693 = vmatprep.subr.bf16.mxu0 0
      %694 = vmatpush2.bf16.msra.mxu0 0
      %695 = vmatprep.subr.bf16.mxu0 0
      %696 = vmatpush2.bf16.msra.mxu0 0
      %697 = vmatprep.subr.bf16.mxu0 0
      %698 = vmatpush2.bf16.msra.mxu0 0
      %699 = vmatprep.subr.bf16.mxu0 0
      %700 = vmatpush2.bf16.msra.mxu0 0
      %701 = vmatprep.subr.bf16.mxu0 0
      %702 = vmatpush2.bf16.msra.mxu0 0
      %703 = vmatprep.mubr.bf16.mxu0 0
      %704 = vmatmul.mubr.bf16.gmra.mxu0 %v660
      %v705 = vpop.f32.mrf.mxu0
      %v706 = vadd.f32 %v651, %v705
      %v707 = vpop.f32.mrf.mxu0
      %v708 = vpop.f32.mrf.mxu0
      %v709 = vadd.f32 %v651, %v708
      %v710 = vpop.f32.mrf.mxu0
      %711 = vmatprep.mubr.bf16.mxu0 0
      %712 = vmatmul.mubr.bf16.gmra.mxu0 %v663
      %v713 = vpop.f32.mrf.mxu0
      %v714 = vadd.f32 %v651, %v713
      %v715 = vpop.f32.mrf.mxu0
      %v716 = vpop.f32.mrf.mxu0
      %v717 = vadd.f32 %v651, %v716
      %v718 = vpop.f32.mrf.mxu0
      %719 = vmatprep.mubr.bf16.mxu0 0
      %720 = vmatmul.mubr.bf16.gmra.mxu0 %v666
      %v721 = vpop.f32.mrf.mxu0
      %v722 = vadd.f32 %v651, %v721
      %v723 = vpop.f32.mrf.mxu0
      %v724 = vpop.f32.mrf.mxu0
      %v725 = vadd.f32 %v651, %v724
      %v726 = vpop.f32.mrf.mxu0
      %727 = vmatprep.mubr.bf16.mxu0 0
      %728 = vmatmul.mubr.bf16.gmra.mxu0 %v669
      %v729 = vpop.f32.mrf.mxu0
      %v730 = vadd.f32 %v651, %v729
      %v731 = vpop.f32.mrf.mxu0
      %v732 = vpop.f32.mrf.mxu0
      %v733 = vadd.f32 %v651, %v732
      %v734 = vpop.f32.mrf.mxu0
      %735 = vdwg.mxu0
      %v736 = vld [vmem:[%s266] sm:$0xf]
      %v737 = vld [vmem:[%s266 + $0x4] sm:$0xf]
      %v738 = vld [vmem:[%s266 + $0x8] sm:$0xf]
      %v739 = vld [vmem:[%s266 + $0xc] sm:$0xf]
      %v740 = vld [vmem:[%s266 + $0x10] sm:$0xf]
      %v741 = vld [vmem:[%s266 + $0x14] sm:$0xf]
      %v742 = vld [vmem:[%s266 + $0x18] sm:$0xf]
      %v743 = vld [vmem:[%s266 + $0x1c] sm:$0xf]
      %v744 = vunpack.c.l.bf16 %v736
      %v745 = vunpack.c.l.bf16 %v737
      %v746 = vunpack.c.l.bf16 %v738
      %v747 = vunpack.c.l.bf16 %v739
      %v748 = vunpack.c.l.bf16 %v740
      %v749 = vunpack.c.l.bf16 %v741
      %v750 = vunpack.c.l.bf16 %v742
      %v751 = vunpack.c.l.bf16 %v743
      %v752 = vadd.f32 %v706, %v744
      %v753 = vadd.f32 %v709, %v745
      %v754 = vadd.f32 %v714, %v746
      %v755 = vadd.f32 %v717, %v747
      %v756 = vadd.f32 %v722, %v748
      %v757 = vadd.f32 %v725, %v749
      %v758 = vadd.f32 %v730, %v750
      %v759 = vadd.f32 %v733, %v751
      %v760 = vpack.c.bf16 %v753, %v752
      %v761 = vpack.c.bf16 %v755, %v754
      %v762 = vpack.c.bf16 %v757, %v756
      %v763 = vpack.c.bf16 %v759, %v758
      %v768 = vunpack.c.l.b16 %v760
      %v769 = vunpack.c.h.b16 %v760
      %v770 = vunpack.c.l.b16 %v761
      %v771 = vunpack.c.h.b16 %v761
      %v772 = vunpack.c.l.b16 %v762
      %v773 = vunpack.c.h.b16 %v762
      %v774 = vunpack.c.l.b16 %v763
      %v775 = vunpack.c.h.b16 %v763
      %v776 = vpack.c.b16 %v768, %v768
      %v777 = vpack.c.b16 %v769, %v769
      %v778 = vpack.c.b16 %v770, %v770
      %v779 = vpack.c.b16 %v771, %v771
      %v780 = vpack.c.b16 %v772, %v772
      %v781 = vpack.c.b16 %v773, %v773
      %v782 = vpack.c.b16 %v774, %v774
      %v783 = vpack.c.b16 %v775, %v775
      %792 = vst.msk [vmem:[%s271] sm:$0xf] %vm312, %v776
      %793 = vst.msk [vmem:[%s271 + $0x4] sm:$0xf] %vm312, %v777
      %794 = vst.msk [vmem:[%s271 + $0x8] sm:$0xf] %vm312, %v778
      %795 = vst.msk [vmem:[%s271 + $0xc] sm:$0xf] %vm312, %v779
      %796 = vst.msk [vmem:[%s271 + $0x10] sm:$0xf] %vm312, %v780
      %797 = vst.msk [vmem:[%s271 + $0x14] sm:$0xf] %vm312, %v781
      %798 = vst.msk [vmem:[%s271 + $0x18] sm:$0xf] %vm312, %v782
      %799 = vst.msk [vmem:[%s271 + $0x1c] sm:$0xf] %vm312, %v783
      %p800 = scmp.lt.s32.totalorder %s17, 1
      %s801 = scalar_select %p800, %s17, 1
      %s802 = smul.addr %s801, 8
      %s803 = smul.addr %s802, 4
      %s804 = scalar_lea.vmem %s6, %s803
      // Predicated region
      $region45: #{_lambda_.7} parent=43 // pred_check
        %p805 = pneg %p171
      $region46: #{_lambda_.7} parent=43 // pred_check_branch
        %807 = sbr.rel (%p805) target = $region48
      $region47: #{_lambda_.7} parent=43 // pred_region
        _
      $region48: #{_lambda_.7} parent=43 // pred_fallthru
        _
    $region44: #{_lambda_.7} parent=5 // pred_fallthru
      _
    %p808 = scmp.le.s32.totalorder 2, %s12
    // Predicated region
    $region49: #{_lambda_.7} parent=5 // pred_check
      %p809 = pneg %p808
    $region50: #{_lambda_.7} parent=5 // pred_check_branch
      %811 = sbr.rel (%p809) target = $region52
    $region51: #{_lambda_.7} parent=5 // pred_region
      %s812 = ssub.s32 %s12, 2
      // Predicated region
      $region53: #{_lambda_.7} parent=51 // pred_check
        %p813 = pneg %p177
      $region54: #{_lambda_.7} parent=51 // pred_check_branch
        %815 = sbr.rel (%p813) target = $region56
      $region55: #{_lambda_.7} parent=51 // pred_region
        %p816 = scmp.lt.s32.totalorder %s18, 1
        %s817 = scalar_select %p816, %s18, 1
        %s818 = smul.addr %s817, 8
        %s819 = smul.addr %s818, 4
        %s820 = scalar_lea.vmem %s6, %s819
      $region56: #{_lambda_.7} parent=51 // pred_fallthru
        _
    $region52: #{_lambda_.7} parent=5 // pred_fallthru
      _
  $region6: #{_lambda_.7} parent=0 // loop_footer
    %s16 = sadd.s32 1, %s12
  $region7: #{_lambda_.7} parent=0 // loop_footer_branch
    %11 = sbr.rel target = $region3
  $region8: #{_lambda_.7} parent=0 // loop_exit
    _

// kernel: _lambda_.10
$region0: #{_lambda_.10}
  #allocation0 [shape = 'u32[]', space=smem, size = 0x4, offset = 0x4, fixed_abs, tag = 'smem constant byte address 0x4 - core index']
  #allocation1 [shape = 'u32[144,128]{1,0:T(1,128)}', space=vmem, size = 0x12000, scoped, tag = 'internal scratch']
  %s0 = inlined_call_operand.vmem [shape: bf16[32,24], index: 0, kind: input, shape index: {}]
  %s1 = inlined_call_operand.vmem [shape: bf16[24,144], index: 1, kind: input, shape index: {}]
  %s2 = inlined_call_operand.vmem [shape: f32[1,144], index: 2, kind: input, shape index: {}]
  %s3 = inlined_call_operand.vmem [shape: bf16[32,144], index: 3, kind: output, shape index: {}]
  %s4 = sld [smem:[#allocation0]]
  $region22: #{_lambda_.10} parent=0
    _
  %s6 = ssub.s32 1, %s4
  %s7 = scalar_select 0, %s6, %s4
  // Predicated region
  $region2: #{_lambda_.10} parent=0 // pred_check
    _
  $region3: #{_lambda_.10} parent=0 // pred_check_branch
    %9 = sbr.rel (0) target = $region5
  $region4: #{_lambda_.10} parent=0 // pred_region
    _
  $region5: #{_lambda_.10} parent=0 // pred_fallthru
    _
  // Predicated region
  $region6: #{_lambda_.10} parent=0 // pred_check
    _
  $region7: #{_lambda_.10} parent=0 // pred_check_branch
    %11 = sbr.rel (0) target = $region9
  $region8: #{_lambda_.10} parent=0 // pred_region
    _
  $region9: #{_lambda_.10} parent=0 // pred_fallthru
    _
  // Predicated region
  $region10: #{_lambda_.10} parent=0 // pred_check
    _
  $region11: #{_lambda_.10} parent=0 // pred_check_branch
    %13 = sbr.rel (0) target = $region13
  $region12: #{_lambda_.10} parent=0 // pred_region
    _
  $region13: #{_lambda_.10} parent=0 // pred_fallthru
    _
  %v15 = vld [vmem:[%s0] sm:$0xf]
  %v16 = vld [vmem:[%s0 + $0x4] sm:$0xf]
  %v17 = vld [vmem:[%s0 + $0x8] sm:$0xf]
  %v18 = vld [vmem:[%s0 + $0xc] sm:$0xf]
  %v19 = vld [vmem:[%s1] sm:$0xff]
  %v20 = vld [vmem:[%s1 + $0x8] sm:$0xff]
  %v21 = vld [vmem:[%s1 + $0x10] sm:$0xff]
  %v22 = vld [vmem:[%s2] sm:$0x3]
  %v24 = vlaneseq
  %v25 = vshrl.u32 %v24, 7
  %v26 = vsub.s32 0, %v25
  %v27 = vrot.slane %v22, %v26
  %v28 = vlaneseq
  %v29 = vshrl.u32 %v28, 7
  %v30 = vsub.s32 1, %v29
  %v31 = vrot.slane %v22, %v30
  %v38 = vunpack.c.l.b16 %v15
  %v39 = vunpack.c.l.b16 %v16
  %v40 = vunpack.c.l.b16 %v17
  %v41 = vunpack.c.l.b16 %v18
  %v42 = vpack.c.b16 %v39, %v38
  %v43 = vpack.c.b16 %v41, %v40
  %v47 = vunpack.c.l.b16 %v19
  %v48 = vunpack.c.h.b16 %v19
  %v49 = vunpack.c.l.b16 %v20
  %v50 = vunpack.c.h.b16 %v20
  %v51 = vunpack.c.l.b16 %v21
  %v52 = vunpack.c.h.b16 %v21
  %v53 = vpack.c.b16 %v49, %v47
  %v54 = vpack.c.b16 %v50, %v48
  %v55 = vpack.c.b16 %v51, %v51
  %v56 = vpack.c.b16 %v52, %v52
  %vm59 = vcmask 195584
  %v61 = vsel %vm59, %v42, 0
  %v64 = vsel %vm59, %v43, 0
  %vm66 = vcmask 1043456
  %v68 = vsel %vm66, %v55, 0
  %v71 = vsel %vm66, %v56, 0
  %73 = vmatprep.subr.bf16.mxu0 0
  %74 = vmatpush1.bf16.msra.mxu0 0
  %75 = vmatprep.subr.bf16.mxu0 0
  %76 = vmatpush1.bf16.msra.mxu0 0
  %77 = vmatprep.subr.bf16.mxu0 0
  %78 = vmatpush1.bf16.msra.mxu0 0
  %79 = vmatprep.subr.bf16.mxu0 0
  %80 = vmatpush1.bf16.msra.mxu0 0
  %81 = vmatprep.subr.bf16.mxu0 0
  %82 = vmatpush1.bf16.msra.mxu0 0
  %83 = vmatprep.subr.bf16.mxu0 0
  %84 = vmatpush1.bf16.msra.mxu0 0
  %85 = vmatprep.subr.bf16.mxu0 %v71
  %86 = vmatpush1.bf16.msra.mxu0 %v68
  %87 = vmatprep.subr.bf16.mxu0 %v54
  %88 = vmatpush1.bf16.msra.mxu0 %v53
  %89 = vmatprep.subr.bf16.mxu0 0
  %90 = vmatpush2.bf16.msra.mxu0 0
  %91 = vmatprep.subr.bf16.mxu0 0
  %92 = vmatpush2.bf16.msra.mxu0 0
  %93 = vmatprep.subr.bf16.mxu0 0
  %94 = vmatpush2.bf16.msra.mxu0 0
  %95 = vmatprep.subr.bf16.mxu0 0
  %96 = vmatpush2.bf16.msra.mxu0 0
  %97 = vmatprep.subr.bf16.mxu0 0
  %98 = vmatpush2.bf16.msra.mxu0 0
  %99 = vmatprep.subr.bf16.mxu0 0
  %100 = vmatpush2.bf16.msra.mxu0 0
  %101 = vmatprep.subr.bf16.mxu0 0
  %102 = vmatpush2.bf16.msra.mxu0 0
  %103 = vmatprep.subr.bf16.mxu0 0
  %104 = vmatpush2.bf16.msra.mxu0 0
  %105 = vmatprep.mubr.bf16.mxu0 0
  %106 = vmatmul.mubr.bf16.gmra.mxu0 %v61
  %v107 = vpop.f32.mrf.mxu0
  %v108 = vadd.f32 %v27, %v107
  %v109 = vpop.f32.mrf.mxu0
  %v110 = vadd.f32 %v31, %v109
  %v111 = vpop.f32.mrf.mxu0
  %v112 = vadd.f32 %v27, %v111
  %v113 = vpop.f32.mrf.mxu0
  %v114 = vadd.f32 %v31, %v113
  %115 = vmatprep.mubr.bf16.mxu0 0
  %116 = vmatmul.mubr.bf16.gmra.mxu0 %v64
  %v117 = vpop.f32.mrf.mxu0
  %v118 = vadd.f32 %v27, %v117
  %v119 = vpop.f32.mrf.mxu0
  %v120 = vadd.f32 %v31, %v119
  %v121 = vpop.f32.mrf.mxu0
  %v122 = vadd.f32 %v27, %v121
  %v123 = vpop.f32.mrf.mxu0
  %v124 = vadd.f32 %v31, %v123
  %125 = vdwg.mxu0
  %v126 = vadd.f32 %v108, 3.0
  %v127 = vadd.f32 %v110, 3.0
  %v128 = vadd.f32 %v112, 3.0
  %v129 = vadd.f32 %v114, 3.0
  %v130 = vadd.f32 %v118, 3.0
  %v131 = vadd.f32 %v120, 3.0
  %v132 = vadd.f32 %v122, 3.0
  %v133 = vadd.f32 %v124, 3.0
  %v134 = vmax.f32 %v126, 0.0
  %v135 = vmax.f32 %v127, 0.0
  %v136 = vmax.f32 %v128, 0.0
  %v137 = vmax.f32 %v129, 0.0
  %v138 = vmax.f32 %v130, 0.0
  %v139 = vmax.f32 %v131, 0.0
  %v140 = vmax.f32 %v132, 0.0
  %v141 = vmax.f32 %v133, 0.0
  %v142 = vmin.f32 %v134, 6.0
  %v143 = vmin.f32 %v135, 6.0
  %v144 = vmin.f32 %v136, 6.0
  %v145 = vmin.f32 %v137, 6.0
  %v146 = vmin.f32 %v138, 6.0
  %v147 = vmin.f32 %v139, 6.0
  %v148 = vmin.f32 %v140, 6.0
  %v149 = vmin.f32 %v141, 6.0
  %v150 = vmul.f32 %v108, %v142
  %v151 = vmul.f32 %v110, %v143
  %v152 = vmul.f32 %v112, %v144
  %v153 = vmul.f32 %v114, %v145
  %v154 = vmul.f32 %v118, %v146
  %v155 = vmul.f32 %v120, %v147
  %v156 = vmul.f32 %v122, %v148
  %v157 = vmul.f32 %v124, %v149
  %v158 = vmul.f32 %v150, 0.16666667
  %v159 = vmul.f32 %v151, 0.16666667
  %v160 = vmul.f32 %v152, 0.16666667
  %v161 = vmul.f32 %v153, 0.16666667
  %v162 = vmul.f32 %v154, 0.16666667
  %v163 = vmul.f32 %v155, 0.16666667
  %v164 = vmul.f32 %v156, 0.16666667
  %v165 = vmul.f32 %v157, 0.16666667
  %v166 = vpack.c.bf16 %v160, %v158
  %v167 = vpack.c.bf16 %v161, %v159
  %v168 = vpack.c.bf16 %v164, %v162
  %v169 = vpack.c.bf16 %v165, %v163
  %v174 = vunpack.c.l.b16 %v166
  %v175 = vunpack.c.l.b16 %v167
  %v176 = vunpack.c.h.b16 %v166
  %v177 = vunpack.c.h.b16 %v167
  %v178 = vunpack.c.l.b16 %v168
  %v179 = vunpack.c.l.b16 %v169
  %v180 = vunpack.c.h.b16 %v168
  %v181 = vunpack.c.h.b16 %v169
  %v182 = vpack.c.b16 %v175, %v174
  %v183 = vpack.c.b16 %v177, %v176
  %v184 = vpack.c.b16 %v179, %v178
  %v185 = vpack.c.b16 %v181, %v180
  %vm190 = vcmask 130052
  %vm191 = vmor %vm190, %vm66
  %192 = vst.msk [vmem:[%s3] sm:$0xff] %vm191, %v182
  %193 = vst.msk [vmem:[%s3 + $0x8] sm:$0xff] %vm191, %v183
  %194 = vst.msk [vmem:[%s3 + $0x10] sm:$0xff] %vm191, %v184
  %195 = vst.msk [vmem:[%s3 + $0x18] sm:$0xff] %vm191, %v185
  // Predicated region
  $region14: #{_lambda_.10} parent=0 // pred_check
    _
  $region15: #{_lambda_.10} parent=0 // pred_check_branch
    %197 = sbr.rel (0) target = $region17
  $region16: #{_lambda_.10} parent=0 // pred_region
    _
  $region17: #{_lambda_.10} parent=0 // pred_fallthru
    _
  // Predicated region
  $region18: #{_lambda_.10} parent=0 // pred_check
    _
  $region19: #{_lambda_.10} parent=0 // pred_check_branch
    %199 = sbr.rel (0) target = $region21
  $region20: #{_lambda_.10} parent=0 // pred_region
    _
  $region21: #{_lambda_.10} parent=0 // pred_fallthru
    _

// kernel: _lambda_.8
$region0: #{_lambda_.8}
  #allocation0 [shape = 'u32[]', space=smem, size = 0x4, offset = 0x4, fixed_abs, tag = 'smem constant byte address 0x4 - core index']
  #allocation1 [shape = 'u32[144,128]{1,0:T(1,128)}', space=vmem, size = 0x12000, scoped, tag = 'internal scratch']
  #allocation2 [shape = 'f32[100,64]{1,0:T(8,128)}', space=vmem, size = 0xd000, scoped, tag = 'scratch operand']
  #allocation3 [shape = 'f32[16,64]{1,0:T(8,128)}', space=vmem, size = 0x2000, scoped, tag = 'scratch operand']
  %s0 = inlined_call_operand.vmem [shape: bf16[2,100,16], index: 0, kind: input, shape index: {}]
  %s1 = inlined_call_operand.vmem [shape: f32[100,1], index: 1, kind: input, shape index: {}]
  %s2 = inlined_call_operand.vmem [shape: bf16[16,64], index: 2, kind: input, shape index: {}]
  %s3 = inlined_call_operand.vmem [shape: f32[1,64], index: 3, kind: input, shape index: {}]
  %s4 = inlined_call_operand.vmem [shape: f32[9,1,64], index: 4, kind: input, shape index: {}]
  %s5 = inlined_call_operand.vmem [shape: f32[1,64], index: 5, kind: input, shape index: {}]
  %s6 = inlined_call_operand.vmem [shape: bf16[64,24], index: 6, kind: input, shape index: {}]
  %s7 = inlined_call_operand.vmem [shape: f32[1,24], index: 7, kind: input, shape index: {}]
  %s8 = inlined_call_operand.vmem [shape: bf16[2,16,24], index: 8, kind: output, shape index: {}]
  %s9 = sld [smem:[#allocation0]]
  $region65: #{_lambda_.8} parent=0
    _
  %s11 = ssub.s32 1, %s9
  %s12 = scalar_select 0, %s11, %s9
  loop: start=0, step=1, limit=4
  $region2: #{_lambda_.8} parent=0 // loop_pre_header
    _
  $region3: #{_lambda_.8} parent=0 // loop_header
    %s14 = sphi 0, %s18
    %p15 = scmp.ge.s32.totalorder %s14, 4
    %s24 = sphi 0, %s26
    %s27 = sphi 0, %s24
    %s28 = sphi 0, %s27
    %s44 = sphi 0, %s28
    %s48 = sphi 0, %s48
    %s50 = sphi 0, %s48
    %s51 = sphi 0, %s50
    %s65 = sphi 0, %s51
    %s69 = sphi 0, %s69
    %s71 = sphi 0, %s69
    %s72 = sphi 0, %s71
    %s86 = sphi 0, %s72
    %s90 = sphi 0, %s90
    %s92 = sphi 0, %s90
    %s93 = sphi 0, %s92
    %s107 = sphi 0, %s93
    %s111 = sphi 0, %s111
    %s113 = sphi 0, %s111
    %s114 = sphi 0, %s113
    %s128 = sphi 0, %s114
    %s132 = sphi 0, %s132
    %s134 = sphi 0, %s132
    %s135 = sphi 0, %s134
    %s149 = sphi 0, %s135
    %s153 = sphi 0, %s153
    %s155 = sphi 0, %s153
    %s156 = sphi 0, %s155
    %s170 = sphi 0, %s156
    %s174 = sphi 0, %s174
    %s176 = sphi 0, %s174
    %s177 = sphi 0, %s176
    %s191 = sphi 0, %s177
    %s197 = sphi 0, %s199
    %s200 = sphi 0, %s197
    %s201 = sphi 0, %s200
    %s217 = sphi 0, %s201
  $region4: #{_lambda_.8} parent=0 // loop_header_branch
    %17 = sbr.rel (%p15) target = $region8
  $region5: #{_lambda_.8} parent=0 // loop_body
    %s19 = ssub.s32 %s14, 1
    %s20 = ssub.s32 %s14, 2
    %s21 = sadd.s32 %s14, 1
    %s22 = ssub.s32 %s14, %s21
    %p23 = scmp.eq.s32.totalorder %s22, 0
    %s25 = sadd.s32 %s24, 1
    %s26 = scalar_select %p23, %s24, %s25
    %p29 = pneg %p23
    %p30 = scmp.eq.s32.totalorder %s14, 1
    %p31 = por %p29, %p30
    %p32 = scmp.ne.s32.totalorder %s24, %s27
    %p33 = scmp.eq.s32.totalorder %s14, 0
    %p34 = por %p32, %p33
    %p35 = scmp.ne.s32.totalorder %s24, %s27
    %p36 = scmp.eq.s32.totalorder %s19, 1
    %p37 = por %p35, %p36
    %p38 = scmp.ne.s32.totalorder %s27, %s28
    %p39 = scmp.eq.s32.totalorder %s19, 0
    %p40 = por %p38, %p39
    %p41 = scmp.ne.s32.totalorder %s27, %s28
    %p42 = scmp.eq.s32.totalorder %s20, 1
    %p43 = por %p41, %p42
    %p45 = scmp.ne.s32.totalorder %s28, %s44
    %p46 = scmp.eq.s32.totalorder %s20, 0
    %p47 = por %p45, %p46
    %s49 = sadd.s32 %s48, 1
    %p52 = scmp.eq.s32.totalorder %s14, 1
    %p53 = scmp.ne.s32.totalorder %s48, %s50
    %p54 = scmp.eq.s32.totalorder %s14, 0
    %p55 = por %p53, %p54
    %p56 = scmp.ne.s32.totalorder %s48, %s50
    %p57 = scmp.eq.s32.totalorder %s19, 1
    %p58 = por %p56, %p57
    %p59 = scmp.ne.s32.totalorder %s50, %s51
    %p60 = scmp.eq.s32.totalorder %s19, 0
    %p61 = por %p59, %p60
    %p62 = scmp.ne.s32.totalorder %s50, %s51
    %p63 = scmp.eq.s32.totalorder %s20, 1
    %p64 = por %p62, %p63
    %p66 = scmp.ne.s32.totalorder %s51, %s65
    %p67 = scmp.eq.s32.totalorder %s20, 0
    %p68 = por %p66, %p67
    %s70 = sadd.s32 %s69, 1
    %p73 = scmp.eq.s32.totalorder %s14, 1
    %p74 = scmp.ne.s32.totalorder %s69, %s71
    %p75 = scmp.eq.s32.totalorder %s14, 0
    %p76 = por %p74, %p75
    %p77 = scmp.ne.s32.totalorder %s69, %s71
    %p78 = scmp.eq.s32.totalorder %s19, 1
    %p79 = por %p77, %p78
    %p80 = scmp.ne.s32.totalorder %s71, %s72
    %p81 = scmp.eq.s32.totalorder %s19, 0
    %p82 = por %p80, %p81
    %p83 = scmp.ne.s32.totalorder %s71, %s72
    %p84 = scmp.eq.s32.totalorder %s20, 1
    %p85 = por %p83, %p84
    %p87 = scmp.ne.s32.totalorder %s72, %s86
    %p88 = scmp.eq.s32.totalorder %s20, 0
    %p89 = por %p87, %p88
    %s91 = sadd.s32 %s90, 1
    %p94 = scmp.eq.s32.totalorder %s14, 1
    %p95 = scmp.ne.s32.totalorder %s90, %s92
    %p96 = scmp.eq.s32.totalorder %s14, 0
    %p97 = por %p95, %p96
    %p98 = scmp.ne.s32.totalorder %s90, %s92
    %p99 = scmp.eq.s32.totalorder %s19, 1
    %p100 = por %p98, %p99
    %p101 = scmp.ne.s32.totalorder %s92, %s93
    %p102 = scmp.eq.s32.totalorder %s19, 0
    %p103 = por %p101, %p102
    %p104 = scmp.ne.s32.totalorder %s92, %s93
    %p105 = scmp.eq.s32.totalorder %s20, 1
    %p106 = por %p104, %p105
    %p108 = scmp.ne.s32.totalorder %s93, %s107
    %p109 = scmp.eq.s32.totalorder %s20, 0
    %p110 = por %p108, %p109
    %s112 = sadd.s32 %s111, 1
    %p115 = scmp.eq.s32.totalorder %s14, 1
    %p116 = scmp.ne.s32.totalorder %s111, %s113
    %p117 = scmp.eq.s32.totalorder %s14, 0
    %p118 = por %p116, %p117
    %p119 = scmp.ne.s32.totalorder %s111, %s113
    %p120 = scmp.eq.s32.totalorder %s19, 1
    %p121 = por %p119, %p120
    %p122 = scmp.ne.s32.totalorder %s113, %s114
    %p123 = scmp.eq.s32.totalorder %s19, 0
    %p124 = por %p122, %p123
    %p125 = scmp.ne.s32.totalorder %s113, %s114
    %p126 = scmp.eq.s32.totalorder %s20, 1
    %p127 = por %p125, %p126
    %p129 = scmp.ne.s32.totalorder %s114, %s128
    %p130 = scmp.eq.s32.totalorder %s20, 0
    %p131 = por %p129, %p130
    %s133 = sadd.s32 %s132, 1
    %p136 = scmp.eq.s32.totalorder %s14, 1
    %p137 = scmp.ne.s32.totalorder %s132, %s134
    %p138 = scmp.eq.s32.totalorder %s14, 0
    %p139 = por %p137, %p138
    %p140 = scmp.ne.s32.totalorder %s132, %s134
    %p141 = scmp.eq.s32.totalorder %s19, 1
    %p142 = por %p140, %p141
    %p143 = scmp.ne.s32.totalorder %s134, %s135
    %p144 = scmp.eq.s32.totalorder %s19, 0
    %p145 = por %p143, %p144
    %p146 = scmp.ne.s32.totalorder %s134, %s135
    %p147 = scmp.eq.s32.totalorder %s20, 1
    %p148 = por %p146, %p147
    %p150 = scmp.ne.s32.totalorder %s135, %s149
    %p151 = scmp.eq.s32.totalorder %s20, 0
    %p152 = por %p150, %p151
    %s154 = sadd.s32 %s153, 1
    %p157 = scmp.eq.s32.totalorder %s14, 1
    %p158 = scmp.ne.s32.totalorder %s153, %s155
    %p159 = scmp.eq.s32.totalorder %s14, 0
    %p160 = por %p158, %p159
    %p161 = scmp.ne.s32.totalorder %s153, %s155
    %p162 = scmp.eq.s32.totalorder %s19, 1
    %p163 = por %p161, %p162
    %p164 = scmp.ne.s32.totalorder %s155, %s156
    %p165 = scmp.eq.s32.totalorder %s19, 0
    %p166 = por %p164, %p165
    %p167 = scmp.ne.s32.totalorder %s155, %s156
    %p168 = scmp.eq.s32.totalorder %s20, 1
    %p169 = por %p167, %p168
    %p171 = scmp.ne.s32.totalorder %s156, %s170
    %p172 = scmp.eq.s32.totalorder %s20, 0
    %p173 = por %p171, %p172
    %s175 = sadd.s32 %s174, 1
    %p178 = scmp.eq.s32.totalorder %s14, 1
    %p179 = scmp.ne.s32.totalorder %s174, %s176
    %p180 = scmp.eq.s32.totalorder %s14, 0
    %p181 = por %p179, %p180
    %p182 = scmp.ne.s32.totalorder %s174, %s176
    %p183 = scmp.eq.s32.totalorder %s19, 1
    %p184 = por %p182, %p183
    %p185 = scmp.ne.s32.totalorder %s176, %s177
    %p186 = scmp.eq.s32.totalorder %s19, 0
    %p187 = por %p185, %p186
    %p188 = scmp.ne.s32.totalorder %s176, %s177
    %p189 = scmp.eq.s32.totalorder %s20, 1
    %p190 = por %p188, %p189
    %p192 = scmp.ne.s32.totalorder %s177, %s191
    %p193 = scmp.eq.s32.totalorder %s20, 0
    %p194 = por %p192, %p193
    %s195 = ssub.s32 %s14, %s21
    %p196 = scmp.eq.s32.totalorder %s195, 0
    %s198 = sadd.s32 %s197, 1
    %s199 = scalar_select %p196, %s197, %s198
    %p202 = pneg %p196
    %p203 = scmp.eq.s32.totalorder %s14, 1
    %p204 = por %p202, %p203
    %p205 = scmp.ne.s32.totalorder %s197, %s200
    %p206 = scmp.eq.s32.totalorder %s14, 0
    %p207 = por %p205, %p206
    %p208 = scmp.ne.s32.totalorder %s197, %s200
    %p209 = scmp.eq.s32.totalorder %s19, 1
    %p210 = por %p208, %p209
    %p211 = scmp.ne.s32.totalorder %s200, %s201
    %p212 = scmp.eq.s32.totalorder %s19, 0
    %p213 = por %p211, %p212
    %p214 = scmp.ne.s32.totalorder %s200, %s201
    %p215 = scmp.eq.s32.totalorder %s20, 1
    %p216 = por %p214, %p215
    %p218 = scmp.ne.s32.totalorder %s201, %s217
    %p219 = scmp.eq.s32.totalorder %s20, 0
    %p220 = por %p218, %p219
    %p221 = scmp.le.s32.totalorder 1, %s14
    %p222 = scmp.lt.s32.totalorder %s14, 3
    %p223 = pnand %p221, %p222
    %p224 = pneg %p223
    // Predicated region
    $region9: #{_lambda_.8} parent=5 // pred_check
      _
    $region10: #{_lambda_.8} parent=5 // pred_check_branch
      %226 = sbr.rel (%p223) target = $region12
    $region11: #{_lambda_.8} parent=5 // pred_region
      %s227 = ssub.s32 %s14, 1
      // Predicated region
      $region13: #{_lambda_.8} parent=11 // pred_check
        %p228 = pneg %p61
      $region14: #{_lambda_.8} parent=11 // pred_check_branch
        %230 = sbr.rel (%p228) target = $region16
      $region15: #{_lambda_.8} parent=11 // pred_region
        _
      $region16: #{_lambda_.8} parent=11 // pred_fallthru
        _
      // Predicated region
      $region17: #{_lambda_.8} parent=11 // pred_check
        %p231 = pneg %p82
      $region18: #{_lambda_.8} parent=11 // pred_check_branch
        %233 = sbr.rel (%p231) target = $region20
      $region19: #{_lambda_.8} parent=11 // pred_region
        _
      $region20: #{_lambda_.8} parent=11 // pred_fallthru
        _
      // Predicated region
      $region21: #{_lambda_.8} parent=11 // pred_check
        %p234 = pneg %p103
      $region22: #{_lambda_.8} parent=11 // pred_check_branch
        %236 = sbr.rel (%p234) target = $region24
      $region23: #{_lambda_.8} parent=11 // pred_region
        _
      $region24: #{_lambda_.8} parent=11 // pred_fallthru
        _
      // Predicated region
      $region25: #{_lambda_.8} parent=11 // pred_check
        %p237 = pneg %p124
      $region26: #{_lambda_.8} parent=11 // pred_check_branch
        %239 = sbr.rel (%p237) target = $region28
      $region27: #{_lambda_.8} parent=11 // pred_region
        _
      $region28: #{_lambda_.8} parent=11 // pred_fallthru
        _
      // Predicated region
      $region29: #{_lambda_.8} parent=11 // pred_check
        %p240 = pneg %p145
      $region30: #{_lambda_.8} parent=11 // pred_check_branch
        %242 = sbr.rel (%p240) target = $region32
      $region31: #{_lambda_.8} parent=11 // pred_region
        _
      $region32: #{_lambda_.8} parent=11 // pred_fallthru
        _
      // Predicated region
      $region33: #{_lambda_.8} parent=11 // pred_check
        %p243 = pneg %p166
      $region34: #{_lambda_.8} parent=11 // pred_check_branch
        %245 = sbr.rel (%p243) target = $region36
      $region35: #{_lambda_.8} parent=11 // pred_region
        _
      $region36: #{_lambda_.8} parent=11 // pred_fallthru
        _
      // Predicated region
      $region37: #{_lambda_.8} parent=11 // pred_check
        %p246 = pneg %p187
      $region38: #{_lambda_.8} parent=11 // pred_check_branch
        %248 = sbr.rel (%p246) target = $region40
      $region39: #{_lambda_.8} parent=11 // pred_region
        _
      $region40: #{_lambda_.8} parent=11 // pred_fallthru
        _
    $region12: #{_lambda_.8} parent=5 // pred_fallthru
      _
    %p249 = scmp.lt.s32.totalorder %s14, 2
    // Predicated region
    $region41: #{_lambda_.8} parent=5 // pred_check
      %p250 = pneg %p249
    $region42: #{_lambda_.8} parent=5 // pred_check_branch
      %252 = sbr.rel (%p250) target = $region44
    $region43: #{_lambda_.8} parent=5 // pred_region
      // Predicated region
      $region45: #{_lambda_.8} parent=43 // pred_check
        %p253 = pneg %p34
      $region46: #{_lambda_.8} parent=43 // pred_check_branch
        %255 = sbr.rel (%p253) target = $region48
      $region47: #{_lambda_.8} parent=43 // pred_region
        %p256 = scmp.lt.s32.totalorder %s14, 1
        %s257 = scalar_select %p256, %s14, 1
        %s258 = smul.addr %s257, 13
        %s259 = smul.addr %s258, 4
        %s260 = scalar_lea.vmem %s0, %s259
      $region48: #{_lambda_.8} parent=43 // pred_fallthru
        _
    $region44: #{_lambda_.8} parent=5 // pred_fallthru
      _
    %p261 = scmp.le.s32.totalorder 1, %s14
    %p262 = scmp.lt.s32.totalorder %s14, 3
    %p263 = pnand %p261, %p262
    %p264 = pneg %p263
    // Predicated region
    $region49: #{_lambda_.8} parent=5 // pred_check
      _
    $region50: #{_lambda_.8} parent=5 // pred_check_branch
      %266 = sbr.rel (%p263) target = $region52
    $region51: #{_lambda_.8} parent=5 // pred_region
      %s267 = ssub.s32 %s14, 1
      %p268 = scmp.lt.s32.totalorder %s19, 1
      %s269 = scalar_select %p268, %s19, 1
      %s270 = smul.addr %s269, 13
      %s271 = smul.addr %s270, 4
      %s272 = scalar_lea.vmem %s0, %s271
      %p273 = pneg %p40
      %p274 = pneg %p37
      %p275 = pneg %p61
      %p276 = pneg %p58
      %p277 = pneg %p82
      %p278 = pneg %p79
      %p279 = pneg %p103
      %p280 = pneg %p100
      %p281 = pneg %p124
      %p282 = pneg %p121
      %p283 = pneg %p145
      %p284 = pneg %p142
      %p285 = pneg %p166
      %p286 = pneg %p163
      %p287 = pneg %p187
      %p288 = pneg %p184
      %p289 = pneg %p213
      %p290 = pneg %p210
      %p291 = scmp.lt.s32.totalorder %s19, 1
      %s292 = scalar_select %p291, %s19, 1
      %s293 = smul.addr %s292, 2
      %s294 = smul.addr %s293, 4
      %s295 = scalar_lea.vmem %s8, %s294
      %p296 = scmp.lt.s32.totalorder %s19, 1
      %s297 = scalar_select %p296, %s19, 1
      %s298 = smul.addr %s297, 13
      %s299 = smul.addr %s298, 4
      %s300 = scalar_lea.vmem %s0, %s299
      %p301 = scmp.lt.s32.totalorder %s19, 1
      %s302 = scalar_select %p301, %s19, 1
      %s303 = smul.addr %s302, 2
      %s304 = smul.addr %s303, 4
      %s305 = scalar_lea.vmem %s8, %s304
      %v307 = vld [vmem:[%s300] sm:$0xf]
      %v308 = vld [vmem:[%s300 + $0x4] sm:$0xf]
      %v309 = vld [vmem:[%s300 + $0x8] sm:$0xf]
      %v310 = vld [vmem:[%s300 + $0xc] sm:$0xf]
      %v311 = vld [vmem:[%s300 + $0x10] sm:$0xf]
      %v312 = vld [vmem:[%s300 + $0x14] sm:$0xf]
      %v313 = vld [vmem:[%s300 + $0x18] sm:$0xf]
      %v314 = vld [vmem:[%s300 + $0x1c] sm:$0xf]
      %v315 = vld [vmem:[%s300 + $0x20] sm:$0xf]
      %v316 = vld [vmem:[%s300 + $0x24] sm:$0xf]
      %v317 = vld [vmem:[%s300 + $0x28] sm:$0xf]
      %v318 = vld [vmem:[%s300 + $0x2c] sm:$0xf]
      %v319 = vld [vmem:[%s300 + $0x30] sm:$0x3]
      %v320 = vld [vmem:[%s2] sm:$0xf]
      %v321 = vld [vmem:[%s2 + $0x4] sm:$0xf]
      %v322 = vld [vmem:[%s3] sm:$0x1]
      %v324 = vlaneseq
      %v325 = vshrl.u32 %v324, 7
      %v326 = vsub.s32 0, %v325
      %v327 = vrot.slane %v322, %v326
      %v342 = vunpack.c.l.b16 %v307
      %v343 = vunpack.c.l.b16 %v308
      %v344 = vunpack.c.l.b16 %v309
      %v345 = vunpack.c.l.b16 %v310
      %v346 = vunpack.c.l.b16 %v311
      %v347 = vunpack.c.l.b16 %v312
      %v348 = vunpack.c.l.b16 %v313
      %v349 = vunpack.c.l.b16 %v314
      %v350 = vunpack.c.l.b16 %v315
      %v351 = vunpack.c.l.b16 %v316
      %v352 = vunpack.c.l.b16 %v317
      %v353 = vunpack.c.l.b16 %v318
      %v354 = vunpack.c.l.b16 %v319
      %v355 = vpack.c.b16 %v343, %v342
      %v356 = vpack.c.b16 %v345, %v344
      %v357 = vpack.c.b16 %v347, %v346
      %v358 = vpack.c.b16 %v349, %v348
      %v359 = vpack.c.b16 %v351, %v350
      %v360 = vpack.c.b16 %v353, %v352
      %v361 = vpack.c.b16 %v354, %v354
      %v364 = vunpack.c.l.b16 %v320
      %v365 = vunpack.c.l.b16 %v321
      %v366 = vpack.c.b16 %v365, %v364
      %vm368 = vcmask 130048
      %v370 = vsel %vm368, %v355, 0
      %v373 = vsel %vm368, %v356, 0
      %v376 = vsel %vm368, %v357, 0
      %v379 = vsel %vm368, %v358, 0
      %v382 = vsel %vm368, %v359, 0
      %v385 = vsel %vm368, %v360, 0
      %v388 = vsel %vm368, %v361, 0
      %390 = vmatprep.subr.bf16.mxu0 0
      %391 = vmatpush1.bf16.msra.mxu0 0
      %392 = vmatprep.subr.bf16.mxu0 0
      %393 = vmatpush1.bf16.msra.mxu0 0
      %394 = vmatprep.subr.bf16.mxu0 0
      %395 = vmatpush1.bf16.msra.mxu0 0
      %396 = vmatprep.subr.bf16.mxu0 0
      %397 = vmatpush1.bf16.msra.mxu0 0
      %398 = vmatprep.subr.bf16.mxu0 0
      %399 = vmatpush1.bf16.msra.mxu0 0
      %400 = vmatprep.subr.bf16.mxu0 0
      %401 = vmatpush1.bf16.msra.mxu0 0
      %402 = vmatprep.subr.bf16.mxu0 0
      %403 = vmatpush1.bf16.msra.mxu0 0
      %404 = vmatprep.subr.bf16.mxu0 0
      %405 = vmatpush1.bf16.msra.mxu0 %v366
      %406 = vmatprep.subr.bf16.mxu0 0
      %407 = vmatpush2.bf16.msra.mxu0 0
      %408 = vmatprep.subr.bf16.mxu0 0
      %409 = vmatpush2.bf16.msra.mxu0 0
      %410 = vmatprep.subr.bf16.mxu0 0
      %411 = vmatpush2.bf16.msra.mxu0 0
      %412 = vmatprep.subr.bf16.mxu0 0
      %413 = vmatpush2.bf16.msra.mxu0 0
      %414 = vmatprep.subr.bf16.mxu0 0
      %415 = vmatpush2.bf16.msra.mxu0 0
      %416 = vmatprep.subr.bf16.mxu0 0
      %417 = vmatpush2.bf16.msra.mxu0 0
      %418 = vmatprep.subr.bf16.mxu0 0
      %419 = vmatpush2.bf16.msra.mxu0 0
      %420 = vmatprep.subr.bf16.mxu0 0
      %421 = vmatpush2.bf16.msra.mxu0 0
      %422 = vmatprep.mubr.bf16.mxu0 0
      %423 = vmatmul.mubr.bf16.gmra.mxu0 %v370
      %v424 = vpop.f32.mrf.mxu0
      %v425 = vadd.f32 %v327, %v424
      %v426 = vpop.f32.mrf.mxu0
      %v427 = vpop.f32.mrf.mxu0
      %v428 = vadd.f32 %v327, %v427
      %v429 = vpop.f32.mrf.mxu0
      %430 = vmatprep.mubr.bf16.mxu0 0
      %431 = vmatmul.mubr.bf16.gmra.mxu0 %v373
      %v432 = vpop.f32.mrf.mxu0
      %v433 = vadd.f32 %v327, %v432
      %v434 = vpop.f32.mrf.mxu0
      %v435 = vpop.f32.mrf.mxu0
      %v436 = vadd.f32 %v327, %v435
      %v437 = vpop.f32.mrf.mxu0
      %438 = vmatprep.mubr.bf16.mxu0 0
      %439 = vmatmul.mubr.bf16.gmra.mxu0 %v376
      %v440 = vpop.f32.mrf.mxu0
      %v441 = vadd.f32 %v327, %v440
      %v442 = vpop.f32.mrf.mxu0
      %v443 = vpop.f32.mrf.mxu0
      %v444 = vadd.f32 %v327, %v443
      %v445 = vpop.f32.mrf.mxu0
      %446 = vmatprep.mubr.bf16.mxu0 0
      %447 = vmatmul.mubr.bf16.gmra.mxu0 %v379
      %v448 = vpop.f32.mrf.mxu0
      %v449 = vadd.f32 %v327, %v448
      %v450 = vpop.f32.mrf.mxu0
      %v451 = vpop.f32.mrf.mxu0
      %v452 = vadd.f32 %v327, %v451
      %v453 = vpop.f32.mrf.mxu0
      %454 = vmatprep.mubr.bf16.mxu0 0
      %455 = vmatmul.mubr.bf16.gmra.mxu0 %v382
      %v456 = vpop.f32.mrf.mxu0
      %v457 = vadd.f32 %v327, %v456
      %v458 = vpop.f32.mrf.mxu0
      %v459 = vpop.f32.mrf.mxu0
      %v460 = vadd.f32 %v327, %v459
      %v461 = vpop.f32.mrf.mxu0
      %462 = vmatprep.mubr.bf16.mxu0 0
      %463 = vmatmul.mubr.bf16.gmra.mxu0 %v385
      %v464 = vpop.f32.mrf.mxu0
      %v465 = vadd.f32 %v327, %v464
      %v466 = vpop.f32.mrf.mxu0
      %v467 = vpop.f32.mrf.mxu0
      %v468 = vadd.f32 %v327, %v467
      %v469 = vpop.f32.mrf.mxu0
      %470 = vmatprep.mubr.bf16.mxu0 0
      %471 = vmatmul.mubr.bf16.gmra.mxu0 %v388
      %v472 = vpop.f32.mrf.mxu0
      %v473 = vadd.f32 %v327, %v472
      %v474 = vpop.f32.mrf.mxu0
      %v475 = vpop.f32.mrf.mxu0
      %v476 = vpop.f32.mrf.mxu0
      %477 = vdwg.mxu0
      %v478 = vmax.f32 %v425, 0.0
      %v479 = vmax.f32 %v428, 0.0
      %v480 = vmax.f32 %v433, 0.0
      %v481 = vmax.f32 %v436, 0.0
      %v482 = vmax.f32 %v441, 0.0
      %v483 = vmax.f32 %v444, 0.0
      %v484 = vmax.f32 %v449, 0.0
      %v485 = vmax.f32 %v452, 0.0
      %v486 = vmax.f32 %v457, 0.0
      %v487 = vmax.f32 %v460, 0.0
      %v488 = vmax.f32 %v465, 0.0
      %v489 = vmax.f32 %v468, 0.0
      %v490 = vmax.f32 %v473, 0.0
      %v491 = vld [vmem:[%s1] sm:$0xff]
      %v492 = vld [vmem:[%s1 + $0x8] sm:$0xff]
      %v493 = vld [vmem:[%s1 + $0x10] sm:$0xff]
      %v494 = vld [vmem:[%s1 + $0x18] sm:$0xff]
      %v495 = vld [vmem:[%s1 + $0x20] sm:$0xff]
      %v496 = vld [vmem:[%s1 + $0x28] sm:$0xff]
      %v497 = vld [vmem:[%s1 + $0x30] sm:$0xff]
      %v498 = vld [vmem:[%s1 + $0x38] sm:$0xff]
      %v499 = vld [vmem:[%s1 + $0x40] sm:$0xff]
      %v500 = vld [vmem:[%s1 + $0x48] sm:$0xff]
      %v501 = vld [vmem:[%s1 + $0x50] sm:$0xff]
      %v502 = vld [vmem:[%s1 + $0x58] sm:$0xff]
      %v503 = vld [vmem:[%s1 + $0x60] sm:$0xf]
      %505 = vset.pattern.permute.xlu0 0
      %506 = vperm.xlu0 %505, %v491
      %v507 = vpop.permute.xlu0 %506
      %510 = vset.pattern.permute.xlu0 0
      %511 = vperm.xlu0 %510, %v492
      %v512 = vpop.permute.xlu0 %511
      %515 = vset.pattern.permute.xlu0 0
      %516 = vperm.xlu0 %515, %v493
      %v517 = vpop.permute.xlu0 %516
      %520 = vset.pattern.permute.xlu0 0
      %521 = vperm.xlu0 %520, %v494
      %v522 = vpop.permute.xlu0 %521
      %525 = vset.pattern.permute.xlu0 0
      %526 = vperm.xlu0 %525, %v495
      %v527 = vpop.permute.xlu0 %526
      %530 = vset.pattern.permute.xlu0 0
      %531 = vperm.xlu0 %530, %v496
      %v532 = vpop.permute.xlu0 %531
      %535 = vset.pattern.permute.xlu0 0
      %536 = vperm.xlu0 %535, %v497
      %v537 = vpop.permute.xlu0 %536
      %540 = vset.pattern.permute.xlu0 0
      %541 = vperm.xlu0 %540, %v498
      %v542 = vpop.permute.xlu0 %541
      %545 = vset.pattern.permute.xlu0 0
      %546 = vperm.xlu0 %545, %v499
      %v547 = vpop.permute.xlu0 %546
      %550 = vset.pattern.permute.xlu0 0
      %551 = vperm.xlu0 %550, %v500
      %v552 = vpop.permute.xlu0 %551
      %555 = vset.pattern.permute.xlu0 0
      %556 = vperm.xlu0 %555, %v501
      %v557 = vpop.permute.xlu0 %556
      %560 = vset.pattern.permute.xlu0 0
      %561 = vperm.xlu0 %560, %v502
      %v562 = vpop.permute.xlu0 %561
      %565 = vset.pattern.permute.xlu0 0
      %566 = vperm.xlu0 %565, %v503
      %v567 = vpop.permute.xlu0 %566
      %v569 = vmul.f32 %v478, %v507
      %v570 = vmul.f32 %v479, %v512
      %v571 = vmul.f32 %v480, %v517
      %v572 = vmul.f32 %v481, %v522
      %v573 = vmul.f32 %v482, %v527
      %v574 = vmul.f32 %v483, %v532
      %v575 = vmul.f32 %v484, %v537
      %v576 = vmul.f32 %v485, %v542
      %v577 = vmul.f32 %v486, %v547
      %v578 = vmul.f32 %v487, %v552
      %v579 = vmul.f32 %v488, %v557
      %v580 = vmul.f32 %v489, %v562
      %v581 = vmul.f32 %v490, %v567
      %vm582 = vcmask 523264
      %583 = vst.msk [vmem:[#allocation2] sm:$0xff] %vm582, %v569
      %584 = vst.msk [vmem:[#allocation2 + $0x8] sm:$0xff] %vm582, %v570
      %585 = vst.msk [vmem:[#allocation2 + $0x10] sm:$0xff] %vm582, %v571
      %586 = vst.msk [vmem:[#allocation2 + $0x18] sm:$0xff] %vm582, %v572
      %587 = vst.msk [vmem:[#allocation2 + $0x20] sm:$0xff] %vm582, %v573
      %588 = vst.msk [vmem:[#allocation2 + $0x28] sm:$0xff] %vm582, %v574
      %589 = vst.msk [vmem:[#allocation2 + $0x30] sm:$0xff] %vm582, %v575
      %590 = vst.msk [vmem:[#allocation2 + $0x38] sm:$0xff] %vm582, %v576
      %591 = vst.msk [vmem:[#allocation2 + $0x40] sm:$0xff] %vm582, %v577
      %592 = vst.msk [vmem:[#allocation2 + $0x48] sm:$0xff] %vm582, %v578
      %593 = vst.msk [vmem:[#allocation2 + $0x50] sm:$0xff] %vm582, %v579
      %594 = vst.msk [vmem:[#allocation2 + $0x58] sm:$0xff] %vm582, %v580
      %vm595 = vcmask 519168
      %596 = vst.msk [vmem:[#allocation2 + $0x60] sm:$0xf] %vm595, %v581
      %v597 = vld [vmem:[%s4] sm:$0x1]
      %s598 = scalar_lea.vmem %s4, 1
      %v599 = vld [vmem:[%s598] sm:$0x1]
      %s600 = scalar_lea.vmem %s4, 2
      %v601 = vld [vmem:[%s600] sm:$0x1]
      %s602 = scalar_lea.vmem %s4, 3
      %v603 = vld [vmem:[%s602] sm:$0x1]
      %s604 = scalar_lea.vmem %s4, 4
      %v605 = vld [vmem:[%s604] sm:$0x1]
      %s606 = scalar_lea.vmem %s4, 5
      %v607 = vld [vmem:[%s606] sm:$0x1]
      %s608 = scalar_lea.vmem %s4, 6
      %v609 = vld [vmem:[%s608] sm:$0x1]
      %s610 = scalar_lea.vmem %s4, 7
      %v611 = vld [vmem:[%s610] sm:$0x1]
      %s612 = scalar_lea.vmem %s4, 8
      %v613 = vld [vmem:[%s612] sm:$0x1]
      %v614 = vld [vmem:[%s5] sm:$0x1]
      %v615 = vld [vmem:[#allocation2] sm:$0xf]
      %v617 = vlaneseq
      %v618 = vshrl.u32 %v617, 7
      %v619 = vsub.s32 0, %v618
      %v620 = vrot.slane %v597, %v619
      %v622 = vmul.f32 %v615, %v620
      %v623 = vadd.f32 %v622, 0.0
      %v624 = vld [vmem:[#allocation2 + $0x19] sm:$0xf]
      %v626 = vlaneseq
      %v627 = vshrl.u32 %v626, 7
      %v628 = vsub.s32 0, %v627
      %v629 = vrot.slane %v599, %v628
      %v631 = vmul.f32 %v624, %v629
      %v632 = vadd.f32 %v623, %v631
      %v633 = vld [vmem:[#allocation2 + $0x1] sm:$0xf]
      %v635 = vlaneseq
      %v636 = vshrl.u32 %v635, 7
      %v637 = vsub.s32 0, %v636
      %v638 = vrot.slane %v601, %v637
      %v640 = vmul.f32 %v633, %v638
      %v641 = vadd.f32 %v632, %v640
      %v642 = vld [vmem:[#allocation2 + $0x32] sm:$0xf]
      %v644 = vlaneseq
      %v645 = vshrl.u32 %v644, 7
      %v646 = vsub.s32 0, %v645
      %v647 = vrot.slane %v603, %v646
      %v649 = vmul.f32 %v642, %v647
      %v650 = vadd.f32 %v641, %v649
      %v651 = vld [vmem:[#allocation2 + $0x4b] sm:$0xf]
      %v653 = vlaneseq
      %v654 = vshrl.u32 %v653, 7
      %v655 = vsub.s32 0, %v654
      %v656 = vrot.slane %v605, %v655
      %v658 = vmul.f32 %v651, %v656
      %v659 = vadd.f32 %v650, %v658
      %v660 = vld [vmem:[#allocation2 + $0x33] sm:$0xf]
      %v662 = vlaneseq
      %v663 = vshrl.u32 %v662, 7
      %v664 = vsub.s32 0, %v663
      %v665 = vrot.slane %v607, %v664
      %v667 = vmul.f32 %v660, %v665
      %v668 = vadd.f32 %v659, %v667
      %v669 = vld [vmem:[#allocation2 + $0x5] sm:$0xf]
      %v671 = vlaneseq
      %v672 = vshrl.u32 %v671, 7
      %v673 = vsub.s32 0, %v672
      %v674 = vrot.slane %v609, %v673
      %v676 = vmul.f32 %v669, %v674
      %v677 = vadd.f32 %v668, %v676
      %v678 = vld [vmem:[#allocation2 + $0x1e] sm:$0xf]
      %v680 = vlaneseq
      %v681 = vshrl.u32 %v680, 7
      %v682 = vsub.s32 0, %v681
      %v683 = vrot.slane %v611, %v682
      %v685 = vmul.f32 %v678, %v683
      %v686 = vadd.f32 %v677, %v685
      %v687 = vld [vmem:[#allocation2 + $0x6] sm:$0xf]
      %v689 = vlaneseq
      %v690 = vshrl.u32 %v689, 7
      %v691 = vsub.s32 0, %v690
      %v692 = vrot.slane %v613, %v691
      %v694 = vmul.f32 %v687, %v692
      %v695 = vadd.f32 %v686, %v694
      %v697 = vlaneseq
      %v698 = vshrl.u32 %v697, 7
      %v699 = vsub.s32 0, %v698
      %v700 = vrot.slane %v614, %v699
      %v702 = vadd.f32 %v695, %v700
      %v703 = vmax.f32 %v702, 0.0
      %704 = vst.msk [vmem:[#allocation3] sm:$0xf] %vm595, %v703
      %v705 = vld [vmem:[#allocation2 + $0x5] sm:$0xf]
      %v706 = vmul.f32 %v705, %v620
      %v707 = vadd.f32 %v706, 0.0
      %v708 = vld [vmem:[#allocation2 + $0x1e] sm:$0xf]
      %v709 = vmul.f32 %v708, %v629
      %v710 = vadd.f32 %v707, %v709
      %v711 = vld [vmem:[#allocation2 + $0x6] sm:$0xf]
      %v712 = vmul.f32 %v711, %v638
      %v713 = vadd.f32 %v710, %v712
      %v714 = vld [vmem:[#allocation2 + $0x37] sm:$0xf]
      %v715 = vmul.f32 %v714, %v647
      %v716 = vadd.f32 %v713, %v715
      %v717 = vld [vmem:[#allocation2 + $0x50] sm:$0xf]
      %v718 = vmul.f32 %v717, %v656
      %v719 = vadd.f32 %v716, %v718
      %v720 = vld [vmem:[#allocation2 + $0x38] sm:$0xf]
      %v721 = vmul.f32 %v720, %v665
      %v722 = vadd.f32 %v719, %v721
      %v723 = vld [vmem:[#allocation2 + $0xa] sm:$0xf]
      %v724 = vmul.f32 %v723, %v674
      %v725 = vadd.f32 %v722, %v724
      %v726 = vld [vmem:[#allocation2 + $0x23] sm:$0xf]
      %v727 = vmul.f32 %v726, %v683
      %v728 = vadd.f32 %v725, %v727
      %v729 = vld [vmem:[#allocation2 + $0xb] sm:$0xf]
      %v730 = vmul.f32 %v729, %v692
      %v731 = vadd.f32 %v728, %v730
      %v732 = vadd.f32 %v731, %v700
      %v733 = vmax.f32 %v732, 0.0
      %734 = vst.msk [vmem:[#allocation3 + $0x4] sm:$0xf] %vm595, %v733
      %v735 = vld [vmem:[#allocation2 + $0xa] sm:$0xf]
      %v736 = vmul.f32 %v735, %v620
      %v737 = vadd.f32 %v736, 0.0
      %v738 = vld [vmem:[#allocation2 + $0x23] sm:$0xf]
      %v739 = vmul.f32 %v738, %v629
      %v740 = vadd.f32 %v737, %v739
      %v741 = vld [vmem:[#allocation2 + $0xb] sm:$0xf]
      %v742 = vmul.f32 %v741, %v638
      %v743 = vadd.f32 %v740, %v742
      %v744 = vld [vmem:[#allocation2 + $0x3c] sm:$0xf]
      %v745 = vmul.f32 %v744, %v647
      %v746 = vadd.f32 %v743, %v745
      %v747 = vld [vmem:[#allocation2 + $0x55] sm:$0xf]
      %v748 = vmul.f32 %v747, %v656
      %v749 = vadd.f32 %v746, %v748
      %v750 = vld [vmem:[#allocation2 + $0x3d] sm:$0xf]
      %v751 = vmul.f32 %v750, %v665
      %v752 = vadd.f32 %v749, %v751
      %v753 = vld [vmem:[#allocation2 + $0xf] sm:$0xf]
      %v754 = vmul.f32 %v753, %v674
      %v755 = vadd.f32 %v752, %v754
      %v756 = vld [vmem:[#allocation2 + $0x28] sm:$0xf]
      %v757 = vmul.f32 %v756, %v683
      %v758 = vadd.f32 %v755, %v757
      %v759 = vld [vmem:[#allocation2 + $0x10] sm:$0xf]
      %v760 = vmul.f32 %v759, %v692
      %v761 = vadd.f32 %v758, %v760
      %v762 = vadd.f32 %v761, %v700
      %v763 = vmax.f32 %v762, 0.0
      %764 = vst.msk [vmem:[#allocation3 + $0x8] sm:$0xf] %vm595, %v763
      %v765 = vld [vmem:[#allocation2 + $0xf] sm:$0xf]
      %v766 = vmul.f32 %v765, %v620
      %v767 = vadd.f32 %v766, 0.0
      %v768 = vld [vmem:[#allocation2 + $0x28] sm:$0xf]
      %v769 = vmul.f32 %v768, %v629
      %v770 = vadd.f32 %v767, %v769
      %v771 = vld [vmem:[#allocation2 + $0x10] sm:$0xf]
      %v772 = vmul.f32 %v771, %v638
      %v773 = vadd.f32 %v770, %v772
      %v774 = vld [vmem:[#allocation2 + $0x41] sm:$0xf]
      %v775 = vmul.f32 %v774, %v647
      %v776 = vadd.f32 %v773, %v775
      %v777 = vld [vmem:[#allocation2 + $0x5a] sm:$0xf]
      %v778 = vmul.f32 %v777, %v656
      %v779 = vadd.f32 %v776, %v778
      %v780 = vld [vmem:[#allocation2 + $0x42] sm:$0xf]
      %v781 = vmul.f32 %v780, %v665
      %v782 = vadd.f32 %v779, %v781
      %v783 = vld [vmem:[#allocation2 + $0x14] sm:$0xf]
      %v784 = vmul.f32 %v783, %v674
      %v785 = vadd.f32 %v782, %v784
      %v786 = vld [vmem:[#allocation2 + $0x2d] sm:$0xf]
      %v787 = vmul.f32 %v786, %v683
      %v788 = vadd.f32 %v785, %v787
      %v789 = vld [vmem:[#allocation2 + $0x15] sm:$0xf]
      %v790 = vmul.f32 %v789, %v692
      %v791 = vadd.f32 %v788, %v790
      %v792 = vadd.f32 %v791, %v700
      %v793 = vmax.f32 %v792, 0.0
      %794 = vst.msk [vmem:[#allocation3 + $0xc] sm:$0xf] %vm595, %v793
      %v795 = vld [vmem:[#allocation3] sm:$0xff]
      %v796 = vld [vmem:[#allocation3 + $0x8] sm:$0xff]
      %v797 = vpack.c.bf16 %v796, %v795
      %v798 = vld [vmem:[%s6] sm:$0xf]
      %v799 = vld [vmem:[%s6 + $0x4] sm:$0xf]
      %v800 = vld [vmem:[%s6 + $0x8] sm:$0xf]
      %v801 = vld [vmem:[%s6 + $0xc] sm:$0xf]
      %v802 = vld [vmem:[%s6 + $0x10] sm:$0xf]
      %v803 = vld [vmem:[%s6 + $0x14] sm:$0xf]
      %v804 = vld [vmem:[%s6 + $0x18] sm:$0xf]
      %v805 = vld [vmem:[%s6 + $0x1c] sm:$0xf]
      %v806 = vld [vmem:[%s7] sm:$0x1]
      %v808 = vlaneseq
      %v809 = vshrl.u32 %v808, 7
      %v810 = vsub.s32 0, %v809
      %v811 = vrot.slane %v806, %v810
      %v821 = vunpack.c.l.b16 %v798
      %v822 = vunpack.c.l.b16 %v799
      %v823 = vunpack.c.l.b16 %v800
      %v824 = vunpack.c.l.b16 %v801
      %v825 = vunpack.c.l.b16 %v802
      %v826 = vunpack.c.l.b16 %v803
      %v827 = vunpack.c.l.b16 %v804
      %v828 = vunpack.c.l.b16 %v805
      %v829 = vpack.c.b16 %v822, %v821
      %v830 = vpack.c.b16 %v824, %v823
      %v831 = vpack.c.b16 %v826, %v825
      %v832 = vpack.c.b16 %v828, %v827
      %v838 = vsel %vm582, %v797, 0
      %840 = vmatprep.subr.bf16.mxu0 0
      %841 = vmatpush1.bf16.msra.mxu0 0
      %842 = vmatprep.subr.bf16.mxu0 0
      %843 = vmatpush1.bf16.msra.mxu0 0
      %844 = vmatprep.subr.bf16.mxu0 0
      %845 = vmatpush1.bf16.msra.mxu0 0
      %846 = vmatprep.subr.bf16.mxu0 0
      %847 = vmatpush1.bf16.msra.mxu0 0
      %848 = vmatprep.subr.bf16.mxu0 0
      %849 = vmatpush1.bf16.msra.mxu0 %v832
      %850 = vmatprep.subr.bf16.mxu0 0
      %851 = vmatpush1.bf16.msra.mxu0 %v831
      %852 = vmatprep.subr.bf16.mxu0 0
      %853 = vmatpush1.bf16.msra.mxu0 %v830
      %854 = vmatprep.subr.bf16.mxu0 0
      %855 = vmatpush1.bf16.msra.mxu0 %v829
      %856 = vmatprep.subr.bf16.mxu0 0
      %857 = vmatpush2.bf16.msra.mxu0 0
      %858 = vmatprep.subr.bf16.mxu0 0
      %859 = vmatpush2.bf16.msra.mxu0 0
      %860 = vmatprep.subr.bf16.mxu0 0
      %861 = vmatpush2.bf16.msra.mxu0 0
      %862 = vmatprep.subr.bf16.mxu0 0
      %863 = vmatpush2.bf16.msra.mxu0 0
      %864 = vmatprep.subr.bf16.mxu0 0
      %865 = vmatpush2.bf16.msra.mxu0 0
      %866 = vmatprep.subr.bf16.mxu0 0
      %867 = vmatpush2.bf16.msra.mxu0 0
      %868 = vmatprep.subr.bf16.mxu0 0
      %869 = vmatpush2.bf16.msra.mxu0 0
      %870 = vmatprep.subr.bf16.mxu0 0
      %871 = vmatpush2.bf16.msra.mxu0 0
      %872 = vmatprep.mubr.bf16.mxu0 0
      %873 = vmatmul.mubr.bf16.gmra.mxu0 %v838
      %v874 = vpop.f32.mrf.mxu0
      %v875 = vadd.f32 %v811, %v874
      %v876 = vpop.f32.mrf.mxu0
      %v877 = vpop.f32.mrf.mxu0
      %v878 = vadd.f32 %v811, %v877
      %v879 = vpop.f32.mrf.mxu0
      %880 = vdwg.mxu0
      %v881 = vpack.c.bf16 %v878, %v875
      %v883 = vunpack.c.l.b16 %v881
      %v884 = vunpack.c.h.b16 %v881
      %v885 = vpack.c.b16 %v883, %v883
      %v886 = vpack.c.b16 %v884, %v884
      %vm889 = vcmask 191488
      %890 = vst.msk [vmem:[%s305] sm:$0xf] %vm889, %v885
      %891 = vst.msk [vmem:[%s305 + $0x4] sm:$0xf] %vm889, %v886
      %p892 = scmp.lt.s32.totalorder %s19, 1
      %s893 = scalar_select %p892, %s19, 1
      %s894 = smul.addr %s893, 2
      %s895 = smul.addr %s894, 4
      %s896 = scalar_lea.vmem %s8, %s895
      // Predicated region
      $region53: #{_lambda_.8} parent=51 // pred_check
        %p897 = pneg %p210
      $region54: #{_lambda_.8} parent=51 // pred_check_branch
        %899 = sbr.rel (%p897) target = $region56
      $region55: #{_lambda_.8} parent=51 // pred_region
        _
      $region56: #{_lambda_.8} parent=51 // pred_fallthru
        _
    $region52: #{_lambda_.8} parent=5 // pred_fallthru
      _
    %p900 = scmp.le.s32.totalorder 2, %s14
    // Predicated region
    $region57: #{_lambda_.8} parent=5 // pred_check
      %p901 = pneg %p900
    $region58: #{_lambda_.8} parent=5 // pred_check_branch
      %903 = sbr.rel (%p901) target = $region60
    $region59: #{_lambda_.8} parent=5 // pred_region
      %s904 = ssub.s32 %s14, 2
      // Predicated region
      $region61: #{_lambda_.8} parent=59 // pred_check
        %p905 = pneg %p216
      $region62: #{_lambda_.8} parent=59 // pred_check_branch
        %907 = sbr.rel (%p905) target = $region64
      $region63: #{_lambda_.8} parent=59 // pred_region
        %p908 = scmp.lt.s32.totalorder %s20, 1
        %s909 = scalar_select %p908, %s20, 1
        %s910 = smul.addr %s909, 2
        %s911 = smul.addr %s910, 4
        %s912 = scalar_lea.vmem %s8, %s911
      $region64: #{_lambda_.8} parent=59 // pred_fallthru
        _
    $region60: #{_lambda_.8} parent=5 // pred_fallthru
      _
  $region6: #{_lambda_.8} parent=0 // loop_footer
    %s18 = sadd.s32 1, %s14
  $region7: #{_lambda_.8} parent=0 // loop_footer_branch
    %13 = sbr.rel target = $region3
  $region8: #{_lambda_.8} parent=0 // loop_exit
    _

// kernel: _lambda_.11
$region0: #{_lambda_.11}
  #allocation0 [shape = 'u32[]', space=smem, size = 0x4, offset = 0x4, fixed_abs, tag = 'smem constant byte address 0x4 - core index']
  #allocation1 [shape = 'u32[144,128]{1,0:T(1,128)}', space=vmem, size = 0x12000, scoped, tag = 'internal scratch']
  %s0 = inlined_call_operand.vmem [shape: bf16[2,16,144], index: 0, kind: input, shape index: {}]
  %s1 = inlined_call_operand.vmem [shape: bf16[144,128], index: 1, kind: input, shape index: {}]
  %s2 = inlined_call_operand.vmem [shape: f32[1,128], index: 2, kind: input, shape index: {}]
  %s3 = inlined_call_operand.vmem [shape: bf16[128,10], index: 3, kind: input, shape index: {}]
  %s4 = inlined_call_operand.vmem [shape: f32[1,10], index: 4, kind: input, shape index: {}]
  %s5 = inlined_call_operand.hbm [shape: f32[2,1,10], index: 5, kind: output, shape index: {}]
  %s6 = sld [smem:[#allocation0]]
  $region53: #{_lambda_.11} parent=0
    _
  %s8 = ssub.s32 1, %s6
  %s9 = scalar_select 0, %s8, %s6
  $region1: #{_lambda_.11} parent=0
    #allocation2 [shape = 'u8[1024]{0}', space=vmem, size = 0x400, scoped, tag = 'output window, operand 0']
    #allocation3 [shape = 's32[2]{0}', space=sflag, size = 0x8, scoped, tag = 'scoped memory for _lambda_.11']
    %10 = vsyncpa [#allocation3], 0
    %s11 = scalar_lea.sflag [#allocation3], 1
    %12 = vsyncpa %s11, 0
    loop: start=0, step=1, limit=4
    $region2: #{_lambda_.11} parent=1 // loop_pre_header
      _
    $region3: #{_lambda_.11} parent=1 // loop_header
      %s14 = sphi 0, %s18
      %p15 = scmp.ge.s32.totalorder %s14, 4
      %s24 = sphi 0, %s26
      %s27 = sphi 0, %s24
      %s28 = sphi 0, %s27
      %s44 = sphi 0, %s28
      %s48 = sphi 0, %s48
      %s50 = sphi 0, %s48
      %s51 = sphi 0, %s50
      %s65 = sphi 0, %s51
      %s69 = sphi 0, %s69
      %s71 = sphi 0, %s69
      %s72 = sphi 0, %s71
      %s86 = sphi 0, %s72
      %s90 = sphi 0, %s90
      %s92 = sphi 0, %s90
      %s93 = sphi 0, %s92
      %s107 = sphi 0, %s93
      %s111 = sphi 0, %s111
      %s113 = sphi 0, %s111
      %s114 = sphi 0, %s113
      %s128 = sphi 0, %s114
      %s134 = sphi 0, %s136
      %s137 = sphi 0, %s134
      %s138 = sphi 0, %s137
      %s154 = sphi 0, %s138
    $region4: #{_lambda_.11} parent=1 // loop_header_branch
      %17 = sbr.rel (%p15) target = $region8
    $region5: #{_lambda_.11} parent=1 // loop_body
      %s19 = ssub.s32 %s14, 1
      %s20 = ssub.s32 %s14, 2
      %s21 = sadd.s32 %s14, 1
      %s22 = ssub.s32 %s14, %s21
      %p23 = scmp.eq.s32.totalorder %s22, 0
      %s25 = sadd.s32 %s24, 1
      %s26 = scalar_select %p23, %s24, %s25
      %p29 = pneg %p23
      %p30 = scmp.eq.s32.totalorder %s14, 1
      %p31 = por %p29, %p30
      %p32 = scmp.ne.s32.totalorder %s24, %s27
      %p33 = scmp.eq.s32.totalorder %s14, 0
      %p34 = por %p32, %p33
      %p35 = scmp.ne.s32.totalorder %s24, %s27
      %p36 = scmp.eq.s32.totalorder %s19, 1
      %p37 = por %p35, %p36
      %p38 = scmp.ne.s32.totalorder %s27, %s28
      %p39 = scmp.eq.s32.totalorder %s19, 0
      %p40 = por %p38, %p39
      %p41 = scmp.ne.s32.totalorder %s27, %s28
      %p42 = scmp.eq.s32.totalorder %s20, 1
      %p43 = por %p41, %p42
      %p45 = scmp.ne.s32.totalorder %s28, %s44
      %p46 = scmp.eq.s32.totalorder %s20, 0
      %p47 = por %p45, %p46
      %s49 = sadd.s32 %s48, 1
      %p52 = scmp.eq.s32.totalorder %s14, 1
      %p53 = scmp.ne.s32.totalorder %s48, %s50
      %p54 = scmp.eq.s32.totalorder %s14, 0
      %p55 = por %p53, %p54
      %p56 = scmp.ne.s32.totalorder %s48, %s50
      %p57 = scmp.eq.s32.totalorder %s19, 1
      %p58 = por %p56, %p57
      %p59 = scmp.ne.s32.totalorder %s50, %s51
      %p60 = scmp.eq.s32.totalorder %s19, 0
      %p61 = por %p59, %p60
      %p62 = scmp.ne.s32.totalorder %s50, %s51
      %p63 = scmp.eq.s32.totalorder %s20, 1
      %p64 = por %p62, %p63
      %p66 = scmp.ne.s32.totalorder %s51, %s65
      %p67 = scmp.eq.s32.totalorder %s20, 0
      %p68 = por %p66, %p67
      %s70 = sadd.s32 %s69, 1
      %p73 = scmp.eq.s32.totalorder %s14, 1
      %p74 = scmp.ne.s32.totalorder %s69, %s71
      %p75 = scmp.eq.s32.totalorder %s14, 0
      %p76 = por %p74, %p75
      %p77 = scmp.ne.s32.totalorder %s69, %s71
      %p78 = scmp.eq.s32.totalorder %s19, 1
      %p79 = por %p77, %p78
      %p80 = scmp.ne.s32.totalorder %s71, %s72
      %p81 = scmp.eq.s32.totalorder %s19, 0
      %p82 = por %p80, %p81
      %p83 = scmp.ne.s32.totalorder %s71, %s72
      %p84 = scmp.eq.s32.totalorder %s20, 1
      %p85 = por %p83, %p84
      %p87 = scmp.ne.s32.totalorder %s72, %s86
      %p88 = scmp.eq.s32.totalorder %s20, 0
      %p89 = por %p87, %p88
      %s91 = sadd.s32 %s90, 1
      %p94 = scmp.eq.s32.totalorder %s14, 1
      %p95 = scmp.ne.s32.totalorder %s90, %s92
      %p96 = scmp.eq.s32.totalorder %s14, 0
      %p97 = por %p95, %p96
      %p98 = scmp.ne.s32.totalorder %s90, %s92
      %p99 = scmp.eq.s32.totalorder %s19, 1
      %p100 = por %p98, %p99
      %p101 = scmp.ne.s32.totalorder %s92, %s93
      %p102 = scmp.eq.s32.totalorder %s19, 0
      %p103 = por %p101, %p102
      %p104 = scmp.ne.s32.totalorder %s92, %s93
      %p105 = scmp.eq.s32.totalorder %s20, 1
      %p106 = por %p104, %p105
      %p108 = scmp.ne.s32.totalorder %s93, %s107
      %p109 = scmp.eq.s32.totalorder %s20, 0
      %p110 = por %p108, %p109
      %s112 = sadd.s32 %s111, 1
      %p115 = scmp.eq.s32.totalorder %s14, 1
      %p116 = scmp.ne.s32.totalorder %s111, %s113
      %p117 = scmp.eq.s32.totalorder %s14, 0
      %p118 = por %p116, %p117
      %p119 = scmp.ne.s32.totalorder %s111, %s113
      %p120 = scmp.eq.s32.totalorder %s19, 1
      %p121 = por %p119, %p120
      %p122 = scmp.ne.s32.totalorder %s113, %s114
      %p123 = scmp.eq.s32.totalorder %s19, 0
      %p124 = por %p122, %p123
      %p125 = scmp.ne.s32.totalorder %s113, %s114
      %p126 = scmp.eq.s32.totalorder %s20, 1
      %p127 = por %p125, %p126
      %p129 = scmp.ne.s32.totalorder %s114, %s128
      %p130 = scmp.eq.s32.totalorder %s20, 0
      %p131 = por %p129, %p130
      %s132 = ssub.s32 %s14, %s21
      %p133 = scmp.eq.s32.totalorder %s132, 0
      %s135 = sadd.s32 %s134, 1
      %s136 = scalar_select %p133, %s134, %s135
      %p139 = pneg %p133
      %p140 = scmp.eq.s32.totalorder %s14, 1
      %p141 = por %p139, %p140
      %p142 = scmp.ne.s32.totalorder %s134, %s137
      %p143 = scmp.eq.s32.totalorder %s14, 0
      %p144 = por %p142, %p143
      %p145 = scmp.ne.s32.totalorder %s134, %s137
      %p146 = scmp.eq.s32.totalorder %s19, 1
      %p147 = por %p145, %p146
      %p148 = scmp.ne.s32.totalorder %s137, %s138
      %p149 = scmp.eq.s32.totalorder %s19, 0
      %p150 = por %p148, %p149
      %p151 = scmp.ne.s32.totalorder %s137, %s138
      %p152 = scmp.eq.s32.totalorder %s20, 1
      %p153 = por %p151, %p152
      %p155 = scmp.ne.s32.totalorder %s138, %s154
      %p156 = scmp.eq.s32.totalorder %s20, 0
      %p157 = por %p155, %p156
      %p158 = scmp.le.s32.totalorder 1, %s14
      %p159 = scmp.lt.s32.totalorder %s14, 3
      %p160 = pnand %p158, %p159
      %p161 = pneg %p160
      // Predicated region
      $region9: #{_lambda_.11} parent=5 // pred_check
        _
      $region10: #{_lambda_.11} parent=5 // pred_check_branch
        %163 = sbr.rel (%p160) target = $region12
      $region11: #{_lambda_.11} parent=5 // pred_region
        %s164 = ssub.s32 %s14, 1
        // Predicated region
        $region13: #{_lambda_.11} parent=11 // pred_check
          %p165 = pneg %p61
        $region14: #{_lambda_.11} parent=11 // pred_check_branch
          %167 = sbr.rel (%p165) target = $region16
        $region15: #{_lambda_.11} parent=11 // pred_region
          _
        $region16: #{_lambda_.11} parent=11 // pred_fallthru
          _
        // Predicated region
        $region17: #{_lambda_.11} parent=11 // pred_check
          %p168 = pneg %p82
        $region18: #{_lambda_.11} parent=11 // pred_check_branch
          %170 = sbr.rel (%p168) target = $region20
        $region19: #{_lambda_.11} parent=11 // pred_region
          _
        $region20: #{_lambda_.11} parent=11 // pred_fallthru
          _
        // Predicated region
        $region21: #{_lambda_.11} parent=11 // pred_check
          %p171 = pneg %p103
        $region22: #{_lambda_.11} parent=11 // pred_check_branch
          %173 = sbr.rel (%p171) target = $region24
        $region23: #{_lambda_.11} parent=11 // pred_region
          _
        $region24: #{_lambda_.11} parent=11 // pred_fallthru
          _
        // Predicated region
        $region25: #{_lambda_.11} parent=11 // pred_check
          %p174 = pneg %p124
        $region26: #{_lambda_.11} parent=11 // pred_check_branch
          %176 = sbr.rel (%p174) target = $region28
        $region27: #{_lambda_.11} parent=11 // pred_region
          _
        $region28: #{_lambda_.11} parent=11 // pred_fallthru
          _
      $region12: #{_lambda_.11} parent=5 // pred_fallthru
        _
      %p177 = scmp.lt.s32.totalorder %s14, 2
      // Predicated region
      $region29: #{_lambda_.11} parent=5 // pred_check
        %p178 = pneg %p177
      $region30: #{_lambda_.11} parent=5 // pred_check_branch
        %180 = sbr.rel (%p178) target = $region32
      $region31: #{_lambda_.11} parent=5 // pred_region
        // Predicated region
        $region33: #{_lambda_.11} parent=31 // pred_check
          %p181 = pneg %p34
        $region34: #{_lambda_.11} parent=31 // pred_check_branch
          %183 = sbr.rel (%p181) target = $region36
        $region35: #{_lambda_.11} parent=31 // pred_region
          %p184 = scmp.lt.s32.totalorder %s14, 1
          %s185 = scalar_select %p184, %s14, 1
          %s186 = smul.addr %s185, 4
          %s187 = smul.addr %s186, 4
          %s188 = scalar_lea.vmem %s0, %s187
        $region36: #{_lambda_.11} parent=31 // pred_fallthru
          _
      $region32: #{_lambda_.11} parent=5 // pred_fallthru
        _
      %p189 = scmp.le.s32.totalorder 1, %s14
      %p190 = scmp.lt.s32.totalorder %s14, 3
      %p191 = pnand %p189, %p190
      %p192 = pneg %p191
      // Predicated region
      $region37: #{_lambda_.11} parent=5 // pred_check
        _
      $region38: #{_lambda_.11} parent=5 // pred_check_branch
        %194 = sbr.rel (%p191) target = $region40
      $region39: #{_lambda_.11} parent=5 // pred_region
        %s195 = ssub.s32 %s14, 1
        %p196 = scmp.lt.s32.totalorder %s19, 1
        %s197 = scalar_select %p196, %s19, 1
        %s198 = smul.addr %s197, 4
        %s199 = smul.addr %s198, 4
        %s200 = scalar_lea.vmem %s0, %s199
        %p201 = pneg %p40
        %p202 = pneg %p37
        %p203 = pneg %p61
        %p204 = pneg %p58
        %p205 = pneg %p82
        %p206 = pneg %p79
        %p207 = pneg %p103
        %p208 = pneg %p100
        %p209 = pneg %p124
        %p210 = pneg %p121
        %p211 = pneg %p150
        %p212 = pneg %p147
        %s213 = sand.u32 %s137, 1
        %s214 = scalar_lea.sflag [#allocation3], %s213
        %s215 = sand.u32 %s137, 1
        %s216 = scalar_lea.vmem [#allocation2], %s215
        %p217 = scmp.lt.s32.totalorder %s19, 1
        %s218 = scalar_select %p217, %s19, 1
        %s219 = smul.addr %s218, 4
        %s220 = smul.addr %s219, 4
        %s221 = scalar_lea.vmem %s0, %s220
        %v223 = vld [vmem:[%s221] sm:$0xff]
        %v224 = vld [vmem:[%s221 + $0x8] sm:$0xff]
        %v225 = vunpack.c.l.bf16 %v223
        %v226 = vunpack.c.h.bf16 %v223
        %v227 = vunpack.c.l.bf16 %v224
        %v228 = vunpack.c.h.bf16 %v224
        %v229 = vadd.f32 %v225, %v227
        %v230 = vrot.slane %v229, 4
        %v231 = vadd.f32 %v229, %v230
        %v232 = vrot.slane %v231, 2
        %v233 = vadd.f32 %v231, %v232
        %v234 = vrot.slane %v233, 1
        %v235 = vadd.f32 %v233, %v234
        %vm236 = vcmask 130048
        %v237 = vsel %vm236, %v226, 0.0
        %v238 = vsel %vm236, %v228, 0.0
        %v239 = vadd.f32 %v237, %v238
        %v240 = vrot.slane %v239, 4
        %v241 = vadd.f32 %v239, %v240
        %v242 = vrot.slane %v241, 2
        %v243 = vadd.f32 %v241, %v242
        %v244 = vrot.slane %v243, 1
        %v245 = vadd.f32 %v243, %v244
        %v246 = vrcp.pop 16.0
        %v247 = vmul.f32 %v235, %v246
        %v248 = vmul.f32 %v245, %v246
        %v249 = vpack.c.bf16 %v247, %v247
        %v250 = vpack.c.bf16 %v248, %v248
        %v251 = vld [vmem:[%s1] sm:$0xf]
        %v252 = vld [vmem:[%s1 + $0x4] sm:$0xf]
        %v253 = vld [vmem:[%s1 + $0x8] sm:$0xf]
        %v254 = vld [vmem:[%s1 + $0xc] sm:$0xf]
        %v255 = vld [vmem:[%s1 + $0x10] sm:$0xf]
        %v256 = vld [vmem:[%s1 + $0x14] sm:$0xf]
        %v257 = vld [vmem:[%s1 + $0x18] sm:$0xf]
        %v258 = vld [vmem:[%s1 + $0x1c] sm:$0xf]
        %v259 = vld [vmem:[%s1 + $0x20] sm:$0xf]
        %v260 = vld [vmem:[%s1 + $0x24] sm:$0xf]
        %v261 = vld [vmem:[%s1 + $0x28] sm:$0xf]
        %v262 = vld [vmem:[%s1 + $0x2c] sm:$0xf]
        %v263 = vld [vmem:[%s1 + $0x30] sm:$0xf]
        %v264 = vld [vmem:[%s1 + $0x34] sm:$0xf]
        %v265 = vld [vmem:[%s1 + $0x38] sm:$0xf]
        %v266 = vld [vmem:[%s1 + $0x3c] sm:$0xf]
        %v267 = vld [vmem:[%s1 + $0x40] sm:$0xf]
        %v268 = vld [vmem:[%s1 + $0x44] sm:$0xf]
        %v269 = vld [vmem:[%s2] sm:$0x1]
        %v288 = vunpack.c.l.b16 %v251
        %v289 = vunpack.c.l.b16 %v252
        %v290 = vunpack.c.l.b16 %v253
        %v291 = vunpack.c.l.b16 %v254
        %v292 = vunpack.c.l.b16 %v255
        %v293 = vunpack.c.l.b16 %v256
        %v294 = vunpack.c.l.b16 %v257
        %v295 = vunpack.c.l.b16 %v258
        %v296 = vunpack.c.l.b16 %v259
        %v297 = vunpack.c.l.b16 %v260
        %v298 = vunpack.c.l.b16 %v261
        %v299 = vunpack.c.l.b16 %v262
        %v300 = vunpack.c.l.b16 %v263
        %v301 = vunpack.c.l.b16 %v264
        %v302 = vunpack.c.l.b16 %v265
        %v303 = vunpack.c.l.b16 %v266
        %v304 = vunpack.c.l.b16 %v267
        %v305 = vunpack.c.l.b16 %v268
        %v306 = vpack.c.b16 %v289, %v288
        %v307 = vpack.c.b16 %v291, %v290
        %v308 = vpack.c.b16 %v293, %v292
        %v309 = vpack.c.b16 %v295, %v294
        %v310 = vpack.c.b16 %v297, %v296
        %v311 = vpack.c.b16 %v299, %v298
        %v312 = vpack.c.b16 %v301, %v300
        %v313 = vpack.c.b16 %v303, %v302
        %v314 = vpack.c.b16 %v305, %v304
        %v325 = vsel %vm236, %v250, 0
        %327 = vmatprep.subr.bf16.mxu0 0
        %328 = vmatpush1.bf16.msra.mxu0 %v313
        %329 = vmatprep.subr.bf16.mxu0 0
        %330 = vmatpush1.bf16.msra.mxu0 %v312
        %331 = vmatprep.subr.bf16.mxu0 0
        %332 = vmatpush1.bf16.msra.mxu0 %v311
        %333 = vmatprep.subr.bf16.mxu0 0
        %334 = vmatpush1.bf16.msra.mxu0 %v310
        %335 = vmatprep.subr.bf16.mxu0 0
        %336 = vmatpush1.bf16.msra.mxu0 %v309
        %337 = vmatprep.subr.bf16.mxu0 0
        %338 = vmatpush1.bf16.msra.mxu0 %v308
        %339 = vmatprep.subr.bf16.mxu0 0
        %340 = vmatpush1.bf16.msra.mxu0 %v307
        %341 = vmatprep.subr.bf16.mxu0 0
        %342 = vmatpush1.bf16.msra.mxu0 %v306
        %343 = vmatprep.subr.bf16.mxu0 0
        %344 = vmatpush2.bf16.msra.mxu0 0
        %345 = vmatprep.subr.bf16.mxu0 0
        %346 = vmatpush2.bf16.msra.mxu0 0
        %347 = vmatprep.subr.bf16.mxu0 0
        %348 = vmatpush2.bf16.msra.mxu0 0
        %349 = vmatprep.subr.bf16.mxu0 0
        %350 = vmatpush2.bf16.msra.mxu0 0
        %351 = vmatprep.subr.bf16.mxu0 0
        %352 = vmatpush2.bf16.msra.mxu0 0
        %353 = vmatprep.subr.bf16.mxu0 0
        %354 = vmatpush2.bf16.msra.mxu0 0
        %355 = vmatprep.subr.bf16.mxu0 0
        %356 = vmatpush2.bf16.msra.mxu0 0
        %357 = vmatprep.subr.bf16.mxu0 0
        %358 = vmatpush2.bf16.msra.mxu0 %v314
        %359 = vmatprep.mubr.bf16.mxu0 %v325
        %360 = vmatmul.mubr.bf16.gmra.mxu0 %v249
        %v361 = vpop.f32.mrf.mxu0
        %v362 = vadd.f32 %v269, %v361
        %v363 = vpop.f32.mrf.mxu0
        %v364 = vpop.f32.mrf.mxu0
        %v365 = vpop.f32.mrf.mxu0
        %366 = vdwg.mxu0
        %v367 = vadd.f32 %v362, 3.0
        %v368 = vmax.f32 %v367, 0.0
        %v369 = vmin.f32 %v368, 6.0
        %v370 = vmul.f32 %v362, %v369
        %v371 = vmul.f32 %v370, 0.16666667
        %v372 = vpack.c.bf16 %v371, %v371
        %v373 = vld [vmem:[%s3] sm:$0xf]
        %v374 = vld [vmem:[%s3 + $0x4] sm:$0xf]
        %v375 = vld [vmem:[%s3 + $0x8] sm:$0xf]
        %v376 = vld [vmem:[%s3 + $0xc] sm:$0xf]
        %v377 = vld [vmem:[%s3 + $0x10] sm:$0xf]
        %v378 = vld [vmem:[%s3 + $0x14] sm:$0xf]
        %v379 = vld [vmem:[%s3 + $0x18] sm:$0xf]
        %v380 = vld [vmem:[%s3 + $0x1c] sm:$0xf]
        %v381 = vld [vmem:[%s3 + $0x20] sm:$0xf]
        %v382 = vld [vmem:[%s3 + $0x24] sm:$0xf]
        %v383 = vld [vmem:[%s3 + $0x28] sm:$0xf]
        %v384 = vld [vmem:[%s3 + $0x2c] sm:$0xf]
        %v385 = vld [vmem:[%s3 + $0x30] sm:$0xf]
        %v386 = vld [vmem:[%s3 + $0x34] sm:$0xf]
        %v387 = vld [vmem:[%s3 + $0x38] sm:$0xf]
        %v388 = vld [vmem:[%s3 + $0x3c] sm:$0xf]
        %v389 = vld [vmem:[%s4] sm:$0x1]
        %v406 = vunpack.c.l.b16 %v373
        %v407 = vunpack.c.l.b16 %v374
        %v408 = vunpack.c.l.b16 %v375
        %v409 = vunpack.c.l.b16 %v376
        %v410 = vunpack.c.l.b16 %v377
        %v411 = vunpack.c.l.b16 %v378
        %v412 = vunpack.c.l.b16 %v379
        %v413 = vunpack.c.l.b16 %v380
        %v414 = vunpack.c.l.b16 %v381
        %v415 = vunpack.c.l.b16 %v382
        %v416 = vunpack.c.l.b16 %v383
        %v417 = vunpack.c.l.b16 %v384
        %v418 = vunpack.c.l.b16 %v385
        %v419 = vunpack.c.l.b16 %v386
        %v420 = vunpack.c.l.b16 %v387
        %v421 = vunpack.c.l.b16 %v388
        %v422 = vpack.c.b16 %v407, %v406
        %v423 = vpack.c.b16 %v409, %v408
        %v424 = vpack.c.b16 %v411, %v410
        %v425 = vpack.c.b16 %v413, %v412
        %v426 = vpack.c.b16 %v415, %v414
        %v427 = vpack.c.b16 %v417, %v416
        %v428 = vpack.c.b16 %v419, %v418
        %v429 = vpack.c.b16 %v421, %v420
        %438 = vmatprep.subr.bf16.mxu0 0
        %439 = vmatpush1.bf16.msra.mxu0 %v429
        %440 = vmatprep.subr.bf16.mxu0 0
        %441 = vmatpush1.bf16.msra.mxu0 %v428
        %442 = vmatprep.subr.bf16.mxu0 0
        %443 = vmatpush1.bf16.msra.mxu0 %v427
        %444 = vmatprep.subr.bf16.mxu0 0
        %445 = vmatpush1.bf16.msra.mxu0 %v426
        %446 = vmatprep.subr.bf16.mxu0 0
        %447 = vmatpush1.bf16.msra.mxu0 %v425
        %448 = vmatprep.subr.bf16.mxu0 0
        %449 = vmatpush1.bf16.msra.mxu0 %v424
        %450 = vmatprep.subr.bf16.mxu0 0
        %451 = vmatpush1.bf16.msra.mxu0 %v423
        %452 = vmatprep.subr.bf16.mxu0 0
        %453 = vmatpush1.bf16.msra.mxu0 %v422
        %454 = vmatprep.subr.bf16.mxu0 0
        %455 = vmatpush2.bf16.msra.mxu0 0
        %456 = vmatprep.subr.bf16.mxu0 0
        %457 = vmatpush2.bf16.msra.mxu0 0
        %458 = vmatprep.subr.bf16.mxu0 0
        %459 = vmatpush2.bf16.msra.mxu0 0
        %460 = vmatprep.subr.bf16.mxu0 0
        %461 = vmatpush2.bf16.msra.mxu0 0
        %462 = vmatprep.subr.bf16.mxu0 0
        %463 = vmatpush2.bf16.msra.mxu0 0
        %464 = vmatprep.subr.bf16.mxu0 0
        %465 = vmatpush2.bf16.msra.mxu0 0
        %466 = vmatprep.subr.bf16.mxu0 0
        %467 = vmatpush2.bf16.msra.mxu0 0
        %468 = vmatprep.subr.bf16.mxu0 0
        %469 = vmatpush2.bf16.msra.mxu0 0
        %470 = vmatprep.mubr.bf16.mxu0 0
        %471 = vmatmul.mubr.bf16.gmra.mxu0 %v372
        %v472 = vpop.f32.mrf.mxu0
        %v473 = vadd.f32 %v389, %v472
        %v474 = vpop.f32.mrf.mxu0
        %v475 = vpop.f32.mrf.mxu0
        %v476 = vpop.f32.mrf.mxu0
        %477 = vdwg.mxu0
        %vm478 = vcmask 73728
        %479 = vst.msk [vmem:[%s216] sm:$0x1] %vm478, %v473
        %s480 = sand.u32 %s137, 1
        %s481 = scalar_lea.sflag [#allocation3], %s480
        %s482 = sand.u32 %s137, 1
        %s483 = scalar_lea.vmem [#allocation2], %s482
        // Predicated region
        $region41: #{_lambda_.11} parent=39 // pred_check
          %p484 = pneg %p147
        $region42: #{_lambda_.11} parent=39 // pred_check_branch
          %486 = sbr.rel (%p484) target = $region44
        $region43: #{_lambda_.11} parent=39 // pred_region
          %s488 = ssub.s32 16, 16
          %489 = vsyncadd %s481, %s488
          %s490 = smul.addr %s19, 16
          %s491 = scalar_lea.hbm %s5, %s490
          %s493 = sshll.u32 %s483, 4
          %s494 = int_to_ptr.vmem [resolvable:$true] %s493
          %496 = dma.vmem_to_hbm [thread:$0]  %s494, 16, %s491, %s481
        $region44: #{_lambda_.11} parent=39 // pred_fallthru
          _
      $region40: #{_lambda_.11} parent=5 // pred_fallthru
        _
      %p497 = scmp.le.s32.totalorder 2, %s14
      // Predicated region
      $region45: #{_lambda_.11} parent=5 // pred_check
        %p498 = pneg %p497
      $region46: #{_lambda_.11} parent=5 // pred_check_branch
        %500 = sbr.rel (%p498) target = $region48
      $region47: #{_lambda_.11} parent=5 // pred_region
        %s501 = ssub.s32 %s14, 2
        // Predicated region
        $region49: #{_lambda_.11} parent=47 // pred_check
          %p502 = pneg %p153
        $region50: #{_lambda_.11} parent=47 // pred_check_branch
          %504 = sbr.rel (%p502) target = $region52
        $region51: #{_lambda_.11} parent=47 // pred_region
          %s505 = sand.u32 %s138, 1
          %s506 = scalar_lea.sflag [#allocation3], %s505
          %s507 = sand.u32 %s138, 1
          %s508 = scalar_lea.vmem [#allocation2], %s507
          %509 = dma.done %s506, 16
        $region52: #{_lambda_.11} parent=47 // pred_fallthru
          _
      $region48: #{_lambda_.11} parent=5 // pred_fallthru
        _
    $region6: #{_lambda_.11} parent=1 // loop_footer
      %s18 = sadd.s32 1, %s14
    $region7: #{_lambda_.11} parent=1 // loop_footer_branch
      %13 = sbr.rel target = $region3
    $region8: #{_lambda_.11} parent=1 // loop_exit
      _
    %510 = vsyncpa [#allocation3], 1
    %s511 = scalar_lea.sflag [#allocation3], 1
    %512 = vsyncpa %s511, 1

// kernel: _lambda_.9
$region0: #{_lambda_.9}
  #allocation0 [shape = 'u32[]', space=smem, size = 0x4, offset = 0x4, fixed_abs, tag = 'smem constant byte address 0x4 - core index']
  #allocation1 [shape = 'u32[144,128]{1,0:T(1,128)}', space=vmem, size = 0x12000, scoped, tag = 'internal scratch']
  #allocation2 [shape = 'f32[64,72]{1,0:T(8,128)}', space=vmem, size = 0x8000, scoped, tag = 'scratch operand']
  #allocation3 [shape = 'f32[16,72]{1,0:T(8,128)}', space=vmem, size = 0x2000, scoped, tag = 'scratch operand']
  %s0 = inlined_call_operand.vmem [shape: bf16[2,64,24], index: 0, kind: input, shape index: {}]
  %s1 = inlined_call_operand.vmem [shape: f32[64,1], index: 1, kind: input, shape index: {}]
  %s2 = inlined_call_operand.vmem [shape: bf16[24,72], index: 2, kind: input, shape index: {}]
  %s3 = inlined_call_operand.vmem [shape: f32[1,72], index: 3, kind: input, shape index: {}]
  %s4 = inlined_call_operand.vmem [shape: f32[25,1,72], index: 4, kind: input, shape index: {}]
  %s5 = inlined_call_operand.vmem [shape: f32[1,72], index: 5, kind: input, shape index: {}]
  %s6 = inlined_call_operand.vmem [shape: f32[72,24], index: 6, kind: input, shape index: {}]
  %s7 = inlined_call_operand.vmem [shape: f32[1,24], index: 7, kind: input, shape index: {}]
  %s8 = inlined_call_operand.vmem [shape: f32[24,72], index: 8, kind: input, shape index: {}]
  %s9 = inlined_call_operand.vmem [shape: f32[1,72], index: 9, kind: input, shape index: {}]
  %s10 = inlined_call_operand.vmem [shape: bf16[72,24], index: 10, kind: input, shape index: {}]
  %s11 = inlined_call_operand.vmem [shape: f32[1,24], index: 11, kind: input, shape index: {}]
  %s12 = inlined_call_operand.vmem [shape: bf16[2,16,24], index: 12, kind: input, shape index: {}]
  %s13 = inlined_call_operand.vmem [shape: bf16[2,16,24], index: 13, kind: output, shape index: {}]
  %s14 = sld [smem:[#allocation0]]
  $region85: #{_lambda_.9} parent=0
    _
  %s16 = ssub.s32 1, %s14
  %s17 = scalar_select 0, %s16, %s14
  loop: start=0, step=1, limit=4
  $region2: #{_lambda_.9} parent=0 // loop_pre_header
    _
  $region3: #{_lambda_.9} parent=0 // loop_header
    %s19 = sphi 0, %s23
    %p20 = scmp.ge.s32.totalorder %s19, 4
    %s29 = sphi 0, %s31
    %s32 = sphi 0, %s29
    %s33 = sphi 0, %s32
    %s49 = sphi 0, %s33
    %s53 = sphi 0, %s53
    %s55 = sphi 0, %s53
    %s56 = sphi 0, %s55
    %s70 = sphi 0, %s56
    %s74 = sphi 0, %s74
    %s76 = sphi 0, %s74
    %s77 = sphi 0, %s76
    %s91 = sphi 0, %s77
    %s95 = sphi 0, %s95
    %s97 = sphi 0, %s95
    %s98 = sphi 0, %s97
    %s112 = sphi 0, %s98
    %s116 = sphi 0, %s116
    %s118 = sphi 0, %s116
    %s119 = sphi 0, %s118
    %s133 = sphi 0, %s119
    %s137 = sphi 0, %s137
    %s139 = sphi 0, %s137
    %s140 = sphi 0, %s139
    %s154 = sphi 0, %s140
    %s158 = sphi 0, %s158
    %s160 = sphi 0, %s158
    %s161 = sphi 0, %s160
    %s175 = sphi 0, %s161
    %s179 = sphi 0, %s179
    %s181 = sphi 0, %s179
    %s182 = sphi 0, %s181
    %s196 = sphi 0, %s182
    %s200 = sphi 0, %s200
    %s202 = sphi 0, %s200
    %s203 = sphi 0, %s202
    %s217 = sphi 0, %s203
    %s221 = sphi 0, %s221
    %s223 = sphi 0, %s221
    %s224 = sphi 0, %s223
    %s238 = sphi 0, %s224
    %s242 = sphi 0, %s242
    %s244 = sphi 0, %s242
    %s245 = sphi 0, %s244
    %s259 = sphi 0, %s245
    %s263 = sphi 0, %s263
    %s265 = sphi 0, %s263
    %s266 = sphi 0, %s265
    %s280 = sphi 0, %s266
    %s286 = sphi 0, %s288
    %s289 = sphi 0, %s286
    %s290 = sphi 0, %s289
    %s306 = sphi 0, %s290
    %s312 = sphi 0, %s314
    %s315 = sphi 0, %s312
    %s316 = sphi 0, %s315
    %s332 = sphi 0, %s316
  $region4: #{_lambda_.9} parent=0 // loop_header_branch
    %22 = sbr.rel (%p20) target = $region8
  $region5: #{_lambda_.9} parent=0 // loop_body
    %s24 = ssub.s32 %s19, 1
    %s25 = ssub.s32 %s19, 2
    %s26 = sadd.s32 %s19, 1
    %s27 = ssub.s32 %s19, %s26
    %p28 = scmp.eq.s32.totalorder %s27, 0
    %s30 = sadd.s32 %s29, 1
    %s31 = scalar_select %p28, %s29, %s30
    %p34 = pneg %p28
    %p35 = scmp.eq.s32.totalorder %s19, 1
    %p36 = por %p34, %p35
    %p37 = scmp.ne.s32.totalorder %s29, %s32
    %p38 = scmp.eq.s32.totalorder %s19, 0
    %p39 = por %p37, %p38
    %p40 = scmp.ne.s32.totalorder %s29, %s32
    %p41 = scmp.eq.s32.totalorder %s24, 1
    %p42 = por %p40, %p41
    %p43 = scmp.ne.s32.totalorder %s32, %s33
    %p44 = scmp.eq.s32.totalorder %s24, 0
    %p45 = por %p43, %p44
    %p46 = scmp.ne.s32.totalorder %s32, %s33
    %p47 = scmp.eq.s32.totalorder %s25, 1
    %p48 = por %p46, %p47
    %p50 = scmp.ne.s32.totalorder %s33, %s49
    %p51 = scmp.eq.s32.totalorder %s25, 0
    %p52 = por %p50, %p51
    %s54 = sadd.s32 %s53, 1
    %p57 = scmp.eq.s32.totalorder %s19, 1
    %p58 = scmp.ne.s32.totalorder %s53, %s55
    %p59 = scmp.eq.s32.totalorder %s19, 0
    %p60 = por %p58, %p59
    %p61 = scmp.ne.s32.totalorder %s53, %s55
    %p62 = scmp.eq.s32.totalorder %s24, 1
    %p63 = por %p61, %p62
    %p64 = scmp.ne.s32.totalorder %s55, %s56
    %p65 = scmp.eq.s32.totalorder %s24, 0
    %p66 = por %p64, %p65
    %p67 = scmp.ne.s32.totalorder %s55, %s56
    %p68 = scmp.eq.s32.totalorder %s25, 1
    %p69 = por %p67, %p68
    %p71 = scmp.ne.s32.totalorder %s56, %s70
    %p72 = scmp.eq.s32.totalorder %s25, 0
    %p73 = por %p71, %p72
    %s75 = sadd.s32 %s74, 1
    %p78 = scmp.eq.s32.totalorder %s19, 1
    %p79 = scmp.ne.s32.totalorder %s74, %s76
    %p80 = scmp.eq.s32.totalorder %s19, 0
    %p81 = por %p79, %p80
    %p82 = scmp.ne.s32.totalorder %s74, %s76
    %p83 = scmp.eq.s32.totalorder %s24, 1
    %p84 = por %p82, %p83
    %p85 = scmp.ne.s32.totalorder %s76, %s77
    %p86 = scmp.eq.s32.totalorder %s24, 0
    %p87 = por %p85, %p86
    %p88 = scmp.ne.s32.totalorder %s76, %s77
    %p89 = scmp.eq.s32.totalorder %s25, 1
    %p90 = por %p88, %p89
    %p92 = scmp.ne.s32.totalorder %s77, %s91
    %p93 = scmp.eq.s32.totalorder %s25, 0
    %p94 = por %p92, %p93
    %s96 = sadd.s32 %s95, 1
    %p99 = scmp.eq.s32.totalorder %s19, 1
    %p100 = scmp.ne.s32.totalorder %s95, %s97
    %p101 = scmp.eq.s32.totalorder %s19, 0
    %p102 = por %p100, %p101
    %p103 = scmp.ne.s32.totalorder %s95, %s97
    %p104 = scmp.eq.s32.totalorder %s24, 1
    %p105 = por %p103, %p104
    %p106 = scmp.ne.s32.totalorder %s97, %s98
    %p107 = scmp.eq.s32.totalorder %s24, 0
    %p108 = por %p106, %p107
    %p109 = scmp.ne.s32.totalorder %s97, %s98
    %p110 = scmp.eq.s32.totalorder %s25, 1
    %p111 = por %p109, %p110
    %p113 = scmp.ne.s32.totalorder %s98, %s112
    %p114 = scmp.eq.s32.totalorder %s25, 0
    %p115 = por %p113, %p114
    %s117 = sadd.s32 %s116, 1
    %p120 = scmp.eq.s32.totalorder %s19, 1
    %p121 = scmp.ne.s32.totalorder %s116, %s118
    %p122 = scmp.eq.s32.totalorder %s19, 0
    %p123 = por %p121, %p122
    %p124 = scmp.ne.s32.totalorder %s116, %s118
    %p125 = scmp.eq.s32.totalorder %s24, 1
    %p126 = por %p124, %p125
    %p127 = scmp.ne.s32.totalorder %s118, %s119
    %p128 = scmp.eq.s32.totalorder %s24, 0
    %p129 = por %p127, %p128
    %p130 = scmp.ne.s32.totalorder %s118, %s119
    %p131 = scmp.eq.s32.totalorder %s25, 1
    %p132 = por %p130, %p131
    %p134 = scmp.ne.s32.totalorder %s119, %s133
    %p135 = scmp.eq.s32.totalorder %s25, 0
    %p136 = por %p134, %p135
    %s138 = sadd.s32 %s137, 1
    %p141 = scmp.eq.s32.totalorder %s19, 1
    %p142 = scmp.ne.s32.totalorder %s137, %s139
    %p143 = scmp.eq.s32.totalorder %s19, 0
    %p144 = por %p142, %p143
    %p145 = scmp.ne.s32.totalorder %s137, %s139
    %p146 = scmp.eq.s32.totalorder %s24, 1
    %p147 = por %p145, %p146
    %p148 = scmp.ne.s32.totalorder %s139, %s140
    %p149 = scmp.eq.s32.totalorder %s24, 0
    %p150 = por %p148, %p149
    %p151 = scmp.ne.s32.totalorder %s139, %s140
    %p152 = scmp.eq.s32.totalorder %s25, 1
    %p153 = por %p151, %p152
    %p155 = scmp.ne.s32.totalorder %s140, %s154
    %p156 = scmp.eq.s32.totalorder %s25, 0
    %p157 = por %p155, %p156
    %s159 = sadd.s32 %s158, 1
    %p162 = scmp.eq.s32.totalorder %s19, 1
    %p163 = scmp.ne.s32.totalorder %s158, %s160
    %p164 = scmp.eq.s32.totalorder %s19, 0
    %p165 = por %p163, %p164
    %p166 = scmp.ne.s32.totalorder %s158, %s160
    %p167 = scmp.eq.s32.totalorder %s24, 1
    %p168 = por %p166, %p167
    %p169 = scmp.ne.s32.totalorder %s160, %s161
    %p170 = scmp.eq.s32.totalorder %s24, 0
    %p171 = por %p169, %p170
    %p172 = scmp.ne.s32.totalorder %s160, %s161
    %p173 = scmp.eq.s32.totalorder %s25, 1
    %p174 = por %p172, %p173
    %p176 = scmp.ne.s32.totalorder %s161, %s175
    %p177 = scmp.eq.s32.totalorder %s25, 0
    %p178 = por %p176, %p177
    %s180 = sadd.s32 %s179, 1
    %p183 = scmp.eq.s32.totalorder %s19, 1
    %p184 = scmp.ne.s32.totalorder %s179, %s181
    %p185 = scmp.eq.s32.totalorder %s19, 0
    %p186 = por %p184, %p185
    %p187 = scmp.ne.s32.totalorder %s179, %s181
    %p188 = scmp.eq.s32.totalorder %s24, 1
    %p189 = por %p187, %p188
    %p190 = scmp.ne.s32.totalorder %s181, %s182
    %p191 = scmp.eq.s32.totalorder %s24, 0
    %p192 = por %p190, %p191
    %p193 = scmp.ne.s32.totalorder %s181, %s182
    %p194 = scmp.eq.s32.totalorder %s25, 1
    %p195 = por %p193, %p194
    %p197 = scmp.ne.s32.totalorder %s182, %s196
    %p198 = scmp.eq.s32.totalorder %s25, 0
    %p199 = por %p197, %p198
    %s201 = sadd.s32 %s200, 1
    %p204 = scmp.eq.s32.totalorder %s19, 1
    %p205 = scmp.ne.s32.totalorder %s200, %s202
    %p206 = scmp.eq.s32.totalorder %s19, 0
    %p207 = por %p205, %p206
    %p208 = scmp.ne.s32.totalorder %s200, %s202
    %p209 = scmp.eq.s32.totalorder %s24, 1
    %p210 = por %p208, %p209
    %p211 = scmp.ne.s32.totalorder %s202, %s203
    %p212 = scmp.eq.s32.totalorder %s24, 0
    %p213 = por %p211, %p212
    %p214 = scmp.ne.s32.totalorder %s202, %s203
    %p215 = scmp.eq.s32.totalorder %s25, 1
    %p216 = por %p214, %p215
    %p218 = scmp.ne.s32.totalorder %s203, %s217
    %p219 = scmp.eq.s32.totalorder %s25, 0
    %p220 = por %p218, %p219
    %s222 = sadd.s32 %s221, 1
    %p225 = scmp.eq.s32.totalorder %s19, 1
    %p226 = scmp.ne.s32.totalorder %s221, %s223
    %p227 = scmp.eq.s32.totalorder %s19, 0
    %p228 = por %p226, %p227
    %p229 = scmp.ne.s32.totalorder %s221, %s223
    %p230 = scmp.eq.s32.totalorder %s24, 1
    %p231 = por %p229, %p230
    %p232 = scmp.ne.s32.totalorder %s223, %s224
    %p233 = scmp.eq.s32.totalorder %s24, 0
    %p234 = por %p232, %p233
    %p235 = scmp.ne.s32.totalorder %s223, %s224
    %p236 = scmp.eq.s32.totalorder %s25, 1
    %p237 = por %p235, %p236
    %p239 = scmp.ne.s32.totalorder %s224, %s238
    %p240 = scmp.eq.s32.totalorder %s25, 0
    %p241 = por %p239, %p240
    %s243 = sadd.s32 %s242, 1
    %p246 = scmp.eq.s32.totalorder %s19, 1
    %p247 = scmp.ne.s32.totalorder %s242, %s244
    %p248 = scmp.eq.s32.totalorder %s19, 0
    %p249 = por %p247, %p248
    %p250 = scmp.ne.s32.totalorder %s242, %s244
    %p251 = scmp.eq.s32.totalorder %s24, 1
    %p252 = por %p250, %p251
    %p253 = scmp.ne.s32.totalorder %s244, %s245
    %p254 = scmp.eq.s32.totalorder %s24, 0
    %p255 = por %p253, %p254
    %p256 = scmp.ne.s32.totalorder %s244, %s245
    %p257 = scmp.eq.s32.totalorder %s25, 1
    %p258 = por %p256, %p257
    %p260 = scmp.ne.s32.totalorder %s245, %s259
    %p261 = scmp.eq.s32.totalorder %s25, 0
    %p262 = por %p260, %p261
    %s264 = sadd.s32 %s263, 1
    %p267 = scmp.eq.s32.totalorder %s19, 1
    %p268 = scmp.ne.s32.totalorder %s263, %s265
    %p269 = scmp.eq.s32.totalorder %s19, 0
    %p270 = por %p268, %p269
    %p271 = scmp.ne.s32.totalorder %s263, %s265
    %p272 = scmp.eq.s32.totalorder %s24, 1
    %p273 = por %p271, %p272
    %p274 = scmp.ne.s32.totalorder %s265, %s266
    %p275 = scmp.eq.s32.totalorder %s24, 0
    %p276 = por %p274, %p275
    %p277 = scmp.ne.s32.totalorder %s265, %s266
    %p278 = scmp.eq.s32.totalorder %s25, 1
    %p279 = por %p277, %p278
    %p281 = scmp.ne.s32.totalorder %s266, %s280
    %p282 = scmp.eq.s32.totalorder %s25, 0
    %p283 = por %p281, %p282
    %s284 = ssub.s32 %s19, %s26
    %p285 = scmp.eq.s32.totalorder %s284, 0
    %s287 = sadd.s32 %s286, 1
    %s288 = scalar_select %p285, %s286, %s287
    %p291 = pneg %p285
    %p292 = scmp.eq.s32.totalorder %s19, 1
    %p293 = por %p291, %p292
    %p294 = scmp.ne.s32.totalorder %s286, %s289
    %p295 = scmp.eq.s32.totalorder %s19, 0
    %p296 = por %p294, %p295
    %p297 = scmp.ne.s32.totalorder %s286, %s289
    %p298 = scmp.eq.s32.totalorder %s24, 1
    %p299 = por %p297, %p298
    %p300 = scmp.ne.s32.totalorder %s289, %s290
    %p301 = scmp.eq.s32.totalorder %s24, 0
    %p302 = por %p300, %p301
    %p303 = scmp.ne.s32.totalorder %s289, %s290
    %p304 = scmp.eq.s32.totalorder %s25, 1
    %p305 = por %p303, %p304
    %p307 = scmp.ne.s32.totalorder %s290, %s306
    %p308 = scmp.eq.s32.totalorder %s25, 0
    %p309 = por %p307, %p308
    %s310 = ssub.s32 %s19, %s26
    %p311 = scmp.eq.s32.totalorder %s310, 0
    %s313 = sadd.s32 %s312, 1
    %s314 = scalar_select %p311, %s312, %s313
    %p317 = pneg %p311
    %p318 = scmp.eq.s32.totalorder %s19, 1
    %p319 = por %p317, %p318
    %p320 = scmp.ne.s32.totalorder %s312, %s315
    %p321 = scmp.eq.s32.totalorder %s19, 0
    %p322 = por %p320, %p321
    %p323 = scmp.ne.s32.totalorder %s312, %s315
    %p324 = scmp.eq.s32.totalorder %s24, 1
    %p325 = por %p323, %p324
    %p326 = scmp.ne.s32.totalorder %s315, %s316
    %p327 = scmp.eq.s32.totalorder %s24, 0
    %p328 = por %p326, %p327
    %p329 = scmp.ne.s32.totalorder %s315, %s316
    %p330 = scmp.eq.s32.totalorder %s25, 1
    %p331 = por %p329, %p330
    %p333 = scmp.ne.s32.totalorder %s316, %s332
    %p334 = scmp.eq.s32.totalorder %s25, 0
    %p335 = por %p333, %p334
    %p336 = scmp.le.s32.totalorder 1, %s19
    %p337 = scmp.lt.s32.totalorder %s19, 3
    %p338 = pnand %p336, %p337
    %p339 = pneg %p338
    // Predicated region
    $region9: #{_lambda_.9} parent=5 // pred_check
      _
    $region10: #{_lambda_.9} parent=5 // pred_check_branch
      %341 = sbr.rel (%p338) target = $region12
    $region11: #{_lambda_.9} parent=5 // pred_region
      %s342 = ssub.s32 %s19, 1
      // Predicated region
      $region13: #{_lambda_.9} parent=11 // pred_check
        %p343 = pneg %p66
      $region14: #{_lambda_.9} parent=11 // pred_check_branch
        %345 = sbr.rel (%p343) target = $region16
      $region15: #{_lambda_.9} parent=11 // pred_region
        _
      $region16: #{_lambda_.9} parent=11 // pred_fallthru
        _
      // Predicated region
      $region17: #{_lambda_.9} parent=11 // pred_check
        %p346 = pneg %p87
      $region18: #{_lambda_.9} parent=11 // pred_check_branch
        %348 = sbr.rel (%p346) target = $region20
      $region19: #{_lambda_.9} parent=11 // pred_region
        _
      $region20: #{_lambda_.9} parent=11 // pred_fallthru
        _
      // Predicated region
      $region21: #{_lambda_.9} parent=11 // pred_check
        %p349 = pneg %p108
      $region22: #{_lambda_.9} parent=11 // pred_check_branch
        %351 = sbr.rel (%p349) target = $region24
      $region23: #{_lambda_.9} parent=11 // pred_region
        _
      $region24: #{_lambda_.9} parent=11 // pred_fallthru
        _
      // Predicated region
      $region25: #{_lambda_.9} parent=11 // pred_check
        %p352 = pneg %p129
      $region26: #{_lambda_.9} parent=11 // pred_check_branch
        %354 = sbr.rel (%p352) target = $region28
      $region27: #{_lambda_.9} parent=11 // pred_region
        _
      $region28: #{_lambda_.9} parent=11 // pred_fallthru
        _
      // Predicated region
      $region29: #{_lambda_.9} parent=11 // pred_check
        %p355 = pneg %p150
      $region30: #{_lambda_.9} parent=11 // pred_check_branch
        %357 = sbr.rel (%p355) target = $region32
      $region31: #{_lambda_.9} parent=11 // pred_region
        _
      $region32: #{_lambda_.9} parent=11 // pred_fallthru
        _
      // Predicated region
      $region33: #{_lambda_.9} parent=11 // pred_check
        %p358 = pneg %p171
      $region34: #{_lambda_.9} parent=11 // pred_check_branch
        %360 = sbr.rel (%p358) target = $region36
      $region35: #{_lambda_.9} parent=11 // pred_region
        _
      $region36: #{_lambda_.9} parent=11 // pred_fallthru
        _
      // Predicated region
      $region37: #{_lambda_.9} parent=11 // pred_check
        %p361 = pneg %p192
      $region38: #{_lambda_.9} parent=11 // pred_check_branch
        %363 = sbr.rel (%p361) target = $region40
      $region39: #{_lambda_.9} parent=11 // pred_region
        _
      $region40: #{_lambda_.9} parent=11 // pred_fallthru
        _
      // Predicated region
      $region41: #{_lambda_.9} parent=11 // pred_check
        %p364 = pneg %p213
      $region42: #{_lambda_.9} parent=11 // pred_check_branch
        %366 = sbr.rel (%p364) target = $region44
      $region43: #{_lambda_.9} parent=11 // pred_region
        _
      $region44: #{_lambda_.9} parent=11 // pred_fallthru
        _
      // Predicated region
      $region45: #{_lambda_.9} parent=11 // pred_check
        %p367 = pneg %p234
      $region46: #{_lambda_.9} parent=11 // pred_check_branch
        %369 = sbr.rel (%p367) target = $region48
      $region47: #{_lambda_.9} parent=11 // pred_region
        _
      $region48: #{_lambda_.9} parent=11 // pred_fallthru
        _
      // Predicated region
      $region49: #{_lambda_.9} parent=11 // pred_check
        %p370 = pneg %p255
      $region50: #{_lambda_.9} parent=11 // pred_check_branch
        %372 = sbr.rel (%p370) target = $region52
      $region51: #{_lambda_.9} parent=11 // pred_region
        _
      $region52: #{_lambda_.9} parent=11 // pred_fallthru
        _
      // Predicated region
      $region53: #{_lambda_.9} parent=11 // pred_check
        %p373 = pneg %p276
      $region54: #{_lambda_.9} parent=11 // pred_check_branch
        %375 = sbr.rel (%p373) target = $region56
      $region55: #{_lambda_.9} parent=11 // pred_region
        _
      $region56: #{_lambda_.9} parent=11 // pred_fallthru
        _
    $region12: #{_lambda_.9} parent=5 // pred_fallthru
      _
    %p376 = scmp.lt.s32.totalorder %s19, 2
    // Predicated region
    $region57: #{_lambda_.9} parent=5 // pred_check
      %p377 = pneg %p376
    $region58: #{_lambda_.9} parent=5 // pred_check_branch
      %379 = sbr.rel (%p377) target = $region60
    $region59: #{_lambda_.9} parent=5 // pred_region
      // Predicated region
      $region61: #{_lambda_.9} parent=59 // pred_check
        %p380 = pneg %p39
      $region62: #{_lambda_.9} parent=59 // pred_check_branch
        %382 = sbr.rel (%p380) target = $region64
      $region63: #{_lambda_.9} parent=59 // pred_region
        %p383 = scmp.lt.s32.totalorder %s19, 1
        %s384 = scalar_select %p383, %s19, 1
        %s385 = smul.addr %s384, 8
        %s386 = smul.addr %s385, 4
        %s387 = scalar_lea.vmem %s0, %s386
      $region64: #{_lambda_.9} parent=59 // pred_fallthru
        _
      // Predicated region
      $region65: #{_lambda_.9} parent=59 // pred_check
        %p388 = pneg %p296
      $region66: #{_lambda_.9} parent=59 // pred_check_branch
        %390 = sbr.rel (%p388) target = $region68
      $region67: #{_lambda_.9} parent=59 // pred_region
        %p391 = scmp.lt.s32.totalorder %s19, 1
        %s392 = scalar_select %p391, %s19, 1
        %s393 = smul.addr %s392, 2
        %s394 = smul.addr %s393, 4
        %s395 = scalar_lea.vmem %s12, %s394
      $region68: #{_lambda_.9} parent=59 // pred_fallthru
        _
    $region60: #{_lambda_.9} parent=5 // pred_fallthru
      _
    %p396 = scmp.le.s32.totalorder 1, %s19
    %p397 = scmp.lt.s32.totalorder %s19, 3
    %p398 = pnand %p396, %p397
    %p399 = pneg %p398
    // Predicated region
    $region69: #{_lambda_.9} parent=5 // pred_check
      _
    $region70: #{_lambda_.9} parent=5 // pred_check_branch
      %401 = sbr.rel (%p398) target = $region72
    $region71: #{_lambda_.9} parent=5 // pred_region
      %s402 = ssub.s32 %s19, 1
      %p403 = scmp.lt.s32.totalorder %s24, 1
      %s404 = scalar_select %p403, %s24, 1
      %s405 = smul.addr %s404, 8
      %s406 = smul.addr %s405, 4
      %s407 = scalar_lea.vmem %s0, %s406
      %p408 = pneg %p45
      %p409 = pneg %p42
      %p410 = pneg %p66
      %p411 = pneg %p63
      %p412 = pneg %p87
      %p413 = pneg %p84
      %p414 = pneg %p108
      %p415 = pneg %p105
      %p416 = pneg %p129
      %p417 = pneg %p126
      %p418 = pneg %p150
      %p419 = pneg %p147
      %p420 = pneg %p171
      %p421 = pneg %p168
      %p422 = pneg %p192
      %p423 = pneg %p189
      %p424 = pneg %p213
      %p425 = pneg %p210
      %p426 = pneg %p234
      %p427 = pneg %p231
      %p428 = pneg %p255
      %p429 = pneg %p252
      %p430 = pneg %p276
      %p431 = pneg %p273
      %p432 = scmp.lt.s32.totalorder %s24, 1
      %s433 = scalar_select %p432, %s24, 1
      %s434 = smul.addr %s433, 2
      %s435 = smul.addr %s434, 4
      %s436 = scalar_lea.vmem %s12, %s435
      %p437 = pneg %p302
      %p438 = pneg %p299
      %p439 = pneg %p328
      %p440 = pneg %p325
      %p441 = scmp.lt.s32.totalorder %s24, 1
      %s442 = scalar_select %p441, %s24, 1
      %s443 = smul.addr %s442, 2
      %s444 = smul.addr %s443, 4
      %s445 = scalar_lea.vmem %s13, %s444
      %p446 = scmp.lt.s32.totalorder %s24, 1
      %s447 = scalar_select %p446, %s24, 1
      %s448 = smul.addr %s447, 8
      %s449 = smul.addr %s448, 4
      %s450 = scalar_lea.vmem %s0, %s449
      %p451 = scmp.lt.s32.totalorder %s24, 1
      %s452 = scalar_select %p451, %s24, 1
      %s453 = smul.addr %s452, 2
      %s454 = smul.addr %s453, 4
      %s455 = scalar_lea.vmem %s12, %s454
      %p456 = scmp.lt.s32.totalorder %s24, 1
      %s457 = scalar_select %p456, %s24, 1
      %s458 = smul.addr %s457, 2
      %s459 = smul.addr %s458, 4
      %s460 = scalar_lea.vmem %s13, %s459
      %v462 = vld [vmem:[%s450] sm:$0xf]
      %v463 = vld [vmem:[%s450 + $0x4] sm:$0xf]
      %v464 = vld [vmem:[%s450 + $0x8] sm:$0xf]
      %v465 = vld [vmem:[%s450 + $0xc] sm:$0xf]
      %v466 = vld [vmem:[%s450 + $0x10] sm:$0xf]
      %v467 = vld [vmem:[%s450 + $0x14] sm:$0xf]
      %v468 = vld [vmem:[%s450 + $0x18] sm:$0xf]
      %v469 = vld [vmem:[%s450 + $0x1c] sm:$0xf]
      %v470 = vld [vmem:[%s2] sm:$0xf]
      %v471 = vld [vmem:[%s2 + $0x4] sm:$0xf]
      %v472 = vld [vmem:[%s2 + $0x8] sm:$0xf]
      %v473 = vld [vmem:[%s3] sm:$0x1]
      %v475 = vlaneseq
      %v476 = vshrl.u32 %v475, 7
      %v477 = vsub.s32 0, %v476
      %v478 = vrot.slane %v473, %v477
      %v488 = vunpack.c.l.b16 %v462
      %v489 = vunpack.c.l.b16 %v463
      %v490 = vunpack.c.l.b16 %v464
      %v491 = vunpack.c.l.b16 %v465
      %v492 = vunpack.c.l.b16 %v466
      %v493 = vunpack.c.l.b16 %v467
      %v494 = vunpack.c.l.b16 %v468
      %v495 = vunpack.c.l.b16 %v469
      %v496 = vpack.c.b16 %v489, %v488
      %v497 = vpack.c.b16 %v491, %v490
      %v498 = vpack.c.b16 %v493, %v492
      %v499 = vpack.c.b16 %v495, %v494
      %v503 = vunpack.c.l.b16 %v470
      %v504 = vunpack.c.l.b16 %v471
      %v505 = vunpack.c.l.b16 %v472
      %v506 = vpack.c.b16 %v504, %v503
      %v507 = vpack.c.b16 %v505, %v505
      %vm509 = vcmask 195584
      %v511 = vsel %vm509, %v496, 0
      %v514 = vsel %vm509, %v497, 0
      %v517 = vsel %vm509, %v498, 0
      %v520 = vsel %vm509, %v499, 0
      %vm522 = vcmask 1043456
      %v524 = vsel %vm522, %v507, 0
      %526 = vmatprep.subr.bf16.mxu0 0
      %527 = vmatpush1.bf16.msra.mxu0 0
      %528 = vmatprep.subr.bf16.mxu0 0
      %529 = vmatpush1.bf16.msra.mxu0 0
      %530 = vmatprep.subr.bf16.mxu0 0
      %531 = vmatpush1.bf16.msra.mxu0 0
      %532 = vmatprep.subr.bf16.mxu0 0
      %533 = vmatpush1.bf16.msra.mxu0 0
      %534 = vmatprep.subr.bf16.mxu0 0
      %535 = vmatpush1.bf16.msra.mxu0 0
      %536 = vmatprep.subr.bf16.mxu0 0
      %537 = vmatpush1.bf16.msra.mxu0 0
      %538 = vmatprep.subr.bf16.mxu0 0
      %539 = vmatpush1.bf16.msra.mxu0 %v524
      %540 = vmatprep.subr.bf16.mxu0 0
      %541 = vmatpush1.bf16.msra.mxu0 %v506
      %542 = vmatprep.subr.bf16.mxu0 0
      %543 = vmatpush2.bf16.msra.mxu0 0
      %544 = vmatprep.subr.bf16.mxu0 0
      %545 = vmatpush2.bf16.msra.mxu0 0
      %546 = vmatprep.subr.bf16.mxu0 0
      %547 = vmatpush2.bf16.msra.mxu0 0
      %548 = vmatprep.subr.bf16.mxu0 0
      %549 = vmatpush2.bf16.msra.mxu0 0
      %550 = vmatprep.subr.bf16.mxu0 0
      %551 = vmatpush2.bf16.msra.mxu0 0
      %552 = vmatprep.subr.bf16.mxu0 0
      %553 = vmatpush2.bf16.msra.mxu0 0
      %554 = vmatprep.subr.bf16.mxu0 0
      %555 = vmatpush2.bf16.msra.mxu0 0
      %556 = vmatprep.subr.bf16.mxu0 0
      %557 = vmatpush2.bf16.msra.mxu0 0
      %558 = vmatprep.mubr.bf16.mxu0 0
      %559 = vmatmul.mubr.bf16.gmra.mxu0 %v511
      %v560 = vpop.f32.mrf.mxu0
      %v561 = vadd.f32 %v478, %v560
      %v562 = vpop.f32.mrf.mxu0
      %v563 = vpop.f32.mrf.mxu0
      %v564 = vadd.f32 %v478, %v563
      %v565 = vpop.f32.mrf.mxu0
      %566 = vmatprep.mubr.bf16.mxu0 0
      %567 = vmatmul.mubr.bf16.gmra.mxu0 %v514
      %v568 = vpop.f32.mrf.mxu0
      %v569 = vadd.f32 %v478, %v568
      %v570 = vpop.f32.mrf.mxu0
      %v571 = vpop.f32.mrf.mxu0
      %v572 = vadd.f32 %v478, %v571
      %v573 = vpop.f32.mrf.mxu0
      %574 = vmatprep.mubr.bf16.mxu0 0
      %575 = vmatmul.mubr.bf16.gmra.mxu0 %v517
      %v576 = vpop.f32.mrf.mxu0
      %v577 = vadd.f32 %v478, %v576
      %v578 = vpop.f32.mrf.mxu0
      %v579 = vpop.f32.mrf.mxu0
      %v580 = vadd.f32 %v478, %v579
      %v581 = vpop.f32.mrf.mxu0
      %582 = vmatprep.mubr.bf16.mxu0 0
      %583 = vmatmul.mubr.bf16.gmra.mxu0 %v520
      %v584 = vpop.f32.mrf.mxu0
      %v585 = vadd.f32 %v478, %v584
      %v586 = vpop.f32.mrf.mxu0
      %v587 = vpop.f32.mrf.mxu0
      %v588 = vadd.f32 %v478, %v587
      %v589 = vpop.f32.mrf.mxu0
      %590 = vdwg.mxu0
      %v591 = vadd.f32 %v561, 3.0
      %v592 = vadd.f32 %v564, 3.0
      %v593 = vadd.f32 %v569, 3.0
      %v594 = vadd.f32 %v572, 3.0
      %v595 = vadd.f32 %v577, 3.0
      %v596 = vadd.f32 %v580, 3.0
      %v597 = vadd.f32 %v585, 3.0
      %v598 = vadd.f32 %v588, 3.0
      %v599 = vmax.f32 %v591, 0.0
      %v600 = vmax.f32 %v592, 0.0
      %v601 = vmax.f32 %v593, 0.0
      %v602 = vmax.f32 %v594, 0.0
      %v603 = vmax.f32 %v595, 0.0
      %v604 = vmax.f32 %v596, 0.0
      %v605 = vmax.f32 %v597, 0.0
      %v606 = vmax.f32 %v598, 0.0
      %v607 = vmin.f32 %v599, 6.0
      %v608 = vmin.f32 %v600, 6.0
      %v609 = vmin.f32 %v601, 6.0
      %v610 = vmin.f32 %v602, 6.0
      %v611 = vmin.f32 %v603, 6.0
      %v612 = vmin.f32 %v604, 6.0
      %v613 = vmin.f32 %v605, 6.0
      %v614 = vmin.f32 %v606, 6.0
      %v615 = vmul.f32 %v561, %v607
      %v616 = vmul.f32 %v564, %v608
      %v617 = vmul.f32 %v569, %v609
      %v618 = vmul.f32 %v572, %v610
      %v619 = vmul.f32 %v577, %v611
      %v620 = vmul.f32 %v580, %v612
      %v621 = vmul.f32 %v585, %v613
      %v622 = vmul.f32 %v588, %v614
      %v623 = vmul.f32 %v615, 0.16666667
      %v624 = vmul.f32 %v616, 0.16666667
      %v625 = vmul.f32 %v617, 0.16666667
      %v626 = vmul.f32 %v618, 0.16666667
      %v627 = vmul.f32 %v619, 0.16666667
      %v628 = vmul.f32 %v620, 0.16666667
      %v629 = vmul.f32 %v621, 0.16666667
      %v630 = vmul.f32 %v622, 0.16666667
      %v631 = vld [vmem:[%s1] sm:$0xff]
      %v632 = vld [vmem:[%s1 + $0x8] sm:$0xff]
      %v633 = vld [vmem:[%s1 + $0x10] sm:$0xff]
      %v634 = vld [vmem:[%s1 + $0x18] sm:$0xff]
      %v635 = vld [vmem:[%s1 + $0x20] sm:$0xff]
      %v636 = vld [vmem:[%s1 + $0x28] sm:$0xff]
      %v637 = vld [vmem:[%s1 + $0x30] sm:$0xff]
      %v638 = vld [vmem:[%s1 + $0x38] sm:$0xff]
      %640 = vset.pattern.permute.xlu0 0
      %641 = vperm.xlu0 %640, %v631
      %v642 = vpop.permute.xlu0 %641
      %645 = vset.pattern.permute.xlu0 0
      %646 = vperm.xlu0 %645, %v632
      %v647 = vpop.permute.xlu0 %646
      %650 = vset.pattern.permute.xlu0 0
      %651 = vperm.xlu0 %650, %v633
      %v652 = vpop.permute.xlu0 %651
      %655 = vset.pattern.permute.xlu0 0
      %656 = vperm.xlu0 %655, %v634
      %v657 = vpop.permute.xlu0 %656
      %660 = vset.pattern.permute.xlu0 0
      %661 = vperm.xlu0 %660, %v635
      %v662 = vpop.permute.xlu0 %661
      %665 = vset.pattern.permute.xlu0 0
      %666 = vperm.xlu0 %665, %v636
      %v667 = vpop.permute.xlu0 %666
      %670 = vset.pattern.permute.xlu0 0
      %671 = vperm.xlu0 %670, %v637
      %v672 = vpop.permute.xlu0 %671
      %675 = vset.pattern.permute.xlu0 0
      %676 = vperm.xlu0 %675, %v638
      %v677 = vpop.permute.xlu0 %676
      %v679 = vmul.f32 %v623, %v642
      %v680 = vmul.f32 %v624, %v647
      %v681 = vmul.f32 %v625, %v652
      %v682 = vmul.f32 %v626, %v657
      %v683 = vmul.f32 %v627, %v662
      %v684 = vmul.f32 %v628, %v667
      %v685 = vmul.f32 %v629, %v672
      %v686 = vmul.f32 %v630, %v677
      %vm687 = vcmask 588800
      %688 = vst.msk [vmem:[#allocation2] sm:$0xff] %vm687, %v679
      %689 = vst.msk [vmem:[#allocation2 + $0x8] sm:$0xff] %vm687, %v680
      %690 = vst.msk [vmem:[#allocation2 + $0x10] sm:$0xff] %vm687, %v681
      %691 = vst.msk [vmem:[#allocation2 + $0x18] sm:$0xff] %vm687, %v682
      %692 = vst.msk [vmem:[#allocation2 + $0x20] sm:$0xff] %vm687, %v683
      %693 = vst.msk [vmem:[#allocation2 + $0x28] sm:$0xff] %vm687, %v684
      %694 = vst.msk [vmem:[#allocation2 + $0x30] sm:$0xff] %vm687, %v685
      %695 = vst.msk [vmem:[#allocation2 + $0x38] sm:$0xff] %vm687, %v686
      %v696 = vld [vmem:[%s4] sm:$0x1]
      %s697 = scalar_lea.vmem %s4, 1
      %v698 = vld [vmem:[%s697] sm:$0x1]
      %s699 = scalar_lea.vmem %s4, 2
      %v700 = vld [vmem:[%s699] sm:$0x1]
      %s701 = scalar_lea.vmem %s4, 3
      %v702 = vld [vmem:[%s701] sm:$0x1]
      %s703 = scalar_lea.vmem %s4, 4
      %v704 = vld [vmem:[%s703] sm:$0x1]
      %s705 = scalar_lea.vmem %s4, 5
      %v706 = vld [vmem:[%s705] sm:$0x1]
      %s707 = scalar_lea.vmem %s4, 6
      %v708 = vld [vmem:[%s707] sm:$0x1]
      %s709 = scalar_lea.vmem %s4, 7
      %v710 = vld [vmem:[%s709] sm:$0x1]
      %s711 = scalar_lea.vmem %s4, 8
      %v712 = vld [vmem:[%s711] sm:$0x1]
      %s713 = scalar_lea.vmem %s4, 9
      %v714 = vld [vmem:[%s713] sm:$0x1]
      %s715 = scalar_lea.vmem %s4, 10
      %v716 = vld [vmem:[%s715] sm:$0x1]
      %s717 = scalar_lea.vmem %s4, 11
      %v718 = vld [vmem:[%s717] sm:$0x1]
      %s719 = scalar_lea.vmem %s4, 12
      %v720 = vld [vmem:[%s719] sm:$0x1]
      %s721 = scalar_lea.vmem %s4, 13
      %v722 = vld [vmem:[%s721] sm:$0x1]
      %s723 = scalar_lea.vmem %s4, 14
      %v724 = vld [vmem:[%s723] sm:$0x1]
      %s725 = scalar_lea.vmem %s4, 15
      %v726 = vld [vmem:[%s725] sm:$0x1]
      %s727 = scalar_lea.vmem %s4, 16
      %v728 = vld [vmem:[%s727] sm:$0x1]
      %s729 = scalar_lea.vmem %s4, 17
      %v730 = vld [vmem:[%s729] sm:$0x1]
      %s731 = scalar_lea.vmem %s4, 18
      %v732 = vld [vmem:[%s731] sm:$0x1]
      %s733 = scalar_lea.vmem %s4, 19
      %v734 = vld [vmem:[%s733] sm:$0x1]
      %s735 = scalar_lea.vmem %s4, 20
      %v736 = vld [vmem:[%s735] sm:$0x1]
      %s737 = scalar_lea.vmem %s4, 21
      %v738 = vld [vmem:[%s737] sm:$0x1]
      %s739 = scalar_lea.vmem %s4, 22
      %v740 = vld [vmem:[%s739] sm:$0x1]
      %s741 = scalar_lea.vmem %s4, 23
      %v742 = vld [vmem:[%s741] sm:$0x1]
      %s743 = scalar_lea.vmem %s4, 24
      %v744 = vld [vmem:[%s743] sm:$0x1]
      %v745 = vld [vmem:[%s5] sm:$0x1]
      %v746 = vld [vmem:[#allocation2] sm:$0xf]
      %v748 = vlaneseq
      %v749 = vshrl.u32 %v748, 7
      %v750 = vsub.s32 0, %v749
      %v751 = vrot.slane %v696, %v750
      %v753 = vmul.f32 %v746, %v751
      %v754 = vadd.f32 %v753, 0.0
      %v755 = vld [vmem:[#allocation2 + $0x1] sm:$0xf]
      %v757 = vlaneseq
      %v758 = vshrl.u32 %v757, 7
      %v759 = vsub.s32 0, %v758
      %v760 = vrot.slane %v698, %v759
      %v762 = vmul.f32 %v755, %v760
      %v763 = vadd.f32 %v754, %v762
      %v764 = vld [vmem:[#allocation2 + $0x2] sm:$0xf]
      %v766 = vlaneseq
      %v767 = vshrl.u32 %v766, 7
      %v768 = vsub.s32 0, %v767
      %v769 = vrot.slane %v700, %v768
      %v771 = vmul.f32 %v764, %v769
      %v772 = vadd.f32 %v763, %v771
      %v773 = vld [vmem:[#allocation2 + $0x3] sm:$0xf]
      %v775 = vlaneseq
      %v776 = vshrl.u32 %v775, 7
      %v777 = vsub.s32 0, %v776
      %v778 = vrot.slane %v702, %v777
      %v780 = vmul.f32 %v773, %v778
      %v781 = vadd.f32 %v772, %v780
      %v782 = vld [vmem:[#allocation2 + $0x4] sm:$0xf]
      %v784 = vlaneseq
      %v785 = vshrl.u32 %v784, 7
      %v786 = vsub.s32 0, %v785
      %v787 = vrot.slane %v704, %v786
      %v789 = vmul.f32 %v782, %v787
      %v790 = vadd.f32 %v781, %v789
      %v791 = vld [vmem:[#allocation2 + $0x8] sm:$0xf]
      %v793 = vlaneseq
      %v794 = vshrl.u32 %v793, 7
      %v795 = vsub.s32 0, %v794
      %v796 = vrot.slane %v706, %v795
      %v798 = vmul.f32 %v791, %v796
      %v799 = vadd.f32 %v790, %v798
      %v800 = vld [vmem:[#allocation2 + $0x9] sm:$0xf]
      %v802 = vlaneseq
      %v803 = vshrl.u32 %v802, 7
      %v804 = vsub.s32 0, %v803
      %v805 = vrot.slane %v708, %v804
      %v807 = vmul.f32 %v800, %v805
      %v808 = vadd.f32 %v799, %v807
      %v809 = vld [vmem:[#allocation2 + $0xa] sm:$0xf]
      %v811 = vlaneseq
      %v812 = vshrl.u32 %v811, 7
      %v813 = vsub.s32 0, %v812
      %v814 = vrot.slane %v710, %v813
      %v816 = vmul.f32 %v809, %v814
      %v817 = vadd.f32 %v808, %v816
      %v818 = vld [vmem:[#allocation2 + $0xb] sm:$0xf]
      %v820 = vlaneseq
      %v821 = vshrl.u32 %v820, 7
      %v822 = vsub.s32 0, %v821
      %v823 = vrot.slane %v712, %v822
      %v825 = vmul.f32 %v818, %v823
      %v826 = vadd.f32 %v817, %v825
      %v827 = vld [vmem:[#allocation2 + $0xc] sm:$0xf]
      %v829 = vlaneseq
      %v830 = vshrl.u32 %v829, 7
      %v831 = vsub.s32 0, %v830
      %v832 = vrot.slane %v714, %v831
      %v834 = vmul.f32 %v827, %v832
      %v835 = vadd.f32 %v826, %v834
      %v836 = vld [vmem:[#allocation2 + $0x10] sm:$0xf]
      %v838 = vlaneseq
      %v839 = vshrl.u32 %v838, 7
      %v840 = vsub.s32 0, %v839
      %v841 = vrot.slane %v716, %v840
      %v843 = vmul.f32 %v836, %v841
      %v844 = vadd.f32 %v835, %v843
      %v845 = vld [vmem:[#allocation2 + $0x11] sm:$0xf]
      %v847 = vlaneseq
      %v848 = vshrl.u32 %v847, 7
      %v849 = vsub.s32 0, %v848
      %v850 = vrot.slane %v718, %v849
      %v852 = vmul.f32 %v845, %v850
      %v853 = vadd.f32 %v844, %v852
      %v854 = vld [vmem:[#allocation2 + $0x12] sm:$0xf]
      %v856 = vlaneseq
      %v857 = vshrl.u32 %v856, 7
      %v858 = vsub.s32 0, %v857
      %v859 = vrot.slane %v720, %v858
      %v861 = vmul.f32 %v854, %v859
      %v862 = vadd.f32 %v853, %v861
      %v863 = vld [vmem:[#allocation2 + $0x13] sm:$0xf]
      %v865 = vlaneseq
      %v866 = vshrl.u32 %v865, 7
      %v867 = vsub.s32 0, %v866
      %v868 = vrot.slane %v722, %v867
      %v870 = vmul.f32 %v863, %v868
      %v871 = vadd.f32 %v862, %v870
      %v872 = vld [vmem:[#allocation2 + $0x14] sm:$0xf]
      %v874 = vlaneseq
      %v875 = vshrl.u32 %v874, 7
      %v876 = vsub.s32 0, %v875
      %v877 = vrot.slane %v724, %v876
      %v879 = vmul.f32 %v872, %v877
      %v880 = vadd.f32 %v871, %v879
      %v881 = vld [vmem:[#allocation2 + $0x18] sm:$0xf]
      %v883 = vlaneseq
      %v884 = vshrl.u32 %v883, 7
      %v885 = vsub.s32 0, %v884
      %v886 = vrot.slane %v726, %v885
      %v888 = vmul.f32 %v881, %v886
      %v889 = vadd.f32 %v880, %v888
      %v890 = vld [vmem:[#allocation2 + $0x19] sm:$0xf]
      %v892 = vlaneseq
      %v893 = vshrl.u32 %v892, 7
      %v894 = vsub.s32 0, %v893
      %v895 = vrot.slane %v728, %v894
      %v897 = vmul.f32 %v890, %v895
      %v898 = vadd.f32 %v889, %v897
      %v899 = vld [vmem:[#allocation2 + $0x1a] sm:$0xf]
      %v901 = vlaneseq
      %v902 = vshrl.u32 %v901, 7
      %v903 = vsub.s32 0, %v902
      %v904 = vrot.slane %v730, %v903
      %v906 = vmul.f32 %v899, %v904
      %v907 = vadd.f32 %v898, %v906
      %v908 = vld [vmem:[#allocation2 + $0x1b] sm:$0xf]
      %v910 = vlaneseq
      %v911 = vshrl.u32 %v910, 7
      %v912 = vsub.s32 0, %v911
      %v913 = vrot.slane %v732, %v912
      %v915 = vmul.f32 %v908, %v913
      %v916 = vadd.f32 %v907, %v915
      %v917 = vld [vmem:[#allocation2 + $0x1c] sm:$0xf]
      %v919 = vlaneseq
      %v920 = vshrl.u32 %v919, 7
      %v921 = vsub.s32 0, %v920
      %v922 = vrot.slane %v734, %v921
      %v924 = vmul.f32 %v917, %v922
      %v925 = vadd.f32 %v916, %v924
      %v926 = vld [vmem:[#allocation2 + $0x20] sm:$0xf]
      %v928 = vlaneseq
      %v929 = vshrl.u32 %v928, 7
      %v930 = vsub.s32 0, %v929
      %v931 = vrot.slane %v736, %v930
      %v933 = vmul.f32 %v926, %v931
      %v934 = vadd.f32 %v925, %v933
      %v935 = vld [vmem:[#allocation2 + $0x21] sm:$0xf]
      %v937 = vlaneseq
      %v938 = vshrl.u32 %v937, 7
      %v939 = vsub.s32 0, %v938
      %v940 = vrot.slane %v738, %v939
      %v942 = vmul.f32 %v935, %v940
      %v943 = vadd.f32 %v934, %v942
      %v944 = vld [vmem:[#allocation2 + $0x22] sm:$0xf]
      %v946 = vlaneseq
      %v947 = vshrl.u32 %v946, 7
      %v948 = vsub.s32 0, %v947
      %v949 = vrot.slane %v740, %v948
      %v951 = vmul.f32 %v944, %v949
      %v952 = vadd.f32 %v943, %v951
      %v953 = vld [vmem:[#allocation2 + $0x23] sm:$0xf]
      %v955 = vlaneseq
      %v956 = vshrl.u32 %v955, 7
      %v957 = vsub.s32 0, %v956
      %v958 = vrot.slane %v742, %v957
      %v960 = vmul.f32 %v953, %v958
      %v961 = vadd.f32 %v952, %v960
      %v962 = vld [vmem:[#allocation2 + $0x24] sm:$0xf]
      %v964 = vlaneseq
      %v965 = vshrl.u32 %v964, 7
      %v966 = vsub.s32 0, %v965
      %v967 = vrot.slane %v744, %v966
      %v969 = vmul.f32 %v962, %v967
      %v970 = vadd.f32 %v961, %v969
      %v972 = vlaneseq
      %v973 = vshrl.u32 %v972, 7
      %v974 = vsub.s32 0, %v973
      %v975 = vrot.slane %v745, %v974
      %v977 = vadd.f32 %v970, %v975
      %v978 = vadd.f32 %v977, 3.0
      %v979 = vmax.f32 %v978, 0.0
      %v980 = vmin.f32 %v979, 6.0
      %v981 = vmul.f32 %v977, %v980
      %v982 = vmul.f32 %v981, 0.16666667
      %vm983 = vcmask 584704
      %984 = vst.msk [vmem:[#allocation3] sm:$0xf] %vm983, %v982
      %v985 = vld [vmem:[#allocation2 + $0x8] sm:$0xf]
      %v986 = vmul.f32 %v985, %v751
      %v987 = vadd.f32 %v986, 0.0
      %v988 = vld [vmem:[#allocation2 + $0x9] sm:$0xf]
      %v989 = vmul.f32 %v988, %v760
      %v990 = vadd.f32 %v987, %v989
      %v991 = vld [vmem:[#allocation2 + $0xa] sm:$0xf]
      %v992 = vmul.f32 %v991, %v769
      %v993 = vadd.f32 %v990, %v992
      %v994 = vld [vmem:[#allocation2 + $0xb] sm:$0xf]
      %v995 = vmul.f32 %v994, %v778
      %v996 = vadd.f32 %v993, %v995
      %v997 = vld [vmem:[#allocation2 + $0xc] sm:$0xf]
      %v998 = vmul.f32 %v997, %v787
      %v999 = vadd.f32 %v996, %v998
      %v1000 = vld [vmem:[#allocation2 + $0x10] sm:$0xf]
      %v1001 = vmul.f32 %v1000, %v796
      %v1002 = vadd.f32 %v999, %v1001
      %v1003 = vld [vmem:[#allocation2 + $0x11] sm:$0xf]
      %v1004 = vmul.f32 %v1003, %v805
      %v1005 = vadd.f32 %v1002, %v1004
      %v1006 = vld [vmem:[#allocation2 + $0x12] sm:$0xf]
      %v1007 = vmul.f32 %v1006, %v814
      %v1008 = vadd.f32 %v1005, %v1007
      %v1009 = vld [vmem:[#allocation2 + $0x13] sm:$0xf]
      %v1010 = vmul.f32 %v1009, %v823
      %v1011 = vadd.f32 %v1008, %v1010
      %v1012 = vld [vmem:[#allocation2 + $0x14] sm:$0xf]
      %v1013 = vmul.f32 %v1012, %v832
      %v1014 = vadd.f32 %v1011, %v1013
      %v1015 = vld [vmem:[#allocation2 + $0x18] sm:$0xf]
      %v1016 = vmul.f32 %v1015, %v841
      %v1017 = vadd.f32 %v1014, %v1016
      %v1018 = vld [vmem:[#allocation2 + $0x19] sm:$0xf]
      %v1019 = vmul.f32 %v1018, %v850
      %v1020 = vadd.f32 %v1017, %v1019
      %v1021 = vld [vmem:[#allocation2 + $0x1a] sm:$0xf]
      %v1022 = vmul.f32 %v1021, %v859
      %v1023 = vadd.f32 %v1020, %v1022
      %v1024 = vld [vmem:[#allocation2 + $0x1b] sm:$0xf]
      %v1025 = vmul.f32 %v1024, %v868
      %v1026 = vadd.f32 %v1023, %v1025
      %v1027 = vld [vmem:[#allocation2 + $0x1c] sm:$0xf]
      %v1028 = vmul.f32 %v1027, %v877
      %v1029 = vadd.f32 %v1026, %v1028
      %v1030 = vld [vmem:[#allocation2 + $0x20] sm:$0xf]
      %v1031 = vmul.f32 %v1030, %v886
      %v1032 = vadd.f32 %v1029, %v1031
      %v1033 = vld [vmem:[#allocation2 + $0x21] sm:$0xf]
      %v1034 = vmul.f32 %v1033, %v895
      %v1035 = vadd.f32 %v1032, %v1034
      %v1036 = vld [vmem:[#allocation2 + $0x22] sm:$0xf]
      %v1037 = vmul.f32 %v1036, %v904
      %v1038 = vadd.f32 %v1035, %v1037
      %v1039 = vld [vmem:[#allocation2 + $0x23] sm:$0xf]
      %v1040 = vmul.f32 %v1039, %v913
      %v1041 = vadd.f32 %v1038, %v1040
      %v1042 = vld [vmem:[#allocation2 + $0x24] sm:$0xf]
      %v1043 = vmul.f32 %v1042, %v922
      %v1044 = vadd.f32 %v1041, %v1043
      %v1045 = vld [vmem:[#allocation2 + $0x28] sm:$0xf]
      %v1046 = vmul.f32 %v1045, %v931
      %v1047 = vadd.f32 %v1044, %v1046
      %v1048 = vld [vmem:[#allocation2 + $0x29] sm:$0xf]
      %v1049 = vmul.f32 %v1048, %v940
      %v1050 = vadd.f32 %v1047, %v1049
      %v1051 = vld [vmem:[#allocation2 + $0x2a] sm:$0xf]
      %v1052 = vmul.f32 %v1051, %v949
      %v1053 = vadd.f32 %v1050, %v1052
      %v1054 = vld [vmem:[#allocation2 + $0x2b] sm:$0xf]
      %v1055 = vmul.f32 %v1054, %v958
      %v1056 = vadd.f32 %v1053, %v1055
      %v1057 = vld [vmem:[#allocation2 + $0x2c] sm:$0xf]
      %v1058 = vmul.f32 %v1057, %v967
      %v1059 = vadd.f32 %v1056, %v1058
      %v1060 = vadd.f32 %v1059, %v975
      %v1061 = vadd.f32 %v1060, 3.0
      %v1062 = vmax.f32 %v1061, 0.0
      %v1063 = vmin.f32 %v1062, 6.0
      %v1064 = vmul.f32 %v1060, %v1063
      %v1065 = vmul.f32 %v1064, 0.16666667
      %1066 = vst.msk [vmem:[#allocation3 + $0x4] sm:$0xf] %vm983, %v1065
      %v1067 = vld [vmem:[#allocation2 + $0x10] sm:$0xf]
      %v1068 = vmul.f32 %v1067, %v751
      %v1069 = vadd.f32 %v1068, 0.0
      %v1070 = vld [vmem:[#allocation2 + $0x11] sm:$0xf]
      %v1071 = vmul.f32 %v1070, %v760
      %v1072 = vadd.f32 %v1069, %v1071
      %v1073 = vld [vmem:[#allocation2 + $0x12] sm:$0xf]
      %v1074 = vmul.f32 %v1073, %v769
      %v1075 = vadd.f32 %v1072, %v1074
      %v1076 = vld [vmem:[#allocation2 + $0x13] sm:$0xf]
      %v1077 = vmul.f32 %v1076, %v778
      %v1078 = vadd.f32 %v1075, %v1077
      %v1079 = vld [vmem:[#allocation2 + $0x14] sm:$0xf]
      %v1080 = vmul.f32 %v1079, %v787
      %v1081 = vadd.f32 %v1078, %v1080
      %v1082 = vld [vmem:[#allocation2 + $0x18] sm:$0xf]
      %v1083 = vmul.f32 %v1082, %v796
      %v1084 = vadd.f32 %v1081, %v1083
      %v1085 = vld [vmem:[#allocation2 + $0x19] sm:$0xf]
      %v1086 = vmul.f32 %v1085, %v805
      %v1087 = vadd.f32 %v1084, %v1086
      %v1088 = vld [vmem:[#allocation2 + $0x1a] sm:$0xf]
      %v1089 = vmul.f32 %v1088, %v814
      %v1090 = vadd.f32 %v1087, %v1089
      %v1091 = vld [vmem:[#allocation2 + $0x1b] sm:$0xf]
      %v1092 = vmul.f32 %v1091, %v823
      %v1093 = vadd.f32 %v1090, %v1092
      %v1094 = vld [vmem:[#allocation2 + $0x1c] sm:$0xf]
      %v1095 = vmul.f32 %v1094, %v832
      %v1096 = vadd.f32 %v1093, %v1095
      %v1097 = vld [vmem:[#allocation2 + $0x20] sm:$0xf]
      %v1098 = vmul.f32 %v1097, %v841
      %v1099 = vadd.f32 %v1096, %v1098
      %v1100 = vld [vmem:[#allocation2 + $0x21] sm:$0xf]
      %v1101 = vmul.f32 %v1100, %v850
      %v1102 = vadd.f32 %v1099, %v1101
      %v1103 = vld [vmem:[#allocation2 + $0x22] sm:$0xf]
      %v1104 = vmul.f32 %v1103, %v859
      %v1105 = vadd.f32 %v1102, %v1104
      %v1106 = vld [vmem:[#allocation2 + $0x23] sm:$0xf]
      %v1107 = vmul.f32 %v1106, %v868
      %v1108 = vadd.f32 %v1105, %v1107
      %v1109 = vld [vmem:[#allocation2 + $0x24] sm:$0xf]
      %v1110 = vmul.f32 %v1109, %v877
      %v1111 = vadd.f32 %v1108, %v1110
      %v1112 = vld [vmem:[#allocation2 + $0x28] sm:$0xf]
      %v1113 = vmul.f32 %v1112, %v886
      %v1114 = vadd.f32 %v1111, %v1113
      %v1115 = vld [vmem:[#allocation2 + $0x29] sm:$0xf]
      %v1116 = vmul.f32 %v1115, %v895
      %v1117 = vadd.f32 %v1114, %v1116
      %v1118 = vld [vmem:[#allocation2 + $0x2a] sm:$0xf]
      %v1119 = vmul.f32 %v1118, %v904
      %v1120 = vadd.f32 %v1117, %v1119
      %v1121 = vld [vmem:[#allocation2 + $0x2b] sm:$0xf]
      %v1122 = vmul.f32 %v1121, %v913
      %v1123 = vadd.f32 %v1120, %v1122
      %v1124 = vld [vmem:[#allocation2 + $0x2c] sm:$0xf]
      %v1125 = vmul.f32 %v1124, %v922
      %v1126 = vadd.f32 %v1123, %v1125
      %v1127 = vld [vmem:[#allocation2 + $0x30] sm:$0xf]
      %v1128 = vmul.f32 %v1127, %v931
      %v1129 = vadd.f32 %v1126, %v1128
      %v1130 = vld [vmem:[#allocation2 + $0x31] sm:$0xf]
      %v1131 = vmul.f32 %v1130, %v940
      %v1132 = vadd.f32 %v1129, %v1131
      %v1133 = vld [vmem:[#allocation2 + $0x32] sm:$0xf]
      %v1134 = vmul.f32 %v1133, %v949
      %v1135 = vadd.f32 %v1132, %v1134
      %v1136 = vld [vmem:[#allocation2 + $0x33] sm:$0xf]
      %v1137 = vmul.f32 %v1136, %v958
      %v1138 = vadd.f32 %v1135, %v1137
      %v1139 = vld [vmem:[#allocation2 + $0x34] sm:$0xf]
      %v1140 = vmul.f32 %v1139, %v967
      %v1141 = vadd.f32 %v1138, %v1140
      %v1142 = vadd.f32 %v1141, %v975
      %v1143 = vadd.f32 %v1142, 3.0
      %v1144 = vmax.f32 %v1143, 0.0
      %v1145 = vmin.f32 %v1144, 6.0
      %v1146 = vmul.f32 %v1142, %v1145
      %v1147 = vmul.f32 %v1146, 0.16666667
      %1148 = vst.msk [vmem:[#allocation3 + $0x8] sm:$0xf] %vm983, %v1147
      %v1149 = vld [vmem:[#allocation2 + $0x18] sm:$0xf]
      %v1150 = vmul.f32 %v1149, %v751
      %v1151 = vadd.f32 %v1150, 0.0
      %v1152 = vld [vmem:[#allocation2 + $0x19] sm:$0xf]
      %v1153 = vmul.f32 %v1152, %v760
      %v1154 = vadd.f32 %v1151, %v1153
      %v1155 = vld [vmem:[#allocation2 + $0x1a] sm:$0xf]
      %v1156 = vmul.f32 %v1155, %v769
      %v1157 = vadd.f32 %v1154, %v1156
      %v1158 = vld [vmem:[#allocation2 + $0x1b] sm:$0xf]
      %v1159 = vmul.f32 %v1158, %v778
      %v1160 = vadd.f32 %v1157, %v1159
      %v1161 = vld [vmem:[#allocation2 + $0x1c] sm:$0xf]
      %v1162 = vmul.f32 %v1161, %v787
      %v1163 = vadd.f32 %v1160, %v1162
      %v1164 = vld [vmem:[#allocation2 + $0x20] sm:$0xf]
      %v1165 = vmul.f32 %v1164, %v796
      %v1166 = vadd.f32 %v1163, %v1165
      %v1167 = vld [vmem:[#allocation2 + $0x21] sm:$0xf]
      %v1168 = vmul.f32 %v1167, %v805
      %v1169 = vadd.f32 %v1166, %v1168
      %v1170 = vld [vmem:[#allocation2 + $0x22] sm:$0xf]
      %v1171 = vmul.f32 %v1170, %v814
      %v1172 = vadd.f32 %v1169, %v1171
      %v1173 = vld [vmem:[#allocation2 + $0x23] sm:$0xf]
      %v1174 = vmul.f32 %v1173, %v823
      %v1175 = vadd.f32 %v1172, %v1174
      %v1176 = vld [vmem:[#allocation2 + $0x24] sm:$0xf]
      %v1177 = vmul.f32 %v1176, %v832
      %v1178 = vadd.f32 %v1175, %v1177
      %v1179 = vld [vmem:[#allocation2 + $0x28] sm:$0xf]
      %v1180 = vmul.f32 %v1179, %v841
      %v1181 = vadd.f32 %v1178, %v1180
      %v1182 = vld [vmem:[#allocation2 + $0x29] sm:$0xf]
      %v1183 = vmul.f32 %v1182, %v850
      %v1184 = vadd.f32 %v1181, %v1183
      %v1185 = vld [vmem:[#allocation2 + $0x2a] sm:$0xf]
      %v1186 = vmul.f32 %v1185, %v859
      %v1187 = vadd.f32 %v1184, %v1186
      %v1188 = vld [vmem:[#allocation2 + $0x2b] sm:$0xf]
      %v1189 = vmul.f32 %v1188, %v868
      %v1190 = vadd.f32 %v1187, %v1189
      %v1191 = vld [vmem:[#allocation2 + $0x2c] sm:$0xf]
      %v1192 = vmul.f32 %v1191, %v877
      %v1193 = vadd.f32 %v1190, %v1192
      %v1194 = vld [vmem:[#allocation2 + $0x30] sm:$0xf]
      %v1195 = vmul.f32 %v1194, %v886
      %v1196 = vadd.f32 %v1193, %v1195
      %v1197 = vld [vmem:[#allocation2 + $0x31] sm:$0xf]
      %v1198 = vmul.f32 %v1197, %v895
      %v1199 = vadd.f32 %v1196, %v1198
      %v1200 = vld [vmem:[#allocation2 + $0x32] sm:$0xf]
      %v1201 = vmul.f32 %v1200, %v904
      %v1202 = vadd.f32 %v1199, %v1201
      %v1203 = vld [vmem:[#allocation2 + $0x33] sm:$0xf]
      %v1204 = vmul.f32 %v1203, %v913
      %v1205 = vadd.f32 %v1202, %v1204
      %v1206 = vld [vmem:[#allocation2 + $0x34] sm:$0xf]
      %v1207 = vmul.f32 %v1206, %v922
      %v1208 = vadd.f32 %v1205, %v1207
      %v1209 = vld [vmem:[#allocation2 + $0x38] sm:$0xf]
      %v1210 = vmul.f32 %v1209, %v931
      %v1211 = vadd.f32 %v1208, %v1210
      %v1212 = vld [vmem:[#allocation2 + $0x39] sm:$0xf]
      %v1213 = vmul.f32 %v1212, %v940
      %v1214 = vadd.f32 %v1211, %v1213
      %v1215 = vld [vmem:[#allocation2 + $0x3a] sm:$0xf]
      %v1216 = vmul.f32 %v1215, %v949
      %v1217 = vadd.f32 %v1214, %v1216
      %v1218 = vld [vmem:[#allocation2 + $0x3b] sm:$0xf]
      %v1219 = vmul.f32 %v1218, %v958
      %v1220 = vadd.f32 %v1217, %v1219
      %v1221 = vld [vmem:[#allocation2 + $0x3c] sm:$0xf]
      %v1222 = vmul.f32 %v1221, %v967
      %v1223 = vadd.f32 %v1220, %v1222
      %v1224 = vadd.f32 %v1223, %v975
      %v1225 = vadd.f32 %v1224, 3.0
      %v1226 = vmax.f32 %v1225, 0.0
      %v1227 = vmin.f32 %v1226, 6.0
      %v1228 = vmul.f32 %v1224, %v1227
      %v1229 = vmul.f32 %v1228, 0.16666667
      %1230 = vst.msk [vmem:[#allocation3 + $0xc] sm:$0xf] %vm983, %v1229
      %v1231 = vld [vmem:[#allocation3] sm:$0xff]
      %v1232 = vld [vmem:[#allocation3 + $0x8] sm:$0xff]
      %v1233 = vsel %vm687, %v1231, 0.0
      %v1234 = vsel %vm687, %v1232, 0.0
      %v1235 = vadd.f32 %v1233, %v1234
      %v1236 = vrot.slane %v1235, 4
      %v1237 = vadd.f32 %v1235, %v1236
      %v1238 = vrot.slane %v1237, 2
      %v1239 = vadd.f32 %v1237, %v1238
      %v1240 = vrot.slane %v1239, 1
      %v1241 = vadd.f32 %v1239, %v1240
      %v1242 = vrcp.pop 16.0
      %v1243 = vmul.f32 %v1241, %v1242
      %v1244 = vld [vmem:[%s6] sm:$0xff]
      %v1245 = vld [vmem:[%s6 + $0x8] sm:$0xff]
      %v1246 = vld [vmem:[%s6 + $0x10] sm:$0xff]
      %v1247 = vld [vmem:[%s6 + $0x18] sm:$0xff]
      %v1248 = vld [vmem:[%s6 + $0x20] sm:$0xff]
      %v1249 = vld [vmem:[%s6 + $0x28] sm:$0xff]
      %v1250 = vld [vmem:[%s6 + $0x30] sm:$0xff]
      %v1251 = vld [vmem:[%s6 + $0x38] sm:$0xff]
      %v1252 = vld [vmem:[%s6 + $0x40] sm:$0xff]
      %v1253 = vld [vmem:[%s7] sm:$0x1]
      %v1255 = vsel %vm687, %v1243, 0
      %1257 = vmatprep.subr.mxu0 0.0
      %1258 = vmatpush1.msra.mxu0 0.0
      %1259 = vmatprep.subr.mxu0 0.0
      %1260 = vmatpush1.msra.mxu0 0.0
      %1261 = vmatprep.subr.mxu0 0.0
      %1262 = vmatpush1.msra.mxu0 0.0
      %1263 = vmatprep.subr.mxu0 0.0
      %1264 = vmatpush1.msra.mxu0 0.0
      %1265 = vmatprep.subr.mxu0 0.0
      %1266 = vmatpush1.msra.mxu0 0.0
      %1267 = vmatprep.subr.mxu0 0.0
      %1268 = vmatpush1.msra.mxu0 0.0
      %1269 = vmatprep.subr.mxu0 0.0
      %1270 = vmatpush1.msra.mxu0 0.0
      %1271 = vmatprep.subr.mxu0 0.0
      %1272 = vmatpush1.msra.mxu0 %v1252
      %1273 = vmatprep.subr.mxu0 0.0
      %1274 = vmatpush1.msra.mxu0 %v1251
      %1275 = vmatprep.subr.mxu0 0.0
      %1276 = vmatpush1.msra.mxu0 %v1250
      %1277 = vmatprep.subr.mxu0 0.0
      %1278 = vmatpush1.msra.mxu0 %v1249
      %1279 = vmatprep.subr.mxu0 0.0
      %1280 = vmatpush1.msra.mxu0 %v1248
      %1281 = vmatprep.subr.mxu0 0.0
      %1282 = vmatpush1.msra.mxu0 %v1247
      %1283 = vmatprep.subr.mxu0 0.0
      %1284 = vmatpush1.msra.mxu0 %v1246
      %1285 = vmatprep.subr.mxu0 0.0
      %1286 = vmatpush1.msra.mxu0 %v1245
      %1287 = vmatprep.subr.mxu0 0.0
      %1288 = vmatpush1.msra.mxu0 %v1244
      %1289 = vmatprep.subr.mxu0 0.0
      %1290 = vmatpush2.msra.mxu0 0.0
      %1291 = vmatprep.subr.mxu0 0.0
      %1292 = vmatpush2.msra.mxu0 0.0
      %1293 = vmatprep.subr.mxu0 0.0
      %1294 = vmatpush2.msra.mxu0 0.0
      %1295 = vmatprep.subr.mxu0 0.0
      %1296 = vmatpush2.msra.mxu0 0.0
      %1297 = vmatprep.subr.mxu0 0.0
      %1298 = vmatpush2.msra.mxu0 0.0
      %1299 = vmatprep.subr.mxu0 0.0
      %1300 = vmatpush2.msra.mxu0 0.0
      %1301 = vmatprep.subr.mxu0 0.0
      %1302 = vmatpush2.msra.mxu0 0.0
      %1303 = vmatprep.subr.mxu0 0.0
      %1304 = vmatpush2.msra.mxu0 0.0
      %1305 = vmatprep.subr.mxu0 0.0
      %1306 = vmatpush2.msra.mxu0 0.0
      %1307 = vmatprep.subr.mxu0 0.0
      %1308 = vmatpush2.msra.mxu0 0.0
      %1309 = vmatprep.subr.mxu0 0.0
      %1310 = vmatpush2.msra.mxu0 0.0
      %1311 = vmatprep.subr.mxu0 0.0
      %1312 = vmatpush2.msra.mxu0 0.0
      %1313 = vmatprep.subr.mxu0 0.0
      %1314 = vmatpush2.msra.mxu0 0.0
      %1315 = vmatprep.subr.mxu0 0.0
      %1316 = vmatpush2.msra.mxu0 0.0
      %1317 = vmatprep.subr.mxu0 0.0
      %1318 = vmatpush2.msra.mxu0 0.0
      %1319 = vmatprep.subr.mxu0 0.0
      %1320 = vmatpush2.msra.mxu0 0.0
      %1321 = vmatprep.mubr.f32.mxu0 0.0
      %1322 = vmatmul.mubr.f32.gmra.mxu0 %v1255
      %v1323 = vpop.f32.mrf.mxu0
      %v1324 = vadd.f32 %v1253, %v1323
      %v1325 = vpop.f32.mrf.mxu0
      %1326 = vdwg.mxu0
      %v1327 = vmax.f32 %v1324, 0.0
      %v1328 = vld [vmem:[%s8] sm:$0xff]
      %v1329 = vld [vmem:[%s8 + $0x8] sm:$0xff]
      %v1330 = vld [vmem:[%s8 + $0x10] sm:$0xff]
      %v1331 = vld [vmem:[%s9] sm:$0x1]
      %v1333 = vsel %vm509, %v1327, 0
      %1335 = vmatprep.subr.mxu0 0.0
      %1336 = vmatpush1.msra.mxu0 0.0
      %1337 = vmatprep.subr.mxu0 0.0
      %1338 = vmatpush1.msra.mxu0 0.0
      %1339 = vmatprep.subr.mxu0 0.0
      %1340 = vmatpush1.msra.mxu0 0.0
      %1341 = vmatprep.subr.mxu0 0.0
      %1342 = vmatpush1.msra.mxu0 0.0
      %1343 = vmatprep.subr.mxu0 0.0
      %1344 = vmatpush1.msra.mxu0 0.0
      %1345 = vmatprep.subr.mxu0 0.0
      %1346 = vmatpush1.msra.mxu0 0.0
      %1347 = vmatprep.subr.mxu0 0.0
      %1348 = vmatpush1.msra.mxu0 0.0
      %1349 = vmatprep.subr.mxu0 0.0
      %1350 = vmatpush1.msra.mxu0 0.0
      %1351 = vmatprep.subr.mxu0 0.0
      %1352 = vmatpush1.msra.mxu0 0.0
      %1353 = vmatprep.subr.mxu0 0.0
      %1354 = vmatpush1.msra.mxu0 0.0
      %1355 = vmatprep.subr.mxu0 0.0
      %1356 = vmatpush1.msra.mxu0 0.0
      %1357 = vmatprep.subr.mxu0 0.0
      %1358 = vmatpush1.msra.mxu0 0.0
      %1359 = vmatprep.subr.mxu0 0.0
      %1360 = vmatpush1.msra.mxu0 0.0
      %1361 = vmatprep.subr.mxu0 0.0
      %1362 = vmatpush1.msra.mxu0 %v1330
      %1363 = vmatprep.subr.mxu0 0.0
      %1364 = vmatpush1.msra.mxu0 %v1329
      %1365 = vmatprep.subr.mxu0 0.0
      %1366 = vmatpush1.msra.mxu0 %v1328
      %1367 = vmatprep.subr.mxu0 0.0
      %1368 = vmatpush2.msra.mxu0 0.0
      %1369 = vmatprep.subr.mxu0 0.0
      %1370 = vmatpush2.msra.mxu0 0.0
      %1371 = vmatprep.subr.mxu0 0.0
      %1372 = vmatpush2.msra.mxu0 0.0
      %1373 = vmatprep.subr.mxu0 0.0
      %1374 = vmatpush2.msra.mxu0 0.0
      %1375 = vmatprep.subr.mxu0 0.0
      %1376 = vmatpush2.msra.mxu0 0.0
      %1377 = vmatprep.subr.mxu0 0.0
      %1378 = vmatpush2.msra.mxu0 0.0
      %1379 = vmatprep.subr.mxu0 0.0
      %1380 = vmatpush2.msra.mxu0 0.0
      %1381 = vmatprep.subr.mxu0 0.0
      %1382 = vmatpush2.msra.mxu0 0.0
      %1383 = vmatprep.subr.mxu0 0.0
      %1384 = vmatpush2.msra.mxu0 0.0
      %1385 = vmatprep.subr.mxu0 0.0
      %1386 = vmatpush2.msra.mxu0 0.0
      %1387 = vmatprep.subr.mxu0 0.0
      %1388 = vmatpush2.msra.mxu0 0.0
      %1389 = vmatprep.subr.mxu0 0.0
      %1390 = vmatpush2.msra.mxu0 0.0
      %1391 = vmatprep.subr.mxu0 0.0
      %1392 = vmatpush2.msra.mxu0 0.0
      %1393 = vmatprep.subr.mxu0 0.0
      %1394 = vmatpush2.msra.mxu0 0.0
      %1395 = vmatprep.subr.mxu0 0.0
      %1396 = vmatpush2.msra.mxu0 0.0
      %1397 = vmatprep.subr.mxu0 0.0
      %1398 = vmatpush2.msra.mxu0 0.0
      %1399 = vmatprep.mubr.f32.mxu0 0.0
      %1400 = vmatmul.mubr.f32.gmra.mxu0 %v1333
      %v1401 = vpop.f32.mrf.mxu0
      %v1402 = vadd.f32 %v1331, %v1401
      %v1403 = vpop.f32.mrf.mxu0
      %1404 = vdwg.mxu0
      %v1405 = vadd.f32 %v1402, 3.0
      %v1406 = vmax.f32 %v1405, 0.0
      %v1407 = vmin.f32 %v1406, 6.0
      %v1408 = vmul.f32 %v1407, 0.16666667
      %v1409 = vlaneseq
      %v1410 = vshrl.u32 %v1409, 7
      %v1411 = vsub.s32 0, %v1410
      %v1412 = vrot.slane %v1408, %v1411
      %v1413 = vmul.f32 %v1231, %v1412
      %v1414 = vmul.f32 %v1232, %v1412
      %v1415 = vpack.c.bf16 %v1414, %v1413
      %v1416 = vld [vmem:[%s10] sm:$0xf]
      %v1417 = vld [vmem:[%s10 + $0x4] sm:$0xf]
      %v1418 = vld [vmem:[%s10 + $0x8] sm:$0xf]
      %v1419 = vld [vmem:[%s10 + $0xc] sm:$0xf]
      %v1420 = vld [vmem:[%s10 + $0x10] sm:$0xf]
      %v1421 = vld [vmem:[%s10 + $0x14] sm:$0xf]
      %v1422 = vld [vmem:[%s10 + $0x18] sm:$0xf]
      %v1423 = vld [vmem:[%s10 + $0x1c] sm:$0xf]
      %v1424 = vld [vmem:[%s10 + $0x20] sm:$0xf]
      %v1425 = vld [vmem:[%s11] sm:$0x1]
      %v1427 = vlaneseq
      %v1428 = vshrl.u32 %v1427, 7
      %v1429 = vsub.s32 0, %v1428
      %v1430 = vrot.slane %v1425, %v1429
      %v1441 = vunpack.c.l.b16 %v1416
      %v1442 = vunpack.c.l.b16 %v1417
      %v1443 = vunpack.c.l.b16 %v1418
      %v1444 = vunpack.c.l.b16 %v1419
      %v1445 = vunpack.c.l.b16 %v1420
      %v1446 = vunpack.c.l.b16 %v1421
      %v1447 = vunpack.c.l.b16 %v1422
      %v1448 = vunpack.c.l.b16 %v1423
      %v1449 = vunpack.c.l.b16 %v1424
      %v1450 = vpack.c.b16 %v1442, %v1441
      %v1451 = vpack.c.b16 %v1444, %v1443
      %v1452 = vpack.c.b16 %v1446, %v1445
      %v1453 = vpack.c.b16 %v1448, %v1447
      %v1454 = vpack.c.b16 %v1449, %v1449
      %v1460 = vsel %vm687, %v1415, 0
      %v1463 = vsel %vm522, %v1454, 0
      %1465 = vmatprep.subr.bf16.mxu0 0
      %1466 = vmatpush1.bf16.msra.mxu0 0
      %1467 = vmatprep.subr.bf16.mxu0 0
      %1468 = vmatpush1.bf16.msra.mxu0 0
      %1469 = vmatprep.subr.bf16.mxu0 0
      %1470 = vmatpush1.bf16.msra.mxu0 0
      %1471 = vmatprep.subr.bf16.mxu0 0
      %1472 = vmatpush1.bf16.msra.mxu0 %v1463
      %1473 = vmatprep.subr.bf16.mxu0 0
      %1474 = vmatpush1.bf16.msra.mxu0 %v1453
      %1475 = vmatprep.subr.bf16.mxu0 0
      %1476 = vmatpush1.bf16.msra.mxu0 %v1452
      %1477 = vmatprep.subr.bf16.mxu0 0
      %1478 = vmatpush1.bf16.msra.mxu0 %v1451
      %1479 = vmatprep.subr.bf16.mxu0 0
      %1480 = vmatpush1.bf16.msra.mxu0 %v1450
      %1481 = vmatprep.subr.bf16.mxu0 0
      %1482 = vmatpush2.bf16.msra.mxu0 0
      %1483 = vmatprep.subr.bf16.mxu0 0
      %1484 = vmatpush2.bf16.msra.mxu0 0
      %1485 = vmatprep.subr.bf16.mxu0 0
      %1486 = vmatpush2.bf16.msra.mxu0 0
      %1487 = vmatprep.subr.bf16.mxu0 0
      %1488 = vmatpush2.bf16.msra.mxu0 0
      %1489 = vmatprep.subr.bf16.mxu0 0
      %1490 = vmatpush2.bf16.msra.mxu0 0
      %1491 = vmatprep.subr.bf16.mxu0 0
      %1492 = vmatpush2.bf16.msra.mxu0 0
      %1493 = vmatprep.subr.bf16.mxu0 0
      %1494 = vmatpush2.bf16.msra.mxu0 0
      %1495 = vmatprep.subr.bf16.mxu0 0
      %1496 = vmatpush2.bf16.msra.mxu0 0
      %1497 = vmatprep.mubr.bf16.mxu0 0
      %1498 = vmatmul.mubr.bf16.gmra.mxu0 %v1460
      %v1499 = vpop.f32.mrf.mxu0
      %v1500 = vadd.f32 %v1430, %v1499
      %v1501 = vpop.f32.mrf.mxu0
      %v1502 = vpop.f32.mrf.mxu0
      %v1503 = vadd.f32 %v1430, %v1502
      %v1504 = vpop.f32.mrf.mxu0
      %1505 = vdwg.mxu0
      %v1506 = vld [vmem:[%s455] sm:$0xf]
      %v1507 = vld [vmem:[%s455 + $0x4] sm:$0xf]
      %v1508 = vunpack.c.l.bf16 %v1506
      %v1509 = vunpack.c.l.bf16 %v1507
      %v1510 = vadd.f32 %v1500, %v1508
      %v1511 = vadd.f32 %v1503, %v1509
      %v1512 = vpack.c.bf16 %v1511, %v1510
      %v1514 = vunpack.c.l.b16 %v1512
      %v1515 = vunpack.c.h.b16 %v1512
      %v1516 = vpack.c.b16 %v1514, %v1514
      %v1517 = vpack.c.b16 %v1515, %v1515
      %vm1520 = vcmask 191488
      %1521 = vst.msk [vmem:[%s460] sm:$0xf] %vm1520, %v1516
      %1522 = vst.msk [vmem:[%s460 + $0x4] sm:$0xf] %vm1520, %v1517
      %p1523 = scmp.lt.s32.totalorder %s24, 1
      %s1524 = scalar_select %p1523, %s24, 1
      %s1525 = smul.addr %s1524, 2
      %s1526 = smul.addr %s1525, 4
      %s1527 = scalar_lea.vmem %s13, %s1526
      // Predicated region
      $region73: #{_lambda_.9} parent=71 // pred_check
        %p1528 = pneg %p325
      $region74: #{_lambda_.9} parent=71 // pred_check_branch
        %1530 = sbr.rel (%p1528) target = $region76
      $region75: #{_lambda_.9} parent=71 // pred_region
        _
      $region76: #{_lambda_.9} parent=71 // pred_fallthru
        _
    $region72: #{_lambda_.9} parent=5 // pred_fallthru
      _
    %p1531 = scmp.le.s32.totalorder 2, %s19
    // Predicated region
    $region77: #{_lambda_.9} parent=5 // pred_check
      %p1532 = pneg %p1531
    $region78: #{_lambda_.9} parent=5 // pred_check_branch
      %1534 = sbr.rel (%p1532) target = $region80
    $region79: #{_lambda_.9} parent=5 // pred_region
      %s1535 = ssub.s32 %s19, 2
      // Predicated region
      $region81: #{_lambda_.9} parent=79 // pred_check
        %p1536 = pneg %p331
      $region82: #{_lambda_.9} parent=79 // pred_check_branch
        %1538 = sbr.rel (%p1536) target = $region84
      $region83: #{_lambda_.9} parent=79 // pred_region
        %p1539 = scmp.lt.s32.totalorder %s25, 1
        %s1540 = scalar_select %p1539, %s25, 1
        %s1541 = smul.addr %s1540, 2
        %s1542 = smul.addr %s1541, 4
        %s1543 = scalar_lea.vmem %s13, %s1542
      $region84: #{_lambda_.9} parent=79 // pred_fallthru
        _
    $region80: #{_lambda_.9} parent=5 // pred_fallthru
      _
  $region6: #{_lambda_.9} parent=0 // loop_footer
    %s23 = sadd.s32 1, %s19
  $region7: #{_lambda_.9} parent=0 // loop_footer_branch
    %18 = sbr.rel target = $region3
  $region8: #{_lambda_.9} parent=0 // loop_exit
    _

</llo_original>
